<compile_context>
chip_gen: v5e
topology: v5e:2x2
jax: 0.10.0
libtpu: 0.0.40
codegen_flags: <defaults>
</compile_context>

<pallas_src>
import jax
import jax.numpy as jnp
from jax.experimental import pallas as pl
from jax.experimental.pallas import tpu as pltpu


# --------------------------------------------------------------------------- #
# Kernel
# --------------------------------------------------------------------------- #
def mlp_kernel(x_ref,
               w0_ref, b0_ref,
               w1_ref, b1_ref,
               w2_ref, b2_ref,
               w3_ref, b3_ref,
               o_ref):
    """Fused (Linear + ReLU) x3 + Linear.  bf16 MXU inputs, f32 accumulation."""
    def dense(h, w_ref, b_ref):
        return jnp.dot(h, w_ref[...], preferred_element_type=jnp.float32) + b_ref[...]

    h = x_ref[...]                                                      # bf16 (tile_b, n_feature)
    h = jnp.maximum(dense(h, w0_ref, b0_ref), 0.0).astype(jnp.bfloat16)
    h = jnp.maximum(dense(h, w1_ref, b1_ref), 0.0).astype(jnp.bfloat16)
    h = jnp.maximum(dense(h, w2_ref, b2_ref), 0.0).astype(jnp.bfloat16)
    o_ref[...] = dense(h, w3_ref, b3_ref).astype(o_ref.dtype)


# --------------------------------------------------------------------------- #
# One-time parameter preparation (hoisted out of the per-call hot path)
# --------------------------------------------------------------------------- #
def prepare_params(params, *, compute_dtype=jnp.bfloat16):
    """Cast weights to bf16 once and pad the final layer to 128 output lanes.

    Returns (prepped_params, n_output, n_out_pad).  Run this once per set of
    weights; `net_forward` then only touches the pre-converted arrays.
    """
    n_output = params["w3"].shape[1]
    n_out_pad = ((n_output + 127) // 128) * 128

    prepped = {
        "w0": params["w0"].astype(compute_dtype),
        "w1": params["w1"].astype(compute_dtype),
        "w2": params["w2"].astype(compute_dtype),
        "w3": jnp.zeros((params["w3"].shape[0], n_out_pad), compute_dtype
                        ).at[:, :n_output].set(params["w3"].astype(compute_dtype)),
        "b0": params["b0"].astype(jnp.float32),
        "b1": params["b1"].astype(jnp.float32),
        "b2": params["b2"].astype(jnp.float32),
        "b3": jnp.zeros((1, n_out_pad), jnp.float32
                        ).at[:, :n_output].set(params["b3"].astype(jnp.float32)),
    }
    # Materialize now so the cast/pad cost is paid once, not on first use.
    prepped = jax.tree_util.tree_map(jax.block_until_ready, prepped)
    return prepped, n_output, n_out_pad


def pick_tile_b(batch):
    """Largest MXU-aligned batch tile that still gives enough grid steps.

    Prefer >=8 steps (>=4 per TensorCore on v7x), then >=4, then >=2; never
    smaller than 128 or larger than 1024.
    """
    for min_steps in (8, 4, 2, 1):
        for t in (1024, 512, 256, 128):
            if batch >= min_steps * t:
                return t
    return 128


# --------------------------------------------------------------------------- #
# Forward wrapper
# --------------------------------------------------------------------------- #
def net_forward(x, prepped, n_output, *, tile_b=None):
    """Run the Net forward pass with a fused Pallas TPU kernel.

    x: (B, n_feature) float32
    prepped: output of prepare_params (bf16 weights, f32 biases, padded layer 3)
    """
    B, n_feature = x.shape
    n_out_pad = prepped["w3"].shape[1]
    compute_dtype = prepped["w0"].dtype

    if tile_b is None:
        tile_b = pick_tile_b(B)
    B_pad = ((B + tile_b - 1) // tile_b) * tile_b

    xp = x.astype(compute_dtype)
    if B_pad != B:
        xp = jnp.pad(xp, ((0, B_pad - B), (0, 0)))

    num_steps = B_pad // tile_b
    grid = (num_steps,)

    def resident(shape):
        # Whole array resident in VMEM; constant block index means the block
        # is fetched once and not re-DMA'd between grid steps.
        return pl.BlockSpec(shape, lambda i: (0,) * len(shape))

    in_specs = [
        pl.BlockSpec((tile_b, n_feature), lambda i: (i, 0)),   # x tile over batch
        resident(prepped["w0"].shape), resident(prepped["b0"].shape),
        resident(prepped["w1"].shape), resident(prepped["b1"].shape),
        resident(prepped["w2"].shape), resident(prepped["b2"].shape),
        resident(prepped["w3"].shape), resident(prepped["b3"].shape),
    ]
    out_spec = pl.BlockSpec((tile_b, n_out_pad), lambda i: (i, 0))

    # VMEM budget sized from the real footprint (+ slack), not a blanket 48 MiB.
    def _nbytes(a):
        return a.size * a.dtype.itemsize
    weight_bytes = sum(_nbytes(prepped[k])
                       for k in ("w0", "b0", "w1", "b1", "w2", "b2", "w3", "b3"))
    resident_bytes = 2 * weight_bytes                       # default double-buffering
    io_bytes = 2 * (tile_b * n_feature * 2) + 2 * (tile_b * n_out_pad * 4)
    act_bytes = 2 * (tile_b * 1024 * 4)                     # live f32 intermediates
    vmem_limit = resident_bytes + io_bytes + act_bytes + (6 << 20)
    vmem_limit = int(min(max(vmem_limit, 16 << 20), 48 << 20))

    # Only shard the batch axis across v7x's two TensorCores when there are
    # enough steps to amortize the duplicated resident-weight DMA.
    semantics = ("parallel",) if num_steps >= 4 else ("arbitrary",)

    out = pl.pallas_call(
        mlp_kernel,
        out_shape=jax.ShapeDtypeStruct((B_pad, n_out_pad), jnp.float32),
        grid_spec=pltpu.PrefetchScalarGridSpec(
            num_scalar_prefetch=0,
            grid=grid,
            in_specs=in_specs,
            out_specs=out_spec,
        ),
        compiler_params=pltpu.CompilerParams(
            dimension_semantics=semantics,
            vmem_limit_bytes=vmem_limit,
        ),
    )(xp,
      prepped["w0"], prepped["b0"],
      prepped["w1"], prepped["b1"],
      prepped["w2"], prepped["b2"],
      prepped["w3"], prepped["b3"])

    return out[:B, :n_output]


# --------------------------------------------------------------------------- #
# Init + pure-JAX reference
# --------------------------------------------------------------------------- #
def init_params(key, n_feature, n_output):
    """Deterministic init mimicking torch.nn.Linear defaults (U[-1/sqrt(fan_in), 1/sqrt(fan_in)])."""
    dims = [(n_feature, 512), (512, 1024), (1024, 512), (512, n_output)]
    params = {}
    for idx, (fan_in, fan_out) in enumerate(dims):
        key, kw, kb = jax.random.split(key, 3)
        bound = 1.0 / jnp.sqrt(jnp.float32(fan_in))
        params[f"w{idx}"] = jax.random.uniform(
            kw, (fan_in, fan_out), jnp.float32, -bound, bound)
        params[f"b{idx}"] = jax.random.uniform(
            kb, (1, fan_out), jnp.float32, -bound, bound)
    return params


def net_forward_ref(x, params):
    """Pure-JAX reference using the same bf16-in / f32-accumulate matmul pattern."""
    def dense(h, w, b):
        return jnp.dot(h.astype(jnp.bfloat16), w.astype(jnp.bfloat16),
                       preferred_element_type=jnp.float32) + b
    h = jnp.maximum(dense(x, params["w0"], params["b0"]), 0.0)
    h = jnp.maximum(dense(h, params["w1"], params["b1"]), 0.0)
    h = jnp.maximum(dense(h, params["w2"], params["b2"]), 0.0)
    return dense(h, params["w3"], params["b3"])


if __name__ == "__main__":
    n_feature, n_output = 32, 10
    batch = 512           # -> tile_b=128, grid=(4,): pipelined and megacore-friendly

    key = jax.random.PRNGKey(0)
    key, kx = jax.random.split(key)
    x = jax.random.normal(kx, (batch, n_feature), jnp.float32)
    params = init_params(key, n_feature, n_output)

    # One-time weight preparation (cast/pad hoisted out of the hot path).
    prepped, n_out, _ = prepare_params(params)

    out = net_forward(x, prepped, n_out)
    out = jax.block_until_ready(out)

    ref = net_forward_ref(x, params)
    assert out.shape == (batch, n_output)
    assert jnp.allclose(out, ref, atol=2e-2, rtol=2e-2), "mismatch vs reference"

    print("KERNEL_OK")
</pallas_src>

<mosaic_0001>
module attributes {stable_mosaic.version = 11 : i64} {
  func.func @mlp_kernel(%arg0: i32, %arg1: memref<128x32xbf16, #tpu.memory_space<vmem>>, %arg2: memref<32x512xbf16, #tpu.memory_space<vmem>>, %arg3: memref<1x512xf32, #tpu.memory_space<vmem>>, %arg4: memref<512x1024xbf16, #tpu.memory_space<vmem>>, %arg5: memref<1x1024xf32, #tpu.memory_space<vmem>>, %arg6: memref<1024x512xbf16, #tpu.memory_space<vmem>>, %arg7: memref<1x512xf32, #tpu.memory_space<vmem>>, %arg8: memref<512x128xbf16, #tpu.memory_space<vmem>>, %arg9: memref<1x128xf32, #tpu.memory_space<vmem>>, %arg10: memref<128x128xf32, #tpu.memory_space<vmem>>) attributes {dimension_semantics = [#tpu.dimension_semantics<parallel>], iteration_bounds = array<i64: 4>, scalar_prefetch = 0 : i64, scratch_operands = 0 : i64, tpu.core_type = #tpu.core_type<tc>, window_params = [{transform_indices = @transform_0, window_bounds = array<i64: 128, 32>}, {pipeline_mode = #tpu.pipeline_mode<synchronous>, transform_indices = @transform_1, window_bounds = array<i64: 32, 512>}, {pipeline_mode = #tpu.pipeline_mode<synchronous>, transform_indices = @transform_2, window_bounds = array<i64: 1, 512>}, {pipeline_mode = #tpu.pipeline_mode<synchronous>, transform_indices = @transform_3, window_bounds = array<i64: 512, 1024>}, {pipeline_mode = #tpu.pipeline_mode<synchronous>, transform_indices = @transform_4, window_bounds = array<i64: 1, 1024>}, {pipeline_mode = #tpu.pipeline_mode<synchronous>, transform_indices = @transform_5, window_bounds = array<i64: 1024, 512>}, {pipeline_mode = #tpu.pipeline_mode<synchronous>, transform_indices = @transform_6, window_bounds = array<i64: 1, 512>}, {pipeline_mode = #tpu.pipeline_mode<synchronous>, transform_indices = @transform_7, window_bounds = array<i64: 512, 128>}, {pipeline_mode = #tpu.pipeline_mode<synchronous>, transform_indices = @transform_8, window_bounds = array<i64: 1, 128>}, {transform_indices = @transform_9, window_bounds = array<i64: 128, 128>}]} {
    %c0 = arith.constant 0 : index
    %c0_0 = arith.constant 0 : index
    %0 = vector.load %arg1[%c0, %c0_0] : memref<128x32xbf16, #tpu.memory_space<vmem>>, vector<128x32xbf16>
    %c0_1 = arith.constant 0 : index
    %c0_2 = arith.constant 0 : index
    %1 = vector.load %arg2[%c0_1, %c0_2] : memref<32x512xbf16, #tpu.memory_space<vmem>>, vector<32x512xbf16>
    %cst = arith.constant dense<0.000000e+00> : vector<128x512xf32>
    %2 = tpu.matmul %0, %1, %cst {dimension_numbers = #tpu.dot_dimension_numbers<[1], [0], [0], [1], [0, 0, 1, 1], [], []>} : vector<128x32xbf16>, vector<32x512xbf16>, vector<128x512xf32> -> vector<128x512xf32>
    %c0_3 = arith.constant 0 : index
    %c0_4 = arith.constant 0 : index
    %3 = vector.load %arg3[%c0_3, %c0_4] : memref<1x512xf32, #tpu.memory_space<vmem>>, vector<1x512xf32>
    %4 = vector.broadcast %3 : vector<1x512xf32> to vector<128x512xf32>
    %5 = arith.addf %2, %4 : vector<128x512xf32>
    %cst_5 = arith.constant 0.000000e+00 : f32
    %6 = vector.broadcast %cst_5 : f32 to vector<128x512xf32>
    %7 = arith.maximumf %5, %6 : vector<128x512xf32>
    %8 = arith.truncf %7 : vector<128x512xf32> to vector<128x512xbf16>
    %c0_6 = arith.constant 0 : index
    %c0_7 = arith.constant 0 : index
    %9 = vector.load %arg4[%c0_6, %c0_7] : memref<512x1024xbf16, #tpu.memory_space<vmem>>, vector<512x1024xbf16>
    %cst_8 = arith.constant dense<0.000000e+00> : vector<128x1024xf32>
    %10 = tpu.matmul %8, %9, %cst_8 {dimension_numbers = #tpu.dot_dimension_numbers<[1], [0], [0], [1], [0, 0, 1, 1], [], []>} : vector<128x512xbf16>, vector<512x1024xbf16>, vector<128x1024xf32> -> vector<128x1024xf32>
    %c0_9 = arith.constant 0 : index
    %c0_10 = arith.constant 0 : index
    %11 = vector.load %arg5[%c0_9, %c0_10] : memref<1x1024xf32, #tpu.memory_space<vmem>>, vector<1x1024xf32>
    %12 = vector.broadcast %11 : vector<1x1024xf32> to vector<128x1024xf32>
    %13 = arith.addf %10, %12 : vector<128x1024xf32>
    %cst_11 = arith.constant 0.000000e+00 : f32
    %14 = vector.broadcast %cst_11 : f32 to vector<128x1024xf32>
    %15 = arith.maximumf %13, %14 : vector<128x1024xf32>
    %16 = arith.truncf %15 : vector<128x1024xf32> to vector<128x1024xbf16>
    %c0_12 = arith.constant 0 : index
    %c0_13 = arith.constant 0 : index
    %17 = vector.load %arg6[%c0_12, %c0_13] : memref<1024x512xbf16, #tpu.memory_space<vmem>>, vector<1024x512xbf16>
    %cst_14 = arith.constant dense<0.000000e+00> : vector<128x512xf32>
    %18 = tpu.matmul %16, %17, %cst_14 {dimension_numbers = #tpu.dot_dimension_numbers<[1], [0], [0], [1], [0, 0, 1, 1], [], []>} : vector<128x1024xbf16>, vector<1024x512xbf16>, vector<128x512xf32> -> vector<128x512xf32>
    %c0_15 = arith.constant 0 : index
    %c0_16 = arith.constant 0 : index
    %19 = vector.load %arg7[%c0_15, %c0_16] : memref<1x512xf32, #tpu.memory_space<vmem>>, vector<1x512xf32>
    %20 = vector.broadcast %19 : vector<1x512xf32> to vector<128x512xf32>
    %21 = arith.addf %18, %20 : vector<128x512xf32>
    %cst_17 = arith.constant 0.000000e+00 : f32
    %22 = vector.broadcast %cst_17 : f32 to vector<128x512xf32>
    %23 = arith.maximumf %21, %22 : vector<128x512xf32>
    %24 = arith.truncf %23 : vector<128x512xf32> to vector<128x512xbf16>
    %c0_18 = arith.constant 0 : index
    %c0_19 = arith.constant 0 : index
    %25 = vector.load %arg8[%c0_18, %c0_19] : memref<512x128xbf16, #tpu.memory_space<vmem>>, vector<512x128xbf16>
    %cst_20 = arith.constant dense<0.000000e+00> : vector<128x128xf32>
    %26 = tpu.matmul %24, %25, %cst_20 {dimension_numbers = #tpu.dot_dimension_numbers<[1], [0], [0], [1], [0, 0, 1, 1], [], []>} : vector<128x512xbf16>, vector<512x128xbf16>, vector<128x128xf32> -> vector<128x128xf32>
    %c0_21 = arith.constant 0 : index
    %c0_22 = arith.constant 0 : index
    %27 = vector.load %arg9[%c0_21, %c0_22] : memref<1x128xf32, #tpu.memory_space<vmem>>, vector<1x128xf32>
    %28 = vector.broadcast %27 : vector<1x128xf32> to vector<128x128xf32>
    %29 = arith.addf %26, %28 : vector<128x128xf32>
    %c0_23 = arith.constant 0 : index
    %c0_24 = arith.constant 0 : index
    %30 = vector.load %arg10[%c0_23, %c0_24] : memref<128x128xf32, #tpu.memory_space<vmem>>, vector<128x128xf32>
    tpu.vector_store %arg10[%c0_23, %c0_24], %29 {strides = array<i32>} : memref<128x128xf32, #tpu.memory_space<vmem>>, vector<128x128xf32>,
    return
  }
  func.func @transform_0(%arg0: i32) -> (i32, i32) {
    %c0_i32 = arith.constant 0 : i32
    %c0_i32_0 = arith.constant 0 : i32
    return %arg0, %c0_i32 : i32, i32
  }
  func.func @transform_1(%arg0: i32) -> (i32, i32) {
    %c0_i32 = arith.constant 0 : i32
    %c0_i32_0 = arith.constant 0 : i32
    %c0_i32_1 = arith.constant 0 : i32
    return %c0_i32, %c0_i32_0 : i32, i32
  }
  func.func @transform_2(%arg0: i32) -> (i32, i32) {
    %c0_i32 = arith.constant 0 : i32
    %c0_i32_0 = arith.constant 0 : i32
    %c0_i32_1 = arith.constant 0 : i32
    return %c0_i32, %c0_i32_0 : i32, i32
  }
  func.func @transform_3(%arg0: i32) -> (i32, i32) {
    %c0_i32 = arith.constant 0 : i32
    %c0_i32_0 = arith.constant 0 : i32
    %c0_i32_1 = arith.constant 0 : i32
    return %c0_i32, %c0_i32_0 : i32, i32
  }
  func.func @transform_4(%arg0: i32) -> (i32, i32) {
    %c0_i32 = arith.constant 0 : i32
    %c0_i32_0 = arith.constant 0 : i32
    %c0_i32_1 = arith.constant 0 : i32
    return %c0_i32, %c0_i32_0 : i32, i32
  }
  func.func @transform_5(%arg0: i32) -> (i32, i32) {
    %c0_i32 = arith.constant 0 : i32
    %c0_i32_0 = arith.constant 0 : i32
    %c0_i32_1 = arith.constant 0 : i32
    return %c0_i32, %c0_i32_0 : i32, i32
  }
  func.func @transform_6(%arg0: i32) -> (i32, i32) {
    %c0_i32 = arith.constant 0 : i32
    %c0_i32_0 = arith.constant 0 : i32
    %c0_i32_1 = arith.constant 0 : i32
    return %c0_i32, %c0_i32_0 : i32, i32
  }
  func.func @transform_7(%arg0: i32) -> (i32, i32) {
    %c0_i32 = arith.constant 0 : i32
    %c0_i32_0 = arith.constant 0 : i32
    %c0_i32_1 = arith.constant 0 : i32
    return %c0_i32, %c0_i32_0 : i32, i32
  }
  func.func @transform_8(%arg0: i32) -> (i32, i32) {
    %c0_i32 = arith.constant 0 : i32
    %c0_i32_0 = arith.constant 0 : i32
    %c0_i32_1 = arith.constant 0 : i32
    return %c0_i32, %c0_i32_0 : i32, i32
  }
  func.func @transform_9(%arg0: i32) -> (i32, i32) {
    %c0_i32 = arith.constant 0 : i32
    %c0_i32_0 = arith.constant 0 : i32
    return %arg0, %c0_i32 : i32, i32
  }
}

</mosaic_0001>

<llo_original>
// kernel: tpu_custom_call.1
$region0: #{tpu_custom_call.1}
  #allocation0 [shape = 'u32[]', space=smem, size = 0x4, offset = 0x4, fixed_abs, tag = 'smem constant byte address 0x4 - core index']
  #allocation1 [shape = 'u32[72,128]{1,0:T(1,128)}', space=vmem, size = 0x9000, scoped, tag = 'internal scratch']
  %s0 = inlined_call_operand.vmem [shape: bf16[512,32], index: 0, kind: input, shape index: {}]
  %s1 = inlined_call_operand.vmem [shape: bf16[32,512], index: 1, kind: input, shape index: {}]
  %s2 = inlined_call_operand.vmem [shape: f32[1,512], index: 2, kind: input, shape index: {}]
  %s3 = inlined_call_operand.hbm [shape: bf16[512,1024], index: 3, kind: input, shape index: {}]
  %s4 = inlined_call_operand.hbm [shape: f32[1,1024], index: 4, kind: input, shape index: {}]
  %s5 = inlined_call_operand.hbm [shape: bf16[1024,512], index: 5, kind: input, shape index: {}]
  %s6 = inlined_call_operand.hbm [shape: f32[1,512], index: 6, kind: input, shape index: {}]
  %s7 = inlined_call_operand.vmem [shape: bf16[512,128], index: 7, kind: input, shape index: {}]
  %s8 = inlined_call_operand.vmem [shape: f32[1,128], index: 8, kind: input, shape index: {}]
  %s9 = inlined_call_operand.hbm [shape: f32[512,128], index: 9, kind: output, shape index: {}]
  %s10 = sld [smem:[#allocation0]]
  $region85: #{tpu_custom_call.1} parent=0
    _
  %s12 = ssub.s32 1, %s10
  %s13 = scalar_select 0, %s12, %s10
  $region1: #{tpu_custom_call.1} parent=0
    #allocation2 [shape = 'u8[1048576]{0}', space=vmem, size = 0x100000, scoped, tag = 'input window, operand 3, single buffered']
    #allocation3 [shape = 's32[2]{0}', space=sflag, size = 0x8, scoped, tag = 'scoped memory for tpu_custom_call.1']
    #allocation4 [shape = 's32[2]{0}', space=sflag, size = 0x8, scoped, tag = 'scoped memory for tpu_custom_call.1']
    #allocation5 [shape = 'u8[4096]{0}', space=vmem, size = 0x1000, scoped, tag = 'input window, operand 4, single buffered']
    #allocation6 [shape = 's32[1]{0}', space=sflag, size = 0x4, scoped, tag = 'scoped memory for tpu_custom_call.1']
    #allocation7 [shape = 'u8[1048576]{0}', space=vmem, size = 0x100000, scoped, tag = 'input window, operand 5, single buffered']
    #allocation8 [shape = 'u8[2048]{0}', space=vmem, size = 0x800, scoped, tag = 'input window, operand 6, single buffered']
    #allocation9 [shape = 's32[1]{0}', space=sflag, size = 0x4, scoped, tag = 'scoped memory for tpu_custom_call.1']
    #allocation10 [shape = 'u8[131072]{0}', space=vmem, size = 0x20000, scoped, tag = 'output window, operand 0']
    %14 = vsyncpa [#allocation3], 0
    %15 = vsyncpa [#allocation6], 0
    %16 = vsyncpa [#allocation9], 0
    %17 = vsyncpa [#allocation4], 0
    %s18 = scalar_lea.sflag [#allocation4], 1
    %19 = vsyncpa %s18, 0
    loop: start=0, step=1, limit=6
    $region2: #{tpu_custom_call.1} parent=1 // loop_pre_header
      _
    $region3: #{tpu_custom_call.1} parent=1 // loop_header
      %s21 = sphi 0, %s25
      %p22 = scmp.ge.s32.totalorder %s21, 6
      %s31 = sphi 0, %s33
      %s34 = sphi 0, %s31
      %s35 = sphi 0, %s34
      %s51 = sphi 0, %s35
      %s55 = sphi 0, %s55
      %s57 = sphi 0, %s55
      %s58 = sphi 0, %s57
      %s72 = sphi 0, %s58
      %s76 = sphi 0, %s76
      %s78 = sphi 0, %s76
      %s79 = sphi 0, %s78
      %s93 = sphi 0, %s79
      %s97 = sphi 0, %s97
      %s99 = sphi 0, %s97
      %s100 = sphi 0, %s99
      %s114 = sphi 0, %s100
      %s118 = sphi 0, %s118
      %s120 = sphi 0, %s118
      %s121 = sphi 0, %s120
      %s135 = sphi 0, %s121
      %s139 = sphi 0, %s139
      %s141 = sphi 0, %s139
      %s142 = sphi 0, %s141
      %s156 = sphi 0, %s142
      %s160 = sphi 0, %s160
      %s162 = sphi 0, %s160
      %s163 = sphi 0, %s162
      %s177 = sphi 0, %s163
      %s181 = sphi 0, %s181
      %s183 = sphi 0, %s181
      %s184 = sphi 0, %s183
      %s198 = sphi 0, %s184
      %s202 = sphi 0, %s202
      %s204 = sphi 0, %s202
      %s205 = sphi 0, %s204
      %s219 = sphi 0, %s205
      %s225 = sphi 0, %s227
      %s228 = sphi 0, %s225
      %s229 = sphi 0, %s228
      %s245 = sphi 0, %s229
    $region4: #{tpu_custom_call.1} parent=1 // loop_header_branch
      %24 = sbr.rel (%p22) target = $region8
    $region5: #{tpu_custom_call.1} parent=1 // loop_body
      %s26 = ssub.s32 %s21, 1
      %s27 = ssub.s32 %s21, 2
      %s28 = sadd.s32 %s21, 1
      %s29 = ssub.s32 %s21, %s28
      %p30 = scmp.eq.s32.totalorder %s29, 0
      %s32 = sadd.s32 %s31, 1
      %s33 = scalar_select %p30, %s31, %s32
      %p36 = pneg %p30
      %p37 = scmp.eq.s32.totalorder %s21, 3
      %p38 = por %p36, %p37
      %p39 = scmp.ne.s32.totalorder %s31, %s34
      %p40 = scmp.eq.s32.totalorder %s21, 0
      %p41 = por %p39, %p40
      %p42 = scmp.ne.s32.totalorder %s31, %s34
      %p43 = scmp.eq.s32.totalorder %s26, 3
      %p44 = por %p42, %p43
      %p45 = scmp.ne.s32.totalorder %s34, %s35
      %p46 = scmp.eq.s32.totalorder %s26, 0
      %p47 = por %p45, %p46
      %p48 = scmp.ne.s32.totalorder %s34, %s35
      %p49 = scmp.eq.s32.totalorder %s27, 3
      %p50 = por %p48, %p49
      %p52 = scmp.ne.s32.totalorder %s35, %s51
      %p53 = scmp.eq.s32.totalorder %s27, 0
      %p54 = por %p52, %p53
      %s56 = sadd.s32 %s55, 1
      %p59 = scmp.eq.s32.totalorder %s21, 3
      %p60 = scmp.ne.s32.totalorder %s55, %s57
      %p61 = scmp.eq.s32.totalorder %s21, 0
      %p62 = por %p60, %p61
      %p63 = scmp.ne.s32.totalorder %s55, %s57
      %p64 = scmp.eq.s32.totalorder %s26, 3
      %p65 = por %p63, %p64
      %p66 = scmp.ne.s32.totalorder %s57, %s58
      %p67 = scmp.eq.s32.totalorder %s26, 0
      %p68 = por %p66, %p67
      %p69 = scmp.ne.s32.totalorder %s57, %s58
      %p70 = scmp.eq.s32.totalorder %s27, 3
      %p71 = por %p69, %p70
      %p73 = scmp.ne.s32.totalorder %s58, %s72
      %p74 = scmp.eq.s32.totalorder %s27, 0
      %p75 = por %p73, %p74
      %s77 = sadd.s32 %s76, 1
      %p80 = scmp.eq.s32.totalorder %s21, 3
      %p81 = scmp.ne.s32.totalorder %s76, %s78
      %p82 = scmp.eq.s32.totalorder %s21, 0
      %p83 = por %p81, %p82
      %p84 = scmp.ne.s32.totalorder %s76, %s78
      %p85 = scmp.eq.s32.totalorder %s26, 3
      %p86 = por %p84, %p85
      %p87 = scmp.ne.s32.totalorder %s78, %s79
      %p88 = scmp.eq.s32.totalorder %s26, 0
      %p89 = por %p87, %p88
      %p90 = scmp.ne.s32.totalorder %s78, %s79
      %p91 = scmp.eq.s32.totalorder %s27, 3
      %p92 = por %p90, %p91
      %p94 = scmp.ne.s32.totalorder %s79, %s93
      %p95 = scmp.eq.s32.totalorder %s27, 0
      %p96 = por %p94, %p95
      %s98 = sadd.s32 %s97, 1
      %p101 = scmp.eq.s32.totalorder %s21, 3
      %p102 = scmp.ne.s32.totalorder %s97, %s99
      %p103 = scmp.eq.s32.totalorder %s21, 0
      %p104 = por %p102, %p103
      %p105 = scmp.ne.s32.totalorder %s97, %s99
      %p106 = scmp.eq.s32.totalorder %s26, 3
      %p107 = por %p105, %p106
      %p108 = scmp.ne.s32.totalorder %s99, %s100
      %p109 = scmp.eq.s32.totalorder %s26, 0
      %p110 = por %p108, %p109
      %p111 = scmp.ne.s32.totalorder %s99, %s100
      %p112 = scmp.eq.s32.totalorder %s27, 3
      %p113 = por %p111, %p112
      %p115 = scmp.ne.s32.totalorder %s100, %s114
      %p116 = scmp.eq.s32.totalorder %s27, 0
      %p117 = por %p115, %p116
      %s119 = sadd.s32 %s118, 1
      %p122 = scmp.eq.s32.totalorder %s21, 3
      %p123 = scmp.ne.s32.totalorder %s118, %s120
      %p124 = scmp.eq.s32.totalorder %s21, 0
      %p125 = por %p123, %p124
      %p126 = scmp.ne.s32.totalorder %s118, %s120
      %p127 = scmp.eq.s32.totalorder %s26, 3
      %p128 = por %p126, %p127
      %p129 = scmp.ne.s32.totalorder %s120, %s121
      %p130 = scmp.eq.s32.totalorder %s26, 0
      %p131 = por %p129, %p130
      %p132 = scmp.ne.s32.totalorder %s120, %s121
      %p133 = scmp.eq.s32.totalorder %s27, 3
      %p134 = por %p132, %p133
      %p136 = scmp.ne.s32.totalorder %s121, %s135
      %p137 = scmp.eq.s32.totalorder %s27, 0
      %p138 = por %p136, %p137
      %s140 = sadd.s32 %s139, 1
      %p143 = scmp.eq.s32.totalorder %s21, 3
      %p144 = scmp.ne.s32.totalorder %s139, %s141
      %p145 = scmp.eq.s32.totalorder %s21, 0
      %p146 = por %p144, %p145
      %p147 = scmp.ne.s32.totalorder %s139, %s141
      %p148 = scmp.eq.s32.totalorder %s26, 3
      %p149 = por %p147, %p148
      %p150 = scmp.ne.s32.totalorder %s141, %s142
      %p151 = scmp.eq.s32.totalorder %s26, 0
      %p152 = por %p150, %p151
      %p153 = scmp.ne.s32.totalorder %s141, %s142
      %p154 = scmp.eq.s32.totalorder %s27, 3
      %p155 = por %p153, %p154
      %p157 = scmp.ne.s32.totalorder %s142, %s156
      %p158 = scmp.eq.s32.totalorder %s27, 0
      %p159 = por %p157, %p158
      %s161 = sadd.s32 %s160, 1
      %p164 = scmp.eq.s32.totalorder %s21, 3
      %p165 = scmp.ne.s32.totalorder %s160, %s162
      %p166 = scmp.eq.s32.totalorder %s21, 0
      %p167 = por %p165, %p166
      %p168 = scmp.ne.s32.totalorder %s160, %s162
      %p169 = scmp.eq.s32.totalorder %s26, 3
      %p170 = por %p168, %p169
      %p171 = scmp.ne.s32.totalorder %s162, %s163
      %p172 = scmp.eq.s32.totalorder %s26, 0
      %p173 = por %p171, %p172
      %p174 = scmp.ne.s32.totalorder %s162, %s163
      %p175 = scmp.eq.s32.totalorder %s27, 3
      %p176 = por %p174, %p175
      %p178 = scmp.ne.s32.totalorder %s163, %s177
      %p179 = scmp.eq.s32.totalorder %s27, 0
      %p180 = por %p178, %p179
      %s182 = sadd.s32 %s181, 1
      %p185 = scmp.eq.s32.totalorder %s21, 3
      %p186 = scmp.ne.s32.totalorder %s181, %s183
      %p187 = scmp.eq.s32.totalorder %s21, 0
      %p188 = por %p186, %p187
      %p189 = scmp.ne.s32.totalorder %s181, %s183
      %p190 = scmp.eq.s32.totalorder %s26, 3
      %p191 = por %p189, %p190
      %p192 = scmp.ne.s32.totalorder %s183, %s184
      %p193 = scmp.eq.s32.totalorder %s26, 0
      %p194 = por %p192, %p193
      %p195 = scmp.ne.s32.totalorder %s183, %s184
      %p196 = scmp.eq.s32.totalorder %s27, 3
      %p197 = por %p195, %p196
      %p199 = scmp.ne.s32.totalorder %s184, %s198
      %p200 = scmp.eq.s32.totalorder %s27, 0
      %p201 = por %p199, %p200
      %s203 = sadd.s32 %s202, 1
      %p206 = scmp.eq.s32.totalorder %s21, 3
      %p207 = scmp.ne.s32.totalorder %s202, %s204
      %p208 = scmp.eq.s32.totalorder %s21, 0
      %p209 = por %p207, %p208
      %p210 = scmp.ne.s32.totalorder %s202, %s204
      %p211 = scmp.eq.s32.totalorder %s26, 3
      %p212 = por %p210, %p211
      %p213 = scmp.ne.s32.totalorder %s204, %s205
      %p214 = scmp.eq.s32.totalorder %s26, 0
      %p215 = por %p213, %p214
      %p216 = scmp.ne.s32.totalorder %s204, %s205
      %p217 = scmp.eq.s32.totalorder %s27, 3
      %p218 = por %p216, %p217
      %p220 = scmp.ne.s32.totalorder %s205, %s219
      %p221 = scmp.eq.s32.totalorder %s27, 0
      %p222 = por %p220, %p221
      %s223 = ssub.s32 %s21, %s28
      %p224 = scmp.eq.s32.totalorder %s223, 0
      %s226 = sadd.s32 %s225, 1
      %s227 = scalar_select %p224, %s225, %s226
      %p230 = pneg %p224
      %p231 = scmp.eq.s32.totalorder %s21, 3
      %p232 = por %p230, %p231
      %p233 = scmp.ne.s32.totalorder %s225, %s228
      %p234 = scmp.eq.s32.totalorder %s21, 0
      %p235 = por %p233, %p234
      %p236 = scmp.ne.s32.totalorder %s225, %s228
      %p237 = scmp.eq.s32.totalorder %s26, 3
      %p238 = por %p236, %p237
      %p239 = scmp.ne.s32.totalorder %s228, %s229
      %p240 = scmp.eq.s32.totalorder %s26, 0
      %p241 = por %p239, %p240
      %p242 = scmp.ne.s32.totalorder %s228, %s229
      %p243 = scmp.eq.s32.totalorder %s27, 3
      %p244 = por %p242, %p243
      %p246 = scmp.ne.s32.totalorder %s229, %s245
      %p247 = scmp.eq.s32.totalorder %s27, 0
      %p248 = por %p246, %p247
      %p249 = scmp.le.s32.totalorder 1, %s21
      %p250 = scmp.lt.s32.totalorder %s21, 5
      %p251 = pnand %p249, %p250
      %p252 = pneg %p251
      // Predicated region
      $region9: #{tpu_custom_call.1} parent=5 // pred_check
        _
      $region10: #{tpu_custom_call.1} parent=5 // pred_check_branch
        %254 = sbr.rel (%p251) target = $region12
      $region11: #{tpu_custom_call.1} parent=5 // pred_region
        %s255 = ssub.s32 %s21, 1
        // Predicated region
        $region13: #{tpu_custom_call.1} parent=11 // pred_check
          %p256 = pneg %p68
        $region14: #{tpu_custom_call.1} parent=11 // pred_check_branch
          %258 = sbr.rel (%p256) target = $region16
        $region15: #{tpu_custom_call.1} parent=11 // pred_region
          _
        $region16: #{tpu_custom_call.1} parent=11 // pred_fallthru
          _
        // Predicated region
        $region17: #{tpu_custom_call.1} parent=11 // pred_check
          %p259 = pneg %p89
        $region18: #{tpu_custom_call.1} parent=11 // pred_check_branch
          %261 = sbr.rel (%p259) target = $region20
        $region19: #{tpu_custom_call.1} parent=11 // pred_region
          _
        $region20: #{tpu_custom_call.1} parent=11 // pred_fallthru
          _
        // Predicated region
        $region21: #{tpu_custom_call.1} parent=11 // pred_check
          %p262 = pneg %p110
        $region22: #{tpu_custom_call.1} parent=11 // pred_check_branch
          %264 = sbr.rel (%p262) target = $region24
        $region23: #{tpu_custom_call.1} parent=11 // pred_region
          %266 = vsyncadd [#allocation3], 0
          %s267 = sshll.u32 %s3, 4
          %s268 = int_to_ptr.hbm [resolvable:$true] %s267
          %s269 = sshll.u32 [#allocation2], 4
          %s270 = int_to_ptr.vmem [resolvable:$true] %s269
          %275 = dma.hbm_to_vmem [thread:$0]  %s268, 32768, %s270, [#allocation3], 512, 512, 32
        $region24: #{tpu_custom_call.1} parent=11 // pred_fallthru
          _
        // Predicated region
        $region25: #{tpu_custom_call.1} parent=11 // pred_check
          %p276 = pneg %p131
        $region26: #{tpu_custom_call.1} parent=11 // pred_check_branch
          %278 = sbr.rel (%p276) target = $region28
        $region27: #{tpu_custom_call.1} parent=11 // pred_region
          %280 = vsyncadd [#allocation6], 0
          %s282 = sshll.u32 %s4, 4
          %s283 = int_to_ptr.hbm [resolvable:$true] %s282
          %s284 = sshll.u32 [#allocation5], 4
          %s285 = int_to_ptr.vmem [resolvable:$true] %s284
          %287 = dma.hbm_to_vmem [thread:$0]  %s283, 128, %s285, [#allocation6]
        $region28: #{tpu_custom_call.1} parent=11 // pred_fallthru
          _
        // Predicated region
        $region29: #{tpu_custom_call.1} parent=11 // pred_check
          %p288 = pneg %p152
        $region30: #{tpu_custom_call.1} parent=11 // pred_check_branch
          %290 = sbr.rel (%p288) target = $region32
        $region31: #{tpu_custom_call.1} parent=11 // pred_region
          %292 = vsyncadd [#allocation6], 0
          %s293 = sshll.u32 %s5, 4
          %s294 = int_to_ptr.hbm [resolvable:$true] %s293
          %s295 = sshll.u32 [#allocation7], 4
          %s296 = int_to_ptr.vmem [resolvable:$true] %s295
          %301 = dma.hbm_to_vmem [thread:$0]  %s294, 32768, %s296, [#allocation6], 256, 256, 16
        $region32: #{tpu_custom_call.1} parent=11 // pred_fallthru
          _
        // Predicated region
        $region33: #{tpu_custom_call.1} parent=11 // pred_check
          %p302 = pneg %p173
        $region34: #{tpu_custom_call.1} parent=11 // pred_check_branch
          %304 = sbr.rel (%p302) target = $region36
        $region35: #{tpu_custom_call.1} parent=11 // pred_region
          %306 = vsyncadd [#allocation9], 0
          %s308 = sshll.u32 %s6, 4
          %s309 = int_to_ptr.hbm [resolvable:$true] %s308
          %s310 = sshll.u32 [#allocation8], 4
          %s311 = int_to_ptr.vmem [resolvable:$true] %s310
          %313 = dma.hbm_to_vmem [thread:$0]  %s309, 64, %s311, [#allocation9]
        $region36: #{tpu_custom_call.1} parent=11 // pred_fallthru
          _
        // Predicated region
        $region37: #{tpu_custom_call.1} parent=11 // pred_check
          %p314 = pneg %p194
        $region38: #{tpu_custom_call.1} parent=11 // pred_check_branch
          %316 = sbr.rel (%p314) target = $region40
        $region39: #{tpu_custom_call.1} parent=11 // pred_region
          _
        $region40: #{tpu_custom_call.1} parent=11 // pred_fallthru
          _
        // Predicated region
        $region41: #{tpu_custom_call.1} parent=11 // pred_check
          %p317 = pneg %p215
        $region42: #{tpu_custom_call.1} parent=11 // pred_check_branch
          %319 = sbr.rel (%p317) target = $region44
        $region43: #{tpu_custom_call.1} parent=11 // pred_region
          _
        $region44: #{tpu_custom_call.1} parent=11 // pred_fallthru
          _
      $region12: #{tpu_custom_call.1} parent=5 // pred_fallthru
        _
      %p320 = scmp.lt.s32.totalorder %s21, 4
      // Predicated region
      $region45: #{tpu_custom_call.1} parent=5 // pred_check
        %p321 = pneg %p320
      $region46: #{tpu_custom_call.1} parent=5 // pred_check_branch
        %323 = sbr.rel (%p321) target = $region48
      $region47: #{tpu_custom_call.1} parent=5 // pred_region
        // Predicated region
        $region49: #{tpu_custom_call.1} parent=47 // pred_check
          %p324 = pneg %p41
        $region50: #{tpu_custom_call.1} parent=47 // pred_check_branch
          %326 = sbr.rel (%p324) target = $region52
        $region51: #{tpu_custom_call.1} parent=47 // pred_region
          %s327 = smul.u32 16, %s21
          %p328 = scmp.lt.s32.totalorder %s327, 63
          %s329 = scalar_select %p328, %s327, 63
          %s330 = smul.addr %s329, 4
          %s331 = scalar_lea.vmem %s0, %s330
          %s332 = smul.u32 16, %s21
        $region52: #{tpu_custom_call.1} parent=47 // pred_fallthru
          _
      $region48: #{tpu_custom_call.1} parent=5 // pred_fallthru
        _
      %p333 = scmp.le.s32.totalorder 1, %s21
      %p334 = scmp.lt.s32.totalorder %s21, 5
      %p335 = pnand %p333, %p334
      %p336 = pneg %p335
      // Predicated region
      $region53: #{tpu_custom_call.1} parent=5 // pred_check
        _
      $region54: #{tpu_custom_call.1} parent=5 // pred_check_branch
        %338 = sbr.rel (%p335) target = $region56
      $region55: #{tpu_custom_call.1} parent=5 // pred_region
        %s339 = ssub.s32 %s21, 1
        // Predicated region
        $region57: #{tpu_custom_call.1} parent=55 // pred_check
          %p340 = pneg %p110
        $region58: #{tpu_custom_call.1} parent=55 // pred_check_branch
          %342 = sbr.rel (%p340) target = $region60
        $region59: #{tpu_custom_call.1} parent=55 // pred_region
          %344 = dma.done [#allocation3], 32768
        $region60: #{tpu_custom_call.1} parent=55 // pred_fallthru
          _
        // Predicated region
        $region61: #{tpu_custom_call.1} parent=55 // pred_check
          %p345 = pneg %p131
        $region62: #{tpu_custom_call.1} parent=55 // pred_check_branch
          %347 = sbr.rel (%p345) target = $region64
        $region63: #{tpu_custom_call.1} parent=55 // pred_region
          %349 = dma.done [#allocation6], 128
        $region64: #{tpu_custom_call.1} parent=55 // pred_fallthru
          _
        // Predicated region
        $region65: #{tpu_custom_call.1} parent=55 // pred_check
          %p350 = pneg %p152
        $region66: #{tpu_custom_call.1} parent=55 // pred_check_branch
          %352 = sbr.rel (%p350) target = $region68
        $region67: #{tpu_custom_call.1} parent=55 // pred_region
          %354 = dma.done [#allocation6], 32768
        $region68: #{tpu_custom_call.1} parent=55 // pred_fallthru
          _
        // Predicated region
        $region69: #{tpu_custom_call.1} parent=55 // pred_check
          %p355 = pneg %p173
        $region70: #{tpu_custom_call.1} parent=55 // pred_check_branch
          %357 = sbr.rel (%p355) target = $region72
        $region71: #{tpu_custom_call.1} parent=55 // pred_region
          %359 = dma.done [#allocation9], 64
        $region72: #{tpu_custom_call.1} parent=55 // pred_fallthru
          _
        %s360 = smul.u32 16, %s26
        %p361 = scmp.lt.s32.totalorder %s360, 63
        %s362 = scalar_select %p361, %s360, 63
        %s363 = smul.addr %s362, 4
        %s364 = scalar_lea.vmem %s0, %s363
        %p365 = pneg %p47
        %p366 = pneg %p44
        %p367 = pneg %p68
        %p368 = pneg %p65
        %p369 = pneg %p89
        %p370 = pneg %p86
        %p371 = pneg %p110
        %p372 = pneg %p107
        %p373 = pneg %p131
        %p374 = pneg %p128
        %p375 = pneg %p152
        %p376 = pneg %p149
        %p377 = pneg %p173
        %p378 = pneg %p170
        %p379 = pneg %p194
        %p380 = pneg %p191
        %p381 = pneg %p215
        %p382 = pneg %p212
        %p383 = pneg %p241
        %p384 = pneg %p238
        %s385 = sand.u32 %s228, 1
        %s386 = scalar_lea.sflag [#allocation4], %s385
        %s387 = sand.u32 %s228, 1
        %s388 = smul.addr %s387, 128
        %s389 = scalar_lea.vmem [#allocation10], %s388
        %s390 = smul.u32 16, %s26
        %p391 = scmp.lt.s32.totalorder %s390, 63
        %s392 = scalar_select %p391, %s390, 63
        %s393 = smul.addr %s392, 4
        %s394 = scalar_lea.vmem %s0, %s393
        %s395 = smul.u32 16, %s26
        %s396 = smul.u32 16, %s26
        %v398 = vld [vmem:[%s394] sm:$0xf]
        %v399 = vld [vmem:[%s394 + $0x4] sm:$0xf]
        %v400 = vld [vmem:[%s394 + $0x8] sm:$0xf]
        %v401 = vld [vmem:[%s394 + $0xc] sm:$0xf]
        %v402 = vld [vmem:[%s394 + $0x10] sm:$0xf]
        %v403 = vld [vmem:[%s394 + $0x14] sm:$0xf]
        %v404 = vld [vmem:[%s394 + $0x18] sm:$0xf]
        %v405 = vld [vmem:[%s394 + $0x1c] sm:$0xf]
        %v406 = vld [vmem:[%s394 + $0x20] sm:$0xf]
        %v407 = vld [vmem:[%s394 + $0x24] sm:$0xf]
        %v408 = vld [vmem:[%s394 + $0x28] sm:$0xf]
        %v409 = vld [vmem:[%s394 + $0x2c] sm:$0xf]
        %v410 = vld [vmem:[%s394 + $0x30] sm:$0xf]
        %v411 = vld [vmem:[%s394 + $0x34] sm:$0xf]
        %v412 = vld [vmem:[%s394 + $0x38] sm:$0xf]
        %v413 = vld [vmem:[%s394 + $0x3c] sm:$0xf]
        %v414 = vld [vmem:[%s1] sm:$0xff]
        %v415 = vld [vmem:[%s1 + $0x8] sm:$0xff]
        %v416 = vld [vmem:[%s1 + $0x10] sm:$0xff]
        %v417 = vld [vmem:[%s1 + $0x18] sm:$0xff]
        %v418 = vld [vmem:[%s1 + $0x20] sm:$0xff]
        %v419 = vld [vmem:[%s1 + $0x28] sm:$0xff]
        %v420 = vld [vmem:[%s1 + $0x30] sm:$0xff]
        %v421 = vld [vmem:[%s1 + $0x38] sm:$0xff]
        %v422 = vld [vmem:[%s2] sm:$0xf]
        %v424 = vperm.slane %v422, 0
        %v425 = vperm.slane %v422, 1
        %v426 = vperm.slane %v422, 2
        %v427 = vperm.slane %v422, 3
        %v448 = vunpack.c.l.b16 %v398
        %v449 = vunpack.c.l.b16 %v399
        %v450 = vunpack.c.l.b16 %v400
        %v451 = vunpack.c.l.b16 %v401
        %v452 = vunpack.c.l.b16 %v402
        %v453 = vunpack.c.l.b16 %v403
        %v454 = vunpack.c.l.b16 %v404
        %v455 = vunpack.c.l.b16 %v405
        %v456 = vunpack.c.l.b16 %v406
        %v457 = vunpack.c.l.b16 %v407
        %v458 = vunpack.c.l.b16 %v408
        %v459 = vunpack.c.l.b16 %v409
        %v460 = vunpack.c.l.b16 %v410
        %v461 = vunpack.c.l.b16 %v411
        %v462 = vunpack.c.l.b16 %v412
        %v463 = vunpack.c.l.b16 %v413
        %v464 = vpack.c.b16 %v449, %v448
        %v465 = vpack.c.b16 %v451, %v450
        %v466 = vpack.c.b16 %v453, %v452
        %v467 = vpack.c.b16 %v455, %v454
        %v468 = vpack.c.b16 %v457, %v456
        %v469 = vpack.c.b16 %v459, %v458
        %v470 = vpack.c.b16 %v461, %v460
        %v471 = vpack.c.b16 %v463, %v462
        %v480 = vunpack.c.l.b16 %v414
        %v481 = vunpack.c.h.b16 %v414
        %v482 = vunpack.c.l.b16 %v415
        %v483 = vunpack.c.h.b16 %v415
        %v484 = vunpack.c.l.b16 %v416
        %v485 = vunpack.c.h.b16 %v416
        %v486 = vunpack.c.l.b16 %v417
        %v487 = vunpack.c.h.b16 %v417
        %v488 = vunpack.c.l.b16 %v418
        %v489 = vunpack.c.h.b16 %v418
        %v490 = vunpack.c.l.b16 %v419
        %v491 = vunpack.c.h.b16 %v419
        %v492 = vunpack.c.l.b16 %v420
        %v493 = vunpack.c.h.b16 %v420
        %v494 = vunpack.c.l.b16 %v421
        %v495 = vunpack.c.h.b16 %v421
        %v496 = vpack.c.b16 %v484, %v480
        %v497 = vpack.c.b16 %v485, %v481
        %v498 = vpack.c.b16 %v486, %v482
        %v499 = vpack.c.b16 %v487, %v483
        %v500 = vpack.c.b16 %v492, %v488
        %v501 = vpack.c.b16 %v493, %v489
        %v502 = vpack.c.b16 %v494, %v490
        %v503 = vpack.c.b16 %v495, %v491
        %vm512 = vcmask 261120
        %v514 = vsel %vm512, %v464, 0
        %v517 = vsel %vm512, %v465, 0
        %v520 = vsel %vm512, %v466, 0
        %v523 = vsel %vm512, %v467, 0
        %v526 = vsel %vm512, %v468, 0
        %v529 = vsel %vm512, %v469, 0
        %v532 = vsel %vm512, %v470, 0
        %v535 = vsel %vm512, %v471, 0
        %537 = vmatpush.bf16.msra.mxu0 0
        %538 = vmatpush.bf16.msra.mxu0 0
        %539 = vmatpush.bf16.msra.mxu0 0
        %540 = vmatpush.bf16.msra.mxu0 0
        %541 = vmatpush.bf16.msra.mxu0 0
        %542 = vmatpush.bf16.msra.mxu0 0
        %543 = vmatpush.bf16.msra.mxu0 %v500
        %544 = vmatpush.bf16.msra.mxu0 %v496
        %545 = vmatmul.bf16.gmra.mxu0 %v514
        %v546 = vpop.f32.mrf.mxu0
        %v547 = vadd.f32 %v424, %v546
        %v548 = vpop.f32.mrf.mxu0
        %v549 = vadd.f32 %v424, %v548
        %550 = vmatmul.bf16.gmra.mxu0 %v517
        %v551 = vpop.f32.mrf.mxu0
        %v552 = vadd.f32 %v424, %v551
        %v553 = vpop.f32.mrf.mxu0
        %v554 = vadd.f32 %v424, %v553
        %555 = vmatmul.bf16.gmra.mxu0 %v520
        %v556 = vpop.f32.mrf.mxu0
        %v557 = vadd.f32 %v424, %v556
        %v558 = vpop.f32.mrf.mxu0
        %v559 = vadd.f32 %v424, %v558
        %560 = vmatmul.bf16.gmra.mxu0 %v523
        %v561 = vpop.f32.mrf.mxu0
        %v562 = vadd.f32 %v424, %v561
        %v563 = vpop.f32.mrf.mxu0
        %v564 = vadd.f32 %v424, %v563
        %565 = vmatmul.bf16.gmra.mxu0 %v526
        %v566 = vpop.f32.mrf.mxu0
        %v567 = vadd.f32 %v424, %v566
        %v568 = vpop.f32.mrf.mxu0
        %v569 = vadd.f32 %v424, %v568
        %570 = vmatmul.bf16.gmra.mxu0 %v529
        %v571 = vpop.f32.mrf.mxu0
        %v572 = vadd.f32 %v424, %v571
        %v573 = vpop.f32.mrf.mxu0
        %v574 = vadd.f32 %v424, %v573
        %575 = vmatmul.bf16.gmra.mxu0 %v532
        %v576 = vpop.f32.mrf.mxu0
        %v577 = vadd.f32 %v424, %v576
        %v578 = vpop.f32.mrf.mxu0
        %v579 = vadd.f32 %v424, %v578
        %580 = vmatmul.bf16.gmra.mxu0 %v535
        %v581 = vpop.f32.mrf.mxu0
        %v582 = vadd.f32 %v424, %v581
        %v583 = vpop.f32.mrf.mxu0
        %v584 = vadd.f32 %v424, %v583
        %585 = vdwg.mxu0
        %586 = vmatpush.bf16.msra.mxu0 0
        %587 = vmatpush.bf16.msra.mxu0 0
        %588 = vmatpush.bf16.msra.mxu0 0
        %589 = vmatpush.bf16.msra.mxu0 0
        %590 = vmatpush.bf16.msra.mxu0 0
        %591 = vmatpush.bf16.msra.mxu0 0
        %592 = vmatpush.bf16.msra.mxu0 %v501
        %593 = vmatpush.bf16.msra.mxu0 %v497
        %594 = vmatmul.bf16.gmra.mxu0 %v514
        %v595 = vpop.f32.mrf.mxu0
        %v596 = vadd.f32 %v425, %v595
        %v597 = vpop.f32.mrf.mxu0
        %v598 = vadd.f32 %v425, %v597
        %599 = vmatmul.bf16.gmra.mxu0 %v517
        %v600 = vpop.f32.mrf.mxu0
        %v601 = vadd.f32 %v425, %v600
        %v602 = vpop.f32.mrf.mxu0
        %v603 = vadd.f32 %v425, %v602
        %604 = vmatmul.bf16.gmra.mxu0 %v520
        %v605 = vpop.f32.mrf.mxu0
        %v606 = vadd.f32 %v425, %v605
        %v607 = vpop.f32.mrf.mxu0
        %v608 = vadd.f32 %v425, %v607
        %609 = vmatmul.bf16.gmra.mxu0 %v523
        %v610 = vpop.f32.mrf.mxu0
        %v611 = vadd.f32 %v425, %v610
        %v612 = vpop.f32.mrf.mxu0
        %v613 = vadd.f32 %v425, %v612
        %614 = vmatmul.bf16.gmra.mxu0 %v526
        %v615 = vpop.f32.mrf.mxu0
        %v616 = vadd.f32 %v425, %v615
        %v617 = vpop.f32.mrf.mxu0
        %v618 = vadd.f32 %v425, %v617
        %619 = vmatmul.bf16.gmra.mxu0 %v529
        %v620 = vpop.f32.mrf.mxu0
        %v621 = vadd.f32 %v425, %v620
        %v622 = vpop.f32.mrf.mxu0
        %v623 = vadd.f32 %v425, %v622
        %624 = vmatmul.bf16.gmra.mxu0 %v532
        %v625 = vpop.f32.mrf.mxu0
        %v626 = vadd.f32 %v425, %v625
        %v627 = vpop.f32.mrf.mxu0
        %v628 = vadd.f32 %v425, %v627
        %629 = vmatmul.bf16.gmra.mxu0 %v535
        %v630 = vpop.f32.mrf.mxu0
        %v631 = vadd.f32 %v425, %v630
        %v632 = vpop.f32.mrf.mxu0
        %v633 = vadd.f32 %v425, %v632
        %634 = vdwg.mxu0
        %635 = vmatpush.bf16.msra.mxu0 0
        %636 = vmatpush.bf16.msra.mxu0 0
        %637 = vmatpush.bf16.msra.mxu0 0
        %638 = vmatpush.bf16.msra.mxu0 0
        %639 = vmatpush.bf16.msra.mxu0 0
        %640 = vmatpush.bf16.msra.mxu0 0
        %641 = vmatpush.bf16.msra.mxu0 %v502
        %642 = vmatpush.bf16.msra.mxu0 %v498
        %643 = vmatmul.bf16.gmra.mxu0 %v514
        %v644 = vpop.f32.mrf.mxu0
        %v645 = vadd.f32 %v426, %v644
        %v646 = vpop.f32.mrf.mxu0
        %v647 = vadd.f32 %v426, %v646
        %648 = vmatmul.bf16.gmra.mxu0 %v517
        %v649 = vpop.f32.mrf.mxu0
        %v650 = vadd.f32 %v426, %v649
        %v651 = vpop.f32.mrf.mxu0
        %v652 = vadd.f32 %v426, %v651
        %653 = vmatmul.bf16.gmra.mxu0 %v520
        %v654 = vpop.f32.mrf.mxu0
        %v655 = vadd.f32 %v426, %v654
        %v656 = vpop.f32.mrf.mxu0
        %v657 = vadd.f32 %v426, %v656
        %658 = vmatmul.bf16.gmra.mxu0 %v523
        %v659 = vpop.f32.mrf.mxu0
        %v660 = vadd.f32 %v426, %v659
        %v661 = vpop.f32.mrf.mxu0
        %v662 = vadd.f32 %v426, %v661
        %663 = vmatmul.bf16.gmra.mxu0 %v526
        %v664 = vpop.f32.mrf.mxu0
        %v665 = vadd.f32 %v426, %v664
        %v666 = vpop.f32.mrf.mxu0
        %v667 = vadd.f32 %v426, %v666
        %668 = vmatmul.bf16.gmra.mxu0 %v529
        %v669 = vpop.f32.mrf.mxu0
        %v670 = vadd.f32 %v426, %v669
        %v671 = vpop.f32.mrf.mxu0
        %v672 = vadd.f32 %v426, %v671
        %673 = vmatmul.bf16.gmra.mxu0 %v532
        %v674 = vpop.f32.mrf.mxu0
        %v675 = vadd.f32 %v426, %v674
        %v676 = vpop.f32.mrf.mxu0
        %v677 = vadd.f32 %v426, %v676
        %678 = vmatmul.bf16.gmra.mxu0 %v535
        %v679 = vpop.f32.mrf.mxu0
        %v680 = vadd.f32 %v426, %v679
        %v681 = vpop.f32.mrf.mxu0
        %v682 = vadd.f32 %v426, %v681
        %683 = vdwg.mxu0
        %684 = vmatpush.bf16.msra.mxu0 0
        %685 = vmatpush.bf16.msra.mxu0 0
        %686 = vmatpush.bf16.msra.mxu0 0
        %687 = vmatpush.bf16.msra.mxu0 0
        %688 = vmatpush.bf16.msra.mxu0 0
        %689 = vmatpush.bf16.msra.mxu0 0
        %690 = vmatpush.bf16.msra.mxu0 %v503
        %691 = vmatpush.bf16.msra.mxu0 %v499
        %692 = vmatmul.bf16.gmra.mxu0 %v514
        %v693 = vpop.f32.mrf.mxu0
        %v694 = vadd.f32 %v427, %v693
        %v695 = vpop.f32.mrf.mxu0
        %v696 = vadd.f32 %v427, %v695
        %697 = vmatmul.bf16.gmra.mxu0 %v517
        %v698 = vpop.f32.mrf.mxu0
        %v699 = vadd.f32 %v427, %v698
        %v700 = vpop.f32.mrf.mxu0
        %v701 = vadd.f32 %v427, %v700
        %702 = vmatmul.bf16.gmra.mxu0 %v520
        %v703 = vpop.f32.mrf.mxu0
        %v704 = vadd.f32 %v427, %v703
        %v705 = vpop.f32.mrf.mxu0
        %v706 = vadd.f32 %v427, %v705
        %707 = vmatmul.bf16.gmra.mxu0 %v523
        %v708 = vpop.f32.mrf.mxu0
        %v709 = vadd.f32 %v427, %v708
        %v710 = vpop.f32.mrf.mxu0
        %v711 = vadd.f32 %v427, %v710
        %712 = vmatmul.bf16.gmra.mxu0 %v526
        %v713 = vpop.f32.mrf.mxu0
        %v714 = vadd.f32 %v427, %v713
        %v715 = vpop.f32.mrf.mxu0
        %v716 = vadd.f32 %v427, %v715
        %717 = vmatmul.bf16.gmra.mxu0 %v529
        %v718 = vpop.f32.mrf.mxu0
        %v719 = vadd.f32 %v427, %v718
        %v720 = vpop.f32.mrf.mxu0
        %v721 = vadd.f32 %v427, %v720
        %722 = vmatmul.bf16.gmra.mxu0 %v532
        %v723 = vpop.f32.mrf.mxu0
        %v724 = vadd.f32 %v427, %v723
        %v725 = vpop.f32.mrf.mxu0
        %v726 = vadd.f32 %v427, %v725
        %727 = vmatmul.bf16.gmra.mxu0 %v535
        %v728 = vpop.f32.mrf.mxu0
        %v729 = vadd.f32 %v427, %v728
        %v730 = vpop.f32.mrf.mxu0
        %v731 = vadd.f32 %v427, %v730
        %732 = vdwg.mxu0
        %v733 = vmax.f32 %v547, 0.0
        %v734 = vmax.f32 %v596, 0.0
        %v735 = vmax.f32 %v645, 0.0
        %v736 = vmax.f32 %v694, 0.0
        %v737 = vmax.f32 %v549, 0.0
        %v738 = vmax.f32 %v598, 0.0
        %v739 = vmax.f32 %v647, 0.0
        %v740 = vmax.f32 %v696, 0.0
        %v741 = vmax.f32 %v552, 0.0
        %v742 = vmax.f32 %v601, 0.0
        %v743 = vmax.f32 %v650, 0.0
        %v744 = vmax.f32 %v699, 0.0
        %v745 = vmax.f32 %v554, 0.0
        %v746 = vmax.f32 %v603, 0.0
        %v747 = vmax.f32 %v652, 0.0
        %v748 = vmax.f32 %v701, 0.0
        %v749 = vmax.f32 %v557, 0.0
        %v750 = vmax.f32 %v606, 0.0
        %v751 = vmax.f32 %v655, 0.0
        %v752 = vmax.f32 %v704, 0.0
        %v753 = vmax.f32 %v559, 0.0
        %v754 = vmax.f32 %v608, 0.0
        %v755 = vmax.f32 %v657, 0.0
        %v756 = vmax.f32 %v706, 0.0
        %v757 = vmax.f32 %v562, 0.0
        %v758 = vmax.f32 %v611, 0.0
        %v759 = vmax.f32 %v660, 0.0
        %v760 = vmax.f32 %v709, 0.0
        %v761 = vmax.f32 %v564, 0.0
        %v762 = vmax.f32 %v613, 0.0
        %v763 = vmax.f32 %v662, 0.0
        %v764 = vmax.f32 %v711, 0.0
        %v765 = vmax.f32 %v567, 0.0
        %v766 = vmax.f32 %v616, 0.0
        %v767 = vmax.f32 %v665, 0.0
        %v768 = vmax.f32 %v714, 0.0
        %v769 = vmax.f32 %v569, 0.0
        %v770 = vmax.f32 %v618, 0.0
        %v771 = vmax.f32 %v667, 0.0
        %v772 = vmax.f32 %v716, 0.0
        %v773 = vmax.f32 %v572, 0.0
        %v774 = vmax.f32 %v621, 0.0
        %v775 = vmax.f32 %v670, 0.0
        %v776 = vmax.f32 %v719, 0.0
        %v777 = vmax.f32 %v574, 0.0
        %v778 = vmax.f32 %v623, 0.0
        %v779 = vmax.f32 %v672, 0.0
        %v780 = vmax.f32 %v721, 0.0
        %v781 = vmax.f32 %v577, 0.0
        %v782 = vmax.f32 %v626, 0.0
        %v783 = vmax.f32 %v675, 0.0
        %v784 = vmax.f32 %v724, 0.0
        %v785 = vmax.f32 %v579, 0.0
        %v786 = vmax.f32 %v628, 0.0
        %v787 = vmax.f32 %v677, 0.0
        %v788 = vmax.f32 %v726, 0.0
        %v789 = vmax.f32 %v582, 0.0
        %v790 = vmax.f32 %v631, 0.0
        %v791 = vmax.f32 %v680, 0.0
        %v792 = vmax.f32 %v729, 0.0
        %v793 = vmax.f32 %v584, 0.0
        %v794 = vmax.f32 %v633, 0.0
        %v795 = vmax.f32 %v682, 0.0
        %v796 = vmax.f32 %v731, 0.0
        %v797 = vpack.c.bf16 %v737, %v733
        %v798 = vpack.c.bf16 %v738, %v734
        %v799 = vpack.c.bf16 %v739, %v735
        %v800 = vpack.c.bf16 %v740, %v736
        %v801 = vpack.c.bf16 %v745, %v741
        %v802 = vpack.c.bf16 %v746, %v742
        %v803 = vpack.c.bf16 %v747, %v743
        %v804 = vpack.c.bf16 %v748, %v744
        %v805 = vpack.c.bf16 %v753, %v749
        %v806 = vpack.c.bf16 %v754, %v750
        %v807 = vpack.c.bf16 %v755, %v751
        %v808 = vpack.c.bf16 %v756, %v752
        %v809 = vpack.c.bf16 %v761, %v757
        %v810 = vpack.c.bf16 %v762, %v758
        %v811 = vpack.c.bf16 %v763, %v759
        %v812 = vpack.c.bf16 %v764, %v760
        %v813 = vpack.c.bf16 %v769, %v765
        %v814 = vpack.c.bf16 %v770, %v766
        %v815 = vpack.c.bf16 %v771, %v767
        %v816 = vpack.c.bf16 %v772, %v768
        %v817 = vpack.c.bf16 %v777, %v773
        %v818 = vpack.c.bf16 %v778, %v774
        %v819 = vpack.c.bf16 %v779, %v775
        %v820 = vpack.c.bf16 %v780, %v776
        %v821 = vpack.c.bf16 %v785, %v781
        %v822 = vpack.c.bf16 %v786, %v782
        %v823 = vpack.c.bf16 %v787, %v783
        %v824 = vpack.c.bf16 %v788, %v784
        %v825 = vpack.c.bf16 %v793, %v789
        %v826 = vpack.c.bf16 %v794, %v790
        %v827 = vpack.c.bf16 %v795, %v791
        %v828 = vpack.c.bf16 %v796, %v792
        %v829 = vld [vmem:[#allocation2] sm:$0xff]
        %v830 = vld [vmem:[#allocation2 + $0x8] sm:$0xff]
        %v831 = vld [vmem:[#allocation2 + $0x10] sm:$0xff]
        %v832 = vld [vmem:[#allocation2 + $0x18] sm:$0xff]
        %v833 = vld [vmem:[#allocation2 + $0x20] sm:$0xff]
        %v834 = vld [vmem:[#allocation2 + $0x28] sm:$0xff]
        %v835 = vld [vmem:[#allocation2 + $0x30] sm:$0xff]
        %v836 = vld [vmem:[#allocation2 + $0x38] sm:$0xff]
        %v837 = vld [vmem:[#allocation2 + $0x40] sm:$0xff]
        %v838 = vld [vmem:[#allocation2 + $0x48] sm:$0xff]
        %v839 = vld [vmem:[#allocation2 + $0x50] sm:$0xff]
        %v840 = vld [vmem:[#allocation2 + $0x58] sm:$0xff]
        %v841 = vld [vmem:[#allocation2 + $0x60] sm:$0xff]
        %v842 = vld [vmem:[#allocation2 + $0x68] sm:$0xff]
        %v843 = vld [vmem:[#allocation2 + $0x70] sm:$0xff]
        %v844 = vld [vmem:[#allocation2 + $0x78] sm:$0xff]
        %v845 = vld [vmem:[#allocation2 + $0x80] sm:$0xff]
        %v846 = vld [vmem:[#allocation2 + $0x88] sm:$0xff]
        %v847 = vld [vmem:[#allocation2 + $0x90] sm:$0xff]
        %v848 = vld [vmem:[#allocation2 + $0x98] sm:$0xff]
        %v849 = vld [vmem:[#allocation2 + $0xa0] sm:$0xff]
        %v850 = vld [vmem:[#allocation2 + $0xa8] sm:$0xff]
        %v851 = vld [vmem:[#allocation2 + $0xb0] sm:$0xff]
        %v852 = vld [vmem:[#allocation2 + $0xb8] sm:$0xff]
        %v853 = vld [vmem:[#allocation2 + $0xc0] sm:$0xff]
        %v854 = vld [vmem:[#allocation2 + $0xc8] sm:$0xff]
        %v855 = vld [vmem:[#allocation2 + $0xd0] sm:$0xff]
        %v856 = vld [vmem:[#allocation2 + $0xd8] sm:$0xff]
        %v857 = vld [vmem:[#allocation2 + $0xe0] sm:$0xff]
        %v858 = vld [vmem:[#allocation2 + $0xe8] sm:$0xff]
        %v859 = vld [vmem:[#allocation2 + $0xf0] sm:$0xff]
        %v860 = vld [vmem:[#allocation2 + $0xf8] sm:$0xff]
        %v861 = vld [vmem:[#allocation2 + $0x100] sm:$0xff]
        %v862 = vld [vmem:[#allocation2 + $0x108] sm:$0xff]
        %v863 = vld [vmem:[#allocation2 + $0x110] sm:$0xff]
        %v864 = vld [vmem:[#allocation2 + $0x118] sm:$0xff]
        %v865 = vld [vmem:[#allocation2 + $0x120] sm:$0xff]
        %v866 = vld [vmem:[#allocation2 + $0x128] sm:$0xff]
        %v867 = vld [vmem:[#allocation2 + $0x130] sm:$0xff]
        %v868 = vld [vmem:[#allocation2 + $0x138] sm:$0xff]
        %v869 = vld [vmem:[#allocation2 + $0x140] sm:$0xff]
        %v870 = vld [vmem:[#allocation2 + $0x148] sm:$0xff]
        %v871 = vld [vmem:[#allocation2 + $0x150] sm:$0xff]
        %v872 = vld [vmem:[#allocation2 + $0x158] sm:$0xff]
        %v873 = vld [vmem:[#allocation2 + $0x160] sm:$0xff]
        %v874 = vld [vmem:[#allocation2 + $0x168] sm:$0xff]
        %v875 = vld [vmem:[#allocation2 + $0x170] sm:$0xff]
        %v876 = vld [vmem:[#allocation2 + $0x178] sm:$0xff]
        %v877 = vld [vmem:[#allocation2 + $0x180] sm:$0xff]
        %v878 = vld [vmem:[#allocation2 + $0x188] sm:$0xff]
        %v879 = vld [vmem:[#allocation2 + $0x190] sm:$0xff]
        %v880 = vld [vmem:[#allocation2 + $0x198] sm:$0xff]
        %v881 = vld [vmem:[#allocation2 + $0x1a0] sm:$0xff]
        %v882 = vld [vmem:[#allocation2 + $0x1a8] sm:$0xff]
        %v883 = vld [vmem:[#allocation2 + $0x1b0] sm:$0xff]
        %v884 = vld [vmem:[#allocation2 + $0x1b8] sm:$0xff]
        %v885 = vld [vmem:[#allocation2 + $0x1c0] sm:$0xff]
        %v886 = vld [vmem:[#allocation2 + $0x1c8] sm:$0xff]
        %v887 = vld [vmem:[#allocation2 + $0x1d0] sm:$0xff]
        %v888 = vld [vmem:[#allocation2 + $0x1d8] sm:$0xff]
        %v889 = vld [vmem:[#allocation2 + $0x1e0] sm:$0xff]
        %v890 = vld [vmem:[#allocation2 + $0x1e8] sm:$0xff]
        %v891 = vld [vmem:[#allocation2 + $0x1f0] sm:$0xff]
        %v892 = vld [vmem:[#allocation2 + $0x1f8] sm:$0xff]
        %v893 = vld [vmem:[#allocation2 + $0x200] sm:$0xff]
        %v894 = vld [vmem:[#allocation2 + $0x208] sm:$0xff]
        %v895 = vld [vmem:[#allocation2 + $0x210] sm:$0xff]
        %v896 = vld [vmem:[#allocation2 + $0x218] sm:$0xff]
        %v897 = vld [vmem:[#allocation2 + $0x220] sm:$0xff]
        %v898 = vld [vmem:[#allocation2 + $0x228] sm:$0xff]
        %v899 = vld [vmem:[#allocation2 + $0x230] sm:$0xff]
        %v900 = vld [vmem:[#allocation2 + $0x238] sm:$0xff]
        %v901 = vld [vmem:[#allocation2 + $0x240] sm:$0xff]
        %v902 = vld [vmem:[#allocation2 + $0x248] sm:$0xff]
        %v903 = vld [vmem:[#allocation2 + $0x250] sm:$0xff]
        %v904 = vld [vmem:[#allocation2 + $0x258] sm:$0xff]
        %v905 = vld [vmem:[#allocation2 + $0x260] sm:$0xff]
        %v906 = vld [vmem:[#allocation2 + $0x268] sm:$0xff]
        %v907 = vld [vmem:[#allocation2 + $0x270] sm:$0xff]
        %v908 = vld [vmem:[#allocation2 + $0x278] sm:$0xff]
        %v909 = vld [vmem:[#allocation2 + $0x280] sm:$0xff]
        %v910 = vld [vmem:[#allocation2 + $0x288] sm:$0xff]
        %v911 = vld [vmem:[#allocation2 + $0x290] sm:$0xff]
        %v912 = vld [vmem:[#allocation2 + $0x298] sm:$0xff]
        %v913 = vld [vmem:[#allocation2 + $0x2a0] sm:$0xff]
        %v914 = vld [vmem:[#allocation2 + $0x2a8] sm:$0xff]
        %v915 = vld [vmem:[#allocation2 + $0x2b0] sm:$0xff]
        %v916 = vld [vmem:[#allocation2 + $0x2b8] sm:$0xff]
        %v917 = vld [vmem:[#allocation2 + $0x2c0] sm:$0xff]
        %v918 = vld [vmem:[#allocation2 + $0x2c8] sm:$0xff]
        %v919 = vld [vmem:[#allocation2 + $0x2d0] sm:$0xff]
        %v920 = vld [vmem:[#allocation2 + $0x2d8] sm:$0xff]
        %v921 = vld [vmem:[#allocation2 + $0x2e0] sm:$0xff]
        %v922 = vld [vmem:[#allocation2 + $0x2e8] sm:$0xff]
        %v923 = vld [vmem:[#allocation2 + $0x2f0] sm:$0xff]
        %v924 = vld [vmem:[#allocation2 + $0x2f8] sm:$0xff]
        %v925 = vld [vmem:[#allocation2 + $0x300] sm:$0xff]
        %v926 = vld [vmem:[#allocation2 + $0x308] sm:$0xff]
        %v927 = vld [vmem:[#allocation2 + $0x310] sm:$0xff]
        %v928 = vld [vmem:[#allocation2 + $0x318] sm:$0xff]
        %v929 = vld [vmem:[#allocation2 + $0x320] sm:$0xff]
        %v930 = vld [vmem:[#allocation2 + $0x328] sm:$0xff]
        %v931 = vld [vmem:[#allocation2 + $0x330] sm:$0xff]
        %v932 = vld [vmem:[#allocation2 + $0x338] sm:$0xff]
        %v933 = vld [vmem:[#allocation2 + $0x340] sm:$0xff]
        %v934 = vld [vmem:[#allocation2 + $0x348] sm:$0xff]
        %v935 = vld [vmem:[#allocation2 + $0x350] sm:$0xff]
        %v936 = vld [vmem:[#allocation2 + $0x358] sm:$0xff]
        %v937 = vld [vmem:[#allocation2 + $0x360] sm:$0xff]
        %v938 = vld [vmem:[#allocation2 + $0x368] sm:$0xff]
        %v939 = vld [vmem:[#allocation2 + $0x370] sm:$0xff]
        %v940 = vld [vmem:[#allocation2 + $0x378] sm:$0xff]
        %v941 = vld [vmem:[#allocation2 + $0x380] sm:$0xff]
        %v942 = vld [vmem:[#allocation2 + $0x388] sm:$0xff]
        %v943 = vld [vmem:[#allocation2 + $0x390] sm:$0xff]
        %v944 = vld [vmem:[#allocation2 + $0x398] sm:$0xff]
        %v945 = vld [vmem:[#allocation2 + $0x3a0] sm:$0xff]
        %v946 = vld [vmem:[#allocation2 + $0x3a8] sm:$0xff]
        %v947 = vld [vmem:[#allocation2 + $0x3b0] sm:$0xff]
        %v948 = vld [vmem:[#allocation2 + $0x3b8] sm:$0xff]
        %v949 = vld [vmem:[#allocation2 + $0x3c0] sm:$0xff]
        %v950 = vld [vmem:[#allocation2 + $0x3c8] sm:$0xff]
        %v951 = vld [vmem:[#allocation2 + $0x3d0] sm:$0xff]
        %v952 = vld [vmem:[#allocation2 + $0x3d8] sm:$0xff]
        %v953 = vld [vmem:[#allocation2 + $0x3e0] sm:$0xff]
        %v954 = vld [vmem:[#allocation2 + $0x3e8] sm:$0xff]
        %v955 = vld [vmem:[#allocation2 + $0x3f0] sm:$0xff]
        %v956 = vld [vmem:[#allocation2 + $0x3f8] sm:$0xff]
        %v957 = vld [vmem:[#allocation2 + $0x400] sm:$0xff]
        %v958 = vld [vmem:[#allocation2 + $0x408] sm:$0xff]
        %v959 = vld [vmem:[#allocation2 + $0x410] sm:$0xff]
        %v960 = vld [vmem:[#allocation2 + $0x418] sm:$0xff]
        %v961 = vld [vmem:[#allocation2 + $0x420] sm:$0xff]
        %v962 = vld [vmem:[#allocation2 + $0x428] sm:$0xff]
        %v963 = vld [vmem:[#allocation2 + $0x430] sm:$0xff]
        %v964 = vld [vmem:[#allocation2 + $0x438] sm:$0xff]
        %v965 = vld [vmem:[#allocation2 + $0x440] sm:$0xff]
        %v966 = vld [vmem:[#allocation2 + $0x448] sm:$0xff]
        %v967 = vld [vmem:[#allocation2 + $0x450] sm:$0xff]
        %v968 = vld [vmem:[#allocation2 + $0x458] sm:$0xff]
        %v969 = vld [vmem:[#allocation2 + $0x460] sm:$0xff]
        %v970 = vld [vmem:[#allocation2 + $0x468] sm:$0xff]
        %v971 = vld [vmem:[#allocation2 + $0x470] sm:$0xff]
        %v972 = vld [vmem:[#allocation2 + $0x478] sm:$0xff]
        %v973 = vld [vmem:[#allocation2 + $0x480] sm:$0xff]
        %v974 = vld [vmem:[#allocation2 + $0x488] sm:$0xff]
        %v975 = vld [vmem:[#allocation2 + $0x490] sm:$0xff]
        %v976 = vld [vmem:[#allocation2 + $0x498] sm:$0xff]
        %v977 = vld [vmem:[#allocation2 + $0x4a0] sm:$0xff]
        %v978 = vld [vmem:[#allocation2 + $0x4a8] sm:$0xff]
        %v979 = vld [vmem:[#allocation2 + $0x4b0] sm:$0xff]
        %v980 = vld [vmem:[#allocation2 + $0x4b8] sm:$0xff]
        %v981 = vld [vmem:[#allocation2 + $0x4c0] sm:$0xff]
        %v982 = vld [vmem:[#allocation2 + $0x4c8] sm:$0xff]
        %v983 = vld [vmem:[#allocation2 + $0x4d0] sm:$0xff]
        %v984 = vld [vmem:[#allocation2 + $0x4d8] sm:$0xff]
        %v985 = vld [vmem:[#allocation2 + $0x4e0] sm:$0xff]
        %v986 = vld [vmem:[#allocation2 + $0x4e8] sm:$0xff]
        %v987 = vld [vmem:[#allocation2 + $0x4f0] sm:$0xff]
        %v988 = vld [vmem:[#allocation2 + $0x4f8] sm:$0xff]
        %v989 = vld [vmem:[#allocation2 + $0x500] sm:$0xff]
        %v990 = vld [vmem:[#allocation2 + $0x508] sm:$0xff]
        %v991 = vld [vmem:[#allocation2 + $0x510] sm:$0xff]
        %v992 = vld [vmem:[#allocation2 + $0x518] sm:$0xff]
        %v993 = vld [vmem:[#allocation2 + $0x520] sm:$0xff]
        %v994 = vld [vmem:[#allocation2 + $0x528] sm:$0xff]
        %v995 = vld [vmem:[#allocation2 + $0x530] sm:$0xff]
        %v996 = vld [vmem:[#allocation2 + $0x538] sm:$0xff]
        %v997 = vld [vmem:[#allocation2 + $0x540] sm:$0xff]
        %v998 = vld [vmem:[#allocation2 + $0x548] sm:$0xff]
        %v999 = vld [vmem:[#allocation2 + $0x550] sm:$0xff]
        %v1000 = vld [vmem:[#allocation2 + $0x558] sm:$0xff]
        %v1001 = vld [vmem:[#allocation2 + $0x560] sm:$0xff]
        %v1002 = vld [vmem:[#allocation2 + $0x568] sm:$0xff]
        %v1003 = vld [vmem:[#allocation2 + $0x570] sm:$0xff]
        %v1004 = vld [vmem:[#allocation2 + $0x578] sm:$0xff]
        %v1005 = vld [vmem:[#allocation2 + $0x580] sm:$0xff]
        %v1006 = vld [vmem:[#allocation2 + $0x588] sm:$0xff]
        %v1007 = vld [vmem:[#allocation2 + $0x590] sm:$0xff]
        %v1008 = vld [vmem:[#allocation2 + $0x598] sm:$0xff]
        %v1009 = vld [vmem:[#allocation2 + $0x5a0] sm:$0xff]
        %v1010 = vld [vmem:[#allocation2 + $0x5a8] sm:$0xff]
        %v1011 = vld [vmem:[#allocation2 + $0x5b0] sm:$0xff]
        %v1012 = vld [vmem:[#allocation2 + $0x5b8] sm:$0xff]
        %v1013 = vld [vmem:[#allocation2 + $0x5c0] sm:$0xff]
        %v1014 = vld [vmem:[#allocation2 + $0x5c8] sm:$0xff]
        %v1015 = vld [vmem:[#allocation2 + $0x5d0] sm:$0xff]
        %v1016 = vld [vmem:[#allocation2 + $0x5d8] sm:$0xff]
        %v1017 = vld [vmem:[#allocation2 + $0x5e0] sm:$0xff]
        %v1018 = vld [vmem:[#allocation2 + $0x5e8] sm:$0xff]
        %v1019 = vld [vmem:[#allocation2 + $0x5f0] sm:$0xff]
        %v1020 = vld [vmem:[#allocation2 + $0x5f8] sm:$0xff]
        %v1021 = vld [vmem:[#allocation2 + $0x600] sm:$0xff]
        %v1022 = vld [vmem:[#allocation2 + $0x608] sm:$0xff]
        %v1023 = vld [vmem:[#allocation2 + $0x610] sm:$0xff]
        %v1024 = vld [vmem:[#allocation2 + $0x618] sm:$0xff]
        %v1025 = vld [vmem:[#allocation2 + $0x620] sm:$0xff]
        %v1026 = vld [vmem:[#allocation2 + $0x628] sm:$0xff]
        %v1027 = vld [vmem:[#allocation2 + $0x630] sm:$0xff]
        %v1028 = vld [vmem:[#allocation2 + $0x638] sm:$0xff]
        %v1029 = vld [vmem:[#allocation2 + $0x640] sm:$0xff]
        %v1030 = vld [vmem:[#allocation2 + $0x648] sm:$0xff]
        %v1031 = vld [vmem:[#allocation2 + $0x650] sm:$0xff]
        %v1032 = vld [vmem:[#allocation2 + $0x658] sm:$0xff]
        %v1033 = vld [vmem:[#allocation2 + $0x660] sm:$0xff]
        %v1034 = vld [vmem:[#allocation2 + $0x668] sm:$0xff]
        %v1035 = vld [vmem:[#allocation2 + $0x670] sm:$0xff]
        %v1036 = vld [vmem:[#allocation2 + $0x678] sm:$0xff]
        %v1037 = vld [vmem:[#allocation2 + $0x680] sm:$0xff]
        %v1038 = vld [vmem:[#allocation2 + $0x688] sm:$0xff]
        %v1039 = vld [vmem:[#allocation2 + $0x690] sm:$0xff]
        %v1040 = vld [vmem:[#allocation2 + $0x698] sm:$0xff]
        %v1041 = vld [vmem:[#allocation2 + $0x6a0] sm:$0xff]
        %v1042 = vld [vmem:[#allocation2 + $0x6a8] sm:$0xff]
        %v1043 = vld [vmem:[#allocation2 + $0x6b0] sm:$0xff]
        %v1044 = vld [vmem:[#allocation2 + $0x6b8] sm:$0xff]
        %v1045 = vld [vmem:[#allocation2 + $0x6c0] sm:$0xff]
        %v1046 = vld [vmem:[#allocation2 + $0x6c8] sm:$0xff]
        %v1047 = vld [vmem:[#allocation2 + $0x6d0] sm:$0xff]
        %v1048 = vld [vmem:[#allocation2 + $0x6d8] sm:$0xff]
        %v1049 = vld [vmem:[#allocation2 + $0x6e0] sm:$0xff]
        %v1050 = vld [vmem:[#allocation2 + $0x6e8] sm:$0xff]
        %v1051 = vld [vmem:[#allocation2 + $0x6f0] sm:$0xff]
        %v1052 = vld [vmem:[#allocation2 + $0x6f8] sm:$0xff]
        %v1053 = vld [vmem:[#allocation2 + $0x700] sm:$0xff]
        %v1054 = vld [vmem:[#allocation2 + $0x708] sm:$0xff]
        %v1055 = vld [vmem:[#allocation2 + $0x710] sm:$0xff]
        %v1056 = vld [vmem:[#allocation2 + $0x718] sm:$0xff]
        %v1057 = vld [vmem:[#allocation2 + $0x720] sm:$0xff]
        %v1058 = vld [vmem:[#allocation2 + $0x728] sm:$0xff]
        %v1059 = vld [vmem:[#allocation2 + $0x730] sm:$0xff]
        %v1060 = vld [vmem:[#allocation2 + $0x738] sm:$0xff]
        %v1061 = vld [vmem:[#allocation2 + $0x740] sm:$0xff]
        %v1062 = vld [vmem:[#allocation2 + $0x748] sm:$0xff]
        %v1063 = vld [vmem:[#allocation2 + $0x750] sm:$0xff]
        %v1064 = vld [vmem:[#allocation2 + $0x758] sm:$0xff]
        %v1065 = vld [vmem:[#allocation2 + $0x760] sm:$0xff]
        %v1066 = vld [vmem:[#allocation2 + $0x768] sm:$0xff]
        %v1067 = vld [vmem:[#allocation2 + $0x770] sm:$0xff]
        %v1068 = vld [vmem:[#allocation2 + $0x778] sm:$0xff]
        %v1069 = vld [vmem:[#allocation2 + $0x780] sm:$0xff]
        %v1070 = vld [vmem:[#allocation2 + $0x788] sm:$0xff]
        %v1071 = vld [vmem:[#allocation2 + $0x790] sm:$0xff]
        %v1072 = vld [vmem:[#allocation2 + $0x798] sm:$0xff]
        %v1073 = vld [vmem:[#allocation2 + $0x7a0] sm:$0xff]
        %v1074 = vld [vmem:[#allocation2 + $0x7a8] sm:$0xff]
        %v1075 = vld [vmem:[#allocation2 + $0x7b0] sm:$0xff]
        %v1076 = vld [vmem:[#allocation2 + $0x7b8] sm:$0xff]
        %v1077 = vld [vmem:[#allocation2 + $0x7c0] sm:$0xff]
        %v1078 = vld [vmem:[#allocation2 + $0x7c8] sm:$0xff]
        %v1079 = vld [vmem:[#allocation2 + $0x7d0] sm:$0xff]
        %v1080 = vld [vmem:[#allocation2 + $0x7d8] sm:$0xff]
        %v1081 = vld [vmem:[#allocation2 + $0x7e0] sm:$0xff]
        %v1082 = vld [vmem:[#allocation2 + $0x7e8] sm:$0xff]
        %v1083 = vld [vmem:[#allocation2 + $0x7f0] sm:$0xff]
        %v1084 = vld [vmem:[#allocation2 + $0x7f8] sm:$0xff]
        %v1085 = vld [vmem:[#allocation5] sm:$0xff]
        %v1087 = vperm.slane %v1085, 0
        %v1088 = vperm.slane %v1085, 1
        %v1089 = vperm.slane %v1085, 2
        %v1090 = vperm.slane %v1085, 3
        %v1091 = vperm.slane %v1085, 4
        %v1092 = vperm.slane %v1085, 5
        %v1093 = vperm.slane %v1085, 6
        %v1094 = vperm.slane %v1085, 7
        %v1359 = vunpack.c.l.b16 %v829
        %v1360 = vunpack.c.h.b16 %v829
        %v1361 = vunpack.c.l.b16 %v830
        %v1362 = vunpack.c.h.b16 %v830
        %v1363 = vunpack.c.l.b16 %v831
        %v1364 = vunpack.c.h.b16 %v831
        %v1365 = vunpack.c.l.b16 %v832
        %v1366 = vunpack.c.h.b16 %v832
        %v1367 = vunpack.c.l.b16 %v833
        %v1368 = vunpack.c.h.b16 %v833
        %v1369 = vunpack.c.l.b16 %v834
        %v1370 = vunpack.c.h.b16 %v834
        %v1371 = vunpack.c.l.b16 %v835
        %v1372 = vunpack.c.h.b16 %v835
        %v1373 = vunpack.c.l.b16 %v836
        %v1374 = vunpack.c.h.b16 %v836
        %v1375 = vunpack.c.l.b16 %v837
        %v1376 = vunpack.c.h.b16 %v837
        %v1377 = vunpack.c.l.b16 %v838
        %v1378 = vunpack.c.h.b16 %v838
        %v1379 = vunpack.c.l.b16 %v839
        %v1380 = vunpack.c.h.b16 %v839
        %v1381 = vunpack.c.l.b16 %v840
        %v1382 = vunpack.c.h.b16 %v840
        %v1383 = vunpack.c.l.b16 %v841
        %v1384 = vunpack.c.h.b16 %v841
        %v1385 = vunpack.c.l.b16 %v842
        %v1386 = vunpack.c.h.b16 %v842
        %v1387 = vunpack.c.l.b16 %v843
        %v1388 = vunpack.c.h.b16 %v843
        %v1389 = vunpack.c.l.b16 %v844
        %v1390 = vunpack.c.h.b16 %v844
        %v1391 = vunpack.c.l.b16 %v845
        %v1392 = vunpack.c.h.b16 %v845
        %v1393 = vunpack.c.l.b16 %v846
        %v1394 = vunpack.c.h.b16 %v846
        %v1395 = vunpack.c.l.b16 %v847
        %v1396 = vunpack.c.h.b16 %v847
        %v1397 = vunpack.c.l.b16 %v848
        %v1398 = vunpack.c.h.b16 %v848
        %v1399 = vunpack.c.l.b16 %v849
        %v1400 = vunpack.c.h.b16 %v849
        %v1401 = vunpack.c.l.b16 %v850
        %v1402 = vunpack.c.h.b16 %v850
        %v1403 = vunpack.c.l.b16 %v851
        %v1404 = vunpack.c.h.b16 %v851
        %v1405 = vunpack.c.l.b16 %v852
        %v1406 = vunpack.c.h.b16 %v852
        %v1407 = vunpack.c.l.b16 %v853
        %v1408 = vunpack.c.h.b16 %v853
        %v1409 = vunpack.c.l.b16 %v854
        %v1410 = vunpack.c.h.b16 %v854
        %v1411 = vunpack.c.l.b16 %v855
        %v1412 = vunpack.c.h.b16 %v855
        %v1413 = vunpack.c.l.b16 %v856
        %v1414 = vunpack.c.h.b16 %v856
        %v1415 = vunpack.c.l.b16 %v857
        %v1416 = vunpack.c.h.b16 %v857
        %v1417 = vunpack.c.l.b16 %v858
        %v1418 = vunpack.c.h.b16 %v858
        %v1419 = vunpack.c.l.b16 %v859
        %v1420 = vunpack.c.h.b16 %v859
        %v1421 = vunpack.c.l.b16 %v860
        %v1422 = vunpack.c.h.b16 %v860
        %v1423 = vunpack.c.l.b16 %v861
        %v1424 = vunpack.c.h.b16 %v861
        %v1425 = vunpack.c.l.b16 %v862
        %v1426 = vunpack.c.h.b16 %v862
        %v1427 = vunpack.c.l.b16 %v863
        %v1428 = vunpack.c.h.b16 %v863
        %v1429 = vunpack.c.l.b16 %v864
        %v1430 = vunpack.c.h.b16 %v864
        %v1431 = vunpack.c.l.b16 %v865
        %v1432 = vunpack.c.h.b16 %v865
        %v1433 = vunpack.c.l.b16 %v866
        %v1434 = vunpack.c.h.b16 %v866
        %v1435 = vunpack.c.l.b16 %v867
        %v1436 = vunpack.c.h.b16 %v867
        %v1437 = vunpack.c.l.b16 %v868
        %v1438 = vunpack.c.h.b16 %v868
        %v1439 = vunpack.c.l.b16 %v869
        %v1440 = vunpack.c.h.b16 %v869
        %v1441 = vunpack.c.l.b16 %v870
        %v1442 = vunpack.c.h.b16 %v870
        %v1443 = vunpack.c.l.b16 %v871
        %v1444 = vunpack.c.h.b16 %v871
        %v1445 = vunpack.c.l.b16 %v872
        %v1446 = vunpack.c.h.b16 %v872
        %v1447 = vunpack.c.l.b16 %v873
        %v1448 = vunpack.c.h.b16 %v873
        %v1449 = vunpack.c.l.b16 %v874
        %v1450 = vunpack.c.h.b16 %v874
        %v1451 = vunpack.c.l.b16 %v875
        %v1452 = vunpack.c.h.b16 %v875
        %v1453 = vunpack.c.l.b16 %v876
        %v1454 = vunpack.c.h.b16 %v876
        %v1455 = vunpack.c.l.b16 %v877
        %v1456 = vunpack.c.h.b16 %v877
        %v1457 = vunpack.c.l.b16 %v878
        %v1458 = vunpack.c.h.b16 %v878
        %v1459 = vunpack.c.l.b16 %v879
        %v1460 = vunpack.c.h.b16 %v879
        %v1461 = vunpack.c.l.b16 %v880
        %v1462 = vunpack.c.h.b16 %v880
        %v1463 = vunpack.c.l.b16 %v881
        %v1464 = vunpack.c.h.b16 %v881
        %v1465 = vunpack.c.l.b16 %v882
        %v1466 = vunpack.c.h.b16 %v882
        %v1467 = vunpack.c.l.b16 %v883
        %v1468 = vunpack.c.h.b16 %v883
        %v1469 = vunpack.c.l.b16 %v884
        %v1470 = vunpack.c.h.b16 %v884
        %v1471 = vunpack.c.l.b16 %v885
        %v1472 = vunpack.c.h.b16 %v885
        %v1473 = vunpack.c.l.b16 %v886
        %v1474 = vunpack.c.h.b16 %v886
        %v1475 = vunpack.c.l.b16 %v887
        %v1476 = vunpack.c.h.b16 %v887
        %v1477 = vunpack.c.l.b16 %v888
        %v1478 = vunpack.c.h.b16 %v888
        %v1479 = vunpack.c.l.b16 %v889
        %v1480 = vunpack.c.h.b16 %v889
        %v1481 = vunpack.c.l.b16 %v890
        %v1482 = vunpack.c.h.b16 %v890
        %v1483 = vunpack.c.l.b16 %v891
        %v1484 = vunpack.c.h.b16 %v891
        %v1485 = vunpack.c.l.b16 %v892
        %v1486 = vunpack.c.h.b16 %v892
        %v1487 = vunpack.c.l.b16 %v893
        %v1488 = vunpack.c.h.b16 %v893
        %v1489 = vunpack.c.l.b16 %v894
        %v1490 = vunpack.c.h.b16 %v894
        %v1491 = vunpack.c.l.b16 %v895
        %v1492 = vunpack.c.h.b16 %v895
        %v1493 = vunpack.c.l.b16 %v896
        %v1494 = vunpack.c.h.b16 %v896
        %v1495 = vunpack.c.l.b16 %v897
        %v1496 = vunpack.c.h.b16 %v897
        %v1497 = vunpack.c.l.b16 %v898
        %v1498 = vunpack.c.h.b16 %v898
        %v1499 = vunpack.c.l.b16 %v899
        %v1500 = vunpack.c.h.b16 %v899
        %v1501 = vunpack.c.l.b16 %v900
        %v1502 = vunpack.c.h.b16 %v900
        %v1503 = vunpack.c.l.b16 %v901
        %v1504 = vunpack.c.h.b16 %v901
        %v1505 = vunpack.c.l.b16 %v902
        %v1506 = vunpack.c.h.b16 %v902
        %v1507 = vunpack.c.l.b16 %v903
        %v1508 = vunpack.c.h.b16 %v903
        %v1509 = vunpack.c.l.b16 %v904
        %v1510 = vunpack.c.h.b16 %v904
        %v1511 = vunpack.c.l.b16 %v905
        %v1512 = vunpack.c.h.b16 %v905
        %v1513 = vunpack.c.l.b16 %v906
        %v1514 = vunpack.c.h.b16 %v906
        %v1515 = vunpack.c.l.b16 %v907
        %v1516 = vunpack.c.h.b16 %v907
        %v1517 = vunpack.c.l.b16 %v908
        %v1518 = vunpack.c.h.b16 %v908
        %v1519 = vunpack.c.l.b16 %v909
        %v1520 = vunpack.c.h.b16 %v909
        %v1521 = vunpack.c.l.b16 %v910
        %v1522 = vunpack.c.h.b16 %v910
        %v1523 = vunpack.c.l.b16 %v911
        %v1524 = vunpack.c.h.b16 %v911
        %v1525 = vunpack.c.l.b16 %v912
        %v1526 = vunpack.c.h.b16 %v912
        %v1527 = vunpack.c.l.b16 %v913
        %v1528 = vunpack.c.h.b16 %v913
        %v1529 = vunpack.c.l.b16 %v914
        %v1530 = vunpack.c.h.b16 %v914
        %v1531 = vunpack.c.l.b16 %v915
        %v1532 = vunpack.c.h.b16 %v915
        %v1533 = vunpack.c.l.b16 %v916
        %v1534 = vunpack.c.h.b16 %v916
        %v1535 = vunpack.c.l.b16 %v917
        %v1536 = vunpack.c.h.b16 %v917
        %v1537 = vunpack.c.l.b16 %v918
        %v1538 = vunpack.c.h.b16 %v918
        %v1539 = vunpack.c.l.b16 %v919
        %v1540 = vunpack.c.h.b16 %v919
        %v1541 = vunpack.c.l.b16 %v920
        %v1542 = vunpack.c.h.b16 %v920
        %v1543 = vunpack.c.l.b16 %v921
        %v1544 = vunpack.c.h.b16 %v921
        %v1545 = vunpack.c.l.b16 %v922
        %v1546 = vunpack.c.h.b16 %v922
        %v1547 = vunpack.c.l.b16 %v923
        %v1548 = vunpack.c.h.b16 %v923
        %v1549 = vunpack.c.l.b16 %v924
        %v1550 = vunpack.c.h.b16 %v924
        %v1551 = vunpack.c.l.b16 %v925
        %v1552 = vunpack.c.h.b16 %v925
        %v1553 = vunpack.c.l.b16 %v926
        %v1554 = vunpack.c.h.b16 %v926
        %v1555 = vunpack.c.l.b16 %v927
        %v1556 = vunpack.c.h.b16 %v927
        %v1557 = vunpack.c.l.b16 %v928
        %v1558 = vunpack.c.h.b16 %v928
        %v1559 = vunpack.c.l.b16 %v929
        %v1560 = vunpack.c.h.b16 %v929
        %v1561 = vunpack.c.l.b16 %v930
        %v1562 = vunpack.c.h.b16 %v930
        %v1563 = vunpack.c.l.b16 %v931
        %v1564 = vunpack.c.h.b16 %v931
        %v1565 = vunpack.c.l.b16 %v932
        %v1566 = vunpack.c.h.b16 %v932
        %v1567 = vunpack.c.l.b16 %v933
        %v1568 = vunpack.c.h.b16 %v933
        %v1569 = vunpack.c.l.b16 %v934
        %v1570 = vunpack.c.h.b16 %v934
        %v1571 = vunpack.c.l.b16 %v935
        %v1572 = vunpack.c.h.b16 %v935
        %v1573 = vunpack.c.l.b16 %v936
        %v1574 = vunpack.c.h.b16 %v936
        %v1575 = vunpack.c.l.b16 %v937
        %v1576 = vunpack.c.h.b16 %v937
        %v1577 = vunpack.c.l.b16 %v938
        %v1578 = vunpack.c.h.b16 %v938
        %v1579 = vunpack.c.l.b16 %v939
        %v1580 = vunpack.c.h.b16 %v939
        %v1581 = vunpack.c.l.b16 %v940
        %v1582 = vunpack.c.h.b16 %v940
        %v1583 = vunpack.c.l.b16 %v941
        %v1584 = vunpack.c.h.b16 %v941
        %v1585 = vunpack.c.l.b16 %v942
        %v1586 = vunpack.c.h.b16 %v942
        %v1587 = vunpack.c.l.b16 %v943
        %v1588 = vunpack.c.h.b16 %v943
        %v1589 = vunpack.c.l.b16 %v944
        %v1590 = vunpack.c.h.b16 %v944
        %v1591 = vunpack.c.l.b16 %v945
        %v1592 = vunpack.c.h.b16 %v945
        %v1593 = vunpack.c.l.b16 %v946
        %v1594 = vunpack.c.h.b16 %v946
        %v1595 = vunpack.c.l.b16 %v947
        %v1596 = vunpack.c.h.b16 %v947
        %v1597 = vunpack.c.l.b16 %v948
        %v1598 = vunpack.c.h.b16 %v948
        %v1599 = vunpack.c.l.b16 %v949
        %v1600 = vunpack.c.h.b16 %v949
        %v1601 = vunpack.c.l.b16 %v950
        %v1602 = vunpack.c.h.b16 %v950
        %v1603 = vunpack.c.l.b16 %v951
        %v1604 = vunpack.c.h.b16 %v951
        %v1605 = vunpack.c.l.b16 %v952
        %v1606 = vunpack.c.h.b16 %v952
        %v1607 = vunpack.c.l.b16 %v953
        %v1608 = vunpack.c.h.b16 %v953
        %v1609 = vunpack.c.l.b16 %v954
        %v1610 = vunpack.c.h.b16 %v954
        %v1611 = vunpack.c.l.b16 %v955
        %v1612 = vunpack.c.h.b16 %v955
        %v1613 = vunpack.c.l.b16 %v956
        %v1614 = vunpack.c.h.b16 %v956
        %v1615 = vunpack.c.l.b16 %v957
        %v1616 = vunpack.c.h.b16 %v957
        %v1617 = vunpack.c.l.b16 %v958
        %v1618 = vunpack.c.h.b16 %v958
        %v1619 = vunpack.c.l.b16 %v959
        %v1620 = vunpack.c.h.b16 %v959
        %v1621 = vunpack.c.l.b16 %v960
        %v1622 = vunpack.c.h.b16 %v960
        %v1623 = vunpack.c.l.b16 %v961
        %v1624 = vunpack.c.h.b16 %v961
        %v1625 = vunpack.c.l.b16 %v962
        %v1626 = vunpack.c.h.b16 %v962
        %v1627 = vunpack.c.l.b16 %v963
        %v1628 = vunpack.c.h.b16 %v963
        %v1629 = vunpack.c.l.b16 %v964
        %v1630 = vunpack.c.h.b16 %v964
        %v1631 = vunpack.c.l.b16 %v965
        %v1632 = vunpack.c.h.b16 %v965
        %v1633 = vunpack.c.l.b16 %v966
        %v1634 = vunpack.c.h.b16 %v966
        %v1635 = vunpack.c.l.b16 %v967
        %v1636 = vunpack.c.h.b16 %v967
        %v1637 = vunpack.c.l.b16 %v968
        %v1638 = vunpack.c.h.b16 %v968
        %v1639 = vunpack.c.l.b16 %v969
        %v1640 = vunpack.c.h.b16 %v969
        %v1641 = vunpack.c.l.b16 %v970
        %v1642 = vunpack.c.h.b16 %v970
        %v1643 = vunpack.c.l.b16 %v971
        %v1644 = vunpack.c.h.b16 %v971
        %v1645 = vunpack.c.l.b16 %v972
        %v1646 = vunpack.c.h.b16 %v972
        %v1647 = vunpack.c.l.b16 %v973
        %v1648 = vunpack.c.h.b16 %v973
        %v1649 = vunpack.c.l.b16 %v974
        %v1650 = vunpack.c.h.b16 %v974
        %v1651 = vunpack.c.l.b16 %v975
        %v1652 = vunpack.c.h.b16 %v975
        %v1653 = vunpack.c.l.b16 %v976
        %v1654 = vunpack.c.h.b16 %v976
        %v1655 = vunpack.c.l.b16 %v977
        %v1656 = vunpack.c.h.b16 %v977
        %v1657 = vunpack.c.l.b16 %v978
        %v1658 = vunpack.c.h.b16 %v978
        %v1659 = vunpack.c.l.b16 %v979
        %v1660 = vunpack.c.h.b16 %v979
        %v1661 = vunpack.c.l.b16 %v980
        %v1662 = vunpack.c.h.b16 %v980
        %v1663 = vunpack.c.l.b16 %v981
        %v1664 = vunpack.c.h.b16 %v981
        %v1665 = vunpack.c.l.b16 %v982
        %v1666 = vunpack.c.h.b16 %v982
        %v1667 = vunpack.c.l.b16 %v983
        %v1668 = vunpack.c.h.b16 %v983
        %v1669 = vunpack.c.l.b16 %v984
        %v1670 = vunpack.c.h.b16 %v984
        %v1671 = vunpack.c.l.b16 %v985
        %v1672 = vunpack.c.h.b16 %v985
        %v1673 = vunpack.c.l.b16 %v986
        %v1674 = vunpack.c.h.b16 %v986
        %v1675 = vunpack.c.l.b16 %v987
        %v1676 = vunpack.c.h.b16 %v987
        %v1677 = vunpack.c.l.b16 %v988
        %v1678 = vunpack.c.h.b16 %v988
        %v1679 = vunpack.c.l.b16 %v989
        %v1680 = vunpack.c.h.b16 %v989
        %v1681 = vunpack.c.l.b16 %v990
        %v1682 = vunpack.c.h.b16 %v990
        %v1683 = vunpack.c.l.b16 %v991
        %v1684 = vunpack.c.h.b16 %v991
        %v1685 = vunpack.c.l.b16 %v992
        %v1686 = vunpack.c.h.b16 %v992
        %v1687 = vunpack.c.l.b16 %v993
        %v1688 = vunpack.c.h.b16 %v993
        %v1689 = vunpack.c.l.b16 %v994
        %v1690 = vunpack.c.h.b16 %v994
        %v1691 = vunpack.c.l.b16 %v995
        %v1692 = vunpack.c.h.b16 %v995
        %v1693 = vunpack.c.l.b16 %v996
        %v1694 = vunpack.c.h.b16 %v996
        %v1695 = vunpack.c.l.b16 %v997
        %v1696 = vunpack.c.h.b16 %v997
        %v1697 = vunpack.c.l.b16 %v998
        %v1698 = vunpack.c.h.b16 %v998
        %v1699 = vunpack.c.l.b16 %v999
        %v1700 = vunpack.c.h.b16 %v999
        %v1701 = vunpack.c.l.b16 %v1000
        %v1702 = vunpack.c.h.b16 %v1000
        %v1703 = vunpack.c.l.b16 %v1001
        %v1704 = vunpack.c.h.b16 %v1001
        %v1705 = vunpack.c.l.b16 %v1002
        %v1706 = vunpack.c.h.b16 %v1002
        %v1707 = vunpack.c.l.b16 %v1003
        %v1708 = vunpack.c.h.b16 %v1003
        %v1709 = vunpack.c.l.b16 %v1004
        %v1710 = vunpack.c.h.b16 %v1004
        %v1711 = vunpack.c.l.b16 %v1005
        %v1712 = vunpack.c.h.b16 %v1005
        %v1713 = vunpack.c.l.b16 %v1006
        %v1714 = vunpack.c.h.b16 %v1006
        %v1715 = vunpack.c.l.b16 %v1007
        %v1716 = vunpack.c.h.b16 %v1007
        %v1717 = vunpack.c.l.b16 %v1008
        %v1718 = vunpack.c.h.b16 %v1008
        %v1719 = vunpack.c.l.b16 %v1009
        %v1720 = vunpack.c.h.b16 %v1009
        %v1721 = vunpack.c.l.b16 %v1010
        %v1722 = vunpack.c.h.b16 %v1010
        %v1723 = vunpack.c.l.b16 %v1011
        %v1724 = vunpack.c.h.b16 %v1011
        %v1725 = vunpack.c.l.b16 %v1012
        %v1726 = vunpack.c.h.b16 %v1012
        %v1727 = vunpack.c.l.b16 %v1013
        %v1728 = vunpack.c.h.b16 %v1013
        %v1729 = vunpack.c.l.b16 %v1014
        %v1730 = vunpack.c.h.b16 %v1014
        %v1731 = vunpack.c.l.b16 %v1015
        %v1732 = vunpack.c.h.b16 %v1015
        %v1733 = vunpack.c.l.b16 %v1016
        %v1734 = vunpack.c.h.b16 %v1016
        %v1735 = vunpack.c.l.b16 %v1017
        %v1736 = vunpack.c.h.b16 %v1017
        %v1737 = vunpack.c.l.b16 %v1018
        %v1738 = vunpack.c.h.b16 %v1018
        %v1739 = vunpack.c.l.b16 %v1019
        %v1740 = vunpack.c.h.b16 %v1019
        %v1741 = vunpack.c.l.b16 %v1020
        %v1742 = vunpack.c.h.b16 %v1020
        %v1743 = vunpack.c.l.b16 %v1021
        %v1744 = vunpack.c.h.b16 %v1021
        %v1745 = vunpack.c.l.b16 %v1022
        %v1746 = vunpack.c.h.b16 %v1022
        %v1747 = vunpack.c.l.b16 %v1023
        %v1748 = vunpack.c.h.b16 %v1023
        %v1749 = vunpack.c.l.b16 %v1024
        %v1750 = vunpack.c.h.b16 %v1024
        %v1751 = vunpack.c.l.b16 %v1025
        %v1752 = vunpack.c.h.b16 %v1025
        %v1753 = vunpack.c.l.b16 %v1026
        %v1754 = vunpack.c.h.b16 %v1026
        %v1755 = vunpack.c.l.b16 %v1027
        %v1756 = vunpack.c.h.b16 %v1027
        %v1757 = vunpack.c.l.b16 %v1028
        %v1758 = vunpack.c.h.b16 %v1028
        %v1759 = vunpack.c.l.b16 %v1029
        %v1760 = vunpack.c.h.b16 %v1029
        %v1761 = vunpack.c.l.b16 %v1030
        %v1762 = vunpack.c.h.b16 %v1030
        %v1763 = vunpack.c.l.b16 %v1031
        %v1764 = vunpack.c.h.b16 %v1031
        %v1765 = vunpack.c.l.b16 %v1032
        %v1766 = vunpack.c.h.b16 %v1032
        %v1767 = vunpack.c.l.b16 %v1033
        %v1768 = vunpack.c.h.b16 %v1033
        %v1769 = vunpack.c.l.b16 %v1034
        %v1770 = vunpack.c.h.b16 %v1034
        %v1771 = vunpack.c.l.b16 %v1035
        %v1772 = vunpack.c.h.b16 %v1035
        %v1773 = vunpack.c.l.b16 %v1036
        %v1774 = vunpack.c.h.b16 %v1036
        %v1775 = vunpack.c.l.b16 %v1037
        %v1776 = vunpack.c.h.b16 %v1037
        %v1777 = vunpack.c.l.b16 %v1038
        %v1778 = vunpack.c.h.b16 %v1038
        %v1779 = vunpack.c.l.b16 %v1039
        %v1780 = vunpack.c.h.b16 %v1039
        %v1781 = vunpack.c.l.b16 %v1040
        %v1782 = vunpack.c.h.b16 %v1040
        %v1783 = vunpack.c.l.b16 %v1041
        %v1784 = vunpack.c.h.b16 %v1041
        %v1785 = vunpack.c.l.b16 %v1042
        %v1786 = vunpack.c.h.b16 %v1042
        %v1787 = vunpack.c.l.b16 %v1043
        %v1788 = vunpack.c.h.b16 %v1043
        %v1789 = vunpack.c.l.b16 %v1044
        %v1790 = vunpack.c.h.b16 %v1044
        %v1791 = vunpack.c.l.b16 %v1045
        %v1792 = vunpack.c.h.b16 %v1045
        %v1793 = vunpack.c.l.b16 %v1046
        %v1794 = vunpack.c.h.b16 %v1046
        %v1795 = vunpack.c.l.b16 %v1047
        %v1796 = vunpack.c.h.b16 %v1047
        %v1797 = vunpack.c.l.b16 %v1048
        %v1798 = vunpack.c.h.b16 %v1048
        %v1799 = vunpack.c.l.b16 %v1049
        %v1800 = vunpack.c.h.b16 %v1049
        %v1801 = vunpack.c.l.b16 %v1050
        %v1802 = vunpack.c.h.b16 %v1050
        %v1803 = vunpack.c.l.b16 %v1051
        %v1804 = vunpack.c.h.b16 %v1051
        %v1805 = vunpack.c.l.b16 %v1052
        %v1806 = vunpack.c.h.b16 %v1052
        %v1807 = vunpack.c.l.b16 %v1053
        %v1808 = vunpack.c.h.b16 %v1053
        %v1809 = vunpack.c.l.b16 %v1054
        %v1810 = vunpack.c.h.b16 %v1054
        %v1811 = vunpack.c.l.b16 %v1055
        %v1812 = vunpack.c.h.b16 %v1055
        %v1813 = vunpack.c.l.b16 %v1056
        %v1814 = vunpack.c.h.b16 %v1056
        %v1815 = vunpack.c.l.b16 %v1057
        %v1816 = vunpack.c.h.b16 %v1057
        %v1817 = vunpack.c.l.b16 %v1058
        %v1818 = vunpack.c.h.b16 %v1058
        %v1819 = vunpack.c.l.b16 %v1059
        %v1820 = vunpack.c.h.b16 %v1059
        %v1821 = vunpack.c.l.b16 %v1060
        %v1822 = vunpack.c.h.b16 %v1060
        %v1823 = vunpack.c.l.b16 %v1061
        %v1824 = vunpack.c.h.b16 %v1061
        %v1825 = vunpack.c.l.b16 %v1062
        %v1826 = vunpack.c.h.b16 %v1062
        %v1827 = vunpack.c.l.b16 %v1063
        %v1828 = vunpack.c.h.b16 %v1063
        %v1829 = vunpack.c.l.b16 %v1064
        %v1830 = vunpack.c.h.b16 %v1064
        %v1831 = vunpack.c.l.b16 %v1065
        %v1832 = vunpack.c.h.b16 %v1065
        %v1833 = vunpack.c.l.b16 %v1066
        %v1834 = vunpack.c.h.b16 %v1066
        %v1835 = vunpack.c.l.b16 %v1067
        %v1836 = vunpack.c.h.b16 %v1067
        %v1837 = vunpack.c.l.b16 %v1068
        %v1838 = vunpack.c.h.b16 %v1068
        %v1839 = vunpack.c.l.b16 %v1069
        %v1840 = vunpack.c.h.b16 %v1069
        %v1841 = vunpack.c.l.b16 %v1070
        %v1842 = vunpack.c.h.b16 %v1070
        %v1843 = vunpack.c.l.b16 %v1071
        %v1844 = vunpack.c.h.b16 %v1071
        %v1845 = vunpack.c.l.b16 %v1072
        %v1846 = vunpack.c.h.b16 %v1072
        %v1847 = vunpack.c.l.b16 %v1073
        %v1848 = vunpack.c.h.b16 %v1073
        %v1849 = vunpack.c.l.b16 %v1074
        %v1850 = vunpack.c.h.b16 %v1074
        %v1851 = vunpack.c.l.b16 %v1075
        %v1852 = vunpack.c.h.b16 %v1075
        %v1853 = vunpack.c.l.b16 %v1076
        %v1854 = vunpack.c.h.b16 %v1076
        %v1855 = vunpack.c.l.b16 %v1077
        %v1856 = vunpack.c.h.b16 %v1077
        %v1857 = vunpack.c.l.b16 %v1078
        %v1858 = vunpack.c.h.b16 %v1078
        %v1859 = vunpack.c.l.b16 %v1079
        %v1860 = vunpack.c.h.b16 %v1079
        %v1861 = vunpack.c.l.b16 %v1080
        %v1862 = vunpack.c.h.b16 %v1080
        %v1863 = vunpack.c.l.b16 %v1081
        %v1864 = vunpack.c.h.b16 %v1081
        %v1865 = vunpack.c.l.b16 %v1082
        %v1866 = vunpack.c.h.b16 %v1082
        %v1867 = vunpack.c.l.b16 %v1083
        %v1868 = vunpack.c.h.b16 %v1083
        %v1869 = vunpack.c.l.b16 %v1084
        %v1870 = vunpack.c.h.b16 %v1084
        %v1871 = vpack.c.b16 %v1367, %v1359
        %v1872 = vpack.c.b16 %v1368, %v1360
        %v1873 = vpack.c.b16 %v1369, %v1361
        %v1874 = vpack.c.b16 %v1370, %v1362
        %v1875 = vpack.c.b16 %v1371, %v1363
        %v1876 = vpack.c.b16 %v1372, %v1364
        %v1877 = vpack.c.b16 %v1373, %v1365
        %v1878 = vpack.c.b16 %v1374, %v1366
        %v1879 = vpack.c.b16 %v1383, %v1375
        %v1880 = vpack.c.b16 %v1384, %v1376
        %v1881 = vpack.c.b16 %v1385, %v1377
        %v1882 = vpack.c.b16 %v1386, %v1378
        %v1883 = vpack.c.b16 %v1387, %v1379
        %v1884 = vpack.c.b16 %v1388, %v1380
        %v1885 = vpack.c.b16 %v1389, %v1381
        %v1886 = vpack.c.b16 %v1390, %v1382
        %v1887 = vpack.c.b16 %v1399, %v1391
        %v1888 = vpack.c.b16 %v1400, %v1392
        %v1889 = vpack.c.b16 %v1401, %v1393
        %v1890 = vpack.c.b16 %v1402, %v1394
        %v1891 = vpack.c.b16 %v1403, %v1395
        %v1892 = vpack.c.b16 %v1404, %v1396
        %v1893 = vpack.c.b16 %v1405, %v1397
        %v1894 = vpack.c.b16 %v1406, %v1398
        %v1895 = vpack.c.b16 %v1415, %v1407
        %v1896 = vpack.c.b16 %v1416, %v1408
        %v1897 = vpack.c.b16 %v1417, %v1409
        %v1898 = vpack.c.b16 %v1418, %v1410
        %v1899 = vpack.c.b16 %v1419, %v1411
        %v1900 = vpack.c.b16 %v1420, %v1412
        %v1901 = vpack.c.b16 %v1421, %v1413
        %v1902 = vpack.c.b16 %v1422, %v1414
        %v1903 = vpack.c.b16 %v1431, %v1423
        %v1904 = vpack.c.b16 %v1432, %v1424
        %v1905 = vpack.c.b16 %v1433, %v1425
        %v1906 = vpack.c.b16 %v1434, %v1426
        %v1907 = vpack.c.b16 %v1435, %v1427
        %v1908 = vpack.c.b16 %v1436, %v1428
        %v1909 = vpack.c.b16 %v1437, %v1429
        %v1910 = vpack.c.b16 %v1438, %v1430
        %v1911 = vpack.c.b16 %v1447, %v1439
        %v1912 = vpack.c.b16 %v1448, %v1440
        %v1913 = vpack.c.b16 %v1449, %v1441
        %v1914 = vpack.c.b16 %v1450, %v1442
        %v1915 = vpack.c.b16 %v1451, %v1443
        %v1916 = vpack.c.b16 %v1452, %v1444
        %v1917 = vpack.c.b16 %v1453, %v1445
        %v1918 = vpack.c.b16 %v1454, %v1446
        %v1919 = vpack.c.b16 %v1463, %v1455
        %v1920 = vpack.c.b16 %v1464, %v1456
        %v1921 = vpack.c.b16 %v1465, %v1457
        %v1922 = vpack.c.b16 %v1466, %v1458
        %v1923 = vpack.c.b16 %v1467, %v1459
        %v1924 = vpack.c.b16 %v1468, %v1460
        %v1925 = vpack.c.b16 %v1469, %v1461
        %v1926 = vpack.c.b16 %v1470, %v1462
        %v1927 = vpack.c.b16 %v1479, %v1471
        %v1928 = vpack.c.b16 %v1480, %v1472
        %v1929 = vpack.c.b16 %v1481, %v1473
        %v1930 = vpack.c.b16 %v1482, %v1474
        %v1931 = vpack.c.b16 %v1483, %v1475
        %v1932 = vpack.c.b16 %v1484, %v1476
        %v1933 = vpack.c.b16 %v1485, %v1477
        %v1934 = vpack.c.b16 %v1486, %v1478
        %v1935 = vpack.c.b16 %v1495, %v1487
        %v1936 = vpack.c.b16 %v1496, %v1488
        %v1937 = vpack.c.b16 %v1497, %v1489
        %v1938 = vpack.c.b16 %v1498, %v1490
        %v1939 = vpack.c.b16 %v1499, %v1491
        %v1940 = vpack.c.b16 %v1500, %v1492
        %v1941 = vpack.c.b16 %v1501, %v1493
        %v1942 = vpack.c.b16 %v1502, %v1494
        %v1943 = vpack.c.b16 %v1511, %v1503
        %v1944 = vpack.c.b16 %v1512, %v1504
        %v1945 = vpack.c.b16 %v1513, %v1505
        %v1946 = vpack.c.b16 %v1514, %v1506
        %v1947 = vpack.c.b16 %v1515, %v1507
        %v1948 = vpack.c.b16 %v1516, %v1508
        %v1949 = vpack.c.b16 %v1517, %v1509
        %v1950 = vpack.c.b16 %v1518, %v1510
        %v1951 = vpack.c.b16 %v1527, %v1519
        %v1952 = vpack.c.b16 %v1528, %v1520
        %v1953 = vpack.c.b16 %v1529, %v1521
        %v1954 = vpack.c.b16 %v1530, %v1522
        %v1955 = vpack.c.b16 %v1531, %v1523
        %v1956 = vpack.c.b16 %v1532, %v1524
        %v1957 = vpack.c.b16 %v1533, %v1525
        %v1958 = vpack.c.b16 %v1534, %v1526
        %v1959 = vpack.c.b16 %v1543, %v1535
        %v1960 = vpack.c.b16 %v1544, %v1536
        %v1961 = vpack.c.b16 %v1545, %v1537
        %v1962 = vpack.c.b16 %v1546, %v1538
        %v1963 = vpack.c.b16 %v1547, %v1539
        %v1964 = vpack.c.b16 %v1548, %v1540
        %v1965 = vpack.c.b16 %v1549, %v1541
        %v1966 = vpack.c.b16 %v1550, %v1542
        %v1967 = vpack.c.b16 %v1559, %v1551
        %v1968 = vpack.c.b16 %v1560, %v1552
        %v1969 = vpack.c.b16 %v1561, %v1553
        %v1970 = vpack.c.b16 %v1562, %v1554
        %v1971 = vpack.c.b16 %v1563, %v1555
        %v1972 = vpack.c.b16 %v1564, %v1556
        %v1973 = vpack.c.b16 %v1565, %v1557
        %v1974 = vpack.c.b16 %v1566, %v1558
        %v1975 = vpack.c.b16 %v1575, %v1567
        %v1976 = vpack.c.b16 %v1576, %v1568
        %v1977 = vpack.c.b16 %v1577, %v1569
        %v1978 = vpack.c.b16 %v1578, %v1570
        %v1979 = vpack.c.b16 %v1579, %v1571
        %v1980 = vpack.c.b16 %v1580, %v1572
        %v1981 = vpack.c.b16 %v1581, %v1573
        %v1982 = vpack.c.b16 %v1582, %v1574
        %v1983 = vpack.c.b16 %v1591, %v1583
        %v1984 = vpack.c.b16 %v1592, %v1584
        %v1985 = vpack.c.b16 %v1593, %v1585
        %v1986 = vpack.c.b16 %v1594, %v1586
        %v1987 = vpack.c.b16 %v1595, %v1587
        %v1988 = vpack.c.b16 %v1596, %v1588
        %v1989 = vpack.c.b16 %v1597, %v1589
        %v1990 = vpack.c.b16 %v1598, %v1590
        %v1991 = vpack.c.b16 %v1607, %v1599
        %v1992 = vpack.c.b16 %v1608, %v1600
        %v1993 = vpack.c.b16 %v1609, %v1601
        %v1994 = vpack.c.b16 %v1610, %v1602
        %v1995 = vpack.c.b16 %v1611, %v1603
        %v1996 = vpack.c.b16 %v1612, %v1604
        %v1997 = vpack.c.b16 %v1613, %v1605
        %v1998 = vpack.c.b16 %v1614, %v1606
        %v1999 = vpack.c.b16 %v1623, %v1615
        %v2000 = vpack.c.b16 %v1624, %v1616
        %v2001 = vpack.c.b16 %v1625, %v1617
        %v2002 = vpack.c.b16 %v1626, %v1618
        %v2003 = vpack.c.b16 %v1627, %v1619
        %v2004 = vpack.c.b16 %v1628, %v1620
        %v2005 = vpack.c.b16 %v1629, %v1621
        %v2006 = vpack.c.b16 %v1630, %v1622
        %v2007 = vpack.c.b16 %v1639, %v1631
        %v2008 = vpack.c.b16 %v1640, %v1632
        %v2009 = vpack.c.b16 %v1641, %v1633
        %v2010 = vpack.c.b16 %v1642, %v1634
        %v2011 = vpack.c.b16 %v1643, %v1635
        %v2012 = vpack.c.b16 %v1644, %v1636
        %v2013 = vpack.c.b16 %v1645, %v1637
        %v2014 = vpack.c.b16 %v1646, %v1638
        %v2015 = vpack.c.b16 %v1655, %v1647
        %v2016 = vpack.c.b16 %v1656, %v1648
        %v2017 = vpack.c.b16 %v1657, %v1649
        %v2018 = vpack.c.b16 %v1658, %v1650
        %v2019 = vpack.c.b16 %v1659, %v1651
        %v2020 = vpack.c.b16 %v1660, %v1652
        %v2021 = vpack.c.b16 %v1661, %v1653
        %v2022 = vpack.c.b16 %v1662, %v1654
        %v2023 = vpack.c.b16 %v1671, %v1663
        %v2024 = vpack.c.b16 %v1672, %v1664
        %v2025 = vpack.c.b16 %v1673, %v1665
        %v2026 = vpack.c.b16 %v1674, %v1666
        %v2027 = vpack.c.b16 %v1675, %v1667
        %v2028 = vpack.c.b16 %v1676, %v1668
        %v2029 = vpack.c.b16 %v1677, %v1669
        %v2030 = vpack.c.b16 %v1678, %v1670
        %v2031 = vpack.c.b16 %v1687, %v1679
        %v2032 = vpack.c.b16 %v1688, %v1680
        %v2033 = vpack.c.b16 %v1689, %v1681
        %v2034 = vpack.c.b16 %v1690, %v1682
        %v2035 = vpack.c.b16 %v1691, %v1683
        %v2036 = vpack.c.b16 %v1692, %v1684
        %v2037 = vpack.c.b16 %v1693, %v1685
        %v2038 = vpack.c.b16 %v1694, %v1686
        %v2039 = vpack.c.b16 %v1703, %v1695
        %v2040 = vpack.c.b16 %v1704, %v1696
        %v2041 = vpack.c.b16 %v1705, %v1697
        %v2042 = vpack.c.b16 %v1706, %v1698
        %v2043 = vpack.c.b16 %v1707, %v1699
        %v2044 = vpack.c.b16 %v1708, %v1700
        %v2045 = vpack.c.b16 %v1709, %v1701
        %v2046 = vpack.c.b16 %v1710, %v1702
        %v2047 = vpack.c.b16 %v1719, %v1711
        %v2048 = vpack.c.b16 %v1720, %v1712
        %v2049 = vpack.c.b16 %v1721, %v1713
        %v2050 = vpack.c.b16 %v1722, %v1714
        %v2051 = vpack.c.b16 %v1723, %v1715
        %v2052 = vpack.c.b16 %v1724, %v1716
        %v2053 = vpack.c.b16 %v1725, %v1717
        %v2054 = vpack.c.b16 %v1726, %v1718
        %v2055 = vpack.c.b16 %v1735, %v1727
        %v2056 = vpack.c.b16 %v1736, %v1728
        %v2057 = vpack.c.b16 %v1737, %v1729
        %v2058 = vpack.c.b16 %v1738, %v1730
        %v2059 = vpack.c.b16 %v1739, %v1731
        %v2060 = vpack.c.b16 %v1740, %v1732
        %v2061 = vpack.c.b16 %v1741, %v1733
        %v2062 = vpack.c.b16 %v1742, %v1734
        %v2063 = vpack.c.b16 %v1751, %v1743
        %v2064 = vpack.c.b16 %v1752, %v1744
        %v2065 = vpack.c.b16 %v1753, %v1745
        %v2066 = vpack.c.b16 %v1754, %v1746
        %v2067 = vpack.c.b16 %v1755, %v1747
        %v2068 = vpack.c.b16 %v1756, %v1748
        %v2069 = vpack.c.b16 %v1757, %v1749
        %v2070 = vpack.c.b16 %v1758, %v1750
        %v2071 = vpack.c.b16 %v1767, %v1759
        %v2072 = vpack.c.b16 %v1768, %v1760
        %v2073 = vpack.c.b16 %v1769, %v1761
        %v2074 = vpack.c.b16 %v1770, %v1762
        %v2075 = vpack.c.b16 %v1771, %v1763
        %v2076 = vpack.c.b16 %v1772, %v1764
        %v2077 = vpack.c.b16 %v1773, %v1765
        %v2078 = vpack.c.b16 %v1774, %v1766
        %v2079 = vpack.c.b16 %v1783, %v1775
        %v2080 = vpack.c.b16 %v1784, %v1776
        %v2081 = vpack.c.b16 %v1785, %v1777
        %v2082 = vpack.c.b16 %v1786, %v1778
        %v2083 = vpack.c.b16 %v1787, %v1779
        %v2084 = vpack.c.b16 %v1788, %v1780
        %v2085 = vpack.c.b16 %v1789, %v1781
        %v2086 = vpack.c.b16 %v1790, %v1782
        %v2087 = vpack.c.b16 %v1799, %v1791
        %v2088 = vpack.c.b16 %v1800, %v1792
        %v2089 = vpack.c.b16 %v1801, %v1793
        %v2090 = vpack.c.b16 %v1802, %v1794
        %v2091 = vpack.c.b16 %v1803, %v1795
        %v2092 = vpack.c.b16 %v1804, %v1796
        %v2093 = vpack.c.b16 %v1805, %v1797
        %v2094 = vpack.c.b16 %v1806, %v1798
        %v2095 = vpack.c.b16 %v1815, %v1807
        %v2096 = vpack.c.b16 %v1816, %v1808
        %v2097 = vpack.c.b16 %v1817, %v1809
        %v2098 = vpack.c.b16 %v1818, %v1810
        %v2099 = vpack.c.b16 %v1819, %v1811
        %v2100 = vpack.c.b16 %v1820, %v1812
        %v2101 = vpack.c.b16 %v1821, %v1813
        %v2102 = vpack.c.b16 %v1822, %v1814
        %v2103 = vpack.c.b16 %v1831, %v1823
        %v2104 = vpack.c.b16 %v1832, %v1824
        %v2105 = vpack.c.b16 %v1833, %v1825
        %v2106 = vpack.c.b16 %v1834, %v1826
        %v2107 = vpack.c.b16 %v1835, %v1827
        %v2108 = vpack.c.b16 %v1836, %v1828
        %v2109 = vpack.c.b16 %v1837, %v1829
        %v2110 = vpack.c.b16 %v1838, %v1830
        %v2111 = vpack.c.b16 %v1847, %v1839
        %v2112 = vpack.c.b16 %v1848, %v1840
        %v2113 = vpack.c.b16 %v1849, %v1841
        %v2114 = vpack.c.b16 %v1850, %v1842
        %v2115 = vpack.c.b16 %v1851, %v1843
        %v2116 = vpack.c.b16 %v1852, %v1844
        %v2117 = vpack.c.b16 %v1853, %v1845
        %v2118 = vpack.c.b16 %v1854, %v1846
        %v2119 = vpack.c.b16 %v1863, %v1855
        %v2120 = vpack.c.b16 %v1864, %v1856
        %v2121 = vpack.c.b16 %v1865, %v1857
        %v2122 = vpack.c.b16 %v1866, %v1858
        %v2123 = vpack.c.b16 %v1867, %v1859
        %v2124 = vpack.c.b16 %v1868, %v1860
        %v2125 = vpack.c.b16 %v1869, %v1861
        %v2126 = vpack.c.b16 %v1870, %v1862
        %2383 = vmatpush.bf16.msra.mxu0 %v1927
        %2384 = vmatpush.bf16.msra.mxu0 %v1919
        %2385 = vmatpush.bf16.msra.mxu0 %v1911
        %2386 = vmatpush.bf16.msra.mxu0 %v1903
        %2387 = vmatpush.bf16.msra.mxu0 %v1895
        %2388 = vmatpush.bf16.msra.mxu0 %v1887
        %2389 = vmatpush.bf16.msra.mxu0 %v1879
        %2390 = vmatpush.bf16.msra.mxu0 %v1871
        %2391 = vmatmul.bf16.gmra.mxu0 %v797
        %v2392 = vpop.f32.mrf.mxu0
        %v2393 = vadd.f32 %v1087, %v2392
        %v2394 = vpop.f32.mrf.mxu0
        %v2395 = vadd.f32 %v1087, %v2394
        %2396 = vmatmul.bf16.gmra.mxu0 %v801
        %v2397 = vpop.f32.mrf.mxu0
        %v2398 = vadd.f32 %v1087, %v2397
        %v2399 = vpop.f32.mrf.mxu0
        %v2400 = vadd.f32 %v1087, %v2399
        %2401 = vmatmul.bf16.gmra.mxu0 %v805
        %v2402 = vpop.f32.mrf.mxu0
        %v2403 = vadd.f32 %v1087, %v2402
        %v2404 = vpop.f32.mrf.mxu0
        %v2405 = vadd.f32 %v1087, %v2404
        %2406 = vmatmul.bf16.gmra.mxu0 %v809
        %v2407 = vpop.f32.mrf.mxu0
        %v2408 = vadd.f32 %v1087, %v2407
        %v2409 = vpop.f32.mrf.mxu0
        %v2410 = vadd.f32 %v1087, %v2409
        %2411 = vmatmul.bf16.gmra.mxu0 %v813
        %v2412 = vpop.f32.mrf.mxu0
        %v2413 = vadd.f32 %v1087, %v2412
        %v2414 = vpop.f32.mrf.mxu0
        %v2415 = vadd.f32 %v1087, %v2414
        %2416 = vmatmul.bf16.gmra.mxu0 %v817
        %v2417 = vpop.f32.mrf.mxu0
        %v2418 = vadd.f32 %v1087, %v2417
        %v2419 = vpop.f32.mrf.mxu0
        %v2420 = vadd.f32 %v1087, %v2419
        %2421 = vmatmul.bf16.gmra.mxu0 %v821
        %v2422 = vpop.f32.mrf.mxu0
        %v2423 = vadd.f32 %v1087, %v2422
        %v2424 = vpop.f32.mrf.mxu0
        %v2425 = vadd.f32 %v1087, %v2424
        %2426 = vmatmul.bf16.gmra.mxu0 %v825
        %v2427 = vpop.f32.mrf.mxu0
        %v2428 = vadd.f32 %v1087, %v2427
        %v2429 = vpop.f32.mrf.mxu0
        %v2430 = vadd.f32 %v1087, %v2429
        %2431 = vdwg.mxu0
        %2432 = vmatpush.bf16.msra.mxu0 %v1991
        %2433 = vmatpush.bf16.msra.mxu0 %v1983
        %2434 = vmatpush.bf16.msra.mxu0 %v1975
        %2435 = vmatpush.bf16.msra.mxu0 %v1967
        %2436 = vmatpush.bf16.msra.mxu0 %v1959
        %2437 = vmatpush.bf16.msra.mxu0 %v1951
        %2438 = vmatpush.bf16.msra.mxu0 %v1943
        %2439 = vmatpush.bf16.msra.mxu0 %v1935
        %2440 = vmatmul.bf16.gmra.mxu0 %v798
        %v2441 = vpop.f32.mrf.mxu0
        %v2442 = vadd.f32 %v2393, %v2441
        %v2443 = vpop.f32.mrf.mxu0
        %v2444 = vadd.f32 %v2395, %v2443
        %2445 = vmatmul.bf16.gmra.mxu0 %v802
        %v2446 = vpop.f32.mrf.mxu0
        %v2447 = vadd.f32 %v2398, %v2446
        %v2448 = vpop.f32.mrf.mxu0
        %v2449 = vadd.f32 %v2400, %v2448
        %2450 = vmatmul.bf16.gmra.mxu0 %v806
        %v2451 = vpop.f32.mrf.mxu0
        %v2452 = vadd.f32 %v2403, %v2451
        %v2453 = vpop.f32.mrf.mxu0
        %v2454 = vadd.f32 %v2405, %v2453
        %2455 = vmatmul.bf16.gmra.mxu0 %v810
        %v2456 = vpop.f32.mrf.mxu0
        %v2457 = vadd.f32 %v2408, %v2456
        %v2458 = vpop.f32.mrf.mxu0
        %v2459 = vadd.f32 %v2410, %v2458
        %2460 = vmatmul.bf16.gmra.mxu0 %v814
        %v2461 = vpop.f32.mrf.mxu0
        %v2462 = vadd.f32 %v2413, %v2461
        %v2463 = vpop.f32.mrf.mxu0
        %v2464 = vadd.f32 %v2415, %v2463
        %2465 = vmatmul.bf16.gmra.mxu0 %v818
        %v2466 = vpop.f32.mrf.mxu0
        %v2467 = vadd.f32 %v2418, %v2466
        %v2468 = vpop.f32.mrf.mxu0
        %v2469 = vadd.f32 %v2420, %v2468
        %2470 = vmatmul.bf16.gmra.mxu0 %v822
        %v2471 = vpop.f32.mrf.mxu0
        %v2472 = vadd.f32 %v2423, %v2471
        %v2473 = vpop.f32.mrf.mxu0
        %v2474 = vadd.f32 %v2425, %v2473
        %2475 = vmatmul.bf16.gmra.mxu0 %v826
        %v2476 = vpop.f32.mrf.mxu0
        %v2477 = vadd.f32 %v2428, %v2476
        %v2478 = vpop.f32.mrf.mxu0
        %v2479 = vadd.f32 %v2430, %v2478
        %2480 = vdwg.mxu0
        %2481 = vmatpush.bf16.msra.mxu0 %v2055
        %2482 = vmatpush.bf16.msra.mxu0 %v2047
        %2483 = vmatpush.bf16.msra.mxu0 %v2039
        %2484 = vmatpush.bf16.msra.mxu0 %v2031
        %2485 = vmatpush.bf16.msra.mxu0 %v2023
        %2486 = vmatpush.bf16.msra.mxu0 %v2015
        %2487 = vmatpush.bf16.msra.mxu0 %v2007
        %2488 = vmatpush.bf16.msra.mxu0 %v1999
        %2489 = vmatmul.bf16.gmra.mxu0 %v799
        %v2490 = vpop.f32.mrf.mxu0
        %v2491 = vadd.f32 %v2442, %v2490
        %v2492 = vpop.f32.mrf.mxu0
        %v2493 = vadd.f32 %v2444, %v2492
        %2494 = vmatmul.bf16.gmra.mxu0 %v803
        %v2495 = vpop.f32.mrf.mxu0
        %v2496 = vadd.f32 %v2447, %v2495
        %v2497 = vpop.f32.mrf.mxu0
        %v2498 = vadd.f32 %v2449, %v2497
        %2499 = vmatmul.bf16.gmra.mxu0 %v807
        %v2500 = vpop.f32.mrf.mxu0
        %v2501 = vadd.f32 %v2452, %v2500
        %v2502 = vpop.f32.mrf.mxu0
        %v2503 = vadd.f32 %v2454, %v2502
        %2504 = vmatmul.bf16.gmra.mxu0 %v811
        %v2505 = vpop.f32.mrf.mxu0
        %v2506 = vadd.f32 %v2457, %v2505
        %v2507 = vpop.f32.mrf.mxu0
        %v2508 = vadd.f32 %v2459, %v2507
        %2509 = vmatmul.bf16.gmra.mxu0 %v815
        %v2510 = vpop.f32.mrf.mxu0
        %v2511 = vadd.f32 %v2462, %v2510
        %v2512 = vpop.f32.mrf.mxu0
        %v2513 = vadd.f32 %v2464, %v2512
        %2514 = vmatmul.bf16.gmra.mxu0 %v819
        %v2515 = vpop.f32.mrf.mxu0
        %v2516 = vadd.f32 %v2467, %v2515
        %v2517 = vpop.f32.mrf.mxu0
        %v2518 = vadd.f32 %v2469, %v2517
        %2519 = vmatmul.bf16.gmra.mxu0 %v823
        %v2520 = vpop.f32.mrf.mxu0
        %v2521 = vadd.f32 %v2472, %v2520
        %v2522 = vpop.f32.mrf.mxu0
        %v2523 = vadd.f32 %v2474, %v2522
        %2524 = vmatmul.bf16.gmra.mxu0 %v827
        %v2525 = vpop.f32.mrf.mxu0
        %v2526 = vadd.f32 %v2477, %v2525
        %v2527 = vpop.f32.mrf.mxu0
        %v2528 = vadd.f32 %v2479, %v2527
        %2529 = vdwg.mxu0
        %2530 = vmatpush.bf16.msra.mxu0 %v2119
        %2531 = vmatpush.bf16.msra.mxu0 %v2111
        %2532 = vmatpush.bf16.msra.mxu0 %v2103
        %2533 = vmatpush.bf16.msra.mxu0 %v2095
        %2534 = vmatpush.bf16.msra.mxu0 %v2087
        %2535 = vmatpush.bf16.msra.mxu0 %v2079
        %2536 = vmatpush.bf16.msra.mxu0 %v2071
        %2537 = vmatpush.bf16.msra.mxu0 %v2063
        %2538 = vmatmul.bf16.gmra.mxu0 %v800
        %v2539 = vpop.f32.mrf.mxu0
        %v2540 = vadd.f32 %v2491, %v2539
        %v2541 = vpop.f32.mrf.mxu0
        %v2542 = vadd.f32 %v2493, %v2541
        %2543 = vmatmul.bf16.gmra.mxu0 %v804
        %v2544 = vpop.f32.mrf.mxu0
        %v2545 = vadd.f32 %v2496, %v2544
        %v2546 = vpop.f32.mrf.mxu0
        %v2547 = vadd.f32 %v2498, %v2546
        %2548 = vmatmul.bf16.gmra.mxu0 %v808
        %v2549 = vpop.f32.mrf.mxu0
        %v2550 = vadd.f32 %v2501, %v2549
        %v2551 = vpop.f32.mrf.mxu0
        %v2552 = vadd.f32 %v2503, %v2551
        %2553 = vmatmul.bf16.gmra.mxu0 %v812
        %v2554 = vpop.f32.mrf.mxu0
        %v2555 = vadd.f32 %v2506, %v2554
        %v2556 = vpop.f32.mrf.mxu0
        %v2557 = vadd.f32 %v2508, %v2556
        %2558 = vmatmul.bf16.gmra.mxu0 %v816
        %v2559 = vpop.f32.mrf.mxu0
        %v2560 = vadd.f32 %v2511, %v2559
        %v2561 = vpop.f32.mrf.mxu0
        %v2562 = vadd.f32 %v2513, %v2561
        %2563 = vmatmul.bf16.gmra.mxu0 %v820
        %v2564 = vpop.f32.mrf.mxu0
        %v2565 = vadd.f32 %v2516, %v2564
        %v2566 = vpop.f32.mrf.mxu0
        %v2567 = vadd.f32 %v2518, %v2566
        %2568 = vmatmul.bf16.gmra.mxu0 %v824
        %v2569 = vpop.f32.mrf.mxu0
        %v2570 = vadd.f32 %v2521, %v2569
        %v2571 = vpop.f32.mrf.mxu0
        %v2572 = vadd.f32 %v2523, %v2571
        %2573 = vmatmul.bf16.gmra.mxu0 %v828
        %v2574 = vpop.f32.mrf.mxu0
        %v2575 = vadd.f32 %v2526, %v2574
        %v2576 = vpop.f32.mrf.mxu0
        %v2577 = vadd.f32 %v2528, %v2576
        %2578 = vdwg.mxu0
        %2579 = vmatpush.bf16.msra.mxu0 %v1928
        %2580 = vmatpush.bf16.msra.mxu0 %v1920
        %2581 = vmatpush.bf16.msra.mxu0 %v1912
        %2582 = vmatpush.bf16.msra.mxu0 %v1904
        %2583 = vmatpush.bf16.msra.mxu0 %v1896
        %2584 = vmatpush.bf16.msra.mxu0 %v1888
        %2585 = vmatpush.bf16.msra.mxu0 %v1880
        %2586 = vmatpush.bf16.msra.mxu0 %v1872
        %2587 = vmatmul.bf16.gmra.mxu0 %v797
        %v2588 = vpop.f32.mrf.mxu0
        %v2589 = vadd.f32 %v1088, %v2588
        %v2590 = vpop.f32.mrf.mxu0
        %v2591 = vadd.f32 %v1088, %v2590
        %2592 = vmatmul.bf16.gmra.mxu0 %v801
        %v2593 = vpop.f32.mrf.mxu0
        %v2594 = vadd.f32 %v1088, %v2593
        %v2595 = vpop.f32.mrf.mxu0
        %v2596 = vadd.f32 %v1088, %v2595
        %2597 = vmatmul.bf16.gmra.mxu0 %v805
        %v2598 = vpop.f32.mrf.mxu0
        %v2599 = vadd.f32 %v1088, %v2598
        %v2600 = vpop.f32.mrf.mxu0
        %v2601 = vadd.f32 %v1088, %v2600
        %2602 = vmatmul.bf16.gmra.mxu0 %v809
        %v2603 = vpop.f32.mrf.mxu0
        %v2604 = vadd.f32 %v1088, %v2603
        %v2605 = vpop.f32.mrf.mxu0
        %v2606 = vadd.f32 %v1088, %v2605
        %2607 = vmatmul.bf16.gmra.mxu0 %v813
        %v2608 = vpop.f32.mrf.mxu0
        %v2609 = vadd.f32 %v1088, %v2608
        %v2610 = vpop.f32.mrf.mxu0
        %v2611 = vadd.f32 %v1088, %v2610
        %2612 = vmatmul.bf16.gmra.mxu0 %v817
        %v2613 = vpop.f32.mrf.mxu0
        %v2614 = vadd.f32 %v1088, %v2613
        %v2615 = vpop.f32.mrf.mxu0
        %v2616 = vadd.f32 %v1088, %v2615
        %2617 = vmatmul.bf16.gmra.mxu0 %v821
        %v2618 = vpop.f32.mrf.mxu0
        %v2619 = vadd.f32 %v1088, %v2618
        %v2620 = vpop.f32.mrf.mxu0
        %v2621 = vadd.f32 %v1088, %v2620
        %2622 = vmatmul.bf16.gmra.mxu0 %v825
        %v2623 = vpop.f32.mrf.mxu0
        %v2624 = vadd.f32 %v1088, %v2623
        %v2625 = vpop.f32.mrf.mxu0
        %v2626 = vadd.f32 %v1088, %v2625
        %2627 = vdwg.mxu0
        %2628 = vmatpush.bf16.msra.mxu0 %v1992
        %2629 = vmatpush.bf16.msra.mxu0 %v1984
        %2630 = vmatpush.bf16.msra.mxu0 %v1976
        %2631 = vmatpush.bf16.msra.mxu0 %v1968
        %2632 = vmatpush.bf16.msra.mxu0 %v1960
        %2633 = vmatpush.bf16.msra.mxu0 %v1952
        %2634 = vmatpush.bf16.msra.mxu0 %v1944
        %2635 = vmatpush.bf16.msra.mxu0 %v1936
        %2636 = vmatmul.bf16.gmra.mxu0 %v798
        %v2637 = vpop.f32.mrf.mxu0
        %v2638 = vadd.f32 %v2589, %v2637
        %v2639 = vpop.f32.mrf.mxu0
        %v2640 = vadd.f32 %v2591, %v2639
        %2641 = vmatmul.bf16.gmra.mxu0 %v802
        %v2642 = vpop.f32.mrf.mxu0
        %v2643 = vadd.f32 %v2594, %v2642
        %v2644 = vpop.f32.mrf.mxu0
        %v2645 = vadd.f32 %v2596, %v2644
        %2646 = vmatmul.bf16.gmra.mxu0 %v806
        %v2647 = vpop.f32.mrf.mxu0
        %v2648 = vadd.f32 %v2599, %v2647
        %v2649 = vpop.f32.mrf.mxu0
        %v2650 = vadd.f32 %v2601, %v2649
        %2651 = vmatmul.bf16.gmra.mxu0 %v810
        %v2652 = vpop.f32.mrf.mxu0
        %v2653 = vadd.f32 %v2604, %v2652
        %v2654 = vpop.f32.mrf.mxu0
        %v2655 = vadd.f32 %v2606, %v2654
        %2656 = vmatmul.bf16.gmra.mxu0 %v814
        %v2657 = vpop.f32.mrf.mxu0
        %v2658 = vadd.f32 %v2609, %v2657
        %v2659 = vpop.f32.mrf.mxu0
        %v2660 = vadd.f32 %v2611, %v2659
        %2661 = vmatmul.bf16.gmra.mxu0 %v818
        %v2662 = vpop.f32.mrf.mxu0
        %v2663 = vadd.f32 %v2614, %v2662
        %v2664 = vpop.f32.mrf.mxu0
        %v2665 = vadd.f32 %v2616, %v2664
        %2666 = vmatmul.bf16.gmra.mxu0 %v822
        %v2667 = vpop.f32.mrf.mxu0
        %v2668 = vadd.f32 %v2619, %v2667
        %v2669 = vpop.f32.mrf.mxu0
        %v2670 = vadd.f32 %v2621, %v2669
        %2671 = vmatmul.bf16.gmra.mxu0 %v826
        %v2672 = vpop.f32.mrf.mxu0
        %v2673 = vadd.f32 %v2624, %v2672
        %v2674 = vpop.f32.mrf.mxu0
        %v2675 = vadd.f32 %v2626, %v2674
        %2676 = vdwg.mxu0
        %2677 = vmatpush.bf16.msra.mxu0 %v2056
        %2678 = vmatpush.bf16.msra.mxu0 %v2048
        %2679 = vmatpush.bf16.msra.mxu0 %v2040
        %2680 = vmatpush.bf16.msra.mxu0 %v2032
        %2681 = vmatpush.bf16.msra.mxu0 %v2024
        %2682 = vmatpush.bf16.msra.mxu0 %v2016
        %2683 = vmatpush.bf16.msra.mxu0 %v2008
        %2684 = vmatpush.bf16.msra.mxu0 %v2000
        %2685 = vmatmul.bf16.gmra.mxu0 %v799
        %v2686 = vpop.f32.mrf.mxu0
        %v2687 = vadd.f32 %v2638, %v2686
        %v2688 = vpop.f32.mrf.mxu0
        %v2689 = vadd.f32 %v2640, %v2688
        %2690 = vmatmul.bf16.gmra.mxu0 %v803
        %v2691 = vpop.f32.mrf.mxu0
        %v2692 = vadd.f32 %v2643, %v2691
        %v2693 = vpop.f32.mrf.mxu0
        %v2694 = vadd.f32 %v2645, %v2693
        %2695 = vmatmul.bf16.gmra.mxu0 %v807
        %v2696 = vpop.f32.mrf.mxu0
        %v2697 = vadd.f32 %v2648, %v2696
        %v2698 = vpop.f32.mrf.mxu0
        %v2699 = vadd.f32 %v2650, %v2698
        %2700 = vmatmul.bf16.gmra.mxu0 %v811
        %v2701 = vpop.f32.mrf.mxu0
        %v2702 = vadd.f32 %v2653, %v2701
        %v2703 = vpop.f32.mrf.mxu0
        %v2704 = vadd.f32 %v2655, %v2703
        %2705 = vmatmul.bf16.gmra.mxu0 %v815
        %v2706 = vpop.f32.mrf.mxu0
        %v2707 = vadd.f32 %v2658, %v2706
        %v2708 = vpop.f32.mrf.mxu0
        %v2709 = vadd.f32 %v2660, %v2708
        %2710 = vmatmul.bf16.gmra.mxu0 %v819
        %v2711 = vpop.f32.mrf.mxu0
        %v2712 = vadd.f32 %v2663, %v2711
        %v2713 = vpop.f32.mrf.mxu0
        %v2714 = vadd.f32 %v2665, %v2713
        %2715 = vmatmul.bf16.gmra.mxu0 %v823
        %v2716 = vpop.f32.mrf.mxu0
        %v2717 = vadd.f32 %v2668, %v2716
        %v2718 = vpop.f32.mrf.mxu0
        %v2719 = vadd.f32 %v2670, %v2718
        %2720 = vmatmul.bf16.gmra.mxu0 %v827
        %v2721 = vpop.f32.mrf.mxu0
        %v2722 = vadd.f32 %v2673, %v2721
        %v2723 = vpop.f32.mrf.mxu0
        %v2724 = vadd.f32 %v2675, %v2723
        %2725 = vdwg.mxu0
        %2726 = vmatpush.bf16.msra.mxu0 %v2120
        %2727 = vmatpush.bf16.msra.mxu0 %v2112
        %2728 = vmatpush.bf16.msra.mxu0 %v2104
        %2729 = vmatpush.bf16.msra.mxu0 %v2096
        %2730 = vmatpush.bf16.msra.mxu0 %v2088
        %2731 = vmatpush.bf16.msra.mxu0 %v2080
        %2732 = vmatpush.bf16.msra.mxu0 %v2072
        %2733 = vmatpush.bf16.msra.mxu0 %v2064
        %2734 = vmatmul.bf16.gmra.mxu0 %v800
        %v2735 = vpop.f32.mrf.mxu0
        %v2736 = vadd.f32 %v2687, %v2735
        %v2737 = vpop.f32.mrf.mxu0
        %v2738 = vadd.f32 %v2689, %v2737
        %2739 = vmatmul.bf16.gmra.mxu0 %v804
        %v2740 = vpop.f32.mrf.mxu0
        %v2741 = vadd.f32 %v2692, %v2740
        %v2742 = vpop.f32.mrf.mxu0
        %v2743 = vadd.f32 %v2694, %v2742
        %2744 = vmatmul.bf16.gmra.mxu0 %v808
        %v2745 = vpop.f32.mrf.mxu0
        %v2746 = vadd.f32 %v2697, %v2745
        %v2747 = vpop.f32.mrf.mxu0
        %v2748 = vadd.f32 %v2699, %v2747
        %2749 = vmatmul.bf16.gmra.mxu0 %v812
        %v2750 = vpop.f32.mrf.mxu0
        %v2751 = vadd.f32 %v2702, %v2750
        %v2752 = vpop.f32.mrf.mxu0
        %v2753 = vadd.f32 %v2704, %v2752
        %2754 = vmatmul.bf16.gmra.mxu0 %v816
        %v2755 = vpop.f32.mrf.mxu0
        %v2756 = vadd.f32 %v2707, %v2755
        %v2757 = vpop.f32.mrf.mxu0
        %v2758 = vadd.f32 %v2709, %v2757
        %2759 = vmatmul.bf16.gmra.mxu0 %v820
        %v2760 = vpop.f32.mrf.mxu0
        %v2761 = vadd.f32 %v2712, %v2760
        %v2762 = vpop.f32.mrf.mxu0
        %v2763 = vadd.f32 %v2714, %v2762
        %2764 = vmatmul.bf16.gmra.mxu0 %v824
        %v2765 = vpop.f32.mrf.mxu0
        %v2766 = vadd.f32 %v2717, %v2765
        %v2767 = vpop.f32.mrf.mxu0
        %v2768 = vadd.f32 %v2719, %v2767
        %2769 = vmatmul.bf16.gmra.mxu0 %v828
        %v2770 = vpop.f32.mrf.mxu0
        %v2771 = vadd.f32 %v2722, %v2770
        %v2772 = vpop.f32.mrf.mxu0
        %v2773 = vadd.f32 %v2724, %v2772
        %2774 = vdwg.mxu0
        %2775 = vmatpush.bf16.msra.mxu0 %v1929
        %2776 = vmatpush.bf16.msra.mxu0 %v1921
        %2777 = vmatpush.bf16.msra.mxu0 %v1913
        %2778 = vmatpush.bf16.msra.mxu0 %v1905
        %2779 = vmatpush.bf16.msra.mxu0 %v1897
        %2780 = vmatpush.bf16.msra.mxu0 %v1889
        %2781 = vmatpush.bf16.msra.mxu0 %v1881
        %2782 = vmatpush.bf16.msra.mxu0 %v1873
        %2783 = vmatmul.bf16.gmra.mxu0 %v797
        %v2784 = vpop.f32.mrf.mxu0
        %v2785 = vadd.f32 %v1089, %v2784
        %v2786 = vpop.f32.mrf.mxu0
        %v2787 = vadd.f32 %v1089, %v2786
        %2788 = vmatmul.bf16.gmra.mxu0 %v801
        %v2789 = vpop.f32.mrf.mxu0
        %v2790 = vadd.f32 %v1089, %v2789
        %v2791 = vpop.f32.mrf.mxu0
        %v2792 = vadd.f32 %v1089, %v2791
        %2793 = vmatmul.bf16.gmra.mxu0 %v805
        %v2794 = vpop.f32.mrf.mxu0
        %v2795 = vadd.f32 %v1089, %v2794
        %v2796 = vpop.f32.mrf.mxu0
        %v2797 = vadd.f32 %v1089, %v2796
        %2798 = vmatmul.bf16.gmra.mxu0 %v809
        %v2799 = vpop.f32.mrf.mxu0
        %v2800 = vadd.f32 %v1089, %v2799
        %v2801 = vpop.f32.mrf.mxu0
        %v2802 = vadd.f32 %v1089, %v2801
        %2803 = vmatmul.bf16.gmra.mxu0 %v813
        %v2804 = vpop.f32.mrf.mxu0
        %v2805 = vadd.f32 %v1089, %v2804
        %v2806 = vpop.f32.mrf.mxu0
        %v2807 = vadd.f32 %v1089, %v2806
        %2808 = vmatmul.bf16.gmra.mxu0 %v817
        %v2809 = vpop.f32.mrf.mxu0
        %v2810 = vadd.f32 %v1089, %v2809
        %v2811 = vpop.f32.mrf.mxu0
        %v2812 = vadd.f32 %v1089, %v2811
        %2813 = vmatmul.bf16.gmra.mxu0 %v821
        %v2814 = vpop.f32.mrf.mxu0
        %v2815 = vadd.f32 %v1089, %v2814
        %v2816 = vpop.f32.mrf.mxu0
        %v2817 = vadd.f32 %v1089, %v2816
        %2818 = vmatmul.bf16.gmra.mxu0 %v825
        %v2819 = vpop.f32.mrf.mxu0
        %v2820 = vadd.f32 %v1089, %v2819
        %v2821 = vpop.f32.mrf.mxu0
        %v2822 = vadd.f32 %v1089, %v2821
        %2823 = vdwg.mxu0
        %2824 = vmatpush.bf16.msra.mxu0 %v1993
        %2825 = vmatpush.bf16.msra.mxu0 %v1985
        %2826 = vmatpush.bf16.msra.mxu0 %v1977
        %2827 = vmatpush.bf16.msra.mxu0 %v1969
        %2828 = vmatpush.bf16.msra.mxu0 %v1961
        %2829 = vmatpush.bf16.msra.mxu0 %v1953
        %2830 = vmatpush.bf16.msra.mxu0 %v1945
        %2831 = vmatpush.bf16.msra.mxu0 %v1937
        %2832 = vmatmul.bf16.gmra.mxu0 %v798
        %v2833 = vpop.f32.mrf.mxu0
        %v2834 = vadd.f32 %v2785, %v2833
        %v2835 = vpop.f32.mrf.mxu0
        %v2836 = vadd.f32 %v2787, %v2835
        %2837 = vmatmul.bf16.gmra.mxu0 %v802
        %v2838 = vpop.f32.mrf.mxu0
        %v2839 = vadd.f32 %v2790, %v2838
        %v2840 = vpop.f32.mrf.mxu0
        %v2841 = vadd.f32 %v2792, %v2840
        %2842 = vmatmul.bf16.gmra.mxu0 %v806
        %v2843 = vpop.f32.mrf.mxu0
        %v2844 = vadd.f32 %v2795, %v2843
        %v2845 = vpop.f32.mrf.mxu0
        %v2846 = vadd.f32 %v2797, %v2845
        %2847 = vmatmul.bf16.gmra.mxu0 %v810
        %v2848 = vpop.f32.mrf.mxu0
        %v2849 = vadd.f32 %v2800, %v2848
        %v2850 = vpop.f32.mrf.mxu0
        %v2851 = vadd.f32 %v2802, %v2850
        %2852 = vmatmul.bf16.gmra.mxu0 %v814
        %v2853 = vpop.f32.mrf.mxu0
        %v2854 = vadd.f32 %v2805, %v2853
        %v2855 = vpop.f32.mrf.mxu0
        %v2856 = vadd.f32 %v2807, %v2855
        %2857 = vmatmul.bf16.gmra.mxu0 %v818
        %v2858 = vpop.f32.mrf.mxu0
        %v2859 = vadd.f32 %v2810, %v2858
        %v2860 = vpop.f32.mrf.mxu0
        %v2861 = vadd.f32 %v2812, %v2860
        %2862 = vmatmul.bf16.gmra.mxu0 %v822
        %v2863 = vpop.f32.mrf.mxu0
        %v2864 = vadd.f32 %v2815, %v2863
        %v2865 = vpop.f32.mrf.mxu0
        %v2866 = vadd.f32 %v2817, %v2865
        %2867 = vmatmul.bf16.gmra.mxu0 %v826
        %v2868 = vpop.f32.mrf.mxu0
        %v2869 = vadd.f32 %v2820, %v2868
        %v2870 = vpop.f32.mrf.mxu0
        %v2871 = vadd.f32 %v2822, %v2870
        %2872 = vdwg.mxu0
        %2873 = vmatpush.bf16.msra.mxu0 %v2057
        %2874 = vmatpush.bf16.msra.mxu0 %v2049
        %2875 = vmatpush.bf16.msra.mxu0 %v2041
        %2876 = vmatpush.bf16.msra.mxu0 %v2033
        %2877 = vmatpush.bf16.msra.mxu0 %v2025
        %2878 = vmatpush.bf16.msra.mxu0 %v2017
        %2879 = vmatpush.bf16.msra.mxu0 %v2009
        %2880 = vmatpush.bf16.msra.mxu0 %v2001
        %2881 = vmatmul.bf16.gmra.mxu0 %v799
        %v2882 = vpop.f32.mrf.mxu0
        %v2883 = vadd.f32 %v2834, %v2882
        %v2884 = vpop.f32.mrf.mxu0
        %v2885 = vadd.f32 %v2836, %v2884
        %2886 = vmatmul.bf16.gmra.mxu0 %v803
        %v2887 = vpop.f32.mrf.mxu0
        %v2888 = vadd.f32 %v2839, %v2887
        %v2889 = vpop.f32.mrf.mxu0
        %v2890 = vadd.f32 %v2841, %v2889
        %2891 = vmatmul.bf16.gmra.mxu0 %v807
        %v2892 = vpop.f32.mrf.mxu0
        %v2893 = vadd.f32 %v2844, %v2892
        %v2894 = vpop.f32.mrf.mxu0
        %v2895 = vadd.f32 %v2846, %v2894
        %2896 = vmatmul.bf16.gmra.mxu0 %v811
        %v2897 = vpop.f32.mrf.mxu0
        %v2898 = vadd.f32 %v2849, %v2897
        %v2899 = vpop.f32.mrf.mxu0
        %v2900 = vadd.f32 %v2851, %v2899
        %2901 = vmatmul.bf16.gmra.mxu0 %v815
        %v2902 = vpop.f32.mrf.mxu0
        %v2903 = vadd.f32 %v2854, %v2902
        %v2904 = vpop.f32.mrf.mxu0
        %v2905 = vadd.f32 %v2856, %v2904
        %2906 = vmatmul.bf16.gmra.mxu0 %v819
        %v2907 = vpop.f32.mrf.mxu0
        %v2908 = vadd.f32 %v2859, %v2907
        %v2909 = vpop.f32.mrf.mxu0
        %v2910 = vadd.f32 %v2861, %v2909
        %2911 = vmatmul.bf16.gmra.mxu0 %v823
        %v2912 = vpop.f32.mrf.mxu0
        %v2913 = vadd.f32 %v2864, %v2912
        %v2914 = vpop.f32.mrf.mxu0
        %v2915 = vadd.f32 %v2866, %v2914
        %2916 = vmatmul.bf16.gmra.mxu0 %v827
        %v2917 = vpop.f32.mrf.mxu0
        %v2918 = vadd.f32 %v2869, %v2917
        %v2919 = vpop.f32.mrf.mxu0
        %v2920 = vadd.f32 %v2871, %v2919
        %2921 = vdwg.mxu0
        %2922 = vmatpush.bf16.msra.mxu0 %v2121
        %2923 = vmatpush.bf16.msra.mxu0 %v2113
        %2924 = vmatpush.bf16.msra.mxu0 %v2105
        %2925 = vmatpush.bf16.msra.mxu0 %v2097
        %2926 = vmatpush.bf16.msra.mxu0 %v2089
        %2927 = vmatpush.bf16.msra.mxu0 %v2081
        %2928 = vmatpush.bf16.msra.mxu0 %v2073
        %2929 = vmatpush.bf16.msra.mxu0 %v2065
        %2930 = vmatmul.bf16.gmra.mxu0 %v800
        %v2931 = vpop.f32.mrf.mxu0
        %v2932 = vadd.f32 %v2883, %v2931
        %v2933 = vpop.f32.mrf.mxu0
        %v2934 = vadd.f32 %v2885, %v2933
        %2935 = vmatmul.bf16.gmra.mxu0 %v804
        %v2936 = vpop.f32.mrf.mxu0
        %v2937 = vadd.f32 %v2888, %v2936
        %v2938 = vpop.f32.mrf.mxu0
        %v2939 = vadd.f32 %v2890, %v2938
        %2940 = vmatmul.bf16.gmra.mxu0 %v808
        %v2941 = vpop.f32.mrf.mxu0
        %v2942 = vadd.f32 %v2893, %v2941
        %v2943 = vpop.f32.mrf.mxu0
        %v2944 = vadd.f32 %v2895, %v2943
        %2945 = vmatmul.bf16.gmra.mxu0 %v812
        %v2946 = vpop.f32.mrf.mxu0
        %v2947 = vadd.f32 %v2898, %v2946
        %v2948 = vpop.f32.mrf.mxu0
        %v2949 = vadd.f32 %v2900, %v2948
        %2950 = vmatmul.bf16.gmra.mxu0 %v816
        %v2951 = vpop.f32.mrf.mxu0
        %v2952 = vadd.f32 %v2903, %v2951
        %v2953 = vpop.f32.mrf.mxu0
        %v2954 = vadd.f32 %v2905, %v2953
        %2955 = vmatmul.bf16.gmra.mxu0 %v820
        %v2956 = vpop.f32.mrf.mxu0
        %v2957 = vadd.f32 %v2908, %v2956
        %v2958 = vpop.f32.mrf.mxu0
        %v2959 = vadd.f32 %v2910, %v2958
        %2960 = vmatmul.bf16.gmra.mxu0 %v824
        %v2961 = vpop.f32.mrf.mxu0
        %v2962 = vadd.f32 %v2913, %v2961
        %v2963 = vpop.f32.mrf.mxu0
        %v2964 = vadd.f32 %v2915, %v2963
        %2965 = vmatmul.bf16.gmra.mxu0 %v828
        %v2966 = vpop.f32.mrf.mxu0
        %v2967 = vadd.f32 %v2918, %v2966
        %v2968 = vpop.f32.mrf.mxu0
        %v2969 = vadd.f32 %v2920, %v2968
        %2970 = vdwg.mxu0
        %2971 = vmatpush.bf16.msra.mxu0 %v1930
        %2972 = vmatpush.bf16.msra.mxu0 %v1922
        %2973 = vmatpush.bf16.msra.mxu0 %v1914
        %2974 = vmatpush.bf16.msra.mxu0 %v1906
        %2975 = vmatpush.bf16.msra.mxu0 %v1898
        %2976 = vmatpush.bf16.msra.mxu0 %v1890
        %2977 = vmatpush.bf16.msra.mxu0 %v1882
        %2978 = vmatpush.bf16.msra.mxu0 %v1874
        %2979 = vmatmul.bf16.gmra.mxu0 %v797
        %v2980 = vpop.f32.mrf.mxu0
        %v2981 = vadd.f32 %v1090, %v2980
        %v2982 = vpop.f32.mrf.mxu0
        %v2983 = vadd.f32 %v1090, %v2982
        %2984 = vmatmul.bf16.gmra.mxu0 %v801
        %v2985 = vpop.f32.mrf.mxu0
        %v2986 = vadd.f32 %v1090, %v2985
        %v2987 = vpop.f32.mrf.mxu0
        %v2988 = vadd.f32 %v1090, %v2987
        %2989 = vmatmul.bf16.gmra.mxu0 %v805
        %v2990 = vpop.f32.mrf.mxu0
        %v2991 = vadd.f32 %v1090, %v2990
        %v2992 = vpop.f32.mrf.mxu0
        %v2993 = vadd.f32 %v1090, %v2992
        %2994 = vmatmul.bf16.gmra.mxu0 %v809
        %v2995 = vpop.f32.mrf.mxu0
        %v2996 = vadd.f32 %v1090, %v2995
        %v2997 = vpop.f32.mrf.mxu0
        %v2998 = vadd.f32 %v1090, %v2997
        %2999 = vmatmul.bf16.gmra.mxu0 %v813
        %v3000 = vpop.f32.mrf.mxu0
        %v3001 = vadd.f32 %v1090, %v3000
        %v3002 = vpop.f32.mrf.mxu0
        %v3003 = vadd.f32 %v1090, %v3002
        %3004 = vmatmul.bf16.gmra.mxu0 %v817
        %v3005 = vpop.f32.mrf.mxu0
        %v3006 = vadd.f32 %v1090, %v3005
        %v3007 = vpop.f32.mrf.mxu0
        %v3008 = vadd.f32 %v1090, %v3007
        %3009 = vmatmul.bf16.gmra.mxu0 %v821
        %v3010 = vpop.f32.mrf.mxu0
        %v3011 = vadd.f32 %v1090, %v3010
        %v3012 = vpop.f32.mrf.mxu0
        %v3013 = vadd.f32 %v1090, %v3012
        %3014 = vmatmul.bf16.gmra.mxu0 %v825
        %v3015 = vpop.f32.mrf.mxu0
        %v3016 = vadd.f32 %v1090, %v3015
        %v3017 = vpop.f32.mrf.mxu0
        %v3018 = vadd.f32 %v1090, %v3017
        %3019 = vdwg.mxu0
        %3020 = vmatpush.bf16.msra.mxu0 %v1994
        %3021 = vmatpush.bf16.msra.mxu0 %v1986
        %3022 = vmatpush.bf16.msra.mxu0 %v1978
        %3023 = vmatpush.bf16.msra.mxu0 %v1970
        %3024 = vmatpush.bf16.msra.mxu0 %v1962
        %3025 = vmatpush.bf16.msra.mxu0 %v1954
        %3026 = vmatpush.bf16.msra.mxu0 %v1946
        %3027 = vmatpush.bf16.msra.mxu0 %v1938
        %3028 = vmatmul.bf16.gmra.mxu0 %v798
        %v3029 = vpop.f32.mrf.mxu0
        %v3030 = vadd.f32 %v2981, %v3029
        %v3031 = vpop.f32.mrf.mxu0
        %v3032 = vadd.f32 %v2983, %v3031
        %3033 = vmatmul.bf16.gmra.mxu0 %v802
        %v3034 = vpop.f32.mrf.mxu0
        %v3035 = vadd.f32 %v2986, %v3034
        %v3036 = vpop.f32.mrf.mxu0
        %v3037 = vadd.f32 %v2988, %v3036
        %3038 = vmatmul.bf16.gmra.mxu0 %v806
        %v3039 = vpop.f32.mrf.mxu0
        %v3040 = vadd.f32 %v2991, %v3039
        %v3041 = vpop.f32.mrf.mxu0
        %v3042 = vadd.f32 %v2993, %v3041
        %3043 = vmatmul.bf16.gmra.mxu0 %v810
        %v3044 = vpop.f32.mrf.mxu0
        %v3045 = vadd.f32 %v2996, %v3044
        %v3046 = vpop.f32.mrf.mxu0
        %v3047 = vadd.f32 %v2998, %v3046
        %3048 = vmatmul.bf16.gmra.mxu0 %v814
        %v3049 = vpop.f32.mrf.mxu0
        %v3050 = vadd.f32 %v3001, %v3049
        %v3051 = vpop.f32.mrf.mxu0
        %v3052 = vadd.f32 %v3003, %v3051
        %3053 = vmatmul.bf16.gmra.mxu0 %v818
        %v3054 = vpop.f32.mrf.mxu0
        %v3055 = vadd.f32 %v3006, %v3054
        %v3056 = vpop.f32.mrf.mxu0
        %v3057 = vadd.f32 %v3008, %v3056
        %3058 = vmatmul.bf16.gmra.mxu0 %v822
        %v3059 = vpop.f32.mrf.mxu0
        %v3060 = vadd.f32 %v3011, %v3059
        %v3061 = vpop.f32.mrf.mxu0
        %v3062 = vadd.f32 %v3013, %v3061
        %3063 = vmatmul.bf16.gmra.mxu0 %v826
        %v3064 = vpop.f32.mrf.mxu0
        %v3065 = vadd.f32 %v3016, %v3064
        %v3066 = vpop.f32.mrf.mxu0
        %v3067 = vadd.f32 %v3018, %v3066
        %3068 = vdwg.mxu0
        %3069 = vmatpush.bf16.msra.mxu0 %v2058
        %3070 = vmatpush.bf16.msra.mxu0 %v2050
        %3071 = vmatpush.bf16.msra.mxu0 %v2042
        %3072 = vmatpush.bf16.msra.mxu0 %v2034
        %3073 = vmatpush.bf16.msra.mxu0 %v2026
        %3074 = vmatpush.bf16.msra.mxu0 %v2018
        %3075 = vmatpush.bf16.msra.mxu0 %v2010
        %3076 = vmatpush.bf16.msra.mxu0 %v2002
        %3077 = vmatmul.bf16.gmra.mxu0 %v799
        %v3078 = vpop.f32.mrf.mxu0
        %v3079 = vadd.f32 %v3030, %v3078
        %v3080 = vpop.f32.mrf.mxu0
        %v3081 = vadd.f32 %v3032, %v3080
        %3082 = vmatmul.bf16.gmra.mxu0 %v803
        %v3083 = vpop.f32.mrf.mxu0
        %v3084 = vadd.f32 %v3035, %v3083
        %v3085 = vpop.f32.mrf.mxu0
        %v3086 = vadd.f32 %v3037, %v3085
        %3087 = vmatmul.bf16.gmra.mxu0 %v807
        %v3088 = vpop.f32.mrf.mxu0
        %v3089 = vadd.f32 %v3040, %v3088
        %v3090 = vpop.f32.mrf.mxu0
        %v3091 = vadd.f32 %v3042, %v3090
        %3092 = vmatmul.bf16.gmra.mxu0 %v811
        %v3093 = vpop.f32.mrf.mxu0
        %v3094 = vadd.f32 %v3045, %v3093
        %v3095 = vpop.f32.mrf.mxu0
        %v3096 = vadd.f32 %v3047, %v3095
        %3097 = vmatmul.bf16.gmra.mxu0 %v815
        %v3098 = vpop.f32.mrf.mxu0
        %v3099 = vadd.f32 %v3050, %v3098
        %v3100 = vpop.f32.mrf.mxu0
        %v3101 = vadd.f32 %v3052, %v3100
        %3102 = vmatmul.bf16.gmra.mxu0 %v819
        %v3103 = vpop.f32.mrf.mxu0
        %v3104 = vadd.f32 %v3055, %v3103
        %v3105 = vpop.f32.mrf.mxu0
        %v3106 = vadd.f32 %v3057, %v3105
        %3107 = vmatmul.bf16.gmra.mxu0 %v823
        %v3108 = vpop.f32.mrf.mxu0
        %v3109 = vadd.f32 %v3060, %v3108
        %v3110 = vpop.f32.mrf.mxu0
        %v3111 = vadd.f32 %v3062, %v3110
        %3112 = vmatmul.bf16.gmra.mxu0 %v827
        %v3113 = vpop.f32.mrf.mxu0
        %v3114 = vadd.f32 %v3065, %v3113
        %v3115 = vpop.f32.mrf.mxu0
        %v3116 = vadd.f32 %v3067, %v3115
        %3117 = vdwg.mxu0
        %3118 = vmatpush.bf16.msra.mxu0 %v2122
        %3119 = vmatpush.bf16.msra.mxu0 %v2114
        %3120 = vmatpush.bf16.msra.mxu0 %v2106
        %3121 = vmatpush.bf16.msra.mxu0 %v2098
        %3122 = vmatpush.bf16.msra.mxu0 %v2090
        %3123 = vmatpush.bf16.msra.mxu0 %v2082
        %3124 = vmatpush.bf16.msra.mxu0 %v2074
        %3125 = vmatpush.bf16.msra.mxu0 %v2066
        %3126 = vmatmul.bf16.gmra.mxu0 %v800
        %v3127 = vpop.f32.mrf.mxu0
        %v3128 = vadd.f32 %v3079, %v3127
        %v3129 = vpop.f32.mrf.mxu0
        %v3130 = vadd.f32 %v3081, %v3129
        %3131 = vmatmul.bf16.gmra.mxu0 %v804
        %v3132 = vpop.f32.mrf.mxu0
        %v3133 = vadd.f32 %v3084, %v3132
        %v3134 = vpop.f32.mrf.mxu0
        %v3135 = vadd.f32 %v3086, %v3134
        %3136 = vmatmul.bf16.gmra.mxu0 %v808
        %v3137 = vpop.f32.mrf.mxu0
        %v3138 = vadd.f32 %v3089, %v3137
        %v3139 = vpop.f32.mrf.mxu0
        %v3140 = vadd.f32 %v3091, %v3139
        %3141 = vmatmul.bf16.gmra.mxu0 %v812
        %v3142 = vpop.f32.mrf.mxu0
        %v3143 = vadd.f32 %v3094, %v3142
        %v3144 = vpop.f32.mrf.mxu0
        %v3145 = vadd.f32 %v3096, %v3144
        %3146 = vmatmul.bf16.gmra.mxu0 %v816
        %v3147 = vpop.f32.mrf.mxu0
        %v3148 = vadd.f32 %v3099, %v3147
        %v3149 = vpop.f32.mrf.mxu0
        %v3150 = vadd.f32 %v3101, %v3149
        %3151 = vmatmul.bf16.gmra.mxu0 %v820
        %v3152 = vpop.f32.mrf.mxu0
        %v3153 = vadd.f32 %v3104, %v3152
        %v3154 = vpop.f32.mrf.mxu0
        %v3155 = vadd.f32 %v3106, %v3154
        %3156 = vmatmul.bf16.gmra.mxu0 %v824
        %v3157 = vpop.f32.mrf.mxu0
        %v3158 = vadd.f32 %v3109, %v3157
        %v3159 = vpop.f32.mrf.mxu0
        %v3160 = vadd.f32 %v3111, %v3159
        %3161 = vmatmul.bf16.gmra.mxu0 %v828
        %v3162 = vpop.f32.mrf.mxu0
        %v3163 = vadd.f32 %v3114, %v3162
        %v3164 = vpop.f32.mrf.mxu0
        %v3165 = vadd.f32 %v3116, %v3164
        %3166 = vdwg.mxu0
        %3167 = vmatpush.bf16.msra.mxu0 %v1931
        %3168 = vmatpush.bf16.msra.mxu0 %v1923
        %3169 = vmatpush.bf16.msra.mxu0 %v1915
        %3170 = vmatpush.bf16.msra.mxu0 %v1907
        %3171 = vmatpush.bf16.msra.mxu0 %v1899
        %3172 = vmatpush.bf16.msra.mxu0 %v1891
        %3173 = vmatpush.bf16.msra.mxu0 %v1883
        %3174 = vmatpush.bf16.msra.mxu0 %v1875
        %3175 = vmatmul.bf16.gmra.mxu0 %v797
        %v3176 = vpop.f32.mrf.mxu0
        %v3177 = vadd.f32 %v1091, %v3176
        %v3178 = vpop.f32.mrf.mxu0
        %v3179 = vadd.f32 %v1091, %v3178
        %3180 = vmatmul.bf16.gmra.mxu0 %v801
        %v3181 = vpop.f32.mrf.mxu0
        %v3182 = vadd.f32 %v1091, %v3181
        %v3183 = vpop.f32.mrf.mxu0
        %v3184 = vadd.f32 %v1091, %v3183
        %3185 = vmatmul.bf16.gmra.mxu0 %v805
        %v3186 = vpop.f32.mrf.mxu0
        %v3187 = vadd.f32 %v1091, %v3186
        %v3188 = vpop.f32.mrf.mxu0
        %v3189 = vadd.f32 %v1091, %v3188
        %3190 = vmatmul.bf16.gmra.mxu0 %v809
        %v3191 = vpop.f32.mrf.mxu0
        %v3192 = vadd.f32 %v1091, %v3191
        %v3193 = vpop.f32.mrf.mxu0
        %v3194 = vadd.f32 %v1091, %v3193
        %3195 = vmatmul.bf16.gmra.mxu0 %v813
        %v3196 = vpop.f32.mrf.mxu0
        %v3197 = vadd.f32 %v1091, %v3196
        %v3198 = vpop.f32.mrf.mxu0
        %v3199 = vadd.f32 %v1091, %v3198
        %3200 = vmatmul.bf16.gmra.mxu0 %v817
        %v3201 = vpop.f32.mrf.mxu0
        %v3202 = vadd.f32 %v1091, %v3201
        %v3203 = vpop.f32.mrf.mxu0
        %v3204 = vadd.f32 %v1091, %v3203
        %3205 = vmatmul.bf16.gmra.mxu0 %v821
        %v3206 = vpop.f32.mrf.mxu0
        %v3207 = vadd.f32 %v1091, %v3206
        %v3208 = vpop.f32.mrf.mxu0
        %v3209 = vadd.f32 %v1091, %v3208
        %3210 = vmatmul.bf16.gmra.mxu0 %v825
        %v3211 = vpop.f32.mrf.mxu0
        %v3212 = vadd.f32 %v1091, %v3211
        %v3213 = vpop.f32.mrf.mxu0
        %v3214 = vadd.f32 %v1091, %v3213
        %3215 = vdwg.mxu0
        %3216 = vmatpush.bf16.msra.mxu0 %v1995
        %3217 = vmatpush.bf16.msra.mxu0 %v1987
        %3218 = vmatpush.bf16.msra.mxu0 %v1979
        %3219 = vmatpush.bf16.msra.mxu0 %v1971
        %3220 = vmatpush.bf16.msra.mxu0 %v1963
        %3221 = vmatpush.bf16.msra.mxu0 %v1955
        %3222 = vmatpush.bf16.msra.mxu0 %v1947
        %3223 = vmatpush.bf16.msra.mxu0 %v1939
        %3224 = vmatmul.bf16.gmra.mxu0 %v798
        %v3225 = vpop.f32.mrf.mxu0
        %v3226 = vadd.f32 %v3177, %v3225
        %v3227 = vpop.f32.mrf.mxu0
        %v3228 = vadd.f32 %v3179, %v3227
        %3229 = vmatmul.bf16.gmra.mxu0 %v802
        %v3230 = vpop.f32.mrf.mxu0
        %v3231 = vadd.f32 %v3182, %v3230
        %v3232 = vpop.f32.mrf.mxu0
        %v3233 = vadd.f32 %v3184, %v3232
        %3234 = vmatmul.bf16.gmra.mxu0 %v806
        %v3235 = vpop.f32.mrf.mxu0
        %v3236 = vadd.f32 %v3187, %v3235
        %v3237 = vpop.f32.mrf.mxu0
        %v3238 = vadd.f32 %v3189, %v3237
        %3239 = vmatmul.bf16.gmra.mxu0 %v810
        %v3240 = vpop.f32.mrf.mxu0
        %v3241 = vadd.f32 %v3192, %v3240
        %v3242 = vpop.f32.mrf.mxu0
        %v3243 = vadd.f32 %v3194, %v3242
        %3244 = vmatmul.bf16.gmra.mxu0 %v814
        %v3245 = vpop.f32.mrf.mxu0
        %v3246 = vadd.f32 %v3197, %v3245
        %v3247 = vpop.f32.mrf.mxu0
        %v3248 = vadd.f32 %v3199, %v3247
        %3249 = vmatmul.bf16.gmra.mxu0 %v818
        %v3250 = vpop.f32.mrf.mxu0
        %v3251 = vadd.f32 %v3202, %v3250
        %v3252 = vpop.f32.mrf.mxu0
        %v3253 = vadd.f32 %v3204, %v3252
        %3254 = vmatmul.bf16.gmra.mxu0 %v822
        %v3255 = vpop.f32.mrf.mxu0
        %v3256 = vadd.f32 %v3207, %v3255
        %v3257 = vpop.f32.mrf.mxu0
        %v3258 = vadd.f32 %v3209, %v3257
        %3259 = vmatmul.bf16.gmra.mxu0 %v826
        %v3260 = vpop.f32.mrf.mxu0
        %v3261 = vadd.f32 %v3212, %v3260
        %v3262 = vpop.f32.mrf.mxu0
        %v3263 = vadd.f32 %v3214, %v3262
        %3264 = vdwg.mxu0
        %3265 = vmatpush.bf16.msra.mxu0 %v2059
        %3266 = vmatpush.bf16.msra.mxu0 %v2051
        %3267 = vmatpush.bf16.msra.mxu0 %v2043
        %3268 = vmatpush.bf16.msra.mxu0 %v2035
        %3269 = vmatpush.bf16.msra.mxu0 %v2027
        %3270 = vmatpush.bf16.msra.mxu0 %v2019
        %3271 = vmatpush.bf16.msra.mxu0 %v2011
        %3272 = vmatpush.bf16.msra.mxu0 %v2003
        %3273 = vmatmul.bf16.gmra.mxu0 %v799
        %v3274 = vpop.f32.mrf.mxu0
        %v3275 = vadd.f32 %v3226, %v3274
        %v3276 = vpop.f32.mrf.mxu0
        %v3277 = vadd.f32 %v3228, %v3276
        %3278 = vmatmul.bf16.gmra.mxu0 %v803
        %v3279 = vpop.f32.mrf.mxu0
        %v3280 = vadd.f32 %v3231, %v3279
        %v3281 = vpop.f32.mrf.mxu0
        %v3282 = vadd.f32 %v3233, %v3281
        %3283 = vmatmul.bf16.gmra.mxu0 %v807
        %v3284 = vpop.f32.mrf.mxu0
        %v3285 = vadd.f32 %v3236, %v3284
        %v3286 = vpop.f32.mrf.mxu0
        %v3287 = vadd.f32 %v3238, %v3286
        %3288 = vmatmul.bf16.gmra.mxu0 %v811
        %v3289 = vpop.f32.mrf.mxu0
        %v3290 = vadd.f32 %v3241, %v3289
        %v3291 = vpop.f32.mrf.mxu0
        %v3292 = vadd.f32 %v3243, %v3291
        %3293 = vmatmul.bf16.gmra.mxu0 %v815
        %v3294 = vpop.f32.mrf.mxu0
        %v3295 = vadd.f32 %v3246, %v3294
        %v3296 = vpop.f32.mrf.mxu0
        %v3297 = vadd.f32 %v3248, %v3296
        %3298 = vmatmul.bf16.gmra.mxu0 %v819
        %v3299 = vpop.f32.mrf.mxu0
        %v3300 = vadd.f32 %v3251, %v3299
        %v3301 = vpop.f32.mrf.mxu0
        %v3302 = vadd.f32 %v3253, %v3301
        %3303 = vmatmul.bf16.gmra.mxu0 %v823
        %v3304 = vpop.f32.mrf.mxu0
        %v3305 = vadd.f32 %v3256, %v3304
        %v3306 = vpop.f32.mrf.mxu0
        %v3307 = vadd.f32 %v3258, %v3306
        %3308 = vmatmul.bf16.gmra.mxu0 %v827
        %v3309 = vpop.f32.mrf.mxu0
        %v3310 = vadd.f32 %v3261, %v3309
        %v3311 = vpop.f32.mrf.mxu0
        %v3312 = vadd.f32 %v3263, %v3311
        %3313 = vdwg.mxu0
        %3314 = vmatpush.bf16.msra.mxu0 %v2123
        %3315 = vmatpush.bf16.msra.mxu0 %v2115
        %3316 = vmatpush.bf16.msra.mxu0 %v2107
        %3317 = vmatpush.bf16.msra.mxu0 %v2099
        %3318 = vmatpush.bf16.msra.mxu0 %v2091
        %3319 = vmatpush.bf16.msra.mxu0 %v2083
        %3320 = vmatpush.bf16.msra.mxu0 %v2075
        %3321 = vmatpush.bf16.msra.mxu0 %v2067
        %3322 = vmatmul.bf16.gmra.mxu0 %v800
        %v3323 = vpop.f32.mrf.mxu0
        %v3324 = vadd.f32 %v3275, %v3323
        %v3325 = vpop.f32.mrf.mxu0
        %v3326 = vadd.f32 %v3277, %v3325
        %3327 = vmatmul.bf16.gmra.mxu0 %v804
        %v3328 = vpop.f32.mrf.mxu0
        %v3329 = vadd.f32 %v3280, %v3328
        %v3330 = vpop.f32.mrf.mxu0
        %v3331 = vadd.f32 %v3282, %v3330
        %3332 = vmatmul.bf16.gmra.mxu0 %v808
        %v3333 = vpop.f32.mrf.mxu0
        %v3334 = vadd.f32 %v3285, %v3333
        %v3335 = vpop.f32.mrf.mxu0
        %v3336 = vadd.f32 %v3287, %v3335
        %3337 = vmatmul.bf16.gmra.mxu0 %v812
        %v3338 = vpop.f32.mrf.mxu0
        %v3339 = vadd.f32 %v3290, %v3338
        %v3340 = vpop.f32.mrf.mxu0
        %v3341 = vadd.f32 %v3292, %v3340
        %3342 = vmatmul.bf16.gmra.mxu0 %v816
        %v3343 = vpop.f32.mrf.mxu0
        %v3344 = vadd.f32 %v3295, %v3343
        %v3345 = vpop.f32.mrf.mxu0
        %v3346 = vadd.f32 %v3297, %v3345
        %3347 = vmatmul.bf16.gmra.mxu0 %v820
        %v3348 = vpop.f32.mrf.mxu0
        %v3349 = vadd.f32 %v3300, %v3348
        %v3350 = vpop.f32.mrf.mxu0
        %v3351 = vadd.f32 %v3302, %v3350
        %3352 = vmatmul.bf16.gmra.mxu0 %v824
        %v3353 = vpop.f32.mrf.mxu0
        %v3354 = vadd.f32 %v3305, %v3353
        %v3355 = vpop.f32.mrf.mxu0
        %v3356 = vadd.f32 %v3307, %v3355
        %3357 = vmatmul.bf16.gmra.mxu0 %v828
        %v3358 = vpop.f32.mrf.mxu0
        %v3359 = vadd.f32 %v3310, %v3358
        %v3360 = vpop.f32.mrf.mxu0
        %v3361 = vadd.f32 %v3312, %v3360
        %3362 = vdwg.mxu0
        %3363 = vmatpush.bf16.msra.mxu0 %v1932
        %3364 = vmatpush.bf16.msra.mxu0 %v1924
        %3365 = vmatpush.bf16.msra.mxu0 %v1916
        %3366 = vmatpush.bf16.msra.mxu0 %v1908
        %3367 = vmatpush.bf16.msra.mxu0 %v1900
        %3368 = vmatpush.bf16.msra.mxu0 %v1892
        %3369 = vmatpush.bf16.msra.mxu0 %v1884
        %3370 = vmatpush.bf16.msra.mxu0 %v1876
        %3371 = vmatmul.bf16.gmra.mxu0 %v797
        %v3372 = vpop.f32.mrf.mxu0
        %v3373 = vadd.f32 %v1092, %v3372
        %v3374 = vpop.f32.mrf.mxu0
        %v3375 = vadd.f32 %v1092, %v3374
        %3376 = vmatmul.bf16.gmra.mxu0 %v801
        %v3377 = vpop.f32.mrf.mxu0
        %v3378 = vadd.f32 %v1092, %v3377
        %v3379 = vpop.f32.mrf.mxu0
        %v3380 = vadd.f32 %v1092, %v3379
        %3381 = vmatmul.bf16.gmra.mxu0 %v805
        %v3382 = vpop.f32.mrf.mxu0
        %v3383 = vadd.f32 %v1092, %v3382
        %v3384 = vpop.f32.mrf.mxu0
        %v3385 = vadd.f32 %v1092, %v3384
        %3386 = vmatmul.bf16.gmra.mxu0 %v809
        %v3387 = vpop.f32.mrf.mxu0
        %v3388 = vadd.f32 %v1092, %v3387
        %v3389 = vpop.f32.mrf.mxu0
        %v3390 = vadd.f32 %v1092, %v3389
        %3391 = vmatmul.bf16.gmra.mxu0 %v813
        %v3392 = vpop.f32.mrf.mxu0
        %v3393 = vadd.f32 %v1092, %v3392
        %v3394 = vpop.f32.mrf.mxu0
        %v3395 = vadd.f32 %v1092, %v3394
        %3396 = vmatmul.bf16.gmra.mxu0 %v817
        %v3397 = vpop.f32.mrf.mxu0
        %v3398 = vadd.f32 %v1092, %v3397
        %v3399 = vpop.f32.mrf.mxu0
        %v3400 = vadd.f32 %v1092, %v3399
        %3401 = vmatmul.bf16.gmra.mxu0 %v821
        %v3402 = vpop.f32.mrf.mxu0
        %v3403 = vadd.f32 %v1092, %v3402
        %v3404 = vpop.f32.mrf.mxu0
        %v3405 = vadd.f32 %v1092, %v3404
        %3406 = vmatmul.bf16.gmra.mxu0 %v825
        %v3407 = vpop.f32.mrf.mxu0
        %v3408 = vadd.f32 %v1092, %v3407
        %v3409 = vpop.f32.mrf.mxu0
        %v3410 = vadd.f32 %v1092, %v3409
        %3411 = vdwg.mxu0
        %3412 = vmatpush.bf16.msra.mxu0 %v1996
        %3413 = vmatpush.bf16.msra.mxu0 %v1988
        %3414 = vmatpush.bf16.msra.mxu0 %v1980
        %3415 = vmatpush.bf16.msra.mxu0 %v1972
        %3416 = vmatpush.bf16.msra.mxu0 %v1964
        %3417 = vmatpush.bf16.msra.mxu0 %v1956
        %3418 = vmatpush.bf16.msra.mxu0 %v1948
        %3419 = vmatpush.bf16.msra.mxu0 %v1940
        %3420 = vmatmul.bf16.gmra.mxu0 %v798
        %v3421 = vpop.f32.mrf.mxu0
        %v3422 = vadd.f32 %v3373, %v3421
        %v3423 = vpop.f32.mrf.mxu0
        %v3424 = vadd.f32 %v3375, %v3423
        %3425 = vmatmul.bf16.gmra.mxu0 %v802
        %v3426 = vpop.f32.mrf.mxu0
        %v3427 = vadd.f32 %v3378, %v3426
        %v3428 = vpop.f32.mrf.mxu0
        %v3429 = vadd.f32 %v3380, %v3428
        %3430 = vmatmul.bf16.gmra.mxu0 %v806
        %v3431 = vpop.f32.mrf.mxu0
        %v3432 = vadd.f32 %v3383, %v3431
        %v3433 = vpop.f32.mrf.mxu0
        %v3434 = vadd.f32 %v3385, %v3433
        %3435 = vmatmul.bf16.gmra.mxu0 %v810
        %v3436 = vpop.f32.mrf.mxu0
        %v3437 = vadd.f32 %v3388, %v3436
        %v3438 = vpop.f32.mrf.mxu0
        %v3439 = vadd.f32 %v3390, %v3438
        %3440 = vmatmul.bf16.gmra.mxu0 %v814
        %v3441 = vpop.f32.mrf.mxu0
        %v3442 = vadd.f32 %v3393, %v3441
        %v3443 = vpop.f32.mrf.mxu0
        %v3444 = vadd.f32 %v3395, %v3443
        %3445 = vmatmul.bf16.gmra.mxu0 %v818
        %v3446 = vpop.f32.mrf.mxu0
        %v3447 = vadd.f32 %v3398, %v3446
        %v3448 = vpop.f32.mrf.mxu0
        %v3449 = vadd.f32 %v3400, %v3448
        %3450 = vmatmul.bf16.gmra.mxu0 %v822
        %v3451 = vpop.f32.mrf.mxu0
        %v3452 = vadd.f32 %v3403, %v3451
        %v3453 = vpop.f32.mrf.mxu0
        %v3454 = vadd.f32 %v3405, %v3453
        %3455 = vmatmul.bf16.gmra.mxu0 %v826
        %v3456 = vpop.f32.mrf.mxu0
        %v3457 = vadd.f32 %v3408, %v3456
        %v3458 = vpop.f32.mrf.mxu0
        %v3459 = vadd.f32 %v3410, %v3458
        %3460 = vdwg.mxu0
        %3461 = vmatpush.bf16.msra.mxu0 %v2060
        %3462 = vmatpush.bf16.msra.mxu0 %v2052
        %3463 = vmatpush.bf16.msra.mxu0 %v2044
        %3464 = vmatpush.bf16.msra.mxu0 %v2036
        %3465 = vmatpush.bf16.msra.mxu0 %v2028
        %3466 = vmatpush.bf16.msra.mxu0 %v2020
        %3467 = vmatpush.bf16.msra.mxu0 %v2012
        %3468 = vmatpush.bf16.msra.mxu0 %v2004
        %3469 = vmatmul.bf16.gmra.mxu0 %v799
        %v3470 = vpop.f32.mrf.mxu0
        %v3471 = vadd.f32 %v3422, %v3470
        %v3472 = vpop.f32.mrf.mxu0
        %v3473 = vadd.f32 %v3424, %v3472
        %3474 = vmatmul.bf16.gmra.mxu0 %v803
        %v3475 = vpop.f32.mrf.mxu0
        %v3476 = vadd.f32 %v3427, %v3475
        %v3477 = vpop.f32.mrf.mxu0
        %v3478 = vadd.f32 %v3429, %v3477
        %3479 = vmatmul.bf16.gmra.mxu0 %v807
        %v3480 = vpop.f32.mrf.mxu0
        %v3481 = vadd.f32 %v3432, %v3480
        %v3482 = vpop.f32.mrf.mxu0
        %v3483 = vadd.f32 %v3434, %v3482
        %3484 = vmatmul.bf16.gmra.mxu0 %v811
        %v3485 = vpop.f32.mrf.mxu0
        %v3486 = vadd.f32 %v3437, %v3485
        %v3487 = vpop.f32.mrf.mxu0
        %v3488 = vadd.f32 %v3439, %v3487
        %3489 = vmatmul.bf16.gmra.mxu0 %v815
        %v3490 = vpop.f32.mrf.mxu0
        %v3491 = vadd.f32 %v3442, %v3490
        %v3492 = vpop.f32.mrf.mxu0
        %v3493 = vadd.f32 %v3444, %v3492
        %3494 = vmatmul.bf16.gmra.mxu0 %v819
        %v3495 = vpop.f32.mrf.mxu0
        %v3496 = vadd.f32 %v3447, %v3495
        %v3497 = vpop.f32.mrf.mxu0
        %v3498 = vadd.f32 %v3449, %v3497
        %3499 = vmatmul.bf16.gmra.mxu0 %v823
        %v3500 = vpop.f32.mrf.mxu0
        %v3501 = vadd.f32 %v3452, %v3500
        %v3502 = vpop.f32.mrf.mxu0
        %v3503 = vadd.f32 %v3454, %v3502
        %3504 = vmatmul.bf16.gmra.mxu0 %v827
        %v3505 = vpop.f32.mrf.mxu0
        %v3506 = vadd.f32 %v3457, %v3505
        %v3507 = vpop.f32.mrf.mxu0
        %v3508 = vadd.f32 %v3459, %v3507
        %3509 = vdwg.mxu0
        %3510 = vmatpush.bf16.msra.mxu0 %v2124
        %3511 = vmatpush.bf16.msra.mxu0 %v2116
        %3512 = vmatpush.bf16.msra.mxu0 %v2108
        %3513 = vmatpush.bf16.msra.mxu0 %v2100
        %3514 = vmatpush.bf16.msra.mxu0 %v2092
        %3515 = vmatpush.bf16.msra.mxu0 %v2084
        %3516 = vmatpush.bf16.msra.mxu0 %v2076
        %3517 = vmatpush.bf16.msra.mxu0 %v2068
        %3518 = vmatmul.bf16.gmra.mxu0 %v800
        %v3519 = vpop.f32.mrf.mxu0
        %v3520 = vadd.f32 %v3471, %v3519
        %v3521 = vpop.f32.mrf.mxu0
        %v3522 = vadd.f32 %v3473, %v3521
        %3523 = vmatmul.bf16.gmra.mxu0 %v804
        %v3524 = vpop.f32.mrf.mxu0
        %v3525 = vadd.f32 %v3476, %v3524
        %v3526 = vpop.f32.mrf.mxu0
        %v3527 = vadd.f32 %v3478, %v3526
        %3528 = vmatmul.bf16.gmra.mxu0 %v808
        %v3529 = vpop.f32.mrf.mxu0
        %v3530 = vadd.f32 %v3481, %v3529
        %v3531 = vpop.f32.mrf.mxu0
        %v3532 = vadd.f32 %v3483, %v3531
        %3533 = vmatmul.bf16.gmra.mxu0 %v812
        %v3534 = vpop.f32.mrf.mxu0
        %v3535 = vadd.f32 %v3486, %v3534
        %v3536 = vpop.f32.mrf.mxu0
        %v3537 = vadd.f32 %v3488, %v3536
        %3538 = vmatmul.bf16.gmra.mxu0 %v816
        %v3539 = vpop.f32.mrf.mxu0
        %v3540 = vadd.f32 %v3491, %v3539
        %v3541 = vpop.f32.mrf.mxu0
        %v3542 = vadd.f32 %v3493, %v3541
        %3543 = vmatmul.bf16.gmra.mxu0 %v820
        %v3544 = vpop.f32.mrf.mxu0
        %v3545 = vadd.f32 %v3496, %v3544
        %v3546 = vpop.f32.mrf.mxu0
        %v3547 = vadd.f32 %v3498, %v3546
        %3548 = vmatmul.bf16.gmra.mxu0 %v824
        %v3549 = vpop.f32.mrf.mxu0
        %v3550 = vadd.f32 %v3501, %v3549
        %v3551 = vpop.f32.mrf.mxu0
        %v3552 = vadd.f32 %v3503, %v3551
        %3553 = vmatmul.bf16.gmra.mxu0 %v828
        %v3554 = vpop.f32.mrf.mxu0
        %v3555 = vadd.f32 %v3506, %v3554
        %v3556 = vpop.f32.mrf.mxu0
        %v3557 = vadd.f32 %v3508, %v3556
        %3558 = vdwg.mxu0
        %3559 = vmatpush.bf16.msra.mxu0 %v1933
        %3560 = vmatpush.bf16.msra.mxu0 %v1925
        %3561 = vmatpush.bf16.msra.mxu0 %v1917
        %3562 = vmatpush.bf16.msra.mxu0 %v1909
        %3563 = vmatpush.bf16.msra.mxu0 %v1901
        %3564 = vmatpush.bf16.msra.mxu0 %v1893
        %3565 = vmatpush.bf16.msra.mxu0 %v1885
        %3566 = vmatpush.bf16.msra.mxu0 %v1877
        %3567 = vmatmul.bf16.gmra.mxu0 %v797
        %v3568 = vpop.f32.mrf.mxu0
        %v3569 = vadd.f32 %v1093, %v3568
        %v3570 = vpop.f32.mrf.mxu0
        %v3571 = vadd.f32 %v1093, %v3570
        %3572 = vmatmul.bf16.gmra.mxu0 %v801
        %v3573 = vpop.f32.mrf.mxu0
        %v3574 = vadd.f32 %v1093, %v3573
        %v3575 = vpop.f32.mrf.mxu0
        %v3576 = vadd.f32 %v1093, %v3575
        %3577 = vmatmul.bf16.gmra.mxu0 %v805
        %v3578 = vpop.f32.mrf.mxu0
        %v3579 = vadd.f32 %v1093, %v3578
        %v3580 = vpop.f32.mrf.mxu0
        %v3581 = vadd.f32 %v1093, %v3580
        %3582 = vmatmul.bf16.gmra.mxu0 %v809
        %v3583 = vpop.f32.mrf.mxu0
        %v3584 = vadd.f32 %v1093, %v3583
        %v3585 = vpop.f32.mrf.mxu0
        %v3586 = vadd.f32 %v1093, %v3585
        %3587 = vmatmul.bf16.gmra.mxu0 %v813
        %v3588 = vpop.f32.mrf.mxu0
        %v3589 = vadd.f32 %v1093, %v3588
        %v3590 = vpop.f32.mrf.mxu0
        %v3591 = vadd.f32 %v1093, %v3590
        %3592 = vmatmul.bf16.gmra.mxu0 %v817
        %v3593 = vpop.f32.mrf.mxu0
        %v3594 = vadd.f32 %v1093, %v3593
        %v3595 = vpop.f32.mrf.mxu0
        %v3596 = vadd.f32 %v1093, %v3595
        %3597 = vmatmul.bf16.gmra.mxu0 %v821
        %v3598 = vpop.f32.mrf.mxu0
        %v3599 = vadd.f32 %v1093, %v3598
        %v3600 = vpop.f32.mrf.mxu0
        %v3601 = vadd.f32 %v1093, %v3600
        %3602 = vmatmul.bf16.gmra.mxu0 %v825
        %v3603 = vpop.f32.mrf.mxu0
        %v3604 = vadd.f32 %v1093, %v3603
        %v3605 = vpop.f32.mrf.mxu0
        %v3606 = vadd.f32 %v1093, %v3605
        %3607 = vdwg.mxu0
        %3608 = vmatpush.bf16.msra.mxu0 %v1997
        %3609 = vmatpush.bf16.msra.mxu0 %v1989
        %3610 = vmatpush.bf16.msra.mxu0 %v1981
        %3611 = vmatpush.bf16.msra.mxu0 %v1973
        %3612 = vmatpush.bf16.msra.mxu0 %v1965
        %3613 = vmatpush.bf16.msra.mxu0 %v1957
        %3614 = vmatpush.bf16.msra.mxu0 %v1949
        %3615 = vmatpush.bf16.msra.mxu0 %v1941
        %3616 = vmatmul.bf16.gmra.mxu0 %v798
        %v3617 = vpop.f32.mrf.mxu0
        %v3618 = vadd.f32 %v3569, %v3617
        %v3619 = vpop.f32.mrf.mxu0
        %v3620 = vadd.f32 %v3571, %v3619
        %3621 = vmatmul.bf16.gmra.mxu0 %v802
        %v3622 = vpop.f32.mrf.mxu0
        %v3623 = vadd.f32 %v3574, %v3622
        %v3624 = vpop.f32.mrf.mxu0
        %v3625 = vadd.f32 %v3576, %v3624
        %3626 = vmatmul.bf16.gmra.mxu0 %v806
        %v3627 = vpop.f32.mrf.mxu0
        %v3628 = vadd.f32 %v3579, %v3627
        %v3629 = vpop.f32.mrf.mxu0
        %v3630 = vadd.f32 %v3581, %v3629
        %3631 = vmatmul.bf16.gmra.mxu0 %v810
        %v3632 = vpop.f32.mrf.mxu0
        %v3633 = vadd.f32 %v3584, %v3632
        %v3634 = vpop.f32.mrf.mxu0
        %v3635 = vadd.f32 %v3586, %v3634
        %3636 = vmatmul.bf16.gmra.mxu0 %v814
        %v3637 = vpop.f32.mrf.mxu0
        %v3638 = vadd.f32 %v3589, %v3637
        %v3639 = vpop.f32.mrf.mxu0
        %v3640 = vadd.f32 %v3591, %v3639
        %3641 = vmatmul.bf16.gmra.mxu0 %v818
        %v3642 = vpop.f32.mrf.mxu0
        %v3643 = vadd.f32 %v3594, %v3642
        %v3644 = vpop.f32.mrf.mxu0
        %v3645 = vadd.f32 %v3596, %v3644
        %3646 = vmatmul.bf16.gmra.mxu0 %v822
        %v3647 = vpop.f32.mrf.mxu0
        %v3648 = vadd.f32 %v3599, %v3647
        %v3649 = vpop.f32.mrf.mxu0
        %v3650 = vadd.f32 %v3601, %v3649
        %3651 = vmatmul.bf16.gmra.mxu0 %v826
        %v3652 = vpop.f32.mrf.mxu0
        %v3653 = vadd.f32 %v3604, %v3652
        %v3654 = vpop.f32.mrf.mxu0
        %v3655 = vadd.f32 %v3606, %v3654
        %3656 = vdwg.mxu0
        %3657 = vmatpush.bf16.msra.mxu0 %v2061
        %3658 = vmatpush.bf16.msra.mxu0 %v2053
        %3659 = vmatpush.bf16.msra.mxu0 %v2045
        %3660 = vmatpush.bf16.msra.mxu0 %v2037
        %3661 = vmatpush.bf16.msra.mxu0 %v2029
        %3662 = vmatpush.bf16.msra.mxu0 %v2021
        %3663 = vmatpush.bf16.msra.mxu0 %v2013
        %3664 = vmatpush.bf16.msra.mxu0 %v2005
        %3665 = vmatmul.bf16.gmra.mxu0 %v799
        %v3666 = vpop.f32.mrf.mxu0
        %v3667 = vadd.f32 %v3618, %v3666
        %v3668 = vpop.f32.mrf.mxu0
        %v3669 = vadd.f32 %v3620, %v3668
        %3670 = vmatmul.bf16.gmra.mxu0 %v803
        %v3671 = vpop.f32.mrf.mxu0
        %v3672 = vadd.f32 %v3623, %v3671
        %v3673 = vpop.f32.mrf.mxu0
        %v3674 = vadd.f32 %v3625, %v3673
        %3675 = vmatmul.bf16.gmra.mxu0 %v807
        %v3676 = vpop.f32.mrf.mxu0
        %v3677 = vadd.f32 %v3628, %v3676
        %v3678 = vpop.f32.mrf.mxu0
        %v3679 = vadd.f32 %v3630, %v3678
        %3680 = vmatmul.bf16.gmra.mxu0 %v811
        %v3681 = vpop.f32.mrf.mxu0
        %v3682 = vadd.f32 %v3633, %v3681
        %v3683 = vpop.f32.mrf.mxu0
        %v3684 = vadd.f32 %v3635, %v3683
        %3685 = vmatmul.bf16.gmra.mxu0 %v815
        %v3686 = vpop.f32.mrf.mxu0
        %v3687 = vadd.f32 %v3638, %v3686
        %v3688 = vpop.f32.mrf.mxu0
        %v3689 = vadd.f32 %v3640, %v3688
        %3690 = vmatmul.bf16.gmra.mxu0 %v819
        %v3691 = vpop.f32.mrf.mxu0
        %v3692 = vadd.f32 %v3643, %v3691
        %v3693 = vpop.f32.mrf.mxu0
        %v3694 = vadd.f32 %v3645, %v3693
        %3695 = vmatmul.bf16.gmra.mxu0 %v823
        %v3696 = vpop.f32.mrf.mxu0
        %v3697 = vadd.f32 %v3648, %v3696
        %v3698 = vpop.f32.mrf.mxu0
        %v3699 = vadd.f32 %v3650, %v3698
        %3700 = vmatmul.bf16.gmra.mxu0 %v827
        %v3701 = vpop.f32.mrf.mxu0
        %v3702 = vadd.f32 %v3653, %v3701
        %v3703 = vpop.f32.mrf.mxu0
        %v3704 = vadd.f32 %v3655, %v3703
        %3705 = vdwg.mxu0
        %3706 = vmatpush.bf16.msra.mxu0 %v2125
        %3707 = vmatpush.bf16.msra.mxu0 %v2117
        %3708 = vmatpush.bf16.msra.mxu0 %v2109
        %3709 = vmatpush.bf16.msra.mxu0 %v2101
        %3710 = vmatpush.bf16.msra.mxu0 %v2093
        %3711 = vmatpush.bf16.msra.mxu0 %v2085
        %3712 = vmatpush.bf16.msra.mxu0 %v2077
        %3713 = vmatpush.bf16.msra.mxu0 %v2069
        %3714 = vmatmul.bf16.gmra.mxu0 %v800
        %v3715 = vpop.f32.mrf.mxu0
        %v3716 = vadd.f32 %v3667, %v3715
        %v3717 = vpop.f32.mrf.mxu0
        %v3718 = vadd.f32 %v3669, %v3717
        %3719 = vmatmul.bf16.gmra.mxu0 %v804
        %v3720 = vpop.f32.mrf.mxu0
        %v3721 = vadd.f32 %v3672, %v3720
        %v3722 = vpop.f32.mrf.mxu0
        %v3723 = vadd.f32 %v3674, %v3722
        %3724 = vmatmul.bf16.gmra.mxu0 %v808
        %v3725 = vpop.f32.mrf.mxu0
        %v3726 = vadd.f32 %v3677, %v3725
        %v3727 = vpop.f32.mrf.mxu0
        %v3728 = vadd.f32 %v3679, %v3727
        %3729 = vmatmul.bf16.gmra.mxu0 %v812
        %v3730 = vpop.f32.mrf.mxu0
        %v3731 = vadd.f32 %v3682, %v3730
        %v3732 = vpop.f32.mrf.mxu0
        %v3733 = vadd.f32 %v3684, %v3732
        %3734 = vmatmul.bf16.gmra.mxu0 %v816
        %v3735 = vpop.f32.mrf.mxu0
        %v3736 = vadd.f32 %v3687, %v3735
        %v3737 = vpop.f32.mrf.mxu0
        %v3738 = vadd.f32 %v3689, %v3737
        %3739 = vmatmul.bf16.gmra.mxu0 %v820
        %v3740 = vpop.f32.mrf.mxu0
        %v3741 = vadd.f32 %v3692, %v3740
        %v3742 = vpop.f32.mrf.mxu0
        %v3743 = vadd.f32 %v3694, %v3742
        %3744 = vmatmul.bf16.gmra.mxu0 %v824
        %v3745 = vpop.f32.mrf.mxu0
        %v3746 = vadd.f32 %v3697, %v3745
        %v3747 = vpop.f32.mrf.mxu0
        %v3748 = vadd.f32 %v3699, %v3747
        %3749 = vmatmul.bf16.gmra.mxu0 %v828
        %v3750 = vpop.f32.mrf.mxu0
        %v3751 = vadd.f32 %v3702, %v3750
        %v3752 = vpop.f32.mrf.mxu0
        %v3753 = vadd.f32 %v3704, %v3752
        %3754 = vdwg.mxu0
        %3755 = vmatpush.bf16.msra.mxu0 %v1934
        %3756 = vmatpush.bf16.msra.mxu0 %v1926
        %3757 = vmatpush.bf16.msra.mxu0 %v1918
        %3758 = vmatpush.bf16.msra.mxu0 %v1910
        %3759 = vmatpush.bf16.msra.mxu0 %v1902
        %3760 = vmatpush.bf16.msra.mxu0 %v1894
        %3761 = vmatpush.bf16.msra.mxu0 %v1886
        %3762 = vmatpush.bf16.msra.mxu0 %v1878
        %3763 = vmatmul.bf16.gmra.mxu0 %v797
        %v3764 = vpop.f32.mrf.mxu0
        %v3765 = vadd.f32 %v1094, %v3764
        %v3766 = vpop.f32.mrf.mxu0
        %v3767 = vadd.f32 %v1094, %v3766
        %3768 = vmatmul.bf16.gmra.mxu0 %v801
        %v3769 = vpop.f32.mrf.mxu0
        %v3770 = vadd.f32 %v1094, %v3769
        %v3771 = vpop.f32.mrf.mxu0
        %v3772 = vadd.f32 %v1094, %v3771
        %3773 = vmatmul.bf16.gmra.mxu0 %v805
        %v3774 = vpop.f32.mrf.mxu0
        %v3775 = vadd.f32 %v1094, %v3774
        %v3776 = vpop.f32.mrf.mxu0
        %v3777 = vadd.f32 %v1094, %v3776
        %3778 = vmatmul.bf16.gmra.mxu0 %v809
        %v3779 = vpop.f32.mrf.mxu0
        %v3780 = vadd.f32 %v1094, %v3779
        %v3781 = vpop.f32.mrf.mxu0
        %v3782 = vadd.f32 %v1094, %v3781
        %3783 = vmatmul.bf16.gmra.mxu0 %v813
        %v3784 = vpop.f32.mrf.mxu0
        %v3785 = vadd.f32 %v1094, %v3784
        %v3786 = vpop.f32.mrf.mxu0
        %v3787 = vadd.f32 %v1094, %v3786
        %3788 = vmatmul.bf16.gmra.mxu0 %v817
        %v3789 = vpop.f32.mrf.mxu0
        %v3790 = vadd.f32 %v1094, %v3789
        %v3791 = vpop.f32.mrf.mxu0
        %v3792 = vadd.f32 %v1094, %v3791
        %3793 = vmatmul.bf16.gmra.mxu0 %v821
        %v3794 = vpop.f32.mrf.mxu0
        %v3795 = vadd.f32 %v1094, %v3794
        %v3796 = vpop.f32.mrf.mxu0
        %v3797 = vadd.f32 %v1094, %v3796
        %3798 = vmatmul.bf16.gmra.mxu0 %v825
        %v3799 = vpop.f32.mrf.mxu0
        %v3800 = vadd.f32 %v1094, %v3799
        %v3801 = vpop.f32.mrf.mxu0
        %v3802 = vadd.f32 %v1094, %v3801
        %3803 = vdwg.mxu0
        %3804 = vmatpush.bf16.msra.mxu0 %v1998
        %3805 = vmatpush.bf16.msra.mxu0 %v1990
        %3806 = vmatpush.bf16.msra.mxu0 %v1982
        %3807 = vmatpush.bf16.msra.mxu0 %v1974
        %3808 = vmatpush.bf16.msra.mxu0 %v1966
        %3809 = vmatpush.bf16.msra.mxu0 %v1958
        %3810 = vmatpush.bf16.msra.mxu0 %v1950
        %3811 = vmatpush.bf16.msra.mxu0 %v1942
        %3812 = vmatmul.bf16.gmra.mxu0 %v798
        %v3813 = vpop.f32.mrf.mxu0
        %v3814 = vadd.f32 %v3765, %v3813
        %v3815 = vpop.f32.mrf.mxu0
        %v3816 = vadd.f32 %v3767, %v3815
        %3817 = vmatmul.bf16.gmra.mxu0 %v802
        %v3818 = vpop.f32.mrf.mxu0
        %v3819 = vadd.f32 %v3770, %v3818
        %v3820 = vpop.f32.mrf.mxu0
        %v3821 = vadd.f32 %v3772, %v3820
        %3822 = vmatmul.bf16.gmra.mxu0 %v806
        %v3823 = vpop.f32.mrf.mxu0
        %v3824 = vadd.f32 %v3775, %v3823
        %v3825 = vpop.f32.mrf.mxu0
        %v3826 = vadd.f32 %v3777, %v3825
        %3827 = vmatmul.bf16.gmra.mxu0 %v810
        %v3828 = vpop.f32.mrf.mxu0
        %v3829 = vadd.f32 %v3780, %v3828
        %v3830 = vpop.f32.mrf.mxu0
        %v3831 = vadd.f32 %v3782, %v3830
        %3832 = vmatmul.bf16.gmra.mxu0 %v814
        %v3833 = vpop.f32.mrf.mxu0
        %v3834 = vadd.f32 %v3785, %v3833
        %v3835 = vpop.f32.mrf.mxu0
        %v3836 = vadd.f32 %v3787, %v3835
        %3837 = vmatmul.bf16.gmra.mxu0 %v818
        %v3838 = vpop.f32.mrf.mxu0
        %v3839 = vadd.f32 %v3790, %v3838
        %v3840 = vpop.f32.mrf.mxu0
        %v3841 = vadd.f32 %v3792, %v3840
        %3842 = vmatmul.bf16.gmra.mxu0 %v822
        %v3843 = vpop.f32.mrf.mxu0
        %v3844 = vadd.f32 %v3795, %v3843
        %v3845 = vpop.f32.mrf.mxu0
        %v3846 = vadd.f32 %v3797, %v3845
        %3847 = vmatmul.bf16.gmra.mxu0 %v826
        %v3848 = vpop.f32.mrf.mxu0
        %v3849 = vadd.f32 %v3800, %v3848
        %v3850 = vpop.f32.mrf.mxu0
        %v3851 = vadd.f32 %v3802, %v3850
        %3852 = vdwg.mxu0
        %3853 = vmatpush.bf16.msra.mxu0 %v2062
        %3854 = vmatpush.bf16.msra.mxu0 %v2054
        %3855 = vmatpush.bf16.msra.mxu0 %v2046
        %3856 = vmatpush.bf16.msra.mxu0 %v2038
        %3857 = vmatpush.bf16.msra.mxu0 %v2030
        %3858 = vmatpush.bf16.msra.mxu0 %v2022
        %3859 = vmatpush.bf16.msra.mxu0 %v2014
        %3860 = vmatpush.bf16.msra.mxu0 %v2006
        %3861 = vmatmul.bf16.gmra.mxu0 %v799
        %v3862 = vpop.f32.mrf.mxu0
        %v3863 = vadd.f32 %v3814, %v3862
        %v3864 = vpop.f32.mrf.mxu0
        %v3865 = vadd.f32 %v3816, %v3864
        %3866 = vmatmul.bf16.gmra.mxu0 %v803
        %v3867 = vpop.f32.mrf.mxu0
        %v3868 = vadd.f32 %v3819, %v3867
        %v3869 = vpop.f32.mrf.mxu0
        %v3870 = vadd.f32 %v3821, %v3869
        %3871 = vmatmul.bf16.gmra.mxu0 %v807
        %v3872 = vpop.f32.mrf.mxu0
        %v3873 = vadd.f32 %v3824, %v3872
        %v3874 = vpop.f32.mrf.mxu0
        %v3875 = vadd.f32 %v3826, %v3874
        %3876 = vmatmul.bf16.gmra.mxu0 %v811
        %v3877 = vpop.f32.mrf.mxu0
        %v3878 = vadd.f32 %v3829, %v3877
        %v3879 = vpop.f32.mrf.mxu0
        %v3880 = vadd.f32 %v3831, %v3879
        %3881 = vmatmul.bf16.gmra.mxu0 %v815
        %v3882 = vpop.f32.mrf.mxu0
        %v3883 = vadd.f32 %v3834, %v3882
        %v3884 = vpop.f32.mrf.mxu0
        %v3885 = vadd.f32 %v3836, %v3884
        %3886 = vmatmul.bf16.gmra.mxu0 %v819
        %v3887 = vpop.f32.mrf.mxu0
        %v3888 = vadd.f32 %v3839, %v3887
        %v3889 = vpop.f32.mrf.mxu0
        %v3890 = vadd.f32 %v3841, %v3889
        %3891 = vmatmul.bf16.gmra.mxu0 %v823
        %v3892 = vpop.f32.mrf.mxu0
        %v3893 = vadd.f32 %v3844, %v3892
        %v3894 = vpop.f32.mrf.mxu0
        %v3895 = vadd.f32 %v3846, %v3894
        %3896 = vmatmul.bf16.gmra.mxu0 %v827
        %v3897 = vpop.f32.mrf.mxu0
        %v3898 = vadd.f32 %v3849, %v3897
        %v3899 = vpop.f32.mrf.mxu0
        %v3900 = vadd.f32 %v3851, %v3899
        %3901 = vdwg.mxu0
        %3902 = vmatpush.bf16.msra.mxu0 %v2126
        %3903 = vmatpush.bf16.msra.mxu0 %v2118
        %3904 = vmatpush.bf16.msra.mxu0 %v2110
        %3905 = vmatpush.bf16.msra.mxu0 %v2102
        %3906 = vmatpush.bf16.msra.mxu0 %v2094
        %3907 = vmatpush.bf16.msra.mxu0 %v2086
        %3908 = vmatpush.bf16.msra.mxu0 %v2078
        %3909 = vmatpush.bf16.msra.mxu0 %v2070
        %3910 = vmatmul.bf16.gmra.mxu0 %v800
        %v3911 = vpop.f32.mrf.mxu0
        %v3912 = vadd.f32 %v3863, %v3911
        %v3913 = vpop.f32.mrf.mxu0
        %v3914 = vadd.f32 %v3865, %v3913
        %3915 = vmatmul.bf16.gmra.mxu0 %v804
        %v3916 = vpop.f32.mrf.mxu0
        %v3917 = vadd.f32 %v3868, %v3916
        %v3918 = vpop.f32.mrf.mxu0
        %v3919 = vadd.f32 %v3870, %v3918
        %3920 = vmatmul.bf16.gmra.mxu0 %v808
        %v3921 = vpop.f32.mrf.mxu0
        %v3922 = vadd.f32 %v3873, %v3921
        %v3923 = vpop.f32.mrf.mxu0
        %v3924 = vadd.f32 %v3875, %v3923
        %3925 = vmatmul.bf16.gmra.mxu0 %v812
        %v3926 = vpop.f32.mrf.mxu0
        %v3927 = vadd.f32 %v3878, %v3926
        %v3928 = vpop.f32.mrf.mxu0
        %v3929 = vadd.f32 %v3880, %v3928
        %3930 = vmatmul.bf16.gmra.mxu0 %v816
        %v3931 = vpop.f32.mrf.mxu0
        %v3932 = vadd.f32 %v3883, %v3931
        %v3933 = vpop.f32.mrf.mxu0
        %v3934 = vadd.f32 %v3885, %v3933
        %3935 = vmatmul.bf16.gmra.mxu0 %v820
        %v3936 = vpop.f32.mrf.mxu0
        %v3937 = vadd.f32 %v3888, %v3936
        %v3938 = vpop.f32.mrf.mxu0
        %v3939 = vadd.f32 %v3890, %v3938
        %3940 = vmatmul.bf16.gmra.mxu0 %v824
        %v3941 = vpop.f32.mrf.mxu0
        %v3942 = vadd.f32 %v3893, %v3941
        %v3943 = vpop.f32.mrf.mxu0
        %v3944 = vadd.f32 %v3895, %v3943
        %3945 = vmatmul.bf16.gmra.mxu0 %v828
        %v3946 = vpop.f32.mrf.mxu0
        %v3947 = vadd.f32 %v3898, %v3946
        %v3948 = vpop.f32.mrf.mxu0
        %v3949 = vadd.f32 %v3900, %v3948
        %3950 = vdwg.mxu0
        %v3951 = vmax.f32 %v2540, 0.0
        %v3952 = vmax.f32 %v2736, 0.0
        %v3953 = vmax.f32 %v2932, 0.0
        %v3954 = vmax.f32 %v3128, 0.0
        %v3955 = vmax.f32 %v3324, 0.0
        %v3956 = vmax.f32 %v3520, 0.0
        %v3957 = vmax.f32 %v3716, 0.0
        %v3958 = vmax.f32 %v3912, 0.0
        %v3959 = vmax.f32 %v2542, 0.0
        %v3960 = vmax.f32 %v2738, 0.0
        %v3961 = vmax.f32 %v2934, 0.0
        %v3962 = vmax.f32 %v3130, 0.0
        %v3963 = vmax.f32 %v3326, 0.0
        %v3964 = vmax.f32 %v3522, 0.0
        %v3965 = vmax.f32 %v3718, 0.0
        %v3966 = vmax.f32 %v3914, 0.0
        %v3967 = vmax.f32 %v2545, 0.0
        %v3968 = vmax.f32 %v2741, 0.0
        %v3969 = vmax.f32 %v2937, 0.0
        %v3970 = vmax.f32 %v3133, 0.0
        %v3971 = vmax.f32 %v3329, 0.0
        %v3972 = vmax.f32 %v3525, 0.0
        %v3973 = vmax.f32 %v3721, 0.0
        %v3974 = vmax.f32 %v3917, 0.0
        %v3975 = vmax.f32 %v2547, 0.0
        %v3976 = vmax.f32 %v2743, 0.0
        %v3977 = vmax.f32 %v2939, 0.0
        %v3978 = vmax.f32 %v3135, 0.0
        %v3979 = vmax.f32 %v3331, 0.0
        %v3980 = vmax.f32 %v3527, 0.0
        %v3981 = vmax.f32 %v3723, 0.0
        %v3982 = vmax.f32 %v3919, 0.0
        %v3983 = vmax.f32 %v2550, 0.0
        %v3984 = vmax.f32 %v2746, 0.0
        %v3985 = vmax.f32 %v2942, 0.0
        %v3986 = vmax.f32 %v3138, 0.0
        %v3987 = vmax.f32 %v3334, 0.0
        %v3988 = vmax.f32 %v3530, 0.0
        %v3989 = vmax.f32 %v3726, 0.0
        %v3990 = vmax.f32 %v3922, 0.0
        %v3991 = vmax.f32 %v2552, 0.0
        %v3992 = vmax.f32 %v2748, 0.0
        %v3993 = vmax.f32 %v2944, 0.0
        %v3994 = vmax.f32 %v3140, 0.0
        %v3995 = vmax.f32 %v3336, 0.0
        %v3996 = vmax.f32 %v3532, 0.0
        %v3997 = vmax.f32 %v3728, 0.0
        %v3998 = vmax.f32 %v3924, 0.0
        %v3999 = vmax.f32 %v2555, 0.0
        %v4000 = vmax.f32 %v2751, 0.0
        %v4001 = vmax.f32 %v2947, 0.0
        %v4002 = vmax.f32 %v3143, 0.0
        %v4003 = vmax.f32 %v3339, 0.0
        %v4004 = vmax.f32 %v3535, 0.0
        %v4005 = vmax.f32 %v3731, 0.0
        %v4006 = vmax.f32 %v3927, 0.0
        %v4007 = vmax.f32 %v2557, 0.0
        %v4008 = vmax.f32 %v2753, 0.0
        %v4009 = vmax.f32 %v2949, 0.0
        %v4010 = vmax.f32 %v3145, 0.0
        %v4011 = vmax.f32 %v3341, 0.0
        %v4012 = vmax.f32 %v3537, 0.0
        %v4013 = vmax.f32 %v3733, 0.0
        %v4014 = vmax.f32 %v3929, 0.0
        %v4015 = vmax.f32 %v2560, 0.0
        %v4016 = vmax.f32 %v2756, 0.0
        %v4017 = vmax.f32 %v2952, 0.0
        %v4018 = vmax.f32 %v3148, 0.0
        %v4019 = vmax.f32 %v3344, 0.0
        %v4020 = vmax.f32 %v3540, 0.0
        %v4021 = vmax.f32 %v3736, 0.0
        %v4022 = vmax.f32 %v3932, 0.0
        %v4023 = vmax.f32 %v2562, 0.0
        %v4024 = vmax.f32 %v2758, 0.0
        %v4025 = vmax.f32 %v2954, 0.0
        %v4026 = vmax.f32 %v3150, 0.0
        %v4027 = vmax.f32 %v3346, 0.0
        %v4028 = vmax.f32 %v3542, 0.0
        %v4029 = vmax.f32 %v3738, 0.0
        %v4030 = vmax.f32 %v3934, 0.0
        %v4031 = vmax.f32 %v2565, 0.0
        %v4032 = vmax.f32 %v2761, 0.0
        %v4033 = vmax.f32 %v2957, 0.0
        %v4034 = vmax.f32 %v3153, 0.0
        %v4035 = vmax.f32 %v3349, 0.0
        %v4036 = vmax.f32 %v3545, 0.0
        %v4037 = vmax.f32 %v3741, 0.0
        %v4038 = vmax.f32 %v3937, 0.0
        %v4039 = vmax.f32 %v2567, 0.0
        %v4040 = vmax.f32 %v2763, 0.0
        %v4041 = vmax.f32 %v2959, 0.0
        %v4042 = vmax.f32 %v3155, 0.0
        %v4043 = vmax.f32 %v3351, 0.0
        %v4044 = vmax.f32 %v3547, 0.0
        %v4045 = vmax.f32 %v3743, 0.0
        %v4046 = vmax.f32 %v3939, 0.0
        %v4047 = vmax.f32 %v2570, 0.0
        %v4048 = vmax.f32 %v2766, 0.0
        %v4049 = vmax.f32 %v2962, 0.0
        %v4050 = vmax.f32 %v3158, 0.0
        %v4051 = vmax.f32 %v3354, 0.0
        %v4052 = vmax.f32 %v3550, 0.0
        %v4053 = vmax.f32 %v3746, 0.0
        %v4054 = vmax.f32 %v3942, 0.0
        %v4055 = vmax.f32 %v2572, 0.0
        %v4056 = vmax.f32 %v2768, 0.0
        %v4057 = vmax.f32 %v2964, 0.0
        %v4058 = vmax.f32 %v3160, 0.0
        %v4059 = vmax.f32 %v3356, 0.0
        %v4060 = vmax.f32 %v3552, 0.0
        %v4061 = vmax.f32 %v3748, 0.0
        %v4062 = vmax.f32 %v3944, 0.0
        %v4063 = vmax.f32 %v2575, 0.0
        %v4064 = vmax.f32 %v2771, 0.0
        %v4065 = vmax.f32 %v2967, 0.0
        %v4066 = vmax.f32 %v3163, 0.0
        %v4067 = vmax.f32 %v3359, 0.0
        %v4068 = vmax.f32 %v3555, 0.0
        %v4069 = vmax.f32 %v3751, 0.0
        %v4070 = vmax.f32 %v3947, 0.0
        %v4071 = vmax.f32 %v2577, 0.0
        %v4072 = vmax.f32 %v2773, 0.0
        %v4073 = vmax.f32 %v2969, 0.0
        %v4074 = vmax.f32 %v3165, 0.0
        %v4075 = vmax.f32 %v3361, 0.0
        %v4076 = vmax.f32 %v3557, 0.0
        %v4077 = vmax.f32 %v3753, 0.0
        %v4078 = vmax.f32 %v3949, 0.0
        %v4079 = vpack.c.bf16 %v3959, %v3951
        %v4080 = vpack.c.bf16 %v3960, %v3952
        %v4081 = vpack.c.bf16 %v3961, %v3953
        %v4082 = vpack.c.bf16 %v3962, %v3954
        %v4083 = vpack.c.bf16 %v3963, %v3955
        %v4084 = vpack.c.bf16 %v3964, %v3956
        %v4085 = vpack.c.bf16 %v3965, %v3957
        %v4086 = vpack.c.bf16 %v3966, %v3958
        %v4087 = vpack.c.bf16 %v3975, %v3967
        %v4088 = vpack.c.bf16 %v3976, %v3968
        %v4089 = vpack.c.bf16 %v3977, %v3969
        %v4090 = vpack.c.bf16 %v3978, %v3970
        %v4091 = vpack.c.bf16 %v3979, %v3971
        %v4092 = vpack.c.bf16 %v3980, %v3972
        %v4093 = vpack.c.bf16 %v3981, %v3973
        %v4094 = vpack.c.bf16 %v3982, %v3974
        %v4095 = vpack.c.bf16 %v3991, %v3983
        %v4096 = vpack.c.bf16 %v3992, %v3984
        %v4097 = vpack.c.bf16 %v3993, %v3985
        %v4098 = vpack.c.bf16 %v3994, %v3986
        %v4099 = vpack.c.bf16 %v3995, %v3987
        %v4100 = vpack.c.bf16 %v3996, %v3988
        %v4101 = vpack.c.bf16 %v3997, %v3989
        %v4102 = vpack.c.bf16 %v3998, %v3990
        %v4103 = vpack.c.bf16 %v4007, %v3999
        %v4104 = vpack.c.bf16 %v4008, %v4000
        %v4105 = vpack.c.bf16 %v4009, %v4001
        %v4106 = vpack.c.bf16 %v4010, %v4002
        %v4107 = vpack.c.bf16 %v4011, %v4003
        %v4108 = vpack.c.bf16 %v4012, %v4004
        %v4109 = vpack.c.bf16 %v4013, %v4005
        %v4110 = vpack.c.bf16 %v4014, %v4006
        %v4111 = vpack.c.bf16 %v4023, %v4015
        %v4112 = vpack.c.bf16 %v4024, %v4016
        %v4113 = vpack.c.bf16 %v4025, %v4017
        %v4114 = vpack.c.bf16 %v4026, %v4018
        %v4115 = vpack.c.bf16 %v4027, %v4019
        %v4116 = vpack.c.bf16 %v4028, %v4020
        %v4117 = vpack.c.bf16 %v4029, %v4021
        %v4118 = vpack.c.bf16 %v4030, %v4022
        %v4119 = vpack.c.bf16 %v4039, %v4031
        %v4120 = vpack.c.bf16 %v4040, %v4032
        %v4121 = vpack.c.bf16 %v4041, %v4033
        %v4122 = vpack.c.bf16 %v4042, %v4034
        %v4123 = vpack.c.bf16 %v4043, %v4035
        %v4124 = vpack.c.bf16 %v4044, %v4036
        %v4125 = vpack.c.bf16 %v4045, %v4037
        %v4126 = vpack.c.bf16 %v4046, %v4038
        %v4127 = vpack.c.bf16 %v4055, %v4047
        %v4128 = vpack.c.bf16 %v4056, %v4048
        %v4129 = vpack.c.bf16 %v4057, %v4049
        %v4130 = vpack.c.bf16 %v4058, %v4050
        %v4131 = vpack.c.bf16 %v4059, %v4051
        %v4132 = vpack.c.bf16 %v4060, %v4052
        %v4133 = vpack.c.bf16 %v4061, %v4053
        %v4134 = vpack.c.bf16 %v4062, %v4054
        %v4135 = vpack.c.bf16 %v4071, %v4063
        %v4136 = vpack.c.bf16 %v4072, %v4064
        %v4137 = vpack.c.bf16 %v4073, %v4065
        %v4138 = vpack.c.bf16 %v4074, %v4066
        %v4139 = vpack.c.bf16 %v4075, %v4067
        %v4140 = vpack.c.bf16 %v4076, %v4068
        %v4141 = vpack.c.bf16 %v4077, %v4069
        %v4142 = vpack.c.bf16 %v4078, %v4070
        %v4143 = vld [vmem:[#allocation7] sm:$0xff]
        %v4144 = vld [vmem:[#allocation7 + $0x8] sm:$0xff]
        %v4145 = vld [vmem:[#allocation7 + $0x10] sm:$0xff]
        %v4146 = vld [vmem:[#allocation7 + $0x18] sm:$0xff]
        %v4147 = vld [vmem:[#allocation7 + $0x20] sm:$0xff]
        %v4148 = vld [vmem:[#allocation7 + $0x28] sm:$0xff]
        %v4149 = vld [vmem:[#allocation7 + $0x30] sm:$0xff]
        %v4150 = vld [vmem:[#allocation7 + $0x38] sm:$0xff]
        %v4151 = vld [vmem:[#allocation7 + $0x40] sm:$0xff]
        %v4152 = vld [vmem:[#allocation7 + $0x48] sm:$0xff]
        %v4153 = vld [vmem:[#allocation7 + $0x50] sm:$0xff]
        %v4154 = vld [vmem:[#allocation7 + $0x58] sm:$0xff]
        %v4155 = vld [vmem:[#allocation7 + $0x60] sm:$0xff]
        %v4156 = vld [vmem:[#allocation7 + $0x68] sm:$0xff]
        %v4157 = vld [vmem:[#allocation7 + $0x70] sm:$0xff]
        %v4158 = vld [vmem:[#allocation7 + $0x78] sm:$0xff]
        %v4159 = vld [vmem:[#allocation7 + $0x80] sm:$0xff]
        %v4160 = vld [vmem:[#allocation7 + $0x88] sm:$0xff]
        %v4161 = vld [vmem:[#allocation7 + $0x90] sm:$0xff]
        %v4162 = vld [vmem:[#allocation7 + $0x98] sm:$0xff]
        %v4163 = vld [vmem:[#allocation7 + $0xa0] sm:$0xff]
        %v4164 = vld [vmem:[#allocation7 + $0xa8] sm:$0xff]
        %v4165 = vld [vmem:[#allocation7 + $0xb0] sm:$0xff]
        %v4166 = vld [vmem:[#allocation7 + $0xb8] sm:$0xff]
        %v4167 = vld [vmem:[#allocation7 + $0xc0] sm:$0xff]
        %v4168 = vld [vmem:[#allocation7 + $0xc8] sm:$0xff]
        %v4169 = vld [vmem:[#allocation7 + $0xd0] sm:$0xff]
        %v4170 = vld [vmem:[#allocation7 + $0xd8] sm:$0xff]
        %v4171 = vld [vmem:[#allocation7 + $0xe0] sm:$0xff]
        %v4172 = vld [vmem:[#allocation7 + $0xe8] sm:$0xff]
        %v4173 = vld [vmem:[#allocation7 + $0xf0] sm:$0xff]
        %v4174 = vld [vmem:[#allocation7 + $0xf8] sm:$0xff]
        %v4175 = vld [vmem:[#allocation7 + $0x100] sm:$0xff]
        %v4176 = vld [vmem:[#allocation7 + $0x108] sm:$0xff]
        %v4177 = vld [vmem:[#allocation7 + $0x110] sm:$0xff]
        %v4178 = vld [vmem:[#allocation7 + $0x118] sm:$0xff]
        %v4179 = vld [vmem:[#allocation7 + $0x120] sm:$0xff]
        %v4180 = vld [vmem:[#allocation7 + $0x128] sm:$0xff]
        %v4181 = vld [vmem:[#allocation7 + $0x130] sm:$0xff]
        %v4182 = vld [vmem:[#allocation7 + $0x138] sm:$0xff]
        %v4183 = vld [vmem:[#allocation7 + $0x140] sm:$0xff]
        %v4184 = vld [vmem:[#allocation7 + $0x148] sm:$0xff]
        %v4185 = vld [vmem:[#allocation7 + $0x150] sm:$0xff]
        %v4186 = vld [vmem:[#allocation7 + $0x158] sm:$0xff]
        %v4187 = vld [vmem:[#allocation7 + $0x160] sm:$0xff]
        %v4188 = vld [vmem:[#allocation7 + $0x168] sm:$0xff]
        %v4189 = vld [vmem:[#allocation7 + $0x170] sm:$0xff]
        %v4190 = vld [vmem:[#allocation7 + $0x178] sm:$0xff]
        %v4191 = vld [vmem:[#allocation7 + $0x180] sm:$0xff]
        %v4192 = vld [vmem:[#allocation7 + $0x188] sm:$0xff]
        %v4193 = vld [vmem:[#allocation7 + $0x190] sm:$0xff]
        %v4194 = vld [vmem:[#allocation7 + $0x198] sm:$0xff]
        %v4195 = vld [vmem:[#allocation7 + $0x1a0] sm:$0xff]
        %v4196 = vld [vmem:[#allocation7 + $0x1a8] sm:$0xff]
        %v4197 = vld [vmem:[#allocation7 + $0x1b0] sm:$0xff]
        %v4198 = vld [vmem:[#allocation7 + $0x1b8] sm:$0xff]
        %v4199 = vld [vmem:[#allocation7 + $0x1c0] sm:$0xff]
        %v4200 = vld [vmem:[#allocation7 + $0x1c8] sm:$0xff]
        %v4201 = vld [vmem:[#allocation7 + $0x1d0] sm:$0xff]
        %v4202 = vld [vmem:[#allocation7 + $0x1d8] sm:$0xff]
        %v4203 = vld [vmem:[#allocation7 + $0x1e0] sm:$0xff]
        %v4204 = vld [vmem:[#allocation7 + $0x1e8] sm:$0xff]
        %v4205 = vld [vmem:[#allocation7 + $0x1f0] sm:$0xff]
        %v4206 = vld [vmem:[#allocation7 + $0x1f8] sm:$0xff]
        %v4207 = vld [vmem:[#allocation7 + $0x200] sm:$0xff]
        %v4208 = vld [vmem:[#allocation7 + $0x208] sm:$0xff]
        %v4209 = vld [vmem:[#allocation7 + $0x210] sm:$0xff]
        %v4210 = vld [vmem:[#allocation7 + $0x218] sm:$0xff]
        %v4211 = vld [vmem:[#allocation7 + $0x220] sm:$0xff]
        %v4212 = vld [vmem:[#allocation7 + $0x228] sm:$0xff]
        %v4213 = vld [vmem:[#allocation7 + $0x230] sm:$0xff]
        %v4214 = vld [vmem:[#allocation7 + $0x238] sm:$0xff]
        %v4215 = vld [vmem:[#allocation7 + $0x240] sm:$0xff]
        %v4216 = vld [vmem:[#allocation7 + $0x248] sm:$0xff]
        %v4217 = vld [vmem:[#allocation7 + $0x250] sm:$0xff]
        %v4218 = vld [vmem:[#allocation7 + $0x258] sm:$0xff]
        %v4219 = vld [vmem:[#allocation7 + $0x260] sm:$0xff]
        %v4220 = vld [vmem:[#allocation7 + $0x268] sm:$0xff]
        %v4221 = vld [vmem:[#allocation7 + $0x270] sm:$0xff]
        %v4222 = vld [vmem:[#allocation7 + $0x278] sm:$0xff]
        %v4223 = vld [vmem:[#allocation7 + $0x280] sm:$0xff]
        %v4224 = vld [vmem:[#allocation7 + $0x288] sm:$0xff]
        %v4225 = vld [vmem:[#allocation7 + $0x290] sm:$0xff]
        %v4226 = vld [vmem:[#allocation7 + $0x298] sm:$0xff]
        %v4227 = vld [vmem:[#allocation7 + $0x2a0] sm:$0xff]
        %v4228 = vld [vmem:[#allocation7 + $0x2a8] sm:$0xff]
        %v4229 = vld [vmem:[#allocation7 + $0x2b0] sm:$0xff]
        %v4230 = vld [vmem:[#allocation7 + $0x2b8] sm:$0xff]
        %v4231 = vld [vmem:[#allocation7 + $0x2c0] sm:$0xff]
        %v4232 = vld [vmem:[#allocation7 + $0x2c8] sm:$0xff]
        %v4233 = vld [vmem:[#allocation7 + $0x2d0] sm:$0xff]
        %v4234 = vld [vmem:[#allocation7 + $0x2d8] sm:$0xff]
        %v4235 = vld [vmem:[#allocation7 + $0x2e0] sm:$0xff]
        %v4236 = vld [vmem:[#allocation7 + $0x2e8] sm:$0xff]
        %v4237 = vld [vmem:[#allocation7 + $0x2f0] sm:$0xff]
        %v4238 = vld [vmem:[#allocation7 + $0x2f8] sm:$0xff]
        %v4239 = vld [vmem:[#allocation7 + $0x300] sm:$0xff]
        %v4240 = vld [vmem:[#allocation7 + $0x308] sm:$0xff]
        %v4241 = vld [vmem:[#allocation7 + $0x310] sm:$0xff]
        %v4242 = vld [vmem:[#allocation7 + $0x318] sm:$0xff]
        %v4243 = vld [vmem:[#allocation7 + $0x320] sm:$0xff]
        %v4244 = vld [vmem:[#allocation7 + $0x328] sm:$0xff]
        %v4245 = vld [vmem:[#allocation7 + $0x330] sm:$0xff]
        %v4246 = vld [vmem:[#allocation7 + $0x338] sm:$0xff]
        %v4247 = vld [vmem:[#allocation7 + $0x340] sm:$0xff]
        %v4248 = vld [vmem:[#allocation7 + $0x348] sm:$0xff]
        %v4249 = vld [vmem:[#allocation7 + $0x350] sm:$0xff]
        %v4250 = vld [vmem:[#allocation7 + $0x358] sm:$0xff]
        %v4251 = vld [vmem:[#allocation7 + $0x360] sm:$0xff]
        %v4252 = vld [vmem:[#allocation7 + $0x368] sm:$0xff]
        %v4253 = vld [vmem:[#allocation7 + $0x370] sm:$0xff]
        %v4254 = vld [vmem:[#allocation7 + $0x378] sm:$0xff]
        %v4255 = vld [vmem:[#allocation7 + $0x380] sm:$0xff]
        %v4256 = vld [vmem:[#allocation7 + $0x388] sm:$0xff]
        %v4257 = vld [vmem:[#allocation7 + $0x390] sm:$0xff]
        %v4258 = vld [vmem:[#allocation7 + $0x398] sm:$0xff]
        %v4259 = vld [vmem:[#allocation7 + $0x3a0] sm:$0xff]
        %v4260 = vld [vmem:[#allocation7 + $0x3a8] sm:$0xff]
        %v4261 = vld [vmem:[#allocation7 + $0x3b0] sm:$0xff]
        %v4262 = vld [vmem:[#allocation7 + $0x3b8] sm:$0xff]
        %v4263 = vld [vmem:[#allocation7 + $0x3c0] sm:$0xff]
        %v4264 = vld [vmem:[#allocation7 + $0x3c8] sm:$0xff]
        %v4265 = vld [vmem:[#allocation7 + $0x3d0] sm:$0xff]
        %v4266 = vld [vmem:[#allocation7 + $0x3d8] sm:$0xff]
        %v4267 = vld [vmem:[#allocation7 + $0x3e0] sm:$0xff]
        %v4268 = vld [vmem:[#allocation7 + $0x3e8] sm:$0xff]
        %v4269 = vld [vmem:[#allocation7 + $0x3f0] sm:$0xff]
        %v4270 = vld [vmem:[#allocation7 + $0x3f8] sm:$0xff]
        %v4271 = vld [vmem:[#allocation7 + $0x400] sm:$0xff]
        %v4272 = vld [vmem:[#allocation7 + $0x408] sm:$0xff]
        %v4273 = vld [vmem:[#allocation7 + $0x410] sm:$0xff]
        %v4274 = vld [vmem:[#allocation7 + $0x418] sm:$0xff]
        %v4275 = vld [vmem:[#allocation7 + $0x420] sm:$0xff]
        %v4276 = vld [vmem:[#allocation7 + $0x428] sm:$0xff]
        %v4277 = vld [vmem:[#allocation7 + $0x430] sm:$0xff]
        %v4278 = vld [vmem:[#allocation7 + $0x438] sm:$0xff]
        %v4279 = vld [vmem:[#allocation7 + $0x440] sm:$0xff]
        %v4280 = vld [vmem:[#allocation7 + $0x448] sm:$0xff]
        %v4281 = vld [vmem:[#allocation7 + $0x450] sm:$0xff]
        %v4282 = vld [vmem:[#allocation7 + $0x458] sm:$0xff]
        %v4283 = vld [vmem:[#allocation7 + $0x460] sm:$0xff]
        %v4284 = vld [vmem:[#allocation7 + $0x468] sm:$0xff]
        %v4285 = vld [vmem:[#allocation7 + $0x470] sm:$0xff]
        %v4286 = vld [vmem:[#allocation7 + $0x478] sm:$0xff]
        %v4287 = vld [vmem:[#allocation7 + $0x480] sm:$0xff]
        %v4288 = vld [vmem:[#allocation7 + $0x488] sm:$0xff]
        %v4289 = vld [vmem:[#allocation7 + $0x490] sm:$0xff]
        %v4290 = vld [vmem:[#allocation7 + $0x498] sm:$0xff]
        %v4291 = vld [vmem:[#allocation7 + $0x4a0] sm:$0xff]
        %v4292 = vld [vmem:[#allocation7 + $0x4a8] sm:$0xff]
        %v4293 = vld [vmem:[#allocation7 + $0x4b0] sm:$0xff]
        %v4294 = vld [vmem:[#allocation7 + $0x4b8] sm:$0xff]
        %v4295 = vld [vmem:[#allocation7 + $0x4c0] sm:$0xff]
        %v4296 = vld [vmem:[#allocation7 + $0x4c8] sm:$0xff]
        %v4297 = vld [vmem:[#allocation7 + $0x4d0] sm:$0xff]
        %v4298 = vld [vmem:[#allocation7 + $0x4d8] sm:$0xff]
        %v4299 = vld [vmem:[#allocation7 + $0x4e0] sm:$0xff]
        %v4300 = vld [vmem:[#allocation7 + $0x4e8] sm:$0xff]
        %v4301 = vld [vmem:[#allocation7 + $0x4f0] sm:$0xff]
        %v4302 = vld [vmem:[#allocation7 + $0x4f8] sm:$0xff]
        %v4303 = vld [vmem:[#allocation7 + $0x500] sm:$0xff]
        %v4304 = vld [vmem:[#allocation7 + $0x508] sm:$0xff]
        %v4305 = vld [vmem:[#allocation7 + $0x510] sm:$0xff]
        %v4306 = vld [vmem:[#allocation7 + $0x518] sm:$0xff]
        %v4307 = vld [vmem:[#allocation7 + $0x520] sm:$0xff]
        %v4308 = vld [vmem:[#allocation7 + $0x528] sm:$0xff]
        %v4309 = vld [vmem:[#allocation7 + $0x530] sm:$0xff]
        %v4310 = vld [vmem:[#allocation7 + $0x538] sm:$0xff]
        %v4311 = vld [vmem:[#allocation7 + $0x540] sm:$0xff]
        %v4312 = vld [vmem:[#allocation7 + $0x548] sm:$0xff]
        %v4313 = vld [vmem:[#allocation7 + $0x550] sm:$0xff]
        %v4314 = vld [vmem:[#allocation7 + $0x558] sm:$0xff]
        %v4315 = vld [vmem:[#allocation7 + $0x560] sm:$0xff]
        %v4316 = vld [vmem:[#allocation7 + $0x568] sm:$0xff]
        %v4317 = vld [vmem:[#allocation7 + $0x570] sm:$0xff]
        %v4318 = vld [vmem:[#allocation7 + $0x578] sm:$0xff]
        %v4319 = vld [vmem:[#allocation7 + $0x580] sm:$0xff]
        %v4320 = vld [vmem:[#allocation7 + $0x588] sm:$0xff]
        %v4321 = vld [vmem:[#allocation7 + $0x590] sm:$0xff]
        %v4322 = vld [vmem:[#allocation7 + $0x598] sm:$0xff]
        %v4323 = vld [vmem:[#allocation7 + $0x5a0] sm:$0xff]
        %v4324 = vld [vmem:[#allocation7 + $0x5a8] sm:$0xff]
        %v4325 = vld [vmem:[#allocation7 + $0x5b0] sm:$0xff]
        %v4326 = vld [vmem:[#allocation7 + $0x5b8] sm:$0xff]
        %v4327 = vld [vmem:[#allocation7 + $0x5c0] sm:$0xff]
        %v4328 = vld [vmem:[#allocation7 + $0x5c8] sm:$0xff]
        %v4329 = vld [vmem:[#allocation7 + $0x5d0] sm:$0xff]
        %v4330 = vld [vmem:[#allocation7 + $0x5d8] sm:$0xff]
        %v4331 = vld [vmem:[#allocation7 + $0x5e0] sm:$0xff]
        %v4332 = vld [vmem:[#allocation7 + $0x5e8] sm:$0xff]
        %v4333 = vld [vmem:[#allocation7 + $0x5f0] sm:$0xff]
        %v4334 = vld [vmem:[#allocation7 + $0x5f8] sm:$0xff]
        %v4335 = vld [vmem:[#allocation7 + $0x600] sm:$0xff]
        %v4336 = vld [vmem:[#allocation7 + $0x608] sm:$0xff]
        %v4337 = vld [vmem:[#allocation7 + $0x610] sm:$0xff]
        %v4338 = vld [vmem:[#allocation7 + $0x618] sm:$0xff]
        %v4339 = vld [vmem:[#allocation7 + $0x620] sm:$0xff]
        %v4340 = vld [vmem:[#allocation7 + $0x628] sm:$0xff]
        %v4341 = vld [vmem:[#allocation7 + $0x630] sm:$0xff]
        %v4342 = vld [vmem:[#allocation7 + $0x638] sm:$0xff]
        %v4343 = vld [vmem:[#allocation7 + $0x640] sm:$0xff]
        %v4344 = vld [vmem:[#allocation7 + $0x648] sm:$0xff]
        %v4345 = vld [vmem:[#allocation7 + $0x650] sm:$0xff]
        %v4346 = vld [vmem:[#allocation7 + $0x658] sm:$0xff]
        %v4347 = vld [vmem:[#allocation7 + $0x660] sm:$0xff]
        %v4348 = vld [vmem:[#allocation7 + $0x668] sm:$0xff]
        %v4349 = vld [vmem:[#allocation7 + $0x670] sm:$0xff]
        %v4350 = vld [vmem:[#allocation7 + $0x678] sm:$0xff]
        %v4351 = vld [vmem:[#allocation7 + $0x680] sm:$0xff]
        %v4352 = vld [vmem:[#allocation7 + $0x688] sm:$0xff]
        %v4353 = vld [vmem:[#allocation7 + $0x690] sm:$0xff]
        %v4354 = vld [vmem:[#allocation7 + $0x698] sm:$0xff]
        %v4355 = vld [vmem:[#allocation7 + $0x6a0] sm:$0xff]
        %v4356 = vld [vmem:[#allocation7 + $0x6a8] sm:$0xff]
        %v4357 = vld [vmem:[#allocation7 + $0x6b0] sm:$0xff]
        %v4358 = vld [vmem:[#allocation7 + $0x6b8] sm:$0xff]
        %v4359 = vld [vmem:[#allocation7 + $0x6c0] sm:$0xff]
        %v4360 = vld [vmem:[#allocation7 + $0x6c8] sm:$0xff]
        %v4361 = vld [vmem:[#allocation7 + $0x6d0] sm:$0xff]
        %v4362 = vld [vmem:[#allocation7 + $0x6d8] sm:$0xff]
        %v4363 = vld [vmem:[#allocation7 + $0x6e0] sm:$0xff]
        %v4364 = vld [vmem:[#allocation7 + $0x6e8] sm:$0xff]
        %v4365 = vld [vmem:[#allocation7 + $0x6f0] sm:$0xff]
        %v4366 = vld [vmem:[#allocation7 + $0x6f8] sm:$0xff]
        %v4367 = vld [vmem:[#allocation7 + $0x700] sm:$0xff]
        %v4368 = vld [vmem:[#allocation7 + $0x708] sm:$0xff]
        %v4369 = vld [vmem:[#allocation7 + $0x710] sm:$0xff]
        %v4370 = vld [vmem:[#allocation7 + $0x718] sm:$0xff]
        %v4371 = vld [vmem:[#allocation7 + $0x720] sm:$0xff]
        %v4372 = vld [vmem:[#allocation7 + $0x728] sm:$0xff]
        %v4373 = vld [vmem:[#allocation7 + $0x730] sm:$0xff]
        %v4374 = vld [vmem:[#allocation7 + $0x738] sm:$0xff]
        %v4375 = vld [vmem:[#allocation7 + $0x740] sm:$0xff]
        %v4376 = vld [vmem:[#allocation7 + $0x748] sm:$0xff]
        %v4377 = vld [vmem:[#allocation7 + $0x750] sm:$0xff]
        %v4378 = vld [vmem:[#allocation7 + $0x758] sm:$0xff]
        %v4379 = vld [vmem:[#allocation7 + $0x760] sm:$0xff]
        %v4380 = vld [vmem:[#allocation7 + $0x768] sm:$0xff]
        %v4381 = vld [vmem:[#allocation7 + $0x770] sm:$0xff]
        %v4382 = vld [vmem:[#allocation7 + $0x778] sm:$0xff]
        %v4383 = vld [vmem:[#allocation7 + $0x780] sm:$0xff]
        %v4384 = vld [vmem:[#allocation7 + $0x788] sm:$0xff]
        %v4385 = vld [vmem:[#allocation7 + $0x790] sm:$0xff]
        %v4386 = vld [vmem:[#allocation7 + $0x798] sm:$0xff]
        %v4387 = vld [vmem:[#allocation7 + $0x7a0] sm:$0xff]
        %v4388 = vld [vmem:[#allocation7 + $0x7a8] sm:$0xff]
        %v4389 = vld [vmem:[#allocation7 + $0x7b0] sm:$0xff]
        %v4390 = vld [vmem:[#allocation7 + $0x7b8] sm:$0xff]
        %v4391 = vld [vmem:[#allocation7 + $0x7c0] sm:$0xff]
        %v4392 = vld [vmem:[#allocation7 + $0x7c8] sm:$0xff]
        %v4393 = vld [vmem:[#allocation7 + $0x7d0] sm:$0xff]
        %v4394 = vld [vmem:[#allocation7 + $0x7d8] sm:$0xff]
        %v4395 = vld [vmem:[#allocation7 + $0x7e0] sm:$0xff]
        %v4396 = vld [vmem:[#allocation7 + $0x7e8] sm:$0xff]
        %v4397 = vld [vmem:[#allocation7 + $0x7f0] sm:$0xff]
        %v4398 = vld [vmem:[#allocation7 + $0x7f8] sm:$0xff]
        %v4399 = vld [vmem:[#allocation8] sm:$0xf]
        %v4401 = vperm.slane %v4399, 0
        %v4402 = vperm.slane %v4399, 1
        %v4403 = vperm.slane %v4399, 2
        %v4404 = vperm.slane %v4399, 3
        %v4665 = vunpack.c.l.b16 %v4143
        %v4666 = vunpack.c.h.b16 %v4143
        %v4667 = vunpack.c.l.b16 %v4144
        %v4668 = vunpack.c.h.b16 %v4144
        %v4669 = vunpack.c.l.b16 %v4145
        %v4670 = vunpack.c.h.b16 %v4145
        %v4671 = vunpack.c.l.b16 %v4146
        %v4672 = vunpack.c.h.b16 %v4146
        %v4673 = vunpack.c.l.b16 %v4147
        %v4674 = vunpack.c.h.b16 %v4147
        %v4675 = vunpack.c.l.b16 %v4148
        %v4676 = vunpack.c.h.b16 %v4148
        %v4677 = vunpack.c.l.b16 %v4149
        %v4678 = vunpack.c.h.b16 %v4149
        %v4679 = vunpack.c.l.b16 %v4150
        %v4680 = vunpack.c.h.b16 %v4150
        %v4681 = vunpack.c.l.b16 %v4151
        %v4682 = vunpack.c.h.b16 %v4151
        %v4683 = vunpack.c.l.b16 %v4152
        %v4684 = vunpack.c.h.b16 %v4152
        %v4685 = vunpack.c.l.b16 %v4153
        %v4686 = vunpack.c.h.b16 %v4153
        %v4687 = vunpack.c.l.b16 %v4154
        %v4688 = vunpack.c.h.b16 %v4154
        %v4689 = vunpack.c.l.b16 %v4155
        %v4690 = vunpack.c.h.b16 %v4155
        %v4691 = vunpack.c.l.b16 %v4156
        %v4692 = vunpack.c.h.b16 %v4156
        %v4693 = vunpack.c.l.b16 %v4157
        %v4694 = vunpack.c.h.b16 %v4157
        %v4695 = vunpack.c.l.b16 %v4158
        %v4696 = vunpack.c.h.b16 %v4158
        %v4697 = vunpack.c.l.b16 %v4159
        %v4698 = vunpack.c.h.b16 %v4159
        %v4699 = vunpack.c.l.b16 %v4160
        %v4700 = vunpack.c.h.b16 %v4160
        %v4701 = vunpack.c.l.b16 %v4161
        %v4702 = vunpack.c.h.b16 %v4161
        %v4703 = vunpack.c.l.b16 %v4162
        %v4704 = vunpack.c.h.b16 %v4162
        %v4705 = vunpack.c.l.b16 %v4163
        %v4706 = vunpack.c.h.b16 %v4163
        %v4707 = vunpack.c.l.b16 %v4164
        %v4708 = vunpack.c.h.b16 %v4164
        %v4709 = vunpack.c.l.b16 %v4165
        %v4710 = vunpack.c.h.b16 %v4165
        %v4711 = vunpack.c.l.b16 %v4166
        %v4712 = vunpack.c.h.b16 %v4166
        %v4713 = vunpack.c.l.b16 %v4167
        %v4714 = vunpack.c.h.b16 %v4167
        %v4715 = vunpack.c.l.b16 %v4168
        %v4716 = vunpack.c.h.b16 %v4168
        %v4717 = vunpack.c.l.b16 %v4169
        %v4718 = vunpack.c.h.b16 %v4169
        %v4719 = vunpack.c.l.b16 %v4170
        %v4720 = vunpack.c.h.b16 %v4170
        %v4721 = vunpack.c.l.b16 %v4171
        %v4722 = vunpack.c.h.b16 %v4171
        %v4723 = vunpack.c.l.b16 %v4172
        %v4724 = vunpack.c.h.b16 %v4172
        %v4725 = vunpack.c.l.b16 %v4173
        %v4726 = vunpack.c.h.b16 %v4173
        %v4727 = vunpack.c.l.b16 %v4174
        %v4728 = vunpack.c.h.b16 %v4174
        %v4729 = vunpack.c.l.b16 %v4175
        %v4730 = vunpack.c.h.b16 %v4175
        %v4731 = vunpack.c.l.b16 %v4176
        %v4732 = vunpack.c.h.b16 %v4176
        %v4733 = vunpack.c.l.b16 %v4177
        %v4734 = vunpack.c.h.b16 %v4177
        %v4735 = vunpack.c.l.b16 %v4178
        %v4736 = vunpack.c.h.b16 %v4178
        %v4737 = vunpack.c.l.b16 %v4179
        %v4738 = vunpack.c.h.b16 %v4179
        %v4739 = vunpack.c.l.b16 %v4180
        %v4740 = vunpack.c.h.b16 %v4180
        %v4741 = vunpack.c.l.b16 %v4181
        %v4742 = vunpack.c.h.b16 %v4181
        %v4743 = vunpack.c.l.b16 %v4182
        %v4744 = vunpack.c.h.b16 %v4182
        %v4745 = vunpack.c.l.b16 %v4183
        %v4746 = vunpack.c.h.b16 %v4183
        %v4747 = vunpack.c.l.b16 %v4184
        %v4748 = vunpack.c.h.b16 %v4184
        %v4749 = vunpack.c.l.b16 %v4185
        %v4750 = vunpack.c.h.b16 %v4185
        %v4751 = vunpack.c.l.b16 %v4186
        %v4752 = vunpack.c.h.b16 %v4186
        %v4753 = vunpack.c.l.b16 %v4187
        %v4754 = vunpack.c.h.b16 %v4187
        %v4755 = vunpack.c.l.b16 %v4188
        %v4756 = vunpack.c.h.b16 %v4188
        %v4757 = vunpack.c.l.b16 %v4189
        %v4758 = vunpack.c.h.b16 %v4189
        %v4759 = vunpack.c.l.b16 %v4190
        %v4760 = vunpack.c.h.b16 %v4190
        %v4761 = vunpack.c.l.b16 %v4191
        %v4762 = vunpack.c.h.b16 %v4191
        %v4763 = vunpack.c.l.b16 %v4192
        %v4764 = vunpack.c.h.b16 %v4192
        %v4765 = vunpack.c.l.b16 %v4193
        %v4766 = vunpack.c.h.b16 %v4193
        %v4767 = vunpack.c.l.b16 %v4194
        %v4768 = vunpack.c.h.b16 %v4194
        %v4769 = vunpack.c.l.b16 %v4195
        %v4770 = vunpack.c.h.b16 %v4195
        %v4771 = vunpack.c.l.b16 %v4196
        %v4772 = vunpack.c.h.b16 %v4196
        %v4773 = vunpack.c.l.b16 %v4197
        %v4774 = vunpack.c.h.b16 %v4197
        %v4775 = vunpack.c.l.b16 %v4198
        %v4776 = vunpack.c.h.b16 %v4198
        %v4777 = vunpack.c.l.b16 %v4199
        %v4778 = vunpack.c.h.b16 %v4199
        %v4779 = vunpack.c.l.b16 %v4200
        %v4780 = vunpack.c.h.b16 %v4200
        %v4781 = vunpack.c.l.b16 %v4201
        %v4782 = vunpack.c.h.b16 %v4201
        %v4783 = vunpack.c.l.b16 %v4202
        %v4784 = vunpack.c.h.b16 %v4202
        %v4785 = vunpack.c.l.b16 %v4203
        %v4786 = vunpack.c.h.b16 %v4203
        %v4787 = vunpack.c.l.b16 %v4204
        %v4788 = vunpack.c.h.b16 %v4204
        %v4789 = vunpack.c.l.b16 %v4205
        %v4790 = vunpack.c.h.b16 %v4205
        %v4791 = vunpack.c.l.b16 %v4206
        %v4792 = vunpack.c.h.b16 %v4206
        %v4793 = vunpack.c.l.b16 %v4207
        %v4794 = vunpack.c.h.b16 %v4207
        %v4795 = vunpack.c.l.b16 %v4208
        %v4796 = vunpack.c.h.b16 %v4208
        %v4797 = vunpack.c.l.b16 %v4209
        %v4798 = vunpack.c.h.b16 %v4209
        %v4799 = vunpack.c.l.b16 %v4210
        %v4800 = vunpack.c.h.b16 %v4210
        %v4801 = vunpack.c.l.b16 %v4211
        %v4802 = vunpack.c.h.b16 %v4211
        %v4803 = vunpack.c.l.b16 %v4212
        %v4804 = vunpack.c.h.b16 %v4212
        %v4805 = vunpack.c.l.b16 %v4213
        %v4806 = vunpack.c.h.b16 %v4213
        %v4807 = vunpack.c.l.b16 %v4214
        %v4808 = vunpack.c.h.b16 %v4214
        %v4809 = vunpack.c.l.b16 %v4215
        %v4810 = vunpack.c.h.b16 %v4215
        %v4811 = vunpack.c.l.b16 %v4216
        %v4812 = vunpack.c.h.b16 %v4216
        %v4813 = vunpack.c.l.b16 %v4217
        %v4814 = vunpack.c.h.b16 %v4217
        %v4815 = vunpack.c.l.b16 %v4218
        %v4816 = vunpack.c.h.b16 %v4218
        %v4817 = vunpack.c.l.b16 %v4219
        %v4818 = vunpack.c.h.b16 %v4219
        %v4819 = vunpack.c.l.b16 %v4220
        %v4820 = vunpack.c.h.b16 %v4220
        %v4821 = vunpack.c.l.b16 %v4221
        %v4822 = vunpack.c.h.b16 %v4221
        %v4823 = vunpack.c.l.b16 %v4222
        %v4824 = vunpack.c.h.b16 %v4222
        %v4825 = vunpack.c.l.b16 %v4223
        %v4826 = vunpack.c.h.b16 %v4223
        %v4827 = vunpack.c.l.b16 %v4224
        %v4828 = vunpack.c.h.b16 %v4224
        %v4829 = vunpack.c.l.b16 %v4225
        %v4830 = vunpack.c.h.b16 %v4225
        %v4831 = vunpack.c.l.b16 %v4226
        %v4832 = vunpack.c.h.b16 %v4226
        %v4833 = vunpack.c.l.b16 %v4227
        %v4834 = vunpack.c.h.b16 %v4227
        %v4835 = vunpack.c.l.b16 %v4228
        %v4836 = vunpack.c.h.b16 %v4228
        %v4837 = vunpack.c.l.b16 %v4229
        %v4838 = vunpack.c.h.b16 %v4229
        %v4839 = vunpack.c.l.b16 %v4230
        %v4840 = vunpack.c.h.b16 %v4230
        %v4841 = vunpack.c.l.b16 %v4231
        %v4842 = vunpack.c.h.b16 %v4231
        %v4843 = vunpack.c.l.b16 %v4232
        %v4844 = vunpack.c.h.b16 %v4232
        %v4845 = vunpack.c.l.b16 %v4233
        %v4846 = vunpack.c.h.b16 %v4233
        %v4847 = vunpack.c.l.b16 %v4234
        %v4848 = vunpack.c.h.b16 %v4234
        %v4849 = vunpack.c.l.b16 %v4235
        %v4850 = vunpack.c.h.b16 %v4235
        %v4851 = vunpack.c.l.b16 %v4236
        %v4852 = vunpack.c.h.b16 %v4236
        %v4853 = vunpack.c.l.b16 %v4237
        %v4854 = vunpack.c.h.b16 %v4237
        %v4855 = vunpack.c.l.b16 %v4238
        %v4856 = vunpack.c.h.b16 %v4238
        %v4857 = vunpack.c.l.b16 %v4239
        %v4858 = vunpack.c.h.b16 %v4239
        %v4859 = vunpack.c.l.b16 %v4240
        %v4860 = vunpack.c.h.b16 %v4240
        %v4861 = vunpack.c.l.b16 %v4241
        %v4862 = vunpack.c.h.b16 %v4241
        %v4863 = vunpack.c.l.b16 %v4242
        %v4864 = vunpack.c.h.b16 %v4242
        %v4865 = vunpack.c.l.b16 %v4243
        %v4866 = vunpack.c.h.b16 %v4243
        %v4867 = vunpack.c.l.b16 %v4244
        %v4868 = vunpack.c.h.b16 %v4244
        %v4869 = vunpack.c.l.b16 %v4245
        %v4870 = vunpack.c.h.b16 %v4245
        %v4871 = vunpack.c.l.b16 %v4246
        %v4872 = vunpack.c.h.b16 %v4246
        %v4873 = vunpack.c.l.b16 %v4247
        %v4874 = vunpack.c.h.b16 %v4247
        %v4875 = vunpack.c.l.b16 %v4248
        %v4876 = vunpack.c.h.b16 %v4248
        %v4877 = vunpack.c.l.b16 %v4249
        %v4878 = vunpack.c.h.b16 %v4249
        %v4879 = vunpack.c.l.b16 %v4250
        %v4880 = vunpack.c.h.b16 %v4250
        %v4881 = vunpack.c.l.b16 %v4251
        %v4882 = vunpack.c.h.b16 %v4251
        %v4883 = vunpack.c.l.b16 %v4252
        %v4884 = vunpack.c.h.b16 %v4252
        %v4885 = vunpack.c.l.b16 %v4253
        %v4886 = vunpack.c.h.b16 %v4253
        %v4887 = vunpack.c.l.b16 %v4254
        %v4888 = vunpack.c.h.b16 %v4254
        %v4889 = vunpack.c.l.b16 %v4255
        %v4890 = vunpack.c.h.b16 %v4255
        %v4891 = vunpack.c.l.b16 %v4256
        %v4892 = vunpack.c.h.b16 %v4256
        %v4893 = vunpack.c.l.b16 %v4257
        %v4894 = vunpack.c.h.b16 %v4257
        %v4895 = vunpack.c.l.b16 %v4258
        %v4896 = vunpack.c.h.b16 %v4258
        %v4897 = vunpack.c.l.b16 %v4259
        %v4898 = vunpack.c.h.b16 %v4259
        %v4899 = vunpack.c.l.b16 %v4260
        %v4900 = vunpack.c.h.b16 %v4260
        %v4901 = vunpack.c.l.b16 %v4261
        %v4902 = vunpack.c.h.b16 %v4261
        %v4903 = vunpack.c.l.b16 %v4262
        %v4904 = vunpack.c.h.b16 %v4262
        %v4905 = vunpack.c.l.b16 %v4263
        %v4906 = vunpack.c.h.b16 %v4263
        %v4907 = vunpack.c.l.b16 %v4264
        %v4908 = vunpack.c.h.b16 %v4264
        %v4909 = vunpack.c.l.b16 %v4265
        %v4910 = vunpack.c.h.b16 %v4265
        %v4911 = vunpack.c.l.b16 %v4266
        %v4912 = vunpack.c.h.b16 %v4266
        %v4913 = vunpack.c.l.b16 %v4267
        %v4914 = vunpack.c.h.b16 %v4267
        %v4915 = vunpack.c.l.b16 %v4268
        %v4916 = vunpack.c.h.b16 %v4268
        %v4917 = vunpack.c.l.b16 %v4269
        %v4918 = vunpack.c.h.b16 %v4269
        %v4919 = vunpack.c.l.b16 %v4270
        %v4920 = vunpack.c.h.b16 %v4270
        %v4921 = vunpack.c.l.b16 %v4271
        %v4922 = vunpack.c.h.b16 %v4271
        %v4923 = vunpack.c.l.b16 %v4272
        %v4924 = vunpack.c.h.b16 %v4272
        %v4925 = vunpack.c.l.b16 %v4273
        %v4926 = vunpack.c.h.b16 %v4273
        %v4927 = vunpack.c.l.b16 %v4274
        %v4928 = vunpack.c.h.b16 %v4274
        %v4929 = vunpack.c.l.b16 %v4275
        %v4930 = vunpack.c.h.b16 %v4275
        %v4931 = vunpack.c.l.b16 %v4276
        %v4932 = vunpack.c.h.b16 %v4276
        %v4933 = vunpack.c.l.b16 %v4277
        %v4934 = vunpack.c.h.b16 %v4277
        %v4935 = vunpack.c.l.b16 %v4278
        %v4936 = vunpack.c.h.b16 %v4278
        %v4937 = vunpack.c.l.b16 %v4279
        %v4938 = vunpack.c.h.b16 %v4279
        %v4939 = vunpack.c.l.b16 %v4280
        %v4940 = vunpack.c.h.b16 %v4280
        %v4941 = vunpack.c.l.b16 %v4281
        %v4942 = vunpack.c.h.b16 %v4281
        %v4943 = vunpack.c.l.b16 %v4282
        %v4944 = vunpack.c.h.b16 %v4282
        %v4945 = vunpack.c.l.b16 %v4283
        %v4946 = vunpack.c.h.b16 %v4283
        %v4947 = vunpack.c.l.b16 %v4284
        %v4948 = vunpack.c.h.b16 %v4284
        %v4949 = vunpack.c.l.b16 %v4285
        %v4950 = vunpack.c.h.b16 %v4285
        %v4951 = vunpack.c.l.b16 %v4286
        %v4952 = vunpack.c.h.b16 %v4286
        %v4953 = vunpack.c.l.b16 %v4287
        %v4954 = vunpack.c.h.b16 %v4287
        %v4955 = vunpack.c.l.b16 %v4288
        %v4956 = vunpack.c.h.b16 %v4288
        %v4957 = vunpack.c.l.b16 %v4289
        %v4958 = vunpack.c.h.b16 %v4289
        %v4959 = vunpack.c.l.b16 %v4290
        %v4960 = vunpack.c.h.b16 %v4290
        %v4961 = vunpack.c.l.b16 %v4291
        %v4962 = vunpack.c.h.b16 %v4291
        %v4963 = vunpack.c.l.b16 %v4292
        %v4964 = vunpack.c.h.b16 %v4292
        %v4965 = vunpack.c.l.b16 %v4293
        %v4966 = vunpack.c.h.b16 %v4293
        %v4967 = vunpack.c.l.b16 %v4294
        %v4968 = vunpack.c.h.b16 %v4294
        %v4969 = vunpack.c.l.b16 %v4295
        %v4970 = vunpack.c.h.b16 %v4295
        %v4971 = vunpack.c.l.b16 %v4296
        %v4972 = vunpack.c.h.b16 %v4296
        %v4973 = vunpack.c.l.b16 %v4297
        %v4974 = vunpack.c.h.b16 %v4297
        %v4975 = vunpack.c.l.b16 %v4298
        %v4976 = vunpack.c.h.b16 %v4298
        %v4977 = vunpack.c.l.b16 %v4299
        %v4978 = vunpack.c.h.b16 %v4299
        %v4979 = vunpack.c.l.b16 %v4300
        %v4980 = vunpack.c.h.b16 %v4300
        %v4981 = vunpack.c.l.b16 %v4301
        %v4982 = vunpack.c.h.b16 %v4301
        %v4983 = vunpack.c.l.b16 %v4302
        %v4984 = vunpack.c.h.b16 %v4302
        %v4985 = vunpack.c.l.b16 %v4303
        %v4986 = vunpack.c.h.b16 %v4303
        %v4987 = vunpack.c.l.b16 %v4304
        %v4988 = vunpack.c.h.b16 %v4304
        %v4989 = vunpack.c.l.b16 %v4305
        %v4990 = vunpack.c.h.b16 %v4305
        %v4991 = vunpack.c.l.b16 %v4306
        %v4992 = vunpack.c.h.b16 %v4306
        %v4993 = vunpack.c.l.b16 %v4307
        %v4994 = vunpack.c.h.b16 %v4307
        %v4995 = vunpack.c.l.b16 %v4308
        %v4996 = vunpack.c.h.b16 %v4308
        %v4997 = vunpack.c.l.b16 %v4309
        %v4998 = vunpack.c.h.b16 %v4309
        %v4999 = vunpack.c.l.b16 %v4310
        %v5000 = vunpack.c.h.b16 %v4310
        %v5001 = vunpack.c.l.b16 %v4311
        %v5002 = vunpack.c.h.b16 %v4311
        %v5003 = vunpack.c.l.b16 %v4312
        %v5004 = vunpack.c.h.b16 %v4312
        %v5005 = vunpack.c.l.b16 %v4313
        %v5006 = vunpack.c.h.b16 %v4313
        %v5007 = vunpack.c.l.b16 %v4314
        %v5008 = vunpack.c.h.b16 %v4314
        %v5009 = vunpack.c.l.b16 %v4315
        %v5010 = vunpack.c.h.b16 %v4315
        %v5011 = vunpack.c.l.b16 %v4316
        %v5012 = vunpack.c.h.b16 %v4316
        %v5013 = vunpack.c.l.b16 %v4317
        %v5014 = vunpack.c.h.b16 %v4317
        %v5015 = vunpack.c.l.b16 %v4318
        %v5016 = vunpack.c.h.b16 %v4318
        %v5017 = vunpack.c.l.b16 %v4319
        %v5018 = vunpack.c.h.b16 %v4319
        %v5019 = vunpack.c.l.b16 %v4320
        %v5020 = vunpack.c.h.b16 %v4320
        %v5021 = vunpack.c.l.b16 %v4321
        %v5022 = vunpack.c.h.b16 %v4321
        %v5023 = vunpack.c.l.b16 %v4322
        %v5024 = vunpack.c.h.b16 %v4322
        %v5025 = vunpack.c.l.b16 %v4323
        %v5026 = vunpack.c.h.b16 %v4323
        %v5027 = vunpack.c.l.b16 %v4324
        %v5028 = vunpack.c.h.b16 %v4324
        %v5029 = vunpack.c.l.b16 %v4325
        %v5030 = vunpack.c.h.b16 %v4325
        %v5031 = vunpack.c.l.b16 %v4326
        %v5032 = vunpack.c.h.b16 %v4326
        %v5033 = vunpack.c.l.b16 %v4327
        %v5034 = vunpack.c.h.b16 %v4327
        %v5035 = vunpack.c.l.b16 %v4328
        %v5036 = vunpack.c.h.b16 %v4328
        %v5037 = vunpack.c.l.b16 %v4329
        %v5038 = vunpack.c.h.b16 %v4329
        %v5039 = vunpack.c.l.b16 %v4330
        %v5040 = vunpack.c.h.b16 %v4330
        %v5041 = vunpack.c.l.b16 %v4331
        %v5042 = vunpack.c.h.b16 %v4331
        %v5043 = vunpack.c.l.b16 %v4332
        %v5044 = vunpack.c.h.b16 %v4332
        %v5045 = vunpack.c.l.b16 %v4333
        %v5046 = vunpack.c.h.b16 %v4333
        %v5047 = vunpack.c.l.b16 %v4334
        %v5048 = vunpack.c.h.b16 %v4334
        %v5049 = vunpack.c.l.b16 %v4335
        %v5050 = vunpack.c.h.b16 %v4335
        %v5051 = vunpack.c.l.b16 %v4336
        %v5052 = vunpack.c.h.b16 %v4336
        %v5053 = vunpack.c.l.b16 %v4337
        %v5054 = vunpack.c.h.b16 %v4337
        %v5055 = vunpack.c.l.b16 %v4338
        %v5056 = vunpack.c.h.b16 %v4338
        %v5057 = vunpack.c.l.b16 %v4339
        %v5058 = vunpack.c.h.b16 %v4339
        %v5059 = vunpack.c.l.b16 %v4340
        %v5060 = vunpack.c.h.b16 %v4340
        %v5061 = vunpack.c.l.b16 %v4341
        %v5062 = vunpack.c.h.b16 %v4341
        %v5063 = vunpack.c.l.b16 %v4342
        %v5064 = vunpack.c.h.b16 %v4342
        %v5065 = vunpack.c.l.b16 %v4343
        %v5066 = vunpack.c.h.b16 %v4343
        %v5067 = vunpack.c.l.b16 %v4344
        %v5068 = vunpack.c.h.b16 %v4344
        %v5069 = vunpack.c.l.b16 %v4345
        %v5070 = vunpack.c.h.b16 %v4345
        %v5071 = vunpack.c.l.b16 %v4346
        %v5072 = vunpack.c.h.b16 %v4346
        %v5073 = vunpack.c.l.b16 %v4347
        %v5074 = vunpack.c.h.b16 %v4347
        %v5075 = vunpack.c.l.b16 %v4348
        %v5076 = vunpack.c.h.b16 %v4348
        %v5077 = vunpack.c.l.b16 %v4349
        %v5078 = vunpack.c.h.b16 %v4349
        %v5079 = vunpack.c.l.b16 %v4350
        %v5080 = vunpack.c.h.b16 %v4350
        %v5081 = vunpack.c.l.b16 %v4351
        %v5082 = vunpack.c.h.b16 %v4351
        %v5083 = vunpack.c.l.b16 %v4352
        %v5084 = vunpack.c.h.b16 %v4352
        %v5085 = vunpack.c.l.b16 %v4353
        %v5086 = vunpack.c.h.b16 %v4353
        %v5087 = vunpack.c.l.b16 %v4354
        %v5088 = vunpack.c.h.b16 %v4354
        %v5089 = vunpack.c.l.b16 %v4355
        %v5090 = vunpack.c.h.b16 %v4355
        %v5091 = vunpack.c.l.b16 %v4356
        %v5092 = vunpack.c.h.b16 %v4356
        %v5093 = vunpack.c.l.b16 %v4357
        %v5094 = vunpack.c.h.b16 %v4357
        %v5095 = vunpack.c.l.b16 %v4358
        %v5096 = vunpack.c.h.b16 %v4358
        %v5097 = vunpack.c.l.b16 %v4359
        %v5098 = vunpack.c.h.b16 %v4359
        %v5099 = vunpack.c.l.b16 %v4360
        %v5100 = vunpack.c.h.b16 %v4360
        %v5101 = vunpack.c.l.b16 %v4361
        %v5102 = vunpack.c.h.b16 %v4361
        %v5103 = vunpack.c.l.b16 %v4362
        %v5104 = vunpack.c.h.b16 %v4362
        %v5105 = vunpack.c.l.b16 %v4363
        %v5106 = vunpack.c.h.b16 %v4363
        %v5107 = vunpack.c.l.b16 %v4364
        %v5108 = vunpack.c.h.b16 %v4364
        %v5109 = vunpack.c.l.b16 %v4365
        %v5110 = vunpack.c.h.b16 %v4365
        %v5111 = vunpack.c.l.b16 %v4366
        %v5112 = vunpack.c.h.b16 %v4366
        %v5113 = vunpack.c.l.b16 %v4367
        %v5114 = vunpack.c.h.b16 %v4367
        %v5115 = vunpack.c.l.b16 %v4368
        %v5116 = vunpack.c.h.b16 %v4368
        %v5117 = vunpack.c.l.b16 %v4369
        %v5118 = vunpack.c.h.b16 %v4369
        %v5119 = vunpack.c.l.b16 %v4370
        %v5120 = vunpack.c.h.b16 %v4370
        %v5121 = vunpack.c.l.b16 %v4371
        %v5122 = vunpack.c.h.b16 %v4371
        %v5123 = vunpack.c.l.b16 %v4372
        %v5124 = vunpack.c.h.b16 %v4372
        %v5125 = vunpack.c.l.b16 %v4373
        %v5126 = vunpack.c.h.b16 %v4373
        %v5127 = vunpack.c.l.b16 %v4374
        %v5128 = vunpack.c.h.b16 %v4374
        %v5129 = vunpack.c.l.b16 %v4375
        %v5130 = vunpack.c.h.b16 %v4375
        %v5131 = vunpack.c.l.b16 %v4376
        %v5132 = vunpack.c.h.b16 %v4376
        %v5133 = vunpack.c.l.b16 %v4377
        %v5134 = vunpack.c.h.b16 %v4377
        %v5135 = vunpack.c.l.b16 %v4378
        %v5136 = vunpack.c.h.b16 %v4378
        %v5137 = vunpack.c.l.b16 %v4379
        %v5138 = vunpack.c.h.b16 %v4379
        %v5139 = vunpack.c.l.b16 %v4380
        %v5140 = vunpack.c.h.b16 %v4380
        %v5141 = vunpack.c.l.b16 %v4381
        %v5142 = vunpack.c.h.b16 %v4381
        %v5143 = vunpack.c.l.b16 %v4382
        %v5144 = vunpack.c.h.b16 %v4382
        %v5145 = vunpack.c.l.b16 %v4383
        %v5146 = vunpack.c.h.b16 %v4383
        %v5147 = vunpack.c.l.b16 %v4384
        %v5148 = vunpack.c.h.b16 %v4384
        %v5149 = vunpack.c.l.b16 %v4385
        %v5150 = vunpack.c.h.b16 %v4385
        %v5151 = vunpack.c.l.b16 %v4386
        %v5152 = vunpack.c.h.b16 %v4386
        %v5153 = vunpack.c.l.b16 %v4387
        %v5154 = vunpack.c.h.b16 %v4387
        %v5155 = vunpack.c.l.b16 %v4388
        %v5156 = vunpack.c.h.b16 %v4388
        %v5157 = vunpack.c.l.b16 %v4389
        %v5158 = vunpack.c.h.b16 %v4389
        %v5159 = vunpack.c.l.b16 %v4390
        %v5160 = vunpack.c.h.b16 %v4390
        %v5161 = vunpack.c.l.b16 %v4391
        %v5162 = vunpack.c.h.b16 %v4391
        %v5163 = vunpack.c.l.b16 %v4392
        %v5164 = vunpack.c.h.b16 %v4392
        %v5165 = vunpack.c.l.b16 %v4393
        %v5166 = vunpack.c.h.b16 %v4393
        %v5167 = vunpack.c.l.b16 %v4394
        %v5168 = vunpack.c.h.b16 %v4394
        %v5169 = vunpack.c.l.b16 %v4395
        %v5170 = vunpack.c.h.b16 %v4395
        %v5171 = vunpack.c.l.b16 %v4396
        %v5172 = vunpack.c.h.b16 %v4396
        %v5173 = vunpack.c.l.b16 %v4397
        %v5174 = vunpack.c.h.b16 %v4397
        %v5175 = vunpack.c.l.b16 %v4398
        %v5176 = vunpack.c.h.b16 %v4398
        %v5177 = vpack.c.b16 %v4669, %v4665
        %v5178 = vpack.c.b16 %v4670, %v4666
        %v5179 = vpack.c.b16 %v4671, %v4667
        %v5180 = vpack.c.b16 %v4672, %v4668
        %v5181 = vpack.c.b16 %v4677, %v4673
        %v5182 = vpack.c.b16 %v4678, %v4674
        %v5183 = vpack.c.b16 %v4679, %v4675
        %v5184 = vpack.c.b16 %v4680, %v4676
        %v5185 = vpack.c.b16 %v4685, %v4681
        %v5186 = vpack.c.b16 %v4686, %v4682
        %v5187 = vpack.c.b16 %v4687, %v4683
        %v5188 = vpack.c.b16 %v4688, %v4684
        %v5189 = vpack.c.b16 %v4693, %v4689
        %v5190 = vpack.c.b16 %v4694, %v4690
        %v5191 = vpack.c.b16 %v4695, %v4691
        %v5192 = vpack.c.b16 %v4696, %v4692
        %v5193 = vpack.c.b16 %v4701, %v4697
        %v5194 = vpack.c.b16 %v4702, %v4698
        %v5195 = vpack.c.b16 %v4703, %v4699
        %v5196 = vpack.c.b16 %v4704, %v4700
        %v5197 = vpack.c.b16 %v4709, %v4705
        %v5198 = vpack.c.b16 %v4710, %v4706
        %v5199 = vpack.c.b16 %v4711, %v4707
        %v5200 = vpack.c.b16 %v4712, %v4708
        %v5201 = vpack.c.b16 %v4717, %v4713
        %v5202 = vpack.c.b16 %v4718, %v4714
        %v5203 = vpack.c.b16 %v4719, %v4715
        %v5204 = vpack.c.b16 %v4720, %v4716
        %v5205 = vpack.c.b16 %v4725, %v4721
        %v5206 = vpack.c.b16 %v4726, %v4722
        %v5207 = vpack.c.b16 %v4727, %v4723
        %v5208 = vpack.c.b16 %v4728, %v4724
        %v5209 = vpack.c.b16 %v4733, %v4729
        %v5210 = vpack.c.b16 %v4734, %v4730
        %v5211 = vpack.c.b16 %v4735, %v4731
        %v5212 = vpack.c.b16 %v4736, %v4732
        %v5213 = vpack.c.b16 %v4741, %v4737
        %v5214 = vpack.c.b16 %v4742, %v4738
        %v5215 = vpack.c.b16 %v4743, %v4739
        %v5216 = vpack.c.b16 %v4744, %v4740
        %v5217 = vpack.c.b16 %v4749, %v4745
        %v5218 = vpack.c.b16 %v4750, %v4746
        %v5219 = vpack.c.b16 %v4751, %v4747
        %v5220 = vpack.c.b16 %v4752, %v4748
        %v5221 = vpack.c.b16 %v4757, %v4753
        %v5222 = vpack.c.b16 %v4758, %v4754
        %v5223 = vpack.c.b16 %v4759, %v4755
        %v5224 = vpack.c.b16 %v4760, %v4756
        %v5225 = vpack.c.b16 %v4765, %v4761
        %v5226 = vpack.c.b16 %v4766, %v4762
        %v5227 = vpack.c.b16 %v4767, %v4763
        %v5228 = vpack.c.b16 %v4768, %v4764
        %v5229 = vpack.c.b16 %v4773, %v4769
        %v5230 = vpack.c.b16 %v4774, %v4770
        %v5231 = vpack.c.b16 %v4775, %v4771
        %v5232 = vpack.c.b16 %v4776, %v4772
        %v5233 = vpack.c.b16 %v4781, %v4777
        %v5234 = vpack.c.b16 %v4782, %v4778
        %v5235 = vpack.c.b16 %v4783, %v4779
        %v5236 = vpack.c.b16 %v4784, %v4780
        %v5237 = vpack.c.b16 %v4789, %v4785
        %v5238 = vpack.c.b16 %v4790, %v4786
        %v5239 = vpack.c.b16 %v4791, %v4787
        %v5240 = vpack.c.b16 %v4792, %v4788
        %v5241 = vpack.c.b16 %v4797, %v4793
        %v5242 = vpack.c.b16 %v4798, %v4794
        %v5243 = vpack.c.b16 %v4799, %v4795
        %v5244 = vpack.c.b16 %v4800, %v4796
        %v5245 = vpack.c.b16 %v4805, %v4801
        %v5246 = vpack.c.b16 %v4806, %v4802
        %v5247 = vpack.c.b16 %v4807, %v4803
        %v5248 = vpack.c.b16 %v4808, %v4804
        %v5249 = vpack.c.b16 %v4813, %v4809
        %v5250 = vpack.c.b16 %v4814, %v4810
        %v5251 = vpack.c.b16 %v4815, %v4811
        %v5252 = vpack.c.b16 %v4816, %v4812
        %v5253 = vpack.c.b16 %v4821, %v4817
        %v5254 = vpack.c.b16 %v4822, %v4818
        %v5255 = vpack.c.b16 %v4823, %v4819
        %v5256 = vpack.c.b16 %v4824, %v4820
        %v5257 = vpack.c.b16 %v4829, %v4825
        %v5258 = vpack.c.b16 %v4830, %v4826
        %v5259 = vpack.c.b16 %v4831, %v4827
        %v5260 = vpack.c.b16 %v4832, %v4828
        %v5261 = vpack.c.b16 %v4837, %v4833
        %v5262 = vpack.c.b16 %v4838, %v4834
        %v5263 = vpack.c.b16 %v4839, %v4835
        %v5264 = vpack.c.b16 %v4840, %v4836
        %v5265 = vpack.c.b16 %v4845, %v4841
        %v5266 = vpack.c.b16 %v4846, %v4842
        %v5267 = vpack.c.b16 %v4847, %v4843
        %v5268 = vpack.c.b16 %v4848, %v4844
        %v5269 = vpack.c.b16 %v4853, %v4849
        %v5270 = vpack.c.b16 %v4854, %v4850
        %v5271 = vpack.c.b16 %v4855, %v4851
        %v5272 = vpack.c.b16 %v4856, %v4852
        %v5273 = vpack.c.b16 %v4861, %v4857
        %v5274 = vpack.c.b16 %v4862, %v4858
        %v5275 = vpack.c.b16 %v4863, %v4859
        %v5276 = vpack.c.b16 %v4864, %v4860
        %v5277 = vpack.c.b16 %v4869, %v4865
        %v5278 = vpack.c.b16 %v4870, %v4866
        %v5279 = vpack.c.b16 %v4871, %v4867
        %v5280 = vpack.c.b16 %v4872, %v4868
        %v5281 = vpack.c.b16 %v4877, %v4873
        %v5282 = vpack.c.b16 %v4878, %v4874
        %v5283 = vpack.c.b16 %v4879, %v4875
        %v5284 = vpack.c.b16 %v4880, %v4876
        %v5285 = vpack.c.b16 %v4885, %v4881
        %v5286 = vpack.c.b16 %v4886, %v4882
        %v5287 = vpack.c.b16 %v4887, %v4883
        %v5288 = vpack.c.b16 %v4888, %v4884
        %v5289 = vpack.c.b16 %v4893, %v4889
        %v5290 = vpack.c.b16 %v4894, %v4890
        %v5291 = vpack.c.b16 %v4895, %v4891
        %v5292 = vpack.c.b16 %v4896, %v4892
        %v5293 = vpack.c.b16 %v4901, %v4897
        %v5294 = vpack.c.b16 %v4902, %v4898
        %v5295 = vpack.c.b16 %v4903, %v4899
        %v5296 = vpack.c.b16 %v4904, %v4900
        %v5297 = vpack.c.b16 %v4909, %v4905
        %v5298 = vpack.c.b16 %v4910, %v4906
        %v5299 = vpack.c.b16 %v4911, %v4907
        %v5300 = vpack.c.b16 %v4912, %v4908
        %v5301 = vpack.c.b16 %v4917, %v4913
        %v5302 = vpack.c.b16 %v4918, %v4914
        %v5303 = vpack.c.b16 %v4919, %v4915
        %v5304 = vpack.c.b16 %v4920, %v4916
        %v5305 = vpack.c.b16 %v4925, %v4921
        %v5306 = vpack.c.b16 %v4926, %v4922
        %v5307 = vpack.c.b16 %v4927, %v4923
        %v5308 = vpack.c.b16 %v4928, %v4924
        %v5309 = vpack.c.b16 %v4933, %v4929
        %v5310 = vpack.c.b16 %v4934, %v4930
        %v5311 = vpack.c.b16 %v4935, %v4931
        %v5312 = vpack.c.b16 %v4936, %v4932
        %v5313 = vpack.c.b16 %v4941, %v4937
        %v5314 = vpack.c.b16 %v4942, %v4938
        %v5315 = vpack.c.b16 %v4943, %v4939
        %v5316 = vpack.c.b16 %v4944, %v4940
        %v5317 = vpack.c.b16 %v4949, %v4945
        %v5318 = vpack.c.b16 %v4950, %v4946
        %v5319 = vpack.c.b16 %v4951, %v4947
        %v5320 = vpack.c.b16 %v4952, %v4948
        %v5321 = vpack.c.b16 %v4957, %v4953
        %v5322 = vpack.c.b16 %v4958, %v4954
        %v5323 = vpack.c.b16 %v4959, %v4955
        %v5324 = vpack.c.b16 %v4960, %v4956
        %v5325 = vpack.c.b16 %v4965, %v4961
        %v5326 = vpack.c.b16 %v4966, %v4962
        %v5327 = vpack.c.b16 %v4967, %v4963
        %v5328 = vpack.c.b16 %v4968, %v4964
        %v5329 = vpack.c.b16 %v4973, %v4969
        %v5330 = vpack.c.b16 %v4974, %v4970
        %v5331 = vpack.c.b16 %v4975, %v4971
        %v5332 = vpack.c.b16 %v4976, %v4972
        %v5333 = vpack.c.b16 %v4981, %v4977
        %v5334 = vpack.c.b16 %v4982, %v4978
        %v5335 = vpack.c.b16 %v4983, %v4979
        %v5336 = vpack.c.b16 %v4984, %v4980
        %v5337 = vpack.c.b16 %v4989, %v4985
        %v5338 = vpack.c.b16 %v4990, %v4986
        %v5339 = vpack.c.b16 %v4991, %v4987
        %v5340 = vpack.c.b16 %v4992, %v4988
        %v5341 = vpack.c.b16 %v4997, %v4993
        %v5342 = vpack.c.b16 %v4998, %v4994
        %v5343 = vpack.c.b16 %v4999, %v4995
        %v5344 = vpack.c.b16 %v5000, %v4996
        %v5345 = vpack.c.b16 %v5005, %v5001
        %v5346 = vpack.c.b16 %v5006, %v5002
        %v5347 = vpack.c.b16 %v5007, %v5003
        %v5348 = vpack.c.b16 %v5008, %v5004
        %v5349 = vpack.c.b16 %v5013, %v5009
        %v5350 = vpack.c.b16 %v5014, %v5010
        %v5351 = vpack.c.b16 %v5015, %v5011
        %v5352 = vpack.c.b16 %v5016, %v5012
        %v5353 = vpack.c.b16 %v5021, %v5017
        %v5354 = vpack.c.b16 %v5022, %v5018
        %v5355 = vpack.c.b16 %v5023, %v5019
        %v5356 = vpack.c.b16 %v5024, %v5020
        %v5357 = vpack.c.b16 %v5029, %v5025
        %v5358 = vpack.c.b16 %v5030, %v5026
        %v5359 = vpack.c.b16 %v5031, %v5027
        %v5360 = vpack.c.b16 %v5032, %v5028
        %v5361 = vpack.c.b16 %v5037, %v5033
        %v5362 = vpack.c.b16 %v5038, %v5034
        %v5363 = vpack.c.b16 %v5039, %v5035
        %v5364 = vpack.c.b16 %v5040, %v5036
        %v5365 = vpack.c.b16 %v5045, %v5041
        %v5366 = vpack.c.b16 %v5046, %v5042
        %v5367 = vpack.c.b16 %v5047, %v5043
        %v5368 = vpack.c.b16 %v5048, %v5044
        %v5369 = vpack.c.b16 %v5053, %v5049
        %v5370 = vpack.c.b16 %v5054, %v5050
        %v5371 = vpack.c.b16 %v5055, %v5051
        %v5372 = vpack.c.b16 %v5056, %v5052
        %v5373 = vpack.c.b16 %v5061, %v5057
        %v5374 = vpack.c.b16 %v5062, %v5058
        %v5375 = vpack.c.b16 %v5063, %v5059
        %v5376 = vpack.c.b16 %v5064, %v5060
        %v5377 = vpack.c.b16 %v5069, %v5065
        %v5378 = vpack.c.b16 %v5070, %v5066
        %v5379 = vpack.c.b16 %v5071, %v5067
        %v5380 = vpack.c.b16 %v5072, %v5068
        %v5381 = vpack.c.b16 %v5077, %v5073
        %v5382 = vpack.c.b16 %v5078, %v5074
        %v5383 = vpack.c.b16 %v5079, %v5075
        %v5384 = vpack.c.b16 %v5080, %v5076
        %v5385 = vpack.c.b16 %v5085, %v5081
        %v5386 = vpack.c.b16 %v5086, %v5082
        %v5387 = vpack.c.b16 %v5087, %v5083
        %v5388 = vpack.c.b16 %v5088, %v5084
        %v5389 = vpack.c.b16 %v5093, %v5089
        %v5390 = vpack.c.b16 %v5094, %v5090
        %v5391 = vpack.c.b16 %v5095, %v5091
        %v5392 = vpack.c.b16 %v5096, %v5092
        %v5393 = vpack.c.b16 %v5101, %v5097
        %v5394 = vpack.c.b16 %v5102, %v5098
        %v5395 = vpack.c.b16 %v5103, %v5099
        %v5396 = vpack.c.b16 %v5104, %v5100
        %v5397 = vpack.c.b16 %v5109, %v5105
        %v5398 = vpack.c.b16 %v5110, %v5106
        %v5399 = vpack.c.b16 %v5111, %v5107
        %v5400 = vpack.c.b16 %v5112, %v5108
        %v5401 = vpack.c.b16 %v5117, %v5113
        %v5402 = vpack.c.b16 %v5118, %v5114
        %v5403 = vpack.c.b16 %v5119, %v5115
        %v5404 = vpack.c.b16 %v5120, %v5116
        %v5405 = vpack.c.b16 %v5125, %v5121
        %v5406 = vpack.c.b16 %v5126, %v5122
        %v5407 = vpack.c.b16 %v5127, %v5123
        %v5408 = vpack.c.b16 %v5128, %v5124
        %v5409 = vpack.c.b16 %v5133, %v5129
        %v5410 = vpack.c.b16 %v5134, %v5130
        %v5411 = vpack.c.b16 %v5135, %v5131
        %v5412 = vpack.c.b16 %v5136, %v5132
        %v5413 = vpack.c.b16 %v5141, %v5137
        %v5414 = vpack.c.b16 %v5142, %v5138
        %v5415 = vpack.c.b16 %v5143, %v5139
        %v5416 = vpack.c.b16 %v5144, %v5140
        %v5417 = vpack.c.b16 %v5149, %v5145
        %v5418 = vpack.c.b16 %v5150, %v5146
        %v5419 = vpack.c.b16 %v5151, %v5147
        %v5420 = vpack.c.b16 %v5152, %v5148
        %v5421 = vpack.c.b16 %v5157, %v5153
        %v5422 = vpack.c.b16 %v5158, %v5154
        %v5423 = vpack.c.b16 %v5159, %v5155
        %v5424 = vpack.c.b16 %v5160, %v5156
        %v5425 = vpack.c.b16 %v5165, %v5161
        %v5426 = vpack.c.b16 %v5166, %v5162
        %v5427 = vpack.c.b16 %v5167, %v5163
        %v5428 = vpack.c.b16 %v5168, %v5164
        %v5429 = vpack.c.b16 %v5173, %v5169
        %v5430 = vpack.c.b16 %v5174, %v5170
        %v5431 = vpack.c.b16 %v5175, %v5171
        %v5432 = vpack.c.b16 %v5176, %v5172
        %5689 = vmatpush.bf16.msra.mxu0 %v5205
        %5690 = vmatpush.bf16.msra.mxu0 %v5201
        %5691 = vmatpush.bf16.msra.mxu0 %v5197
        %5692 = vmatpush.bf16.msra.mxu0 %v5193
        %5693 = vmatpush.bf16.msra.mxu0 %v5189
        %5694 = vmatpush.bf16.msra.mxu0 %v5185
        %5695 = vmatpush.bf16.msra.mxu0 %v5181
        %5696 = vmatpush.bf16.msra.mxu0 %v5177
        %5697 = vmatmul.bf16.gmra.mxu0 %v4079
        %v5698 = vpop.f32.mrf.mxu0
        %v5699 = vadd.f32 %v4401, %v5698
        %v5700 = vpop.f32.mrf.mxu0
        %v5701 = vadd.f32 %v4401, %v5700
        %5702 = vmatmul.bf16.gmra.mxu0 %v4087
        %v5703 = vpop.f32.mrf.mxu0
        %v5704 = vadd.f32 %v4401, %v5703
        %v5705 = vpop.f32.mrf.mxu0
        %v5706 = vadd.f32 %v4401, %v5705
        %5707 = vmatmul.bf16.gmra.mxu0 %v4095
        %v5708 = vpop.f32.mrf.mxu0
        %v5709 = vadd.f32 %v4401, %v5708
        %v5710 = vpop.f32.mrf.mxu0
        %v5711 = vadd.f32 %v4401, %v5710
        %5712 = vmatmul.bf16.gmra.mxu0 %v4103
        %v5713 = vpop.f32.mrf.mxu0
        %v5714 = vadd.f32 %v4401, %v5713
        %v5715 = vpop.f32.mrf.mxu0
        %v5716 = vadd.f32 %v4401, %v5715
        %5717 = vmatmul.bf16.gmra.mxu0 %v4111
        %v5718 = vpop.f32.mrf.mxu0
        %v5719 = vadd.f32 %v4401, %v5718
        %v5720 = vpop.f32.mrf.mxu0
        %v5721 = vadd.f32 %v4401, %v5720
        %5722 = vmatmul.bf16.gmra.mxu0 %v4119
        %v5723 = vpop.f32.mrf.mxu0
        %v5724 = vadd.f32 %v4401, %v5723
        %v5725 = vpop.f32.mrf.mxu0
        %v5726 = vadd.f32 %v4401, %v5725
        %5727 = vmatmul.bf16.gmra.mxu0 %v4127
        %v5728 = vpop.f32.mrf.mxu0
        %v5729 = vadd.f32 %v4401, %v5728
        %v5730 = vpop.f32.mrf.mxu0
        %v5731 = vadd.f32 %v4401, %v5730
        %5732 = vmatmul.bf16.gmra.mxu0 %v4135
        %v5733 = vpop.f32.mrf.mxu0
        %v5734 = vadd.f32 %v4401, %v5733
        %v5735 = vpop.f32.mrf.mxu0
        %v5736 = vadd.f32 %v4401, %v5735
        %5737 = vdwg.mxu0
        %5738 = vmatpush.bf16.msra.mxu0 %v5237
        %5739 = vmatpush.bf16.msra.mxu0 %v5233
        %5740 = vmatpush.bf16.msra.mxu0 %v5229
        %5741 = vmatpush.bf16.msra.mxu0 %v5225
        %5742 = vmatpush.bf16.msra.mxu0 %v5221
        %5743 = vmatpush.bf16.msra.mxu0 %v5217
        %5744 = vmatpush.bf16.msra.mxu0 %v5213
        %5745 = vmatpush.bf16.msra.mxu0 %v5209
        %5746 = vmatmul.bf16.gmra.mxu0 %v4080
        %v5747 = vpop.f32.mrf.mxu0
        %v5748 = vadd.f32 %v5699, %v5747
        %v5749 = vpop.f32.mrf.mxu0
        %v5750 = vadd.f32 %v5701, %v5749
        %5751 = vmatmul.bf16.gmra.mxu0 %v4088
        %v5752 = vpop.f32.mrf.mxu0
        %v5753 = vadd.f32 %v5704, %v5752
        %v5754 = vpop.f32.mrf.mxu0
        %v5755 = vadd.f32 %v5706, %v5754
        %5756 = vmatmul.bf16.gmra.mxu0 %v4096
        %v5757 = vpop.f32.mrf.mxu0
        %v5758 = vadd.f32 %v5709, %v5757
        %v5759 = vpop.f32.mrf.mxu0
        %v5760 = vadd.f32 %v5711, %v5759
        %5761 = vmatmul.bf16.gmra.mxu0 %v4104
        %v5762 = vpop.f32.mrf.mxu0
        %v5763 = vadd.f32 %v5714, %v5762
        %v5764 = vpop.f32.mrf.mxu0
        %v5765 = vadd.f32 %v5716, %v5764
        %5766 = vmatmul.bf16.gmra.mxu0 %v4112
        %v5767 = vpop.f32.mrf.mxu0
        %v5768 = vadd.f32 %v5719, %v5767
        %v5769 = vpop.f32.mrf.mxu0
        %v5770 = vadd.f32 %v5721, %v5769
        %5771 = vmatmul.bf16.gmra.mxu0 %v4120
        %v5772 = vpop.f32.mrf.mxu0
        %v5773 = vadd.f32 %v5724, %v5772
        %v5774 = vpop.f32.mrf.mxu0
        %v5775 = vadd.f32 %v5726, %v5774
        %5776 = vmatmul.bf16.gmra.mxu0 %v4128
        %v5777 = vpop.f32.mrf.mxu0
        %v5778 = vadd.f32 %v5729, %v5777
        %v5779 = vpop.f32.mrf.mxu0
        %v5780 = vadd.f32 %v5731, %v5779
        %5781 = vmatmul.bf16.gmra.mxu0 %v4136
        %v5782 = vpop.f32.mrf.mxu0
        %v5783 = vadd.f32 %v5734, %v5782
        %v5784 = vpop.f32.mrf.mxu0
        %v5785 = vadd.f32 %v5736, %v5784
        %5786 = vdwg.mxu0
        %5787 = vmatpush.bf16.msra.mxu0 %v5269
        %5788 = vmatpush.bf16.msra.mxu0 %v5265
        %5789 = vmatpush.bf16.msra.mxu0 %v5261
        %5790 = vmatpush.bf16.msra.mxu0 %v5257
        %5791 = vmatpush.bf16.msra.mxu0 %v5253
        %5792 = vmatpush.bf16.msra.mxu0 %v5249
        %5793 = vmatpush.bf16.msra.mxu0 %v5245
        %5794 = vmatpush.bf16.msra.mxu0 %v5241
        %5795 = vmatmul.bf16.gmra.mxu0 %v4081
        %v5796 = vpop.f32.mrf.mxu0
        %v5797 = vadd.f32 %v5748, %v5796
        %v5798 = vpop.f32.mrf.mxu0
        %v5799 = vadd.f32 %v5750, %v5798
        %5800 = vmatmul.bf16.gmra.mxu0 %v4089
        %v5801 = vpop.f32.mrf.mxu0
        %v5802 = vadd.f32 %v5753, %v5801
        %v5803 = vpop.f32.mrf.mxu0
        %v5804 = vadd.f32 %v5755, %v5803
        %5805 = vmatmul.bf16.gmra.mxu0 %v4097
        %v5806 = vpop.f32.mrf.mxu0
        %v5807 = vadd.f32 %v5758, %v5806
        %v5808 = vpop.f32.mrf.mxu0
        %v5809 = vadd.f32 %v5760, %v5808
        %5810 = vmatmul.bf16.gmra.mxu0 %v4105
        %v5811 = vpop.f32.mrf.mxu0
        %v5812 = vadd.f32 %v5763, %v5811
        %v5813 = vpop.f32.mrf.mxu0
        %v5814 = vadd.f32 %v5765, %v5813
        %5815 = vmatmul.bf16.gmra.mxu0 %v4113
        %v5816 = vpop.f32.mrf.mxu0
        %v5817 = vadd.f32 %v5768, %v5816
        %v5818 = vpop.f32.mrf.mxu0
        %v5819 = vadd.f32 %v5770, %v5818
        %5820 = vmatmul.bf16.gmra.mxu0 %v4121
        %v5821 = vpop.f32.mrf.mxu0
        %v5822 = vadd.f32 %v5773, %v5821
        %v5823 = vpop.f32.mrf.mxu0
        %v5824 = vadd.f32 %v5775, %v5823
        %5825 = vmatmul.bf16.gmra.mxu0 %v4129
        %v5826 = vpop.f32.mrf.mxu0
        %v5827 = vadd.f32 %v5778, %v5826
        %v5828 = vpop.f32.mrf.mxu0
        %v5829 = vadd.f32 %v5780, %v5828
        %5830 = vmatmul.bf16.gmra.mxu0 %v4137
        %v5831 = vpop.f32.mrf.mxu0
        %v5832 = vadd.f32 %v5783, %v5831
        %v5833 = vpop.f32.mrf.mxu0
        %v5834 = vadd.f32 %v5785, %v5833
        %5835 = vdwg.mxu0
        %5836 = vmatpush.bf16.msra.mxu0 %v5301
        %5837 = vmatpush.bf16.msra.mxu0 %v5297
        %5838 = vmatpush.bf16.msra.mxu0 %v5293
        %5839 = vmatpush.bf16.msra.mxu0 %v5289
        %5840 = vmatpush.bf16.msra.mxu0 %v5285
        %5841 = vmatpush.bf16.msra.mxu0 %v5281
        %5842 = vmatpush.bf16.msra.mxu0 %v5277
        %5843 = vmatpush.bf16.msra.mxu0 %v5273
        %5844 = vmatmul.bf16.gmra.mxu0 %v4082
        %v5845 = vpop.f32.mrf.mxu0
        %v5846 = vadd.f32 %v5797, %v5845
        %v5847 = vpop.f32.mrf.mxu0
        %v5848 = vadd.f32 %v5799, %v5847
        %5849 = vmatmul.bf16.gmra.mxu0 %v4090
        %v5850 = vpop.f32.mrf.mxu0
        %v5851 = vadd.f32 %v5802, %v5850
        %v5852 = vpop.f32.mrf.mxu0
        %v5853 = vadd.f32 %v5804, %v5852
        %5854 = vmatmul.bf16.gmra.mxu0 %v4098
        %v5855 = vpop.f32.mrf.mxu0
        %v5856 = vadd.f32 %v5807, %v5855
        %v5857 = vpop.f32.mrf.mxu0
        %v5858 = vadd.f32 %v5809, %v5857
        %5859 = vmatmul.bf16.gmra.mxu0 %v4106
        %v5860 = vpop.f32.mrf.mxu0
        %v5861 = vadd.f32 %v5812, %v5860
        %v5862 = vpop.f32.mrf.mxu0
        %v5863 = vadd.f32 %v5814, %v5862
        %5864 = vmatmul.bf16.gmra.mxu0 %v4114
        %v5865 = vpop.f32.mrf.mxu0
        %v5866 = vadd.f32 %v5817, %v5865
        %v5867 = vpop.f32.mrf.mxu0
        %v5868 = vadd.f32 %v5819, %v5867
        %5869 = vmatmul.bf16.gmra.mxu0 %v4122
        %v5870 = vpop.f32.mrf.mxu0
        %v5871 = vadd.f32 %v5822, %v5870
        %v5872 = vpop.f32.mrf.mxu0
        %v5873 = vadd.f32 %v5824, %v5872
        %5874 = vmatmul.bf16.gmra.mxu0 %v4130
        %v5875 = vpop.f32.mrf.mxu0
        %v5876 = vadd.f32 %v5827, %v5875
        %v5877 = vpop.f32.mrf.mxu0
        %v5878 = vadd.f32 %v5829, %v5877
        %5879 = vmatmul.bf16.gmra.mxu0 %v4138
        %v5880 = vpop.f32.mrf.mxu0
        %v5881 = vadd.f32 %v5832, %v5880
        %v5882 = vpop.f32.mrf.mxu0
        %v5883 = vadd.f32 %v5834, %v5882
        %5884 = vdwg.mxu0
        %5885 = vmatpush.bf16.msra.mxu0 %v5333
        %5886 = vmatpush.bf16.msra.mxu0 %v5329
        %5887 = vmatpush.bf16.msra.mxu0 %v5325
        %5888 = vmatpush.bf16.msra.mxu0 %v5321
        %5889 = vmatpush.bf16.msra.mxu0 %v5317
        %5890 = vmatpush.bf16.msra.mxu0 %v5313
        %5891 = vmatpush.bf16.msra.mxu0 %v5309
        %5892 = vmatpush.bf16.msra.mxu0 %v5305
        %5893 = vmatmul.bf16.gmra.mxu0 %v4083
        %v5894 = vpop.f32.mrf.mxu0
        %v5895 = vadd.f32 %v5846, %v5894
        %v5896 = vpop.f32.mrf.mxu0
        %v5897 = vadd.f32 %v5848, %v5896
        %5898 = vmatmul.bf16.gmra.mxu0 %v4091
        %v5899 = vpop.f32.mrf.mxu0
        %v5900 = vadd.f32 %v5851, %v5899
        %v5901 = vpop.f32.mrf.mxu0
        %v5902 = vadd.f32 %v5853, %v5901
        %5903 = vmatmul.bf16.gmra.mxu0 %v4099
        %v5904 = vpop.f32.mrf.mxu0
        %v5905 = vadd.f32 %v5856, %v5904
        %v5906 = vpop.f32.mrf.mxu0
        %v5907 = vadd.f32 %v5858, %v5906
        %5908 = vmatmul.bf16.gmra.mxu0 %v4107
        %v5909 = vpop.f32.mrf.mxu0
        %v5910 = vadd.f32 %v5861, %v5909
        %v5911 = vpop.f32.mrf.mxu0
        %v5912 = vadd.f32 %v5863, %v5911
        %5913 = vmatmul.bf16.gmra.mxu0 %v4115
        %v5914 = vpop.f32.mrf.mxu0
        %v5915 = vadd.f32 %v5866, %v5914
        %v5916 = vpop.f32.mrf.mxu0
        %v5917 = vadd.f32 %v5868, %v5916
        %5918 = vmatmul.bf16.gmra.mxu0 %v4123
        %v5919 = vpop.f32.mrf.mxu0
        %v5920 = vadd.f32 %v5871, %v5919
        %v5921 = vpop.f32.mrf.mxu0
        %v5922 = vadd.f32 %v5873, %v5921
        %5923 = vmatmul.bf16.gmra.mxu0 %v4131
        %v5924 = vpop.f32.mrf.mxu0
        %v5925 = vadd.f32 %v5876, %v5924
        %v5926 = vpop.f32.mrf.mxu0
        %v5927 = vadd.f32 %v5878, %v5926
        %5928 = vmatmul.bf16.gmra.mxu0 %v4139
        %v5929 = vpop.f32.mrf.mxu0
        %v5930 = vadd.f32 %v5881, %v5929
        %v5931 = vpop.f32.mrf.mxu0
        %v5932 = vadd.f32 %v5883, %v5931
        %5933 = vdwg.mxu0
        %5934 = vmatpush.bf16.msra.mxu0 %v5365
        %5935 = vmatpush.bf16.msra.mxu0 %v5361
        %5936 = vmatpush.bf16.msra.mxu0 %v5357
        %5937 = vmatpush.bf16.msra.mxu0 %v5353
        %5938 = vmatpush.bf16.msra.mxu0 %v5349
        %5939 = vmatpush.bf16.msra.mxu0 %v5345
        %5940 = vmatpush.bf16.msra.mxu0 %v5341
        %5941 = vmatpush.bf16.msra.mxu0 %v5337
        %5942 = vmatmul.bf16.gmra.mxu0 %v4084
        %v5943 = vpop.f32.mrf.mxu0
        %v5944 = vadd.f32 %v5895, %v5943
        %v5945 = vpop.f32.mrf.mxu0
        %v5946 = vadd.f32 %v5897, %v5945
        %5947 = vmatmul.bf16.gmra.mxu0 %v4092
        %v5948 = vpop.f32.mrf.mxu0
        %v5949 = vadd.f32 %v5900, %v5948
        %v5950 = vpop.f32.mrf.mxu0
        %v5951 = vadd.f32 %v5902, %v5950
        %5952 = vmatmul.bf16.gmra.mxu0 %v4100
        %v5953 = vpop.f32.mrf.mxu0
        %v5954 = vadd.f32 %v5905, %v5953
        %v5955 = vpop.f32.mrf.mxu0
        %v5956 = vadd.f32 %v5907, %v5955
        %5957 = vmatmul.bf16.gmra.mxu0 %v4108
        %v5958 = vpop.f32.mrf.mxu0
        %v5959 = vadd.f32 %v5910, %v5958
        %v5960 = vpop.f32.mrf.mxu0
        %v5961 = vadd.f32 %v5912, %v5960
        %5962 = vmatmul.bf16.gmra.mxu0 %v4116
        %v5963 = vpop.f32.mrf.mxu0
        %v5964 = vadd.f32 %v5915, %v5963
        %v5965 = vpop.f32.mrf.mxu0
        %v5966 = vadd.f32 %v5917, %v5965
        %5967 = vmatmul.bf16.gmra.mxu0 %v4124
        %v5968 = vpop.f32.mrf.mxu0
        %v5969 = vadd.f32 %v5920, %v5968
        %v5970 = vpop.f32.mrf.mxu0
        %v5971 = vadd.f32 %v5922, %v5970
        %5972 = vmatmul.bf16.gmra.mxu0 %v4132
        %v5973 = vpop.f32.mrf.mxu0
        %v5974 = vadd.f32 %v5925, %v5973
        %v5975 = vpop.f32.mrf.mxu0
        %v5976 = vadd.f32 %v5927, %v5975
        %5977 = vmatmul.bf16.gmra.mxu0 %v4140
        %v5978 = vpop.f32.mrf.mxu0
        %v5979 = vadd.f32 %v5930, %v5978
        %v5980 = vpop.f32.mrf.mxu0
        %v5981 = vadd.f32 %v5932, %v5980
        %5982 = vdwg.mxu0
        %5983 = vmatpush.bf16.msra.mxu0 %v5397
        %5984 = vmatpush.bf16.msra.mxu0 %v5393
        %5985 = vmatpush.bf16.msra.mxu0 %v5389
        %5986 = vmatpush.bf16.msra.mxu0 %v5385
        %5987 = vmatpush.bf16.msra.mxu0 %v5381
        %5988 = vmatpush.bf16.msra.mxu0 %v5377
        %5989 = vmatpush.bf16.msra.mxu0 %v5373
        %5990 = vmatpush.bf16.msra.mxu0 %v5369
        %5991 = vmatmul.bf16.gmra.mxu0 %v4085
        %v5992 = vpop.f32.mrf.mxu0
        %v5993 = vadd.f32 %v5944, %v5992
        %v5994 = vpop.f32.mrf.mxu0
        %v5995 = vadd.f32 %v5946, %v5994
        %5996 = vmatmul.bf16.gmra.mxu0 %v4093
        %v5997 = vpop.f32.mrf.mxu0
        %v5998 = vadd.f32 %v5949, %v5997
        %v5999 = vpop.f32.mrf.mxu0
        %v6000 = vadd.f32 %v5951, %v5999
        %6001 = vmatmul.bf16.gmra.mxu0 %v4101
        %v6002 = vpop.f32.mrf.mxu0
        %v6003 = vadd.f32 %v5954, %v6002
        %v6004 = vpop.f32.mrf.mxu0
        %v6005 = vadd.f32 %v5956, %v6004
        %6006 = vmatmul.bf16.gmra.mxu0 %v4109
        %v6007 = vpop.f32.mrf.mxu0
        %v6008 = vadd.f32 %v5959, %v6007
        %v6009 = vpop.f32.mrf.mxu0
        %v6010 = vadd.f32 %v5961, %v6009
        %6011 = vmatmul.bf16.gmra.mxu0 %v4117
        %v6012 = vpop.f32.mrf.mxu0
        %v6013 = vadd.f32 %v5964, %v6012
        %v6014 = vpop.f32.mrf.mxu0
        %v6015 = vadd.f32 %v5966, %v6014
        %6016 = vmatmul.bf16.gmra.mxu0 %v4125
        %v6017 = vpop.f32.mrf.mxu0
        %v6018 = vadd.f32 %v5969, %v6017
        %v6019 = vpop.f32.mrf.mxu0
        %v6020 = vadd.f32 %v5971, %v6019
        %6021 = vmatmul.bf16.gmra.mxu0 %v4133
        %v6022 = vpop.f32.mrf.mxu0
        %v6023 = vadd.f32 %v5974, %v6022
        %v6024 = vpop.f32.mrf.mxu0
        %v6025 = vadd.f32 %v5976, %v6024
        %6026 = vmatmul.bf16.gmra.mxu0 %v4141
        %v6027 = vpop.f32.mrf.mxu0
        %v6028 = vadd.f32 %v5979, %v6027
        %v6029 = vpop.f32.mrf.mxu0
        %v6030 = vadd.f32 %v5981, %v6029
        %6031 = vdwg.mxu0
        %6032 = vmatpush.bf16.msra.mxu0 %v5429
        %6033 = vmatpush.bf16.msra.mxu0 %v5425
        %6034 = vmatpush.bf16.msra.mxu0 %v5421
        %6035 = vmatpush.bf16.msra.mxu0 %v5417
        %6036 = vmatpush.bf16.msra.mxu0 %v5413
        %6037 = vmatpush.bf16.msra.mxu0 %v5409
        %6038 = vmatpush.bf16.msra.mxu0 %v5405
        %6039 = vmatpush.bf16.msra.mxu0 %v5401
        %6040 = vmatmul.bf16.gmra.mxu0 %v4086
        %v6041 = vpop.f32.mrf.mxu0
        %v6042 = vadd.f32 %v5993, %v6041
        %v6043 = vpop.f32.mrf.mxu0
        %v6044 = vadd.f32 %v5995, %v6043
        %6045 = vmatmul.bf16.gmra.mxu0 %v4094
        %v6046 = vpop.f32.mrf.mxu0
        %v6047 = vadd.f32 %v5998, %v6046
        %v6048 = vpop.f32.mrf.mxu0
        %v6049 = vadd.f32 %v6000, %v6048
        %6050 = vmatmul.bf16.gmra.mxu0 %v4102
        %v6051 = vpop.f32.mrf.mxu0
        %v6052 = vadd.f32 %v6003, %v6051
        %v6053 = vpop.f32.mrf.mxu0
        %v6054 = vadd.f32 %v6005, %v6053
        %6055 = vmatmul.bf16.gmra.mxu0 %v4110
        %v6056 = vpop.f32.mrf.mxu0
        %v6057 = vadd.f32 %v6008, %v6056
        %v6058 = vpop.f32.mrf.mxu0
        %v6059 = vadd.f32 %v6010, %v6058
        %6060 = vmatmul.bf16.gmra.mxu0 %v4118
        %v6061 = vpop.f32.mrf.mxu0
        %v6062 = vadd.f32 %v6013, %v6061
        %v6063 = vpop.f32.mrf.mxu0
        %v6064 = vadd.f32 %v6015, %v6063
        %6065 = vmatmul.bf16.gmra.mxu0 %v4126
        %v6066 = vpop.f32.mrf.mxu0
        %v6067 = vadd.f32 %v6018, %v6066
        %v6068 = vpop.f32.mrf.mxu0
        %v6069 = vadd.f32 %v6020, %v6068
        %6070 = vmatmul.bf16.gmra.mxu0 %v4134
        %v6071 = vpop.f32.mrf.mxu0
        %v6072 = vadd.f32 %v6023, %v6071
        %v6073 = vpop.f32.mrf.mxu0
        %v6074 = vadd.f32 %v6025, %v6073
        %6075 = vmatmul.bf16.gmra.mxu0 %v4142
        %v6076 = vpop.f32.mrf.mxu0
        %v6077 = vadd.f32 %v6028, %v6076
        %v6078 = vpop.f32.mrf.mxu0
        %v6079 = vadd.f32 %v6030, %v6078
        %6080 = vdwg.mxu0
        %6081 = vmatpush.bf16.msra.mxu0 %v5206
        %6082 = vmatpush.bf16.msra.mxu0 %v5202
        %6083 = vmatpush.bf16.msra.mxu0 %v5198
        %6084 = vmatpush.bf16.msra.mxu0 %v5194
        %6085 = vmatpush.bf16.msra.mxu0 %v5190
        %6086 = vmatpush.bf16.msra.mxu0 %v5186
        %6087 = vmatpush.bf16.msra.mxu0 %v5182
        %6088 = vmatpush.bf16.msra.mxu0 %v5178
        %6089 = vmatmul.bf16.gmra.mxu0 %v4079
        %v6090 = vpop.f32.mrf.mxu0
        %v6091 = vadd.f32 %v4402, %v6090
        %v6092 = vpop.f32.mrf.mxu0
        %v6093 = vadd.f32 %v4402, %v6092
        %6094 = vmatmul.bf16.gmra.mxu0 %v4087
        %v6095 = vpop.f32.mrf.mxu0
        %v6096 = vadd.f32 %v4402, %v6095
        %v6097 = vpop.f32.mrf.mxu0
        %v6098 = vadd.f32 %v4402, %v6097
        %6099 = vmatmul.bf16.gmra.mxu0 %v4095
        %v6100 = vpop.f32.mrf.mxu0
        %v6101 = vadd.f32 %v4402, %v6100
        %v6102 = vpop.f32.mrf.mxu0
        %v6103 = vadd.f32 %v4402, %v6102
        %6104 = vmatmul.bf16.gmra.mxu0 %v4103
        %v6105 = vpop.f32.mrf.mxu0
        %v6106 = vadd.f32 %v4402, %v6105
        %v6107 = vpop.f32.mrf.mxu0
        %v6108 = vadd.f32 %v4402, %v6107
        %6109 = vmatmul.bf16.gmra.mxu0 %v4111
        %v6110 = vpop.f32.mrf.mxu0
        %v6111 = vadd.f32 %v4402, %v6110
        %v6112 = vpop.f32.mrf.mxu0
        %v6113 = vadd.f32 %v4402, %v6112
        %6114 = vmatmul.bf16.gmra.mxu0 %v4119
        %v6115 = vpop.f32.mrf.mxu0
        %v6116 = vadd.f32 %v4402, %v6115
        %v6117 = vpop.f32.mrf.mxu0
        %v6118 = vadd.f32 %v4402, %v6117
        %6119 = vmatmul.bf16.gmra.mxu0 %v4127
        %v6120 = vpop.f32.mrf.mxu0
        %v6121 = vadd.f32 %v4402, %v6120
        %v6122 = vpop.f32.mrf.mxu0
        %v6123 = vadd.f32 %v4402, %v6122
        %6124 = vmatmul.bf16.gmra.mxu0 %v4135
        %v6125 = vpop.f32.mrf.mxu0
        %v6126 = vadd.f32 %v4402, %v6125
        %v6127 = vpop.f32.mrf.mxu0
        %v6128 = vadd.f32 %v4402, %v6127
        %6129 = vdwg.mxu0
        %6130 = vmatpush.bf16.msra.mxu0 %v5238
        %6131 = vmatpush.bf16.msra.mxu0 %v5234
        %6132 = vmatpush.bf16.msra.mxu0 %v5230
        %6133 = vmatpush.bf16.msra.mxu0 %v5226
        %6134 = vmatpush.bf16.msra.mxu0 %v5222
        %6135 = vmatpush.bf16.msra.mxu0 %v5218
        %6136 = vmatpush.bf16.msra.mxu0 %v5214
        %6137 = vmatpush.bf16.msra.mxu0 %v5210
        %6138 = vmatmul.bf16.gmra.mxu0 %v4080
        %v6139 = vpop.f32.mrf.mxu0
        %v6140 = vadd.f32 %v6091, %v6139
        %v6141 = vpop.f32.mrf.mxu0
        %v6142 = vadd.f32 %v6093, %v6141
        %6143 = vmatmul.bf16.gmra.mxu0 %v4088
        %v6144 = vpop.f32.mrf.mxu0
        %v6145 = vadd.f32 %v6096, %v6144
        %v6146 = vpop.f32.mrf.mxu0
        %v6147 = vadd.f32 %v6098, %v6146
        %6148 = vmatmul.bf16.gmra.mxu0 %v4096
        %v6149 = vpop.f32.mrf.mxu0
        %v6150 = vadd.f32 %v6101, %v6149
        %v6151 = vpop.f32.mrf.mxu0
        %v6152 = vadd.f32 %v6103, %v6151
        %6153 = vmatmul.bf16.gmra.mxu0 %v4104
        %v6154 = vpop.f32.mrf.mxu0
        %v6155 = vadd.f32 %v6106, %v6154
        %v6156 = vpop.f32.mrf.mxu0
        %v6157 = vadd.f32 %v6108, %v6156
        %6158 = vmatmul.bf16.gmra.mxu0 %v4112
        %v6159 = vpop.f32.mrf.mxu0
        %v6160 = vadd.f32 %v6111, %v6159
        %v6161 = vpop.f32.mrf.mxu0
        %v6162 = vadd.f32 %v6113, %v6161
        %6163 = vmatmul.bf16.gmra.mxu0 %v4120
        %v6164 = vpop.f32.mrf.mxu0
        %v6165 = vadd.f32 %v6116, %v6164
        %v6166 = vpop.f32.mrf.mxu0
        %v6167 = vadd.f32 %v6118, %v6166
        %6168 = vmatmul.bf16.gmra.mxu0 %v4128
        %v6169 = vpop.f32.mrf.mxu0
        %v6170 = vadd.f32 %v6121, %v6169
        %v6171 = vpop.f32.mrf.mxu0
        %v6172 = vadd.f32 %v6123, %v6171
        %6173 = vmatmul.bf16.gmra.mxu0 %v4136
        %v6174 = vpop.f32.mrf.mxu0
        %v6175 = vadd.f32 %v6126, %v6174
        %v6176 = vpop.f32.mrf.mxu0
        %v6177 = vadd.f32 %v6128, %v6176
        %6178 = vdwg.mxu0
        %6179 = vmatpush.bf16.msra.mxu0 %v5270
        %6180 = vmatpush.bf16.msra.mxu0 %v5266
        %6181 = vmatpush.bf16.msra.mxu0 %v5262
        %6182 = vmatpush.bf16.msra.mxu0 %v5258
        %6183 = vmatpush.bf16.msra.mxu0 %v5254
        %6184 = vmatpush.bf16.msra.mxu0 %v5250
        %6185 = vmatpush.bf16.msra.mxu0 %v5246
        %6186 = vmatpush.bf16.msra.mxu0 %v5242
        %6187 = vmatmul.bf16.gmra.mxu0 %v4081
        %v6188 = vpop.f32.mrf.mxu0
        %v6189 = vadd.f32 %v6140, %v6188
        %v6190 = vpop.f32.mrf.mxu0
        %v6191 = vadd.f32 %v6142, %v6190
        %6192 = vmatmul.bf16.gmra.mxu0 %v4089
        %v6193 = vpop.f32.mrf.mxu0
        %v6194 = vadd.f32 %v6145, %v6193
        %v6195 = vpop.f32.mrf.mxu0
        %v6196 = vadd.f32 %v6147, %v6195
        %6197 = vmatmul.bf16.gmra.mxu0 %v4097
        %v6198 = vpop.f32.mrf.mxu0
        %v6199 = vadd.f32 %v6150, %v6198
        %v6200 = vpop.f32.mrf.mxu0
        %v6201 = vadd.f32 %v6152, %v6200
        %6202 = vmatmul.bf16.gmra.mxu0 %v4105
        %v6203 = vpop.f32.mrf.mxu0
        %v6204 = vadd.f32 %v6155, %v6203
        %v6205 = vpop.f32.mrf.mxu0
        %v6206 = vadd.f32 %v6157, %v6205
        %6207 = vmatmul.bf16.gmra.mxu0 %v4113
        %v6208 = vpop.f32.mrf.mxu0
        %v6209 = vadd.f32 %v6160, %v6208
        %v6210 = vpop.f32.mrf.mxu0
        %v6211 = vadd.f32 %v6162, %v6210
        %6212 = vmatmul.bf16.gmra.mxu0 %v4121
        %v6213 = vpop.f32.mrf.mxu0
        %v6214 = vadd.f32 %v6165, %v6213
        %v6215 = vpop.f32.mrf.mxu0
        %v6216 = vadd.f32 %v6167, %v6215
        %6217 = vmatmul.bf16.gmra.mxu0 %v4129
        %v6218 = vpop.f32.mrf.mxu0
        %v6219 = vadd.f32 %v6170, %v6218
        %v6220 = vpop.f32.mrf.mxu0
        %v6221 = vadd.f32 %v6172, %v6220
        %6222 = vmatmul.bf16.gmra.mxu0 %v4137
        %v6223 = vpop.f32.mrf.mxu0
        %v6224 = vadd.f32 %v6175, %v6223
        %v6225 = vpop.f32.mrf.mxu0
        %v6226 = vadd.f32 %v6177, %v6225
        %6227 = vdwg.mxu0
        %6228 = vmatpush.bf16.msra.mxu0 %v5302
        %6229 = vmatpush.bf16.msra.mxu0 %v5298
        %6230 = vmatpush.bf16.msra.mxu0 %v5294
        %6231 = vmatpush.bf16.msra.mxu0 %v5290
        %6232 = vmatpush.bf16.msra.mxu0 %v5286
        %6233 = vmatpush.bf16.msra.mxu0 %v5282
        %6234 = vmatpush.bf16.msra.mxu0 %v5278
        %6235 = vmatpush.bf16.msra.mxu0 %v5274
        %6236 = vmatmul.bf16.gmra.mxu0 %v4082
        %v6237 = vpop.f32.mrf.mxu0
        %v6238 = vadd.f32 %v6189, %v6237
        %v6239 = vpop.f32.mrf.mxu0
        %v6240 = vadd.f32 %v6191, %v6239
        %6241 = vmatmul.bf16.gmra.mxu0 %v4090
        %v6242 = vpop.f32.mrf.mxu0
        %v6243 = vadd.f32 %v6194, %v6242
        %v6244 = vpop.f32.mrf.mxu0
        %v6245 = vadd.f32 %v6196, %v6244
        %6246 = vmatmul.bf16.gmra.mxu0 %v4098
        %v6247 = vpop.f32.mrf.mxu0
        %v6248 = vadd.f32 %v6199, %v6247
        %v6249 = vpop.f32.mrf.mxu0
        %v6250 = vadd.f32 %v6201, %v6249
        %6251 = vmatmul.bf16.gmra.mxu0 %v4106
        %v6252 = vpop.f32.mrf.mxu0
        %v6253 = vadd.f32 %v6204, %v6252
        %v6254 = vpop.f32.mrf.mxu0
        %v6255 = vadd.f32 %v6206, %v6254
        %6256 = vmatmul.bf16.gmra.mxu0 %v4114
        %v6257 = vpop.f32.mrf.mxu0
        %v6258 = vadd.f32 %v6209, %v6257
        %v6259 = vpop.f32.mrf.mxu0
        %v6260 = vadd.f32 %v6211, %v6259
        %6261 = vmatmul.bf16.gmra.mxu0 %v4122
        %v6262 = vpop.f32.mrf.mxu0
        %v6263 = vadd.f32 %v6214, %v6262
        %v6264 = vpop.f32.mrf.mxu0
        %v6265 = vadd.f32 %v6216, %v6264
        %6266 = vmatmul.bf16.gmra.mxu0 %v4130
        %v6267 = vpop.f32.mrf.mxu0
        %v6268 = vadd.f32 %v6219, %v6267
        %v6269 = vpop.f32.mrf.mxu0
        %v6270 = vadd.f32 %v6221, %v6269
        %6271 = vmatmul.bf16.gmra.mxu0 %v4138
        %v6272 = vpop.f32.mrf.mxu0
        %v6273 = vadd.f32 %v6224, %v6272
        %v6274 = vpop.f32.mrf.mxu0
        %v6275 = vadd.f32 %v6226, %v6274
        %6276 = vdwg.mxu0
        %6277 = vmatpush.bf16.msra.mxu0 %v5334
        %6278 = vmatpush.bf16.msra.mxu0 %v5330
        %6279 = vmatpush.bf16.msra.mxu0 %v5326
        %6280 = vmatpush.bf16.msra.mxu0 %v5322
        %6281 = vmatpush.bf16.msra.mxu0 %v5318
        %6282 = vmatpush.bf16.msra.mxu0 %v5314
        %6283 = vmatpush.bf16.msra.mxu0 %v5310
        %6284 = vmatpush.bf16.msra.mxu0 %v5306
        %6285 = vmatmul.bf16.gmra.mxu0 %v4083
        %v6286 = vpop.f32.mrf.mxu0
        %v6287 = vadd.f32 %v6238, %v6286
        %v6288 = vpop.f32.mrf.mxu0
        %v6289 = vadd.f32 %v6240, %v6288
        %6290 = vmatmul.bf16.gmra.mxu0 %v4091
        %v6291 = vpop.f32.mrf.mxu0
        %v6292 = vadd.f32 %v6243, %v6291
        %v6293 = vpop.f32.mrf.mxu0
        %v6294 = vadd.f32 %v6245, %v6293
        %6295 = vmatmul.bf16.gmra.mxu0 %v4099
        %v6296 = vpop.f32.mrf.mxu0
        %v6297 = vadd.f32 %v6248, %v6296
        %v6298 = vpop.f32.mrf.mxu0
        %v6299 = vadd.f32 %v6250, %v6298
        %6300 = vmatmul.bf16.gmra.mxu0 %v4107
        %v6301 = vpop.f32.mrf.mxu0
        %v6302 = vadd.f32 %v6253, %v6301
        %v6303 = vpop.f32.mrf.mxu0
        %v6304 = vadd.f32 %v6255, %v6303
        %6305 = vmatmul.bf16.gmra.mxu0 %v4115
        %v6306 = vpop.f32.mrf.mxu0
        %v6307 = vadd.f32 %v6258, %v6306
        %v6308 = vpop.f32.mrf.mxu0
        %v6309 = vadd.f32 %v6260, %v6308
        %6310 = vmatmul.bf16.gmra.mxu0 %v4123
        %v6311 = vpop.f32.mrf.mxu0
        %v6312 = vadd.f32 %v6263, %v6311
        %v6313 = vpop.f32.mrf.mxu0
        %v6314 = vadd.f32 %v6265, %v6313
        %6315 = vmatmul.bf16.gmra.mxu0 %v4131
        %v6316 = vpop.f32.mrf.mxu0
        %v6317 = vadd.f32 %v6268, %v6316
        %v6318 = vpop.f32.mrf.mxu0
        %v6319 = vadd.f32 %v6270, %v6318
        %6320 = vmatmul.bf16.gmra.mxu0 %v4139
        %v6321 = vpop.f32.mrf.mxu0
        %v6322 = vadd.f32 %v6273, %v6321
        %v6323 = vpop.f32.mrf.mxu0
        %v6324 = vadd.f32 %v6275, %v6323
        %6325 = vdwg.mxu0
        %6326 = vmatpush.bf16.msra.mxu0 %v5366
        %6327 = vmatpush.bf16.msra.mxu0 %v5362
        %6328 = vmatpush.bf16.msra.mxu0 %v5358
        %6329 = vmatpush.bf16.msra.mxu0 %v5354
        %6330 = vmatpush.bf16.msra.mxu0 %v5350
        %6331 = vmatpush.bf16.msra.mxu0 %v5346
        %6332 = vmatpush.bf16.msra.mxu0 %v5342
        %6333 = vmatpush.bf16.msra.mxu0 %v5338
        %6334 = vmatmul.bf16.gmra.mxu0 %v4084
        %v6335 = vpop.f32.mrf.mxu0
        %v6336 = vadd.f32 %v6287, %v6335
        %v6337 = vpop.f32.mrf.mxu0
        %v6338 = vadd.f32 %v6289, %v6337
        %6339 = vmatmul.bf16.gmra.mxu0 %v4092
        %v6340 = vpop.f32.mrf.mxu0
        %v6341 = vadd.f32 %v6292, %v6340
        %v6342 = vpop.f32.mrf.mxu0
        %v6343 = vadd.f32 %v6294, %v6342
        %6344 = vmatmul.bf16.gmra.mxu0 %v4100
        %v6345 = vpop.f32.mrf.mxu0
        %v6346 = vadd.f32 %v6297, %v6345
        %v6347 = vpop.f32.mrf.mxu0
        %v6348 = vadd.f32 %v6299, %v6347
        %6349 = vmatmul.bf16.gmra.mxu0 %v4108
        %v6350 = vpop.f32.mrf.mxu0
        %v6351 = vadd.f32 %v6302, %v6350
        %v6352 = vpop.f32.mrf.mxu0
        %v6353 = vadd.f32 %v6304, %v6352
        %6354 = vmatmul.bf16.gmra.mxu0 %v4116
        %v6355 = vpop.f32.mrf.mxu0
        %v6356 = vadd.f32 %v6307, %v6355
        %v6357 = vpop.f32.mrf.mxu0
        %v6358 = vadd.f32 %v6309, %v6357
        %6359 = vmatmul.bf16.gmra.mxu0 %v4124
        %v6360 = vpop.f32.mrf.mxu0
        %v6361 = vadd.f32 %v6312, %v6360
        %v6362 = vpop.f32.mrf.mxu0
        %v6363 = vadd.f32 %v6314, %v6362
        %6364 = vmatmul.bf16.gmra.mxu0 %v4132
        %v6365 = vpop.f32.mrf.mxu0
        %v6366 = vadd.f32 %v6317, %v6365
        %v6367 = vpop.f32.mrf.mxu0
        %v6368 = vadd.f32 %v6319, %v6367
        %6369 = vmatmul.bf16.gmra.mxu0 %v4140
        %v6370 = vpop.f32.mrf.mxu0
        %v6371 = vadd.f32 %v6322, %v6370
        %v6372 = vpop.f32.mrf.mxu0
        %v6373 = vadd.f32 %v6324, %v6372
        %6374 = vdwg.mxu0
        %6375 = vmatpush.bf16.msra.mxu0 %v5398
        %6376 = vmatpush.bf16.msra.mxu0 %v5394
        %6377 = vmatpush.bf16.msra.mxu0 %v5390
        %6378 = vmatpush.bf16.msra.mxu0 %v5386
        %6379 = vmatpush.bf16.msra.mxu0 %v5382
        %6380 = vmatpush.bf16.msra.mxu0 %v5378
        %6381 = vmatpush.bf16.msra.mxu0 %v5374
        %6382 = vmatpush.bf16.msra.mxu0 %v5370
        %6383 = vmatmul.bf16.gmra.mxu0 %v4085
        %v6384 = vpop.f32.mrf.mxu0
        %v6385 = vadd.f32 %v6336, %v6384
        %v6386 = vpop.f32.mrf.mxu0
        %v6387 = vadd.f32 %v6338, %v6386
        %6388 = vmatmul.bf16.gmra.mxu0 %v4093
        %v6389 = vpop.f32.mrf.mxu0
        %v6390 = vadd.f32 %v6341, %v6389
        %v6391 = vpop.f32.mrf.mxu0
        %v6392 = vadd.f32 %v6343, %v6391
        %6393 = vmatmul.bf16.gmra.mxu0 %v4101
        %v6394 = vpop.f32.mrf.mxu0
        %v6395 = vadd.f32 %v6346, %v6394
        %v6396 = vpop.f32.mrf.mxu0
        %v6397 = vadd.f32 %v6348, %v6396
        %6398 = vmatmul.bf16.gmra.mxu0 %v4109
        %v6399 = vpop.f32.mrf.mxu0
        %v6400 = vadd.f32 %v6351, %v6399
        %v6401 = vpop.f32.mrf.mxu0
        %v6402 = vadd.f32 %v6353, %v6401
        %6403 = vmatmul.bf16.gmra.mxu0 %v4117
        %v6404 = vpop.f32.mrf.mxu0
        %v6405 = vadd.f32 %v6356, %v6404
        %v6406 = vpop.f32.mrf.mxu0
        %v6407 = vadd.f32 %v6358, %v6406
        %6408 = vmatmul.bf16.gmra.mxu0 %v4125
        %v6409 = vpop.f32.mrf.mxu0
        %v6410 = vadd.f32 %v6361, %v6409
        %v6411 = vpop.f32.mrf.mxu0
        %v6412 = vadd.f32 %v6363, %v6411
        %6413 = vmatmul.bf16.gmra.mxu0 %v4133
        %v6414 = vpop.f32.mrf.mxu0
        %v6415 = vadd.f32 %v6366, %v6414
        %v6416 = vpop.f32.mrf.mxu0
        %v6417 = vadd.f32 %v6368, %v6416
        %6418 = vmatmul.bf16.gmra.mxu0 %v4141
        %v6419 = vpop.f32.mrf.mxu0
        %v6420 = vadd.f32 %v6371, %v6419
        %v6421 = vpop.f32.mrf.mxu0
        %v6422 = vadd.f32 %v6373, %v6421
        %6423 = vdwg.mxu0
        %6424 = vmatpush.bf16.msra.mxu0 %v5430
        %6425 = vmatpush.bf16.msra.mxu0 %v5426
        %6426 = vmatpush.bf16.msra.mxu0 %v5422
        %6427 = vmatpush.bf16.msra.mxu0 %v5418
        %6428 = vmatpush.bf16.msra.mxu0 %v5414
        %6429 = vmatpush.bf16.msra.mxu0 %v5410
        %6430 = vmatpush.bf16.msra.mxu0 %v5406
        %6431 = vmatpush.bf16.msra.mxu0 %v5402
        %6432 = vmatmul.bf16.gmra.mxu0 %v4086
        %v6433 = vpop.f32.mrf.mxu0
        %v6434 = vadd.f32 %v6385, %v6433
        %v6435 = vpop.f32.mrf.mxu0
        %v6436 = vadd.f32 %v6387, %v6435
        %6437 = vmatmul.bf16.gmra.mxu0 %v4094
        %v6438 = vpop.f32.mrf.mxu0
        %v6439 = vadd.f32 %v6390, %v6438
        %v6440 = vpop.f32.mrf.mxu0
        %v6441 = vadd.f32 %v6392, %v6440
        %6442 = vmatmul.bf16.gmra.mxu0 %v4102
        %v6443 = vpop.f32.mrf.mxu0
        %v6444 = vadd.f32 %v6395, %v6443
        %v6445 = vpop.f32.mrf.mxu0
        %v6446 = vadd.f32 %v6397, %v6445
        %6447 = vmatmul.bf16.gmra.mxu0 %v4110
        %v6448 = vpop.f32.mrf.mxu0
        %v6449 = vadd.f32 %v6400, %v6448
        %v6450 = vpop.f32.mrf.mxu0
        %v6451 = vadd.f32 %v6402, %v6450
        %6452 = vmatmul.bf16.gmra.mxu0 %v4118
        %v6453 = vpop.f32.mrf.mxu0
        %v6454 = vadd.f32 %v6405, %v6453
        %v6455 = vpop.f32.mrf.mxu0
        %v6456 = vadd.f32 %v6407, %v6455
        %6457 = vmatmul.bf16.gmra.mxu0 %v4126
        %v6458 = vpop.f32.mrf.mxu0
        %v6459 = vadd.f32 %v6410, %v6458
        %v6460 = vpop.f32.mrf.mxu0
        %v6461 = vadd.f32 %v6412, %v6460
        %6462 = vmatmul.bf16.gmra.mxu0 %v4134
        %v6463 = vpop.f32.mrf.mxu0
        %v6464 = vadd.f32 %v6415, %v6463
        %v6465 = vpop.f32.mrf.mxu0
        %v6466 = vadd.f32 %v6417, %v6465
        %6467 = vmatmul.bf16.gmra.mxu0 %v4142
        %v6468 = vpop.f32.mrf.mxu0
        %v6469 = vadd.f32 %v6420, %v6468
        %v6470 = vpop.f32.mrf.mxu0
        %v6471 = vadd.f32 %v6422, %v6470
        %6472 = vdwg.mxu0
        %6473 = vmatpush.bf16.msra.mxu0 %v5207
        %6474 = vmatpush.bf16.msra.mxu0 %v5203
        %6475 = vmatpush.bf16.msra.mxu0 %v5199
        %6476 = vmatpush.bf16.msra.mxu0 %v5195
        %6477 = vmatpush.bf16.msra.mxu0 %v5191
        %6478 = vmatpush.bf16.msra.mxu0 %v5187
        %6479 = vmatpush.bf16.msra.mxu0 %v5183
        %6480 = vmatpush.bf16.msra.mxu0 %v5179
        %6481 = vmatmul.bf16.gmra.mxu0 %v4079
        %v6482 = vpop.f32.mrf.mxu0
        %v6483 = vadd.f32 %v4403, %v6482
        %v6484 = vpop.f32.mrf.mxu0
        %v6485 = vadd.f32 %v4403, %v6484
        %6486 = vmatmul.bf16.gmra.mxu0 %v4087
        %v6487 = vpop.f32.mrf.mxu0
        %v6488 = vadd.f32 %v4403, %v6487
        %v6489 = vpop.f32.mrf.mxu0
        %v6490 = vadd.f32 %v4403, %v6489
        %6491 = vmatmul.bf16.gmra.mxu0 %v4095
        %v6492 = vpop.f32.mrf.mxu0
        %v6493 = vadd.f32 %v4403, %v6492
        %v6494 = vpop.f32.mrf.mxu0
        %v6495 = vadd.f32 %v4403, %v6494
        %6496 = vmatmul.bf16.gmra.mxu0 %v4103
        %v6497 = vpop.f32.mrf.mxu0
        %v6498 = vadd.f32 %v4403, %v6497
        %v6499 = vpop.f32.mrf.mxu0
        %v6500 = vadd.f32 %v4403, %v6499
        %6501 = vmatmul.bf16.gmra.mxu0 %v4111
        %v6502 = vpop.f32.mrf.mxu0
        %v6503 = vadd.f32 %v4403, %v6502
        %v6504 = vpop.f32.mrf.mxu0
        %v6505 = vadd.f32 %v4403, %v6504
        %6506 = vmatmul.bf16.gmra.mxu0 %v4119
        %v6507 = vpop.f32.mrf.mxu0
        %v6508 = vadd.f32 %v4403, %v6507
        %v6509 = vpop.f32.mrf.mxu0
        %v6510 = vadd.f32 %v4403, %v6509
        %6511 = vmatmul.bf16.gmra.mxu0 %v4127
        %v6512 = vpop.f32.mrf.mxu0
        %v6513 = vadd.f32 %v4403, %v6512
        %v6514 = vpop.f32.mrf.mxu0
        %v6515 = vadd.f32 %v4403, %v6514
        %6516 = vmatmul.bf16.gmra.mxu0 %v4135
        %v6517 = vpop.f32.mrf.mxu0
        %v6518 = vadd.f32 %v4403, %v6517
        %v6519 = vpop.f32.mrf.mxu0
        %v6520 = vadd.f32 %v4403, %v6519
        %6521 = vdwg.mxu0
        %6522 = vmatpush.bf16.msra.mxu0 %v5239
        %6523 = vmatpush.bf16.msra.mxu0 %v5235
        %6524 = vmatpush.bf16.msra.mxu0 %v5231
        %6525 = vmatpush.bf16.msra.mxu0 %v5227
        %6526 = vmatpush.bf16.msra.mxu0 %v5223
        %6527 = vmatpush.bf16.msra.mxu0 %v5219
        %6528 = vmatpush.bf16.msra.mxu0 %v5215
        %6529 = vmatpush.bf16.msra.mxu0 %v5211
        %6530 = vmatmul.bf16.gmra.mxu0 %v4080
        %v6531 = vpop.f32.mrf.mxu0
        %v6532 = vadd.f32 %v6483, %v6531
        %v6533 = vpop.f32.mrf.mxu0
        %v6534 = vadd.f32 %v6485, %v6533
        %6535 = vmatmul.bf16.gmra.mxu0 %v4088
        %v6536 = vpop.f32.mrf.mxu0
        %v6537 = vadd.f32 %v6488, %v6536
        %v6538 = vpop.f32.mrf.mxu0
        %v6539 = vadd.f32 %v6490, %v6538
        %6540 = vmatmul.bf16.gmra.mxu0 %v4096
        %v6541 = vpop.f32.mrf.mxu0
        %v6542 = vadd.f32 %v6493, %v6541
        %v6543 = vpop.f32.mrf.mxu0
        %v6544 = vadd.f32 %v6495, %v6543
        %6545 = vmatmul.bf16.gmra.mxu0 %v4104
        %v6546 = vpop.f32.mrf.mxu0
        %v6547 = vadd.f32 %v6498, %v6546
        %v6548 = vpop.f32.mrf.mxu0
        %v6549 = vadd.f32 %v6500, %v6548
        %6550 = vmatmul.bf16.gmra.mxu0 %v4112
        %v6551 = vpop.f32.mrf.mxu0
        %v6552 = vadd.f32 %v6503, %v6551
        %v6553 = vpop.f32.mrf.mxu0
        %v6554 = vadd.f32 %v6505, %v6553
        %6555 = vmatmul.bf16.gmra.mxu0 %v4120
        %v6556 = vpop.f32.mrf.mxu0
        %v6557 = vadd.f32 %v6508, %v6556
        %v6558 = vpop.f32.mrf.mxu0
        %v6559 = vadd.f32 %v6510, %v6558
        %6560 = vmatmul.bf16.gmra.mxu0 %v4128
        %v6561 = vpop.f32.mrf.mxu0
        %v6562 = vadd.f32 %v6513, %v6561
        %v6563 = vpop.f32.mrf.mxu0
        %v6564 = vadd.f32 %v6515, %v6563
        %6565 = vmatmul.bf16.gmra.mxu0 %v4136
        %v6566 = vpop.f32.mrf.mxu0
        %v6567 = vadd.f32 %v6518, %v6566
        %v6568 = vpop.f32.mrf.mxu0
        %v6569 = vadd.f32 %v6520, %v6568
        %6570 = vdwg.mxu0
        %6571 = vmatpush.bf16.msra.mxu0 %v5271
        %6572 = vmatpush.bf16.msra.mxu0 %v5267
        %6573 = vmatpush.bf16.msra.mxu0 %v5263
        %6574 = vmatpush.bf16.msra.mxu0 %v5259
        %6575 = vmatpush.bf16.msra.mxu0 %v5255
        %6576 = vmatpush.bf16.msra.mxu0 %v5251
        %6577 = vmatpush.bf16.msra.mxu0 %v5247
        %6578 = vmatpush.bf16.msra.mxu0 %v5243
        %6579 = vmatmul.bf16.gmra.mxu0 %v4081
        %v6580 = vpop.f32.mrf.mxu0
        %v6581 = vadd.f32 %v6532, %v6580
        %v6582 = vpop.f32.mrf.mxu0
        %v6583 = vadd.f32 %v6534, %v6582
        %6584 = vmatmul.bf16.gmra.mxu0 %v4089
        %v6585 = vpop.f32.mrf.mxu0
        %v6586 = vadd.f32 %v6537, %v6585
        %v6587 = vpop.f32.mrf.mxu0
        %v6588 = vadd.f32 %v6539, %v6587
        %6589 = vmatmul.bf16.gmra.mxu0 %v4097
        %v6590 = vpop.f32.mrf.mxu0
        %v6591 = vadd.f32 %v6542, %v6590
        %v6592 = vpop.f32.mrf.mxu0
        %v6593 = vadd.f32 %v6544, %v6592
        %6594 = vmatmul.bf16.gmra.mxu0 %v4105
        %v6595 = vpop.f32.mrf.mxu0
        %v6596 = vadd.f32 %v6547, %v6595
        %v6597 = vpop.f32.mrf.mxu0
        %v6598 = vadd.f32 %v6549, %v6597
        %6599 = vmatmul.bf16.gmra.mxu0 %v4113
        %v6600 = vpop.f32.mrf.mxu0
        %v6601 = vadd.f32 %v6552, %v6600
        %v6602 = vpop.f32.mrf.mxu0
        %v6603 = vadd.f32 %v6554, %v6602
        %6604 = vmatmul.bf16.gmra.mxu0 %v4121
        %v6605 = vpop.f32.mrf.mxu0
        %v6606 = vadd.f32 %v6557, %v6605
        %v6607 = vpop.f32.mrf.mxu0
        %v6608 = vadd.f32 %v6559, %v6607
        %6609 = vmatmul.bf16.gmra.mxu0 %v4129
        %v6610 = vpop.f32.mrf.mxu0
        %v6611 = vadd.f32 %v6562, %v6610
        %v6612 = vpop.f32.mrf.mxu0
        %v6613 = vadd.f32 %v6564, %v6612
        %6614 = vmatmul.bf16.gmra.mxu0 %v4137
        %v6615 = vpop.f32.mrf.mxu0
        %v6616 = vadd.f32 %v6567, %v6615
        %v6617 = vpop.f32.mrf.mxu0
        %v6618 = vadd.f32 %v6569, %v6617
        %6619 = vdwg.mxu0
        %6620 = vmatpush.bf16.msra.mxu0 %v5303
        %6621 = vmatpush.bf16.msra.mxu0 %v5299
        %6622 = vmatpush.bf16.msra.mxu0 %v5295
        %6623 = vmatpush.bf16.msra.mxu0 %v5291
        %6624 = vmatpush.bf16.msra.mxu0 %v5287
        %6625 = vmatpush.bf16.msra.mxu0 %v5283
        %6626 = vmatpush.bf16.msra.mxu0 %v5279
        %6627 = vmatpush.bf16.msra.mxu0 %v5275
        %6628 = vmatmul.bf16.gmra.mxu0 %v4082
        %v6629 = vpop.f32.mrf.mxu0
        %v6630 = vadd.f32 %v6581, %v6629
        %v6631 = vpop.f32.mrf.mxu0
        %v6632 = vadd.f32 %v6583, %v6631
        %6633 = vmatmul.bf16.gmra.mxu0 %v4090
        %v6634 = vpop.f32.mrf.mxu0
        %v6635 = vadd.f32 %v6586, %v6634
        %v6636 = vpop.f32.mrf.mxu0
        %v6637 = vadd.f32 %v6588, %v6636
        %6638 = vmatmul.bf16.gmra.mxu0 %v4098
        %v6639 = vpop.f32.mrf.mxu0
        %v6640 = vadd.f32 %v6591, %v6639
        %v6641 = vpop.f32.mrf.mxu0
        %v6642 = vadd.f32 %v6593, %v6641
        %6643 = vmatmul.bf16.gmra.mxu0 %v4106
        %v6644 = vpop.f32.mrf.mxu0
        %v6645 = vadd.f32 %v6596, %v6644
        %v6646 = vpop.f32.mrf.mxu0
        %v6647 = vadd.f32 %v6598, %v6646
        %6648 = vmatmul.bf16.gmra.mxu0 %v4114
        %v6649 = vpop.f32.mrf.mxu0
        %v6650 = vadd.f32 %v6601, %v6649
        %v6651 = vpop.f32.mrf.mxu0
        %v6652 = vadd.f32 %v6603, %v6651
        %6653 = vmatmul.bf16.gmra.mxu0 %v4122
        %v6654 = vpop.f32.mrf.mxu0
        %v6655 = vadd.f32 %v6606, %v6654
        %v6656 = vpop.f32.mrf.mxu0
        %v6657 = vadd.f32 %v6608, %v6656
        %6658 = vmatmul.bf16.gmra.mxu0 %v4130
        %v6659 = vpop.f32.mrf.mxu0
        %v6660 = vadd.f32 %v6611, %v6659
        %v6661 = vpop.f32.mrf.mxu0
        %v6662 = vadd.f32 %v6613, %v6661
        %6663 = vmatmul.bf16.gmra.mxu0 %v4138
        %v6664 = vpop.f32.mrf.mxu0
        %v6665 = vadd.f32 %v6616, %v6664
        %v6666 = vpop.f32.mrf.mxu0
        %v6667 = vadd.f32 %v6618, %v6666
        %6668 = vdwg.mxu0
        %6669 = vmatpush.bf16.msra.mxu0 %v5335
        %6670 = vmatpush.bf16.msra.mxu0 %v5331
        %6671 = vmatpush.bf16.msra.mxu0 %v5327
        %6672 = vmatpush.bf16.msra.mxu0 %v5323
        %6673 = vmatpush.bf16.msra.mxu0 %v5319
        %6674 = vmatpush.bf16.msra.mxu0 %v5315
        %6675 = vmatpush.bf16.msra.mxu0 %v5311
        %6676 = vmatpush.bf16.msra.mxu0 %v5307
        %6677 = vmatmul.bf16.gmra.mxu0 %v4083
        %v6678 = vpop.f32.mrf.mxu0
        %v6679 = vadd.f32 %v6630, %v6678
        %v6680 = vpop.f32.mrf.mxu0
        %v6681 = vadd.f32 %v6632, %v6680
        %6682 = vmatmul.bf16.gmra.mxu0 %v4091
        %v6683 = vpop.f32.mrf.mxu0
        %v6684 = vadd.f32 %v6635, %v6683
        %v6685 = vpop.f32.mrf.mxu0
        %v6686 = vadd.f32 %v6637, %v6685
        %6687 = vmatmul.bf16.gmra.mxu0 %v4099
        %v6688 = vpop.f32.mrf.mxu0
        %v6689 = vadd.f32 %v6640, %v6688
        %v6690 = vpop.f32.mrf.mxu0
        %v6691 = vadd.f32 %v6642, %v6690
        %6692 = vmatmul.bf16.gmra.mxu0 %v4107
        %v6693 = vpop.f32.mrf.mxu0
        %v6694 = vadd.f32 %v6645, %v6693
        %v6695 = vpop.f32.mrf.mxu0
        %v6696 = vadd.f32 %v6647, %v6695
        %6697 = vmatmul.bf16.gmra.mxu0 %v4115
        %v6698 = vpop.f32.mrf.mxu0
        %v6699 = vadd.f32 %v6650, %v6698
        %v6700 = vpop.f32.mrf.mxu0
        %v6701 = vadd.f32 %v6652, %v6700
        %6702 = vmatmul.bf16.gmra.mxu0 %v4123
        %v6703 = vpop.f32.mrf.mxu0
        %v6704 = vadd.f32 %v6655, %v6703
        %v6705 = vpop.f32.mrf.mxu0
        %v6706 = vadd.f32 %v6657, %v6705
        %6707 = vmatmul.bf16.gmra.mxu0 %v4131
        %v6708 = vpop.f32.mrf.mxu0
        %v6709 = vadd.f32 %v6660, %v6708
        %v6710 = vpop.f32.mrf.mxu0
        %v6711 = vadd.f32 %v6662, %v6710
        %6712 = vmatmul.bf16.gmra.mxu0 %v4139
        %v6713 = vpop.f32.mrf.mxu0
        %v6714 = vadd.f32 %v6665, %v6713
        %v6715 = vpop.f32.mrf.mxu0
        %v6716 = vadd.f32 %v6667, %v6715
        %6717 = vdwg.mxu0
        %6718 = vmatpush.bf16.msra.mxu0 %v5367
        %6719 = vmatpush.bf16.msra.mxu0 %v5363
        %6720 = vmatpush.bf16.msra.mxu0 %v5359
        %6721 = vmatpush.bf16.msra.mxu0 %v5355
        %6722 = vmatpush.bf16.msra.mxu0 %v5351
        %6723 = vmatpush.bf16.msra.mxu0 %v5347
        %6724 = vmatpush.bf16.msra.mxu0 %v5343
        %6725 = vmatpush.bf16.msra.mxu0 %v5339
        %6726 = vmatmul.bf16.gmra.mxu0 %v4084
        %v6727 = vpop.f32.mrf.mxu0
        %v6728 = vadd.f32 %v6679, %v6727
        %v6729 = vpop.f32.mrf.mxu0
        %v6730 = vadd.f32 %v6681, %v6729
        %6731 = vmatmul.bf16.gmra.mxu0 %v4092
        %v6732 = vpop.f32.mrf.mxu0
        %v6733 = vadd.f32 %v6684, %v6732
        %v6734 = vpop.f32.mrf.mxu0
        %v6735 = vadd.f32 %v6686, %v6734
        %6736 = vmatmul.bf16.gmra.mxu0 %v4100
        %v6737 = vpop.f32.mrf.mxu0
        %v6738 = vadd.f32 %v6689, %v6737
        %v6739 = vpop.f32.mrf.mxu0
        %v6740 = vadd.f32 %v6691, %v6739
        %6741 = vmatmul.bf16.gmra.mxu0 %v4108
        %v6742 = vpop.f32.mrf.mxu0
        %v6743 = vadd.f32 %v6694, %v6742
        %v6744 = vpop.f32.mrf.mxu0
        %v6745 = vadd.f32 %v6696, %v6744
        %6746 = vmatmul.bf16.gmra.mxu0 %v4116
        %v6747 = vpop.f32.mrf.mxu0
        %v6748 = vadd.f32 %v6699, %v6747
        %v6749 = vpop.f32.mrf.mxu0
        %v6750 = vadd.f32 %v6701, %v6749
        %6751 = vmatmul.bf16.gmra.mxu0 %v4124
        %v6752 = vpop.f32.mrf.mxu0
        %v6753 = vadd.f32 %v6704, %v6752
        %v6754 = vpop.f32.mrf.mxu0
        %v6755 = vadd.f32 %v6706, %v6754
        %6756 = vmatmul.bf16.gmra.mxu0 %v4132
        %v6757 = vpop.f32.mrf.mxu0
        %v6758 = vadd.f32 %v6709, %v6757
        %v6759 = vpop.f32.mrf.mxu0
        %v6760 = vadd.f32 %v6711, %v6759
        %6761 = vmatmul.bf16.gmra.mxu0 %v4140
        %v6762 = vpop.f32.mrf.mxu0
        %v6763 = vadd.f32 %v6714, %v6762
        %v6764 = vpop.f32.mrf.mxu0
        %v6765 = vadd.f32 %v6716, %v6764
        %6766 = vdwg.mxu0
        %6767 = vmatpush.bf16.msra.mxu0 %v5399
        %6768 = vmatpush.bf16.msra.mxu0 %v5395
        %6769 = vmatpush.bf16.msra.mxu0 %v5391
        %6770 = vmatpush.bf16.msra.mxu0 %v5387
        %6771 = vmatpush.bf16.msra.mxu0 %v5383
        %6772 = vmatpush.bf16.msra.mxu0 %v5379
        %6773 = vmatpush.bf16.msra.mxu0 %v5375
        %6774 = vmatpush.bf16.msra.mxu0 %v5371
        %6775 = vmatmul.bf16.gmra.mxu0 %v4085
        %v6776 = vpop.f32.mrf.mxu0
        %v6777 = vadd.f32 %v6728, %v6776
        %v6778 = vpop.f32.mrf.mxu0
        %v6779 = vadd.f32 %v6730, %v6778
        %6780 = vmatmul.bf16.gmra.mxu0 %v4093
        %v6781 = vpop.f32.mrf.mxu0
        %v6782 = vadd.f32 %v6733, %v6781
        %v6783 = vpop.f32.mrf.mxu0
        %v6784 = vadd.f32 %v6735, %v6783
        %6785 = vmatmul.bf16.gmra.mxu0 %v4101
        %v6786 = vpop.f32.mrf.mxu0
        %v6787 = vadd.f32 %v6738, %v6786
        %v6788 = vpop.f32.mrf.mxu0
        %v6789 = vadd.f32 %v6740, %v6788
        %6790 = vmatmul.bf16.gmra.mxu0 %v4109
        %v6791 = vpop.f32.mrf.mxu0
        %v6792 = vadd.f32 %v6743, %v6791
        %v6793 = vpop.f32.mrf.mxu0
        %v6794 = vadd.f32 %v6745, %v6793
        %6795 = vmatmul.bf16.gmra.mxu0 %v4117
        %v6796 = vpop.f32.mrf.mxu0
        %v6797 = vadd.f32 %v6748, %v6796
        %v6798 = vpop.f32.mrf.mxu0
        %v6799 = vadd.f32 %v6750, %v6798
        %6800 = vmatmul.bf16.gmra.mxu0 %v4125
        %v6801 = vpop.f32.mrf.mxu0
        %v6802 = vadd.f32 %v6753, %v6801
        %v6803 = vpop.f32.mrf.mxu0
        %v6804 = vadd.f32 %v6755, %v6803
        %6805 = vmatmul.bf16.gmra.mxu0 %v4133
        %v6806 = vpop.f32.mrf.mxu0
        %v6807 = vadd.f32 %v6758, %v6806
        %v6808 = vpop.f32.mrf.mxu0
        %v6809 = vadd.f32 %v6760, %v6808
        %6810 = vmatmul.bf16.gmra.mxu0 %v4141
        %v6811 = vpop.f32.mrf.mxu0
        %v6812 = vadd.f32 %v6763, %v6811
        %v6813 = vpop.f32.mrf.mxu0
        %v6814 = vadd.f32 %v6765, %v6813
        %6815 = vdwg.mxu0
        %6816 = vmatpush.bf16.msra.mxu0 %v5431
        %6817 = vmatpush.bf16.msra.mxu0 %v5427
        %6818 = vmatpush.bf16.msra.mxu0 %v5423
        %6819 = vmatpush.bf16.msra.mxu0 %v5419
        %6820 = vmatpush.bf16.msra.mxu0 %v5415
        %6821 = vmatpush.bf16.msra.mxu0 %v5411
        %6822 = vmatpush.bf16.msra.mxu0 %v5407
        %6823 = vmatpush.bf16.msra.mxu0 %v5403
        %6824 = vmatmul.bf16.gmra.mxu0 %v4086
        %v6825 = vpop.f32.mrf.mxu0
        %v6826 = vadd.f32 %v6777, %v6825
        %v6827 = vpop.f32.mrf.mxu0
        %v6828 = vadd.f32 %v6779, %v6827
        %6829 = vmatmul.bf16.gmra.mxu0 %v4094
        %v6830 = vpop.f32.mrf.mxu0
        %v6831 = vadd.f32 %v6782, %v6830
        %v6832 = vpop.f32.mrf.mxu0
        %v6833 = vadd.f32 %v6784, %v6832
        %6834 = vmatmul.bf16.gmra.mxu0 %v4102
        %v6835 = vpop.f32.mrf.mxu0
        %v6836 = vadd.f32 %v6787, %v6835
        %v6837 = vpop.f32.mrf.mxu0
        %v6838 = vadd.f32 %v6789, %v6837
        %6839 = vmatmul.bf16.gmra.mxu0 %v4110
        %v6840 = vpop.f32.mrf.mxu0
        %v6841 = vadd.f32 %v6792, %v6840
        %v6842 = vpop.f32.mrf.mxu0
        %v6843 = vadd.f32 %v6794, %v6842
        %6844 = vmatmul.bf16.gmra.mxu0 %v4118
        %v6845 = vpop.f32.mrf.mxu0
        %v6846 = vadd.f32 %v6797, %v6845
        %v6847 = vpop.f32.mrf.mxu0
        %v6848 = vadd.f32 %v6799, %v6847
        %6849 = vmatmul.bf16.gmra.mxu0 %v4126
        %v6850 = vpop.f32.mrf.mxu0
        %v6851 = vadd.f32 %v6802, %v6850
        %v6852 = vpop.f32.mrf.mxu0
        %v6853 = vadd.f32 %v6804, %v6852
        %6854 = vmatmul.bf16.gmra.mxu0 %v4134
        %v6855 = vpop.f32.mrf.mxu0
        %v6856 = vadd.f32 %v6807, %v6855
        %v6857 = vpop.f32.mrf.mxu0
        %v6858 = vadd.f32 %v6809, %v6857
        %6859 = vmatmul.bf16.gmra.mxu0 %v4142
        %v6860 = vpop.f32.mrf.mxu0
        %v6861 = vadd.f32 %v6812, %v6860
        %v6862 = vpop.f32.mrf.mxu0
        %v6863 = vadd.f32 %v6814, %v6862
        %6864 = vdwg.mxu0
        %6865 = vmatpush.bf16.msra.mxu0 %v5208
        %6866 = vmatpush.bf16.msra.mxu0 %v5204
        %6867 = vmatpush.bf16.msra.mxu0 %v5200
        %6868 = vmatpush.bf16.msra.mxu0 %v5196
        %6869 = vmatpush.bf16.msra.mxu0 %v5192
        %6870 = vmatpush.bf16.msra.mxu0 %v5188
        %6871 = vmatpush.bf16.msra.mxu0 %v5184
        %6872 = vmatpush.bf16.msra.mxu0 %v5180
        %6873 = vmatmul.bf16.gmra.mxu0 %v4079
        %v6874 = vpop.f32.mrf.mxu0
        %v6875 = vadd.f32 %v4404, %v6874
        %v6876 = vpop.f32.mrf.mxu0
        %v6877 = vadd.f32 %v4404, %v6876
        %6878 = vmatmul.bf16.gmra.mxu0 %v4087
        %v6879 = vpop.f32.mrf.mxu0
        %v6880 = vadd.f32 %v4404, %v6879
        %v6881 = vpop.f32.mrf.mxu0
        %v6882 = vadd.f32 %v4404, %v6881
        %6883 = vmatmul.bf16.gmra.mxu0 %v4095
        %v6884 = vpop.f32.mrf.mxu0
        %v6885 = vadd.f32 %v4404, %v6884
        %v6886 = vpop.f32.mrf.mxu0
        %v6887 = vadd.f32 %v4404, %v6886
        %6888 = vmatmul.bf16.gmra.mxu0 %v4103
        %v6889 = vpop.f32.mrf.mxu0
        %v6890 = vadd.f32 %v4404, %v6889
        %v6891 = vpop.f32.mrf.mxu0
        %v6892 = vadd.f32 %v4404, %v6891
        %6893 = vmatmul.bf16.gmra.mxu0 %v4111
        %v6894 = vpop.f32.mrf.mxu0
        %v6895 = vadd.f32 %v4404, %v6894
        %v6896 = vpop.f32.mrf.mxu0
        %v6897 = vadd.f32 %v4404, %v6896
        %6898 = vmatmul.bf16.gmra.mxu0 %v4119
        %v6899 = vpop.f32.mrf.mxu0
        %v6900 = vadd.f32 %v4404, %v6899
        %v6901 = vpop.f32.mrf.mxu0
        %v6902 = vadd.f32 %v4404, %v6901
        %6903 = vmatmul.bf16.gmra.mxu0 %v4127
        %v6904 = vpop.f32.mrf.mxu0
        %v6905 = vadd.f32 %v4404, %v6904
        %v6906 = vpop.f32.mrf.mxu0
        %v6907 = vadd.f32 %v4404, %v6906
        %6908 = vmatmul.bf16.gmra.mxu0 %v4135
        %v6909 = vpop.f32.mrf.mxu0
        %v6910 = vadd.f32 %v4404, %v6909
        %v6911 = vpop.f32.mrf.mxu0
        %v6912 = vadd.f32 %v4404, %v6911
        %6913 = vdwg.mxu0
        %6914 = vmatpush.bf16.msra.mxu0 %v5240
        %6915 = vmatpush.bf16.msra.mxu0 %v5236
        %6916 = vmatpush.bf16.msra.mxu0 %v5232
        %6917 = vmatpush.bf16.msra.mxu0 %v5228
        %6918 = vmatpush.bf16.msra.mxu0 %v5224
        %6919 = vmatpush.bf16.msra.mxu0 %v5220
        %6920 = vmatpush.bf16.msra.mxu0 %v5216
        %6921 = vmatpush.bf16.msra.mxu0 %v5212
        %6922 = vmatmul.bf16.gmra.mxu0 %v4080
        %v6923 = vpop.f32.mrf.mxu0
        %v6924 = vadd.f32 %v6875, %v6923
        %v6925 = vpop.f32.mrf.mxu0
        %v6926 = vadd.f32 %v6877, %v6925
        %6927 = vmatmul.bf16.gmra.mxu0 %v4088
        %v6928 = vpop.f32.mrf.mxu0
        %v6929 = vadd.f32 %v6880, %v6928
        %v6930 = vpop.f32.mrf.mxu0
        %v6931 = vadd.f32 %v6882, %v6930
        %6932 = vmatmul.bf16.gmra.mxu0 %v4096
        %v6933 = vpop.f32.mrf.mxu0
        %v6934 = vadd.f32 %v6885, %v6933
        %v6935 = vpop.f32.mrf.mxu0
        %v6936 = vadd.f32 %v6887, %v6935
        %6937 = vmatmul.bf16.gmra.mxu0 %v4104
        %v6938 = vpop.f32.mrf.mxu0
        %v6939 = vadd.f32 %v6890, %v6938
        %v6940 = vpop.f32.mrf.mxu0
        %v6941 = vadd.f32 %v6892, %v6940
        %6942 = vmatmul.bf16.gmra.mxu0 %v4112
        %v6943 = vpop.f32.mrf.mxu0
        %v6944 = vadd.f32 %v6895, %v6943
        %v6945 = vpop.f32.mrf.mxu0
        %v6946 = vadd.f32 %v6897, %v6945
        %6947 = vmatmul.bf16.gmra.mxu0 %v4120
        %v6948 = vpop.f32.mrf.mxu0
        %v6949 = vadd.f32 %v6900, %v6948
        %v6950 = vpop.f32.mrf.mxu0
        %v6951 = vadd.f32 %v6902, %v6950
        %6952 = vmatmul.bf16.gmra.mxu0 %v4128
        %v6953 = vpop.f32.mrf.mxu0
        %v6954 = vadd.f32 %v6905, %v6953
        %v6955 = vpop.f32.mrf.mxu0
        %v6956 = vadd.f32 %v6907, %v6955
        %6957 = vmatmul.bf16.gmra.mxu0 %v4136
        %v6958 = vpop.f32.mrf.mxu0
        %v6959 = vadd.f32 %v6910, %v6958
        %v6960 = vpop.f32.mrf.mxu0
        %v6961 = vadd.f32 %v6912, %v6960
        %6962 = vdwg.mxu0
        %6963 = vmatpush.bf16.msra.mxu0 %v5272
        %6964 = vmatpush.bf16.msra.mxu0 %v5268
        %6965 = vmatpush.bf16.msra.mxu0 %v5264
        %6966 = vmatpush.bf16.msra.mxu0 %v5260
        %6967 = vmatpush.bf16.msra.mxu0 %v5256
        %6968 = vmatpush.bf16.msra.mxu0 %v5252
        %6969 = vmatpush.bf16.msra.mxu0 %v5248
        %6970 = vmatpush.bf16.msra.mxu0 %v5244
        %6971 = vmatmul.bf16.gmra.mxu0 %v4081
        %v6972 = vpop.f32.mrf.mxu0
        %v6973 = vadd.f32 %v6924, %v6972
        %v6974 = vpop.f32.mrf.mxu0
        %v6975 = vadd.f32 %v6926, %v6974
        %6976 = vmatmul.bf16.gmra.mxu0 %v4089
        %v6977 = vpop.f32.mrf.mxu0
        %v6978 = vadd.f32 %v6929, %v6977
        %v6979 = vpop.f32.mrf.mxu0
        %v6980 = vadd.f32 %v6931, %v6979
        %6981 = vmatmul.bf16.gmra.mxu0 %v4097
        %v6982 = vpop.f32.mrf.mxu0
        %v6983 = vadd.f32 %v6934, %v6982
        %v6984 = vpop.f32.mrf.mxu0
        %v6985 = vadd.f32 %v6936, %v6984
        %6986 = vmatmul.bf16.gmra.mxu0 %v4105
        %v6987 = vpop.f32.mrf.mxu0
        %v6988 = vadd.f32 %v6939, %v6987
        %v6989 = vpop.f32.mrf.mxu0
        %v6990 = vadd.f32 %v6941, %v6989
        %6991 = vmatmul.bf16.gmra.mxu0 %v4113
        %v6992 = vpop.f32.mrf.mxu0
        %v6993 = vadd.f32 %v6944, %v6992
        %v6994 = vpop.f32.mrf.mxu0
        %v6995 = vadd.f32 %v6946, %v6994
        %6996 = vmatmul.bf16.gmra.mxu0 %v4121
        %v6997 = vpop.f32.mrf.mxu0
        %v6998 = vadd.f32 %v6949, %v6997
        %v6999 = vpop.f32.mrf.mxu0
        %v7000 = vadd.f32 %v6951, %v6999
        %7001 = vmatmul.bf16.gmra.mxu0 %v4129
        %v7002 = vpop.f32.mrf.mxu0
        %v7003 = vadd.f32 %v6954, %v7002
        %v7004 = vpop.f32.mrf.mxu0
        %v7005 = vadd.f32 %v6956, %v7004
        %7006 = vmatmul.bf16.gmra.mxu0 %v4137
        %v7007 = vpop.f32.mrf.mxu0
        %v7008 = vadd.f32 %v6959, %v7007
        %v7009 = vpop.f32.mrf.mxu0
        %v7010 = vadd.f32 %v6961, %v7009
        %7011 = vdwg.mxu0
        %7012 = vmatpush.bf16.msra.mxu0 %v5304
        %7013 = vmatpush.bf16.msra.mxu0 %v5300
        %7014 = vmatpush.bf16.msra.mxu0 %v5296
        %7015 = vmatpush.bf16.msra.mxu0 %v5292
        %7016 = vmatpush.bf16.msra.mxu0 %v5288
        %7017 = vmatpush.bf16.msra.mxu0 %v5284
        %7018 = vmatpush.bf16.msra.mxu0 %v5280
        %7019 = vmatpush.bf16.msra.mxu0 %v5276
        %7020 = vmatmul.bf16.gmra.mxu0 %v4082
        %v7021 = vpop.f32.mrf.mxu0
        %v7022 = vadd.f32 %v6973, %v7021
        %v7023 = vpop.f32.mrf.mxu0
        %v7024 = vadd.f32 %v6975, %v7023
        %7025 = vmatmul.bf16.gmra.mxu0 %v4090
        %v7026 = vpop.f32.mrf.mxu0
        %v7027 = vadd.f32 %v6978, %v7026
        %v7028 = vpop.f32.mrf.mxu0
        %v7029 = vadd.f32 %v6980, %v7028
        %7030 = vmatmul.bf16.gmra.mxu0 %v4098
        %v7031 = vpop.f32.mrf.mxu0
        %v7032 = vadd.f32 %v6983, %v7031
        %v7033 = vpop.f32.mrf.mxu0
        %v7034 = vadd.f32 %v6985, %v7033
        %7035 = vmatmul.bf16.gmra.mxu0 %v4106
        %v7036 = vpop.f32.mrf.mxu0
        %v7037 = vadd.f32 %v6988, %v7036
        %v7038 = vpop.f32.mrf.mxu0
        %v7039 = vadd.f32 %v6990, %v7038
        %7040 = vmatmul.bf16.gmra.mxu0 %v4114
        %v7041 = vpop.f32.mrf.mxu0
        %v7042 = vadd.f32 %v6993, %v7041
        %v7043 = vpop.f32.mrf.mxu0
        %v7044 = vadd.f32 %v6995, %v7043
        %7045 = vmatmul.bf16.gmra.mxu0 %v4122
        %v7046 = vpop.f32.mrf.mxu0
        %v7047 = vadd.f32 %v6998, %v7046
        %v7048 = vpop.f32.mrf.mxu0
        %v7049 = vadd.f32 %v7000, %v7048
        %7050 = vmatmul.bf16.gmra.mxu0 %v4130
        %v7051 = vpop.f32.mrf.mxu0
        %v7052 = vadd.f32 %v7003, %v7051
        %v7053 = vpop.f32.mrf.mxu0
        %v7054 = vadd.f32 %v7005, %v7053
        %7055 = vmatmul.bf16.gmra.mxu0 %v4138
        %v7056 = vpop.f32.mrf.mxu0
        %v7057 = vadd.f32 %v7008, %v7056
        %v7058 = vpop.f32.mrf.mxu0
        %v7059 = vadd.f32 %v7010, %v7058
        %7060 = vdwg.mxu0
        %7061 = vmatpush.bf16.msra.mxu0 %v5336
        %7062 = vmatpush.bf16.msra.mxu0 %v5332
        %7063 = vmatpush.bf16.msra.mxu0 %v5328
        %7064 = vmatpush.bf16.msra.mxu0 %v5324
        %7065 = vmatpush.bf16.msra.mxu0 %v5320
        %7066 = vmatpush.bf16.msra.mxu0 %v5316
        %7067 = vmatpush.bf16.msra.mxu0 %v5312
        %7068 = vmatpush.bf16.msra.mxu0 %v5308
        %7069 = vmatmul.bf16.gmra.mxu0 %v4083
        %v7070 = vpop.f32.mrf.mxu0
        %v7071 = vadd.f32 %v7022, %v7070
        %v7072 = vpop.f32.mrf.mxu0
        %v7073 = vadd.f32 %v7024, %v7072
        %7074 = vmatmul.bf16.gmra.mxu0 %v4091
        %v7075 = vpop.f32.mrf.mxu0
        %v7076 = vadd.f32 %v7027, %v7075
        %v7077 = vpop.f32.mrf.mxu0
        %v7078 = vadd.f32 %v7029, %v7077
        %7079 = vmatmul.bf16.gmra.mxu0 %v4099
        %v7080 = vpop.f32.mrf.mxu0
        %v7081 = vadd.f32 %v7032, %v7080
        %v7082 = vpop.f32.mrf.mxu0
        %v7083 = vadd.f32 %v7034, %v7082
        %7084 = vmatmul.bf16.gmra.mxu0 %v4107
        %v7085 = vpop.f32.mrf.mxu0
        %v7086 = vadd.f32 %v7037, %v7085
        %v7087 = vpop.f32.mrf.mxu0
        %v7088 = vadd.f32 %v7039, %v7087
        %7089 = vmatmul.bf16.gmra.mxu0 %v4115
        %v7090 = vpop.f32.mrf.mxu0
        %v7091 = vadd.f32 %v7042, %v7090
        %v7092 = vpop.f32.mrf.mxu0
        %v7093 = vadd.f32 %v7044, %v7092
        %7094 = vmatmul.bf16.gmra.mxu0 %v4123
        %v7095 = vpop.f32.mrf.mxu0
        %v7096 = vadd.f32 %v7047, %v7095
        %v7097 = vpop.f32.mrf.mxu0
        %v7098 = vadd.f32 %v7049, %v7097
        %7099 = vmatmul.bf16.gmra.mxu0 %v4131
        %v7100 = vpop.f32.mrf.mxu0
        %v7101 = vadd.f32 %v7052, %v7100
        %v7102 = vpop.f32.mrf.mxu0
        %v7103 = vadd.f32 %v7054, %v7102
        %7104 = vmatmul.bf16.gmra.mxu0 %v4139
        %v7105 = vpop.f32.mrf.mxu0
        %v7106 = vadd.f32 %v7057, %v7105
        %v7107 = vpop.f32.mrf.mxu0
        %v7108 = vadd.f32 %v7059, %v7107
        %7109 = vdwg.mxu0
        %7110 = vmatpush.bf16.msra.mxu0 %v5368
        %7111 = vmatpush.bf16.msra.mxu0 %v5364
        %7112 = vmatpush.bf16.msra.mxu0 %v5360
        %7113 = vmatpush.bf16.msra.mxu0 %v5356
        %7114 = vmatpush.bf16.msra.mxu0 %v5352
        %7115 = vmatpush.bf16.msra.mxu0 %v5348
        %7116 = vmatpush.bf16.msra.mxu0 %v5344
        %7117 = vmatpush.bf16.msra.mxu0 %v5340
        %7118 = vmatmul.bf16.gmra.mxu0 %v4084
        %v7119 = vpop.f32.mrf.mxu0
        %v7120 = vadd.f32 %v7071, %v7119
        %v7121 = vpop.f32.mrf.mxu0
        %v7122 = vadd.f32 %v7073, %v7121
        %7123 = vmatmul.bf16.gmra.mxu0 %v4092
        %v7124 = vpop.f32.mrf.mxu0
        %v7125 = vadd.f32 %v7076, %v7124
        %v7126 = vpop.f32.mrf.mxu0
        %v7127 = vadd.f32 %v7078, %v7126
        %7128 = vmatmul.bf16.gmra.mxu0 %v4100
        %v7129 = vpop.f32.mrf.mxu0
        %v7130 = vadd.f32 %v7081, %v7129
        %v7131 = vpop.f32.mrf.mxu0
        %v7132 = vadd.f32 %v7083, %v7131
        %7133 = vmatmul.bf16.gmra.mxu0 %v4108
        %v7134 = vpop.f32.mrf.mxu0
        %v7135 = vadd.f32 %v7086, %v7134
        %v7136 = vpop.f32.mrf.mxu0
        %v7137 = vadd.f32 %v7088, %v7136
        %7138 = vmatmul.bf16.gmra.mxu0 %v4116
        %v7139 = vpop.f32.mrf.mxu0
        %v7140 = vadd.f32 %v7091, %v7139
        %v7141 = vpop.f32.mrf.mxu0
        %v7142 = vadd.f32 %v7093, %v7141
        %7143 = vmatmul.bf16.gmra.mxu0 %v4124
        %v7144 = vpop.f32.mrf.mxu0
        %v7145 = vadd.f32 %v7096, %v7144
        %v7146 = vpop.f32.mrf.mxu0
        %v7147 = vadd.f32 %v7098, %v7146
        %7148 = vmatmul.bf16.gmra.mxu0 %v4132
        %v7149 = vpop.f32.mrf.mxu0
        %v7150 = vadd.f32 %v7101, %v7149
        %v7151 = vpop.f32.mrf.mxu0
        %v7152 = vadd.f32 %v7103, %v7151
        %7153 = vmatmul.bf16.gmra.mxu0 %v4140
        %v7154 = vpop.f32.mrf.mxu0
        %v7155 = vadd.f32 %v7106, %v7154
        %v7156 = vpop.f32.mrf.mxu0
        %v7157 = vadd.f32 %v7108, %v7156
        %7158 = vdwg.mxu0
        %7159 = vmatpush.bf16.msra.mxu0 %v5400
        %7160 = vmatpush.bf16.msra.mxu0 %v5396
        %7161 = vmatpush.bf16.msra.mxu0 %v5392
        %7162 = vmatpush.bf16.msra.mxu0 %v5388
        %7163 = vmatpush.bf16.msra.mxu0 %v5384
        %7164 = vmatpush.bf16.msra.mxu0 %v5380
        %7165 = vmatpush.bf16.msra.mxu0 %v5376
        %7166 = vmatpush.bf16.msra.mxu0 %v5372
        %7167 = vmatmul.bf16.gmra.mxu0 %v4085
        %v7168 = vpop.f32.mrf.mxu0
        %v7169 = vadd.f32 %v7120, %v7168
        %v7170 = vpop.f32.mrf.mxu0
        %v7171 = vadd.f32 %v7122, %v7170
        %7172 = vmatmul.bf16.gmra.mxu0 %v4093
        %v7173 = vpop.f32.mrf.mxu0
        %v7174 = vadd.f32 %v7125, %v7173
        %v7175 = vpop.f32.mrf.mxu0
        %v7176 = vadd.f32 %v7127, %v7175
        %7177 = vmatmul.bf16.gmra.mxu0 %v4101
        %v7178 = vpop.f32.mrf.mxu0
        %v7179 = vadd.f32 %v7130, %v7178
        %v7180 = vpop.f32.mrf.mxu0
        %v7181 = vadd.f32 %v7132, %v7180
        %7182 = vmatmul.bf16.gmra.mxu0 %v4109
        %v7183 = vpop.f32.mrf.mxu0
        %v7184 = vadd.f32 %v7135, %v7183
        %v7185 = vpop.f32.mrf.mxu0
        %v7186 = vadd.f32 %v7137, %v7185
        %7187 = vmatmul.bf16.gmra.mxu0 %v4117
        %v7188 = vpop.f32.mrf.mxu0
        %v7189 = vadd.f32 %v7140, %v7188
        %v7190 = vpop.f32.mrf.mxu0
        %v7191 = vadd.f32 %v7142, %v7190
        %7192 = vmatmul.bf16.gmra.mxu0 %v4125
        %v7193 = vpop.f32.mrf.mxu0
        %v7194 = vadd.f32 %v7145, %v7193
        %v7195 = vpop.f32.mrf.mxu0
        %v7196 = vadd.f32 %v7147, %v7195
        %7197 = vmatmul.bf16.gmra.mxu0 %v4133
        %v7198 = vpop.f32.mrf.mxu0
        %v7199 = vadd.f32 %v7150, %v7198
        %v7200 = vpop.f32.mrf.mxu0
        %v7201 = vadd.f32 %v7152, %v7200
        %7202 = vmatmul.bf16.gmra.mxu0 %v4141
        %v7203 = vpop.f32.mrf.mxu0
        %v7204 = vadd.f32 %v7155, %v7203
        %v7205 = vpop.f32.mrf.mxu0
        %v7206 = vadd.f32 %v7157, %v7205
        %7207 = vdwg.mxu0
        %7208 = vmatpush.bf16.msra.mxu0 %v5432
        %7209 = vmatpush.bf16.msra.mxu0 %v5428
        %7210 = vmatpush.bf16.msra.mxu0 %v5424
        %7211 = vmatpush.bf16.msra.mxu0 %v5420
        %7212 = vmatpush.bf16.msra.mxu0 %v5416
        %7213 = vmatpush.bf16.msra.mxu0 %v5412
        %7214 = vmatpush.bf16.msra.mxu0 %v5408
        %7215 = vmatpush.bf16.msra.mxu0 %v5404
        %7216 = vmatmul.bf16.gmra.mxu0 %v4086
        %v7217 = vpop.f32.mrf.mxu0
        %v7218 = vadd.f32 %v7169, %v7217
        %v7219 = vpop.f32.mrf.mxu0
        %v7220 = vadd.f32 %v7171, %v7219
        %7221 = vmatmul.bf16.gmra.mxu0 %v4094
        %v7222 = vpop.f32.mrf.mxu0
        %v7223 = vadd.f32 %v7174, %v7222
        %v7224 = vpop.f32.mrf.mxu0
        %v7225 = vadd.f32 %v7176, %v7224
        %7226 = vmatmul.bf16.gmra.mxu0 %v4102
        %v7227 = vpop.f32.mrf.mxu0
        %v7228 = vadd.f32 %v7179, %v7227
        %v7229 = vpop.f32.mrf.mxu0
        %v7230 = vadd.f32 %v7181, %v7229
        %7231 = vmatmul.bf16.gmra.mxu0 %v4110
        %v7232 = vpop.f32.mrf.mxu0
        %v7233 = vadd.f32 %v7184, %v7232
        %v7234 = vpop.f32.mrf.mxu0
        %v7235 = vadd.f32 %v7186, %v7234
        %7236 = vmatmul.bf16.gmra.mxu0 %v4118
        %v7237 = vpop.f32.mrf.mxu0
        %v7238 = vadd.f32 %v7189, %v7237
        %v7239 = vpop.f32.mrf.mxu0
        %v7240 = vadd.f32 %v7191, %v7239
        %7241 = vmatmul.bf16.gmra.mxu0 %v4126
        %v7242 = vpop.f32.mrf.mxu0
        %v7243 = vadd.f32 %v7194, %v7242
        %v7244 = vpop.f32.mrf.mxu0
        %v7245 = vadd.f32 %v7196, %v7244
        %7246 = vmatmul.bf16.gmra.mxu0 %v4134
        %v7247 = vpop.f32.mrf.mxu0
        %v7248 = vadd.f32 %v7199, %v7247
        %v7249 = vpop.f32.mrf.mxu0
        %v7250 = vadd.f32 %v7201, %v7249
        %7251 = vmatmul.bf16.gmra.mxu0 %v4142
        %v7252 = vpop.f32.mrf.mxu0
        %v7253 = vadd.f32 %v7204, %v7252
        %v7254 = vpop.f32.mrf.mxu0
        %v7255 = vadd.f32 %v7206, %v7254
        %7256 = vdwg.mxu0
        %v7257 = vmax.f32 %v6042, 0.0
        %v7258 = vmax.f32 %v6434, 0.0
        %v7259 = vmax.f32 %v6826, 0.0
        %v7260 = vmax.f32 %v7218, 0.0
        %v7261 = vmax.f32 %v6044, 0.0
        %v7262 = vmax.f32 %v6436, 0.0
        %v7263 = vmax.f32 %v6828, 0.0
        %v7264 = vmax.f32 %v7220, 0.0
        %v7265 = vmax.f32 %v6047, 0.0
        %v7266 = vmax.f32 %v6439, 0.0
        %v7267 = vmax.f32 %v6831, 0.0
        %v7268 = vmax.f32 %v7223, 0.0
        %v7269 = vmax.f32 %v6049, 0.0
        %v7270 = vmax.f32 %v6441, 0.0
        %v7271 = vmax.f32 %v6833, 0.0
        %v7272 = vmax.f32 %v7225, 0.0
        %v7273 = vmax.f32 %v6052, 0.0
        %v7274 = vmax.f32 %v6444, 0.0
        %v7275 = vmax.f32 %v6836, 0.0
        %v7276 = vmax.f32 %v7228, 0.0
        %v7277 = vmax.f32 %v6054, 0.0
        %v7278 = vmax.f32 %v6446, 0.0
        %v7279 = vmax.f32 %v6838, 0.0
        %v7280 = vmax.f32 %v7230, 0.0
        %v7281 = vmax.f32 %v6057, 0.0
        %v7282 = vmax.f32 %v6449, 0.0
        %v7283 = vmax.f32 %v6841, 0.0
        %v7284 = vmax.f32 %v7233, 0.0
        %v7285 = vmax.f32 %v6059, 0.0
        %v7286 = vmax.f32 %v6451, 0.0
        %v7287 = vmax.f32 %v6843, 0.0
        %v7288 = vmax.f32 %v7235, 0.0
        %v7289 = vmax.f32 %v6062, 0.0
        %v7290 = vmax.f32 %v6454, 0.0
        %v7291 = vmax.f32 %v6846, 0.0
        %v7292 = vmax.f32 %v7238, 0.0
        %v7293 = vmax.f32 %v6064, 0.0
        %v7294 = vmax.f32 %v6456, 0.0
        %v7295 = vmax.f32 %v6848, 0.0
        %v7296 = vmax.f32 %v7240, 0.0
        %v7297 = vmax.f32 %v6067, 0.0
        %v7298 = vmax.f32 %v6459, 0.0
        %v7299 = vmax.f32 %v6851, 0.0
        %v7300 = vmax.f32 %v7243, 0.0
        %v7301 = vmax.f32 %v6069, 0.0
        %v7302 = vmax.f32 %v6461, 0.0
        %v7303 = vmax.f32 %v6853, 0.0
        %v7304 = vmax.f32 %v7245, 0.0
        %v7305 = vmax.f32 %v6072, 0.0
        %v7306 = vmax.f32 %v6464, 0.0
        %v7307 = vmax.f32 %v6856, 0.0
        %v7308 = vmax.f32 %v7248, 0.0
        %v7309 = vmax.f32 %v6074, 0.0
        %v7310 = vmax.f32 %v6466, 0.0
        %v7311 = vmax.f32 %v6858, 0.0
        %v7312 = vmax.f32 %v7250, 0.0
        %v7313 = vmax.f32 %v6077, 0.0
        %v7314 = vmax.f32 %v6469, 0.0
        %v7315 = vmax.f32 %v6861, 0.0
        %v7316 = vmax.f32 %v7253, 0.0
        %v7317 = vmax.f32 %v6079, 0.0
        %v7318 = vmax.f32 %v6471, 0.0
        %v7319 = vmax.f32 %v6863, 0.0
        %v7320 = vmax.f32 %v7255, 0.0
        %v7321 = vpack.c.bf16 %v7261, %v7257
        %v7322 = vpack.c.bf16 %v7262, %v7258
        %v7323 = vpack.c.bf16 %v7263, %v7259
        %v7324 = vpack.c.bf16 %v7264, %v7260
        %v7325 = vpack.c.bf16 %v7269, %v7265
        %v7326 = vpack.c.bf16 %v7270, %v7266
        %v7327 = vpack.c.bf16 %v7271, %v7267
        %v7328 = vpack.c.bf16 %v7272, %v7268
        %v7329 = vpack.c.bf16 %v7277, %v7273
        %v7330 = vpack.c.bf16 %v7278, %v7274
        %v7331 = vpack.c.bf16 %v7279, %v7275
        %v7332 = vpack.c.bf16 %v7280, %v7276
        %v7333 = vpack.c.bf16 %v7285, %v7281
        %v7334 = vpack.c.bf16 %v7286, %v7282
        %v7335 = vpack.c.bf16 %v7287, %v7283
        %v7336 = vpack.c.bf16 %v7288, %v7284
        %v7337 = vpack.c.bf16 %v7293, %v7289
        %v7338 = vpack.c.bf16 %v7294, %v7290
        %v7339 = vpack.c.bf16 %v7295, %v7291
        %v7340 = vpack.c.bf16 %v7296, %v7292
        %v7341 = vpack.c.bf16 %v7301, %v7297
        %v7342 = vpack.c.bf16 %v7302, %v7298
        %v7343 = vpack.c.bf16 %v7303, %v7299
        %v7344 = vpack.c.bf16 %v7304, %v7300
        %v7345 = vpack.c.bf16 %v7309, %v7305
        %v7346 = vpack.c.bf16 %v7310, %v7306
        %v7347 = vpack.c.bf16 %v7311, %v7307
        %v7348 = vpack.c.bf16 %v7312, %v7308
        %v7349 = vpack.c.bf16 %v7317, %v7313
        %v7350 = vpack.c.bf16 %v7318, %v7314
        %v7351 = vpack.c.bf16 %v7319, %v7315
        %v7352 = vpack.c.bf16 %v7320, %v7316
        %v7353 = vld [vmem:[%s7] sm:$0xf]
        %v7354 = vld [vmem:[%s7 + $0x4] sm:$0xf]
        %v7355 = vld [vmem:[%s7 + $0x8] sm:$0xf]
        %v7356 = vld [vmem:[%s7 + $0xc] sm:$0xf]
        %v7357 = vld [vmem:[%s7 + $0x10] sm:$0xf]
        %v7358 = vld [vmem:[%s7 + $0x14] sm:$0xf]
        %v7359 = vld [vmem:[%s7 + $0x18] sm:$0xf]
        %v7360 = vld [vmem:[%s7 + $0x1c] sm:$0xf]
        %v7361 = vld [vmem:[%s7 + $0x20] sm:$0xf]
        %v7362 = vld [vmem:[%s7 + $0x24] sm:$0xf]
        %v7363 = vld [vmem:[%s7 + $0x28] sm:$0xf]
        %v7364 = vld [vmem:[%s7 + $0x2c] sm:$0xf]
        %v7365 = vld [vmem:[%s7 + $0x30] sm:$0xf]
        %v7366 = vld [vmem:[%s7 + $0x34] sm:$0xf]
        %v7367 = vld [vmem:[%s7 + $0x38] sm:$0xf]
        %v7368 = vld [vmem:[%s7 + $0x3c] sm:$0xf]
        %v7369 = vld [vmem:[%s7 + $0x40] sm:$0xf]
        %v7370 = vld [vmem:[%s7 + $0x44] sm:$0xf]
        %v7371 = vld [vmem:[%s7 + $0x48] sm:$0xf]
        %v7372 = vld [vmem:[%s7 + $0x4c] sm:$0xf]
        %v7373 = vld [vmem:[%s7 + $0x50] sm:$0xf]
        %v7374 = vld [vmem:[%s7 + $0x54] sm:$0xf]
        %v7375 = vld [vmem:[%s7 + $0x58] sm:$0xf]
        %v7376 = vld [vmem:[%s7 + $0x5c] sm:$0xf]
        %v7377 = vld [vmem:[%s7 + $0x60] sm:$0xf]
        %v7378 = vld [vmem:[%s7 + $0x64] sm:$0xf]
        %v7379 = vld [vmem:[%s7 + $0x68] sm:$0xf]
        %v7380 = vld [vmem:[%s7 + $0x6c] sm:$0xf]
        %v7381 = vld [vmem:[%s7 + $0x70] sm:$0xf]
        %v7382 = vld [vmem:[%s7 + $0x74] sm:$0xf]
        %v7383 = vld [vmem:[%s7 + $0x78] sm:$0xf]
        %v7384 = vld [vmem:[%s7 + $0x7c] sm:$0xf]
        %v7385 = vld [vmem:[%s7 + $0x80] sm:$0xf]
        %v7386 = vld [vmem:[%s7 + $0x84] sm:$0xf]
        %v7387 = vld [vmem:[%s7 + $0x88] sm:$0xf]
        %v7388 = vld [vmem:[%s7 + $0x8c] sm:$0xf]
        %v7389 = vld [vmem:[%s7 + $0x90] sm:$0xf]
        %v7390 = vld [vmem:[%s7 + $0x94] sm:$0xf]
        %v7391 = vld [vmem:[%s7 + $0x98] sm:$0xf]
        %v7392 = vld [vmem:[%s7 + $0x9c] sm:$0xf]
        %v7393 = vld [vmem:[%s7 + $0xa0] sm:$0xf]
        %v7394 = vld [vmem:[%s7 + $0xa4] sm:$0xf]
        %v7395 = vld [vmem:[%s7 + $0xa8] sm:$0xf]
        %v7396 = vld [vmem:[%s7 + $0xac] sm:$0xf]
        %v7397 = vld [vmem:[%s7 + $0xb0] sm:$0xf]
        %v7398 = vld [vmem:[%s7 + $0xb4] sm:$0xf]
        %v7399 = vld [vmem:[%s7 + $0xb8] sm:$0xf]
        %v7400 = vld [vmem:[%s7 + $0xbc] sm:$0xf]
        %v7401 = vld [vmem:[%s7 + $0xc0] sm:$0xf]
        %v7402 = vld [vmem:[%s7 + $0xc4] sm:$0xf]
        %v7403 = vld [vmem:[%s7 + $0xc8] sm:$0xf]
        %v7404 = vld [vmem:[%s7 + $0xcc] sm:$0xf]
        %v7405 = vld [vmem:[%s7 + $0xd0] sm:$0xf]
        %v7406 = vld [vmem:[%s7 + $0xd4] sm:$0xf]
        %v7407 = vld [vmem:[%s7 + $0xd8] sm:$0xf]
        %v7408 = vld [vmem:[%s7 + $0xdc] sm:$0xf]
        %v7409 = vld [vmem:[%s7 + $0xe0] sm:$0xf]
        %v7410 = vld [vmem:[%s7 + $0xe4] sm:$0xf]
        %v7411 = vld [vmem:[%s7 + $0xe8] sm:$0xf]
        %v7412 = vld [vmem:[%s7 + $0xec] sm:$0xf]
        %v7413 = vld [vmem:[%s7 + $0xf0] sm:$0xf]
        %v7414 = vld [vmem:[%s7 + $0xf4] sm:$0xf]
        %v7415 = vld [vmem:[%s7 + $0xf8] sm:$0xf]
        %v7416 = vld [vmem:[%s7 + $0xfc] sm:$0xf]
        %v7417 = vld [vmem:[%s8] sm:$0x1]
        %v7419 = vperm.slane %v7417, 0
        %v7485 = vunpack.c.l.b16 %v7353
        %v7486 = vunpack.c.l.b16 %v7354
        %v7487 = vunpack.c.l.b16 %v7355
        %v7488 = vunpack.c.l.b16 %v7356
        %v7489 = vunpack.c.l.b16 %v7357
        %v7490 = vunpack.c.l.b16 %v7358
        %v7491 = vunpack.c.l.b16 %v7359
        %v7492 = vunpack.c.l.b16 %v7360
        %v7493 = vunpack.c.l.b16 %v7361
        %v7494 = vunpack.c.l.b16 %v7362
        %v7495 = vunpack.c.l.b16 %v7363
        %v7496 = vunpack.c.l.b16 %v7364
        %v7497 = vunpack.c.l.b16 %v7365
        %v7498 = vunpack.c.l.b16 %v7366
        %v7499 = vunpack.c.l.b16 %v7367
        %v7500 = vunpack.c.l.b16 %v7368
        %v7501 = vunpack.c.l.b16 %v7369
        %v7502 = vunpack.c.l.b16 %v7370
        %v7503 = vunpack.c.l.b16 %v7371
        %v7504 = vunpack.c.l.b16 %v7372
        %v7505 = vunpack.c.l.b16 %v7373
        %v7506 = vunpack.c.l.b16 %v7374
        %v7507 = vunpack.c.l.b16 %v7375
        %v7508 = vunpack.c.l.b16 %v7376
        %v7509 = vunpack.c.l.b16 %v7377
        %v7510 = vunpack.c.l.b16 %v7378
        %v7511 = vunpack.c.l.b16 %v7379
        %v7512 = vunpack.c.l.b16 %v7380
        %v7513 = vunpack.c.l.b16 %v7381
        %v7514 = vunpack.c.l.b16 %v7382
        %v7515 = vunpack.c.l.b16 %v7383
        %v7516 = vunpack.c.l.b16 %v7384
        %v7517 = vunpack.c.l.b16 %v7385
        %v7518 = vunpack.c.l.b16 %v7386
        %v7519 = vunpack.c.l.b16 %v7387
        %v7520 = vunpack.c.l.b16 %v7388
        %v7521 = vunpack.c.l.b16 %v7389
        %v7522 = vunpack.c.l.b16 %v7390
        %v7523 = vunpack.c.l.b16 %v7391
        %v7524 = vunpack.c.l.b16 %v7392
        %v7525 = vunpack.c.l.b16 %v7393
        %v7526 = vunpack.c.l.b16 %v7394
        %v7527 = vunpack.c.l.b16 %v7395
        %v7528 = vunpack.c.l.b16 %v7396
        %v7529 = vunpack.c.l.b16 %v7397
        %v7530 = vunpack.c.l.b16 %v7398
        %v7531 = vunpack.c.l.b16 %v7399
        %v7532 = vunpack.c.l.b16 %v7400
        %v7533 = vunpack.c.l.b16 %v7401
        %v7534 = vunpack.c.l.b16 %v7402
        %v7535 = vunpack.c.l.b16 %v7403
        %v7536 = vunpack.c.l.b16 %v7404
        %v7537 = vunpack.c.l.b16 %v7405
        %v7538 = vunpack.c.l.b16 %v7406
        %v7539 = vunpack.c.l.b16 %v7407
        %v7540 = vunpack.c.l.b16 %v7408
        %v7541 = vunpack.c.l.b16 %v7409
        %v7542 = vunpack.c.l.b16 %v7410
        %v7543 = vunpack.c.l.b16 %v7411
        %v7544 = vunpack.c.l.b16 %v7412
        %v7545 = vunpack.c.l.b16 %v7413
        %v7546 = vunpack.c.l.b16 %v7414
        %v7547 = vunpack.c.l.b16 %v7415
        %v7548 = vunpack.c.l.b16 %v7416
        %v7549 = vpack.c.b16 %v7486, %v7485
        %v7550 = vpack.c.b16 %v7488, %v7487
        %v7551 = vpack.c.b16 %v7490, %v7489
        %v7552 = vpack.c.b16 %v7492, %v7491
        %v7553 = vpack.c.b16 %v7494, %v7493
        %v7554 = vpack.c.b16 %v7496, %v7495
        %v7555 = vpack.c.b16 %v7498, %v7497
        %v7556 = vpack.c.b16 %v7500, %v7499
        %v7557 = vpack.c.b16 %v7502, %v7501
        %v7558 = vpack.c.b16 %v7504, %v7503
        %v7559 = vpack.c.b16 %v7506, %v7505
        %v7560 = vpack.c.b16 %v7508, %v7507
        %v7561 = vpack.c.b16 %v7510, %v7509
        %v7562 = vpack.c.b16 %v7512, %v7511
        %v7563 = vpack.c.b16 %v7514, %v7513
        %v7564 = vpack.c.b16 %v7516, %v7515
        %v7565 = vpack.c.b16 %v7518, %v7517
        %v7566 = vpack.c.b16 %v7520, %v7519
        %v7567 = vpack.c.b16 %v7522, %v7521
        %v7568 = vpack.c.b16 %v7524, %v7523
        %v7569 = vpack.c.b16 %v7526, %v7525
        %v7570 = vpack.c.b16 %v7528, %v7527
        %v7571 = vpack.c.b16 %v7530, %v7529
        %v7572 = vpack.c.b16 %v7532, %v7531
        %v7573 = vpack.c.b16 %v7534, %v7533
        %v7574 = vpack.c.b16 %v7536, %v7535
        %v7575 = vpack.c.b16 %v7538, %v7537
        %v7576 = vpack.c.b16 %v7540, %v7539
        %v7577 = vpack.c.b16 %v7542, %v7541
        %v7578 = vpack.c.b16 %v7544, %v7543
        %v7579 = vpack.c.b16 %v7546, %v7545
        %v7580 = vpack.c.b16 %v7548, %v7547
        %7613 = vmatpush.bf16.msra.mxu0 %v7556
        %7614 = vmatpush.bf16.msra.mxu0 %v7555
        %7615 = vmatpush.bf16.msra.mxu0 %v7554
        %7616 = vmatpush.bf16.msra.mxu0 %v7553
        %7617 = vmatpush.bf16.msra.mxu0 %v7552
        %7618 = vmatpush.bf16.msra.mxu0 %v7551
        %7619 = vmatpush.bf16.msra.mxu0 %v7550
        %7620 = vmatpush.bf16.msra.mxu0 %v7549
        %7621 = vmatmul.bf16.gmra.mxu0 %v7321
        %v7622 = vpop.f32.mrf.mxu0
        %v7623 = vadd.f32 %v7419, %v7622
        %v7624 = vpop.f32.mrf.mxu0
        %v7625 = vadd.f32 %v7419, %v7624
        %7626 = vmatmul.bf16.gmra.mxu0 %v7325
        %v7627 = vpop.f32.mrf.mxu0
        %v7628 = vadd.f32 %v7419, %v7627
        %v7629 = vpop.f32.mrf.mxu0
        %v7630 = vadd.f32 %v7419, %v7629
        %7631 = vmatmul.bf16.gmra.mxu0 %v7329
        %v7632 = vpop.f32.mrf.mxu0
        %v7633 = vadd.f32 %v7419, %v7632
        %v7634 = vpop.f32.mrf.mxu0
        %v7635 = vadd.f32 %v7419, %v7634
        %7636 = vmatmul.bf16.gmra.mxu0 %v7333
        %v7637 = vpop.f32.mrf.mxu0
        %v7638 = vadd.f32 %v7419, %v7637
        %v7639 = vpop.f32.mrf.mxu0
        %v7640 = vadd.f32 %v7419, %v7639
        %7641 = vmatmul.bf16.gmra.mxu0 %v7337
        %v7642 = vpop.f32.mrf.mxu0
        %v7643 = vadd.f32 %v7419, %v7642
        %v7644 = vpop.f32.mrf.mxu0
        %v7645 = vadd.f32 %v7419, %v7644
        %7646 = vmatmul.bf16.gmra.mxu0 %v7341
        %v7647 = vpop.f32.mrf.mxu0
        %v7648 = vadd.f32 %v7419, %v7647
        %v7649 = vpop.f32.mrf.mxu0
        %v7650 = vadd.f32 %v7419, %v7649
        %7651 = vmatmul.bf16.gmra.mxu0 %v7345
        %v7652 = vpop.f32.mrf.mxu0
        %v7653 = vadd.f32 %v7419, %v7652
        %v7654 = vpop.f32.mrf.mxu0
        %v7655 = vadd.f32 %v7419, %v7654
        %7656 = vmatmul.bf16.gmra.mxu0 %v7349
        %v7657 = vpop.f32.mrf.mxu0
        %v7658 = vadd.f32 %v7419, %v7657
        %v7659 = vpop.f32.mrf.mxu0
        %v7660 = vadd.f32 %v7419, %v7659
        %7661 = vdwg.mxu0
        %7662 = vmatpush.bf16.msra.mxu0 %v7564
        %7663 = vmatpush.bf16.msra.mxu0 %v7563
        %7664 = vmatpush.bf16.msra.mxu0 %v7562
        %7665 = vmatpush.bf16.msra.mxu0 %v7561
        %7666 = vmatpush.bf16.msra.mxu0 %v7560
        %7667 = vmatpush.bf16.msra.mxu0 %v7559
        %7668 = vmatpush.bf16.msra.mxu0 %v7558
        %7669 = vmatpush.bf16.msra.mxu0 %v7557
        %7670 = vmatmul.bf16.gmra.mxu0 %v7322
        %v7671 = vpop.f32.mrf.mxu0
        %v7672 = vadd.f32 %v7623, %v7671
        %v7673 = vpop.f32.mrf.mxu0
        %v7674 = vadd.f32 %v7625, %v7673
        %7675 = vmatmul.bf16.gmra.mxu0 %v7326
        %v7676 = vpop.f32.mrf.mxu0
        %v7677 = vadd.f32 %v7628, %v7676
        %v7678 = vpop.f32.mrf.mxu0
        %v7679 = vadd.f32 %v7630, %v7678
        %7680 = vmatmul.bf16.gmra.mxu0 %v7330
        %v7681 = vpop.f32.mrf.mxu0
        %v7682 = vadd.f32 %v7633, %v7681
        %v7683 = vpop.f32.mrf.mxu0
        %v7684 = vadd.f32 %v7635, %v7683
        %7685 = vmatmul.bf16.gmra.mxu0 %v7334
        %v7686 = vpop.f32.mrf.mxu0
        %v7687 = vadd.f32 %v7638, %v7686
        %v7688 = vpop.f32.mrf.mxu0
        %v7689 = vadd.f32 %v7640, %v7688
        %7690 = vmatmul.bf16.gmra.mxu0 %v7338
        %v7691 = vpop.f32.mrf.mxu0
        %v7692 = vadd.f32 %v7643, %v7691
        %v7693 = vpop.f32.mrf.mxu0
        %v7694 = vadd.f32 %v7645, %v7693
        %7695 = vmatmul.bf16.gmra.mxu0 %v7342
        %v7696 = vpop.f32.mrf.mxu0
        %v7697 = vadd.f32 %v7648, %v7696
        %v7698 = vpop.f32.mrf.mxu0
        %v7699 = vadd.f32 %v7650, %v7698
        %7700 = vmatmul.bf16.gmra.mxu0 %v7346
        %v7701 = vpop.f32.mrf.mxu0
        %v7702 = vadd.f32 %v7653, %v7701
        %v7703 = vpop.f32.mrf.mxu0
        %v7704 = vadd.f32 %v7655, %v7703
        %7705 = vmatmul.bf16.gmra.mxu0 %v7350
        %v7706 = vpop.f32.mrf.mxu0
        %v7707 = vadd.f32 %v7658, %v7706
        %v7708 = vpop.f32.mrf.mxu0
        %v7709 = vadd.f32 %v7660, %v7708
        %7710 = vdwg.mxu0
        %7711 = vmatpush.bf16.msra.mxu0 %v7572
        %7712 = vmatpush.bf16.msra.mxu0 %v7571
        %7713 = vmatpush.bf16.msra.mxu0 %v7570
        %7714 = vmatpush.bf16.msra.mxu0 %v7569
        %7715 = vmatpush.bf16.msra.mxu0 %v7568
        %7716 = vmatpush.bf16.msra.mxu0 %v7567
        %7717 = vmatpush.bf16.msra.mxu0 %v7566
        %7718 = vmatpush.bf16.msra.mxu0 %v7565
        %7719 = vmatmul.bf16.gmra.mxu0 %v7323
        %v7720 = vpop.f32.mrf.mxu0
        %v7721 = vadd.f32 %v7672, %v7720
        %v7722 = vpop.f32.mrf.mxu0
        %v7723 = vadd.f32 %v7674, %v7722
        %7724 = vmatmul.bf16.gmra.mxu0 %v7327
        %v7725 = vpop.f32.mrf.mxu0
        %v7726 = vadd.f32 %v7677, %v7725
        %v7727 = vpop.f32.mrf.mxu0
        %v7728 = vadd.f32 %v7679, %v7727
        %7729 = vmatmul.bf16.gmra.mxu0 %v7331
        %v7730 = vpop.f32.mrf.mxu0
        %v7731 = vadd.f32 %v7682, %v7730
        %v7732 = vpop.f32.mrf.mxu0
        %v7733 = vadd.f32 %v7684, %v7732
        %7734 = vmatmul.bf16.gmra.mxu0 %v7335
        %v7735 = vpop.f32.mrf.mxu0
        %v7736 = vadd.f32 %v7687, %v7735
        %v7737 = vpop.f32.mrf.mxu0
        %v7738 = vadd.f32 %v7689, %v7737
        %7739 = vmatmul.bf16.gmra.mxu0 %v7339
        %v7740 = vpop.f32.mrf.mxu0
        %v7741 = vadd.f32 %v7692, %v7740
        %v7742 = vpop.f32.mrf.mxu0
        %v7743 = vadd.f32 %v7694, %v7742
        %7744 = vmatmul.bf16.gmra.mxu0 %v7343
        %v7745 = vpop.f32.mrf.mxu0
        %v7746 = vadd.f32 %v7697, %v7745
        %v7747 = vpop.f32.mrf.mxu0
        %v7748 = vadd.f32 %v7699, %v7747
        %7749 = vmatmul.bf16.gmra.mxu0 %v7347
        %v7750 = vpop.f32.mrf.mxu0
        %v7751 = vadd.f32 %v7702, %v7750
        %v7752 = vpop.f32.mrf.mxu0
        %v7753 = vadd.f32 %v7704, %v7752
        %7754 = vmatmul.bf16.gmra.mxu0 %v7351
        %v7755 = vpop.f32.mrf.mxu0
        %v7756 = vadd.f32 %v7707, %v7755
        %v7757 = vpop.f32.mrf.mxu0
        %v7758 = vadd.f32 %v7709, %v7757
        %7759 = vdwg.mxu0
        %7760 = vmatpush.bf16.msra.mxu0 %v7580
        %7761 = vmatpush.bf16.msra.mxu0 %v7579
        %7762 = vmatpush.bf16.msra.mxu0 %v7578
        %7763 = vmatpush.bf16.msra.mxu0 %v7577
        %7764 = vmatpush.bf16.msra.mxu0 %v7576
        %7765 = vmatpush.bf16.msra.mxu0 %v7575
        %7766 = vmatpush.bf16.msra.mxu0 %v7574
        %7767 = vmatpush.bf16.msra.mxu0 %v7573
        %7768 = vmatmul.bf16.gmra.mxu0 %v7324
        %v7769 = vpop.f32.mrf.mxu0
        %v7770 = vadd.f32 %v7721, %v7769
        %v7771 = vpop.f32.mrf.mxu0
        %v7772 = vadd.f32 %v7723, %v7771
        %7773 = vmatmul.bf16.gmra.mxu0 %v7328
        %v7774 = vpop.f32.mrf.mxu0
        %v7775 = vadd.f32 %v7726, %v7774
        %v7776 = vpop.f32.mrf.mxu0
        %v7777 = vadd.f32 %v7728, %v7776
        %7778 = vmatmul.bf16.gmra.mxu0 %v7332
        %v7779 = vpop.f32.mrf.mxu0
        %v7780 = vadd.f32 %v7731, %v7779
        %v7781 = vpop.f32.mrf.mxu0
        %v7782 = vadd.f32 %v7733, %v7781
        %7783 = vmatmul.bf16.gmra.mxu0 %v7336
        %v7784 = vpop.f32.mrf.mxu0
        %v7785 = vadd.f32 %v7736, %v7784
        %v7786 = vpop.f32.mrf.mxu0
        %v7787 = vadd.f32 %v7738, %v7786
        %7788 = vmatmul.bf16.gmra.mxu0 %v7340
        %v7789 = vpop.f32.mrf.mxu0
        %v7790 = vadd.f32 %v7741, %v7789
        %v7791 = vpop.f32.mrf.mxu0
        %v7792 = vadd.f32 %v7743, %v7791
        %7793 = vmatmul.bf16.gmra.mxu0 %v7344
        %v7794 = vpop.f32.mrf.mxu0
        %v7795 = vadd.f32 %v7746, %v7794
        %v7796 = vpop.f32.mrf.mxu0
        %v7797 = vadd.f32 %v7748, %v7796
        %7798 = vmatmul.bf16.gmra.mxu0 %v7348
        %v7799 = vpop.f32.mrf.mxu0
        %v7800 = vadd.f32 %v7751, %v7799
        %v7801 = vpop.f32.mrf.mxu0
        %v7802 = vadd.f32 %v7753, %v7801
        %7803 = vmatmul.bf16.gmra.mxu0 %v7352
        %v7804 = vpop.f32.mrf.mxu0
        %v7805 = vadd.f32 %v7756, %v7804
        %v7806 = vpop.f32.mrf.mxu0
        %v7807 = vadd.f32 %v7758, %v7806
        %7808 = vdwg.mxu0
        %7809 = vst [vmem:[%s389] sm:$0xff] %v7770
        %7810 = vst [vmem:[%s389 + $0x8] sm:$0xff] %v7772
        %7811 = vst [vmem:[%s389 + $0x10] sm:$0xff] %v7775
        %7812 = vst [vmem:[%s389 + $0x18] sm:$0xff] %v7777
        %7813 = vst [vmem:[%s389 + $0x20] sm:$0xff] %v7780
        %7814 = vst [vmem:[%s389 + $0x28] sm:$0xff] %v7782
        %7815 = vst [vmem:[%s389 + $0x30] sm:$0xff] %v7785
        %7816 = vst [vmem:[%s389 + $0x38] sm:$0xff] %v7787
        %7817 = vst [vmem:[%s389 + $0x40] sm:$0xff] %v7790
        %7818 = vst [vmem:[%s389 + $0x48] sm:$0xff] %v7792
        %7819 = vst [vmem:[%s389 + $0x50] sm:$0xff] %v7795
        %7820 = vst [vmem:[%s389 + $0x58] sm:$0xff] %v7797
        %7821 = vst [vmem:[%s389 + $0x60] sm:$0xff] %v7800
        %7822 = vst [vmem:[%s389 + $0x68] sm:$0xff] %v7802
        %7823 = vst [vmem:[%s389 + $0x70] sm:$0xff] %v7805
        %7824 = vst [vmem:[%s389 + $0x78] sm:$0xff] %v7807
        %s7825 = sand.u32 %s228, 1
        %s7826 = scalar_lea.sflag [#allocation4], %s7825
        %s7827 = sand.u32 %s228, 1
        %s7828 = smul.addr %s7827, 128
        %s7829 = scalar_lea.vmem [#allocation10], %s7828
        // Predicated region
        $region73: #{tpu_custom_call.1} parent=55 // pred_check
          %p7830 = pneg %p238
        $region74: #{tpu_custom_call.1} parent=55 // pred_check_branch
          %7832 = sbr.rel (%p7830) target = $region76
        $region75: #{tpu_custom_call.1} parent=55 // pred_region
          %s7833 = smul.u32 16, %s26
          %7835 = vsyncadd %s7826, 0
          %s7836 = smul.addr %s7833, 8
          %s7837 = scalar_lea.hbm %s9, %s7836
          %s7838 = sshll.u32 %s7829, 4
          %s7839 = int_to_ptr.vmem [resolvable:$true] %s7838
          %s7840 = sshll.u32 %s7837, 4
          %s7841 = int_to_ptr.hbm [resolvable:$true] %s7840
          %7846 = dma.vmem_to_hbm [thread:$0]  %s7839, 2048, %s7841, %s7826, 128, 128, 8
        $region76: #{tpu_custom_call.1} parent=55 // pred_fallthru
          _
      $region56: #{tpu_custom_call.1} parent=5 // pred_fallthru
        _
      %p7847 = scmp.le.s32.totalorder 2, %s21
      // Predicated region
      $region77: #{tpu_custom_call.1} parent=5 // pred_check
        %p7848 = pneg %p7847
      $region78: #{tpu_custom_call.1} parent=5 // pred_check_branch
        %7850 = sbr.rel (%p7848) target = $region80
      $region79: #{tpu_custom_call.1} parent=5 // pred_region
        %s7851 = ssub.s32 %s21, 2
        // Predicated region
        $region81: #{tpu_custom_call.1} parent=79 // pred_check
          %p7852 = pneg %p244
        $region82: #{tpu_custom_call.1} parent=79 // pred_check_branch
          %7854 = sbr.rel (%p7852) target = $region84
        $region83: #{tpu_custom_call.1} parent=79 // pred_region
          %s7855 = sand.u32 %s229, 1
          %s7856 = scalar_lea.sflag [#allocation4], %s7855
          %s7857 = sand.u32 %s229, 1
          %s7858 = smul.addr %s7857, 128
          %s7859 = scalar_lea.vmem [#allocation10], %s7858
          %7861 = dma.done %s7856, 2048
        $region84: #{tpu_custom_call.1} parent=79 // pred_fallthru
          _
      $region80: #{tpu_custom_call.1} parent=5 // pred_fallthru
        _
    $region6: #{tpu_custom_call.1} parent=1 // loop_footer
      %s25 = sadd.s32 1, %s21
    $region7: #{tpu_custom_call.1} parent=1 // loop_footer_branch
      %20 = sbr.rel target = $region3
    $region8: #{tpu_custom_call.1} parent=1 // loop_exit
      _
    %7862 = vsyncpa [#allocation3], 1
    %s7863 = scalar_lea.sflag [#allocation3], 1
    %7864 = vsyncpa %s7863, 1
    %7865 = vsyncpa [#allocation6], 1
    %7866 = vsyncpa [#allocation9], 1
    %7867 = vsyncpa [#allocation4], 1
    %s7868 = scalar_lea.sflag [#allocation4], 1
    %7869 = vsyncpa %s7868, 1

</llo_original>
